<compile_context>
chip_gen: v7x
topology: tpu7x:2x2x1
jax: 0.10.0
libtpu: 0.0.40
codegen_flags: <defaults>
</compile_context>

<pallas_src>
from math import pi, cos, sin
from functools import partial

import jax
import jax.numpy as jnp
from jax import lax
from jax.experimental import pallas as pl
from jax.experimental.pallas import tpu as pltpu


# ---------------------------------------------------------------------------
# Shared per-step math (used by both kernel variants)
# ---------------------------------------------------------------------------
def _v_step(x, w1, b1, w2, sigma, c_a, c_b):
    """One fused VSampler step on a (tile_b, C, tile_t) block.

    net(x, sigma) is a sigma-conditioned 1x1-conv MLP (synthetic stand-in for
    the arbitrary UNet1d).  Fused update (exact trig identity):
        x_pred     = a_i*x - b_i*v ; noise_pred = b_i*x + a_i*v
        x_next     = a_{i+1}*x_pred + b_{i+1}*noise_pred
                   = cos(θ_{i+1}-θ_i)*x + sin(θ_{i+1}-θ_i)*v
    """
    b_col = sigma * b1                                            # (H, 1) tiny
    h = jnp.tanh(
        jnp.einsum('hc,bct->bht', w1, x,
                   preferred_element_type=jnp.float32) + b_col)   # (b, H, t)
    v_pred = jnp.einsum('ch,bht->bct', w2, h,
                        preferred_element_type=jnp.float32)       # (b, C, t)
    return c_a * x + c_b * v_pred


# ---------------------------------------------------------------------------
# Kernel bodies
# ---------------------------------------------------------------------------
def _vsampler_unrolled_kernel(x_ref, w1_ref, b1_ref, w2_ref, o_ref,
                              *, coeffs, sigmas):
    """Fully unrolled sampling loop; schedule constants are immediates."""
    x = x_ref[...].astype(jnp.float32)          # (tile_b, C, tile_t)
    w1 = w1_ref[...].astype(jnp.float32)        # (H, C)
    b1 = b1_ref[...].astype(jnp.float32)        # (H, 1)
    w2 = w2_ref[...].astype(jnp.float32)        # (C, H)
    for sigma, (c_a, c_b) in zip(sigmas, coeffs):
        x = _v_step(x, w1, b1, w2, sigma, c_a, c_b)
    o_ref[...] = x.astype(o_ref.dtype)


def _vsampler_loop_kernel(ca_ref, cb_ref, sig_ref,       # SMEM schedule tables
                          x_ref, w1_ref, b1_ref, w2_ref, o_ref,
                          *, num_steps, unroll):
    """fori_loop variant for long schedules (caps code size / compile time)."""
    x0 = x_ref[...].astype(jnp.float32)
    w1 = w1_ref[...].astype(jnp.float32)
    b1 = b1_ref[...].astype(jnp.float32)
    w2 = w2_ref[...].astype(jnp.float32)

    def body(i, x):
        return _v_step(x, w1, b1, w2, sig_ref[i], ca_ref[i], cb_ref[i])

    x = lax.fori_loop(0, num_steps, body, x0, unroll=unroll)
    o_ref[...] = x.astype(o_ref.dtype)


# ---------------------------------------------------------------------------
# Generation-aware configuration helpers
# ---------------------------------------------------------------------------
def _num_tensorcores():
    """Best-effort TensorCore-per-chip count; defaults to 1 (v5e/v6e)."""
    try:
        info = pltpu.get_tpu_info()
    except Exception:
        return 1
    for name in ("tensor_cores_per_chip", "num_tensorcores",
                 "num_cores", "core_count"):
        v = getattr(info, name, None)
        if isinstance(v, int) and 0 < v <= 8:
            return v
    return 1


def _per_block_cap_bytes():
    """Cap for a single (tile_b, C, tile_t) block.

    Budget = scoped-VMEM default / 8: double-buffered input + output blocks
    (4 copies) plus resident weights must fit comfortably under 16 MiB (v5e)
    or 32 MiB (v6e/v7x scoped default; v7x physical ceiling is 64 MiB).
    """
    scoped = 16 << 20                      # conservative v5e scoped default
    try:
        phys = int(getattr(pltpu.get_tpu_info(), "vmem_capacity_bytes", 0))
        if phys and phys <= (64 << 20):    # v7x: 64 MiB physical, 32 MiB scoped
            scoped = 32 << 20
    except Exception:
        pass
    return scoped // 8


def _choose_tiles(B, C, T, itemsize, num_cores):
    """Pick (tile_b, tile_t): split batch only across real TensorCores, and
    shrink the (lane-dense, multiple-of-128) T tile only if VMEM demands it."""
    tile_b, tile_t = B, T
    if num_cores > 1 and B % num_cores == 0:
        tile_b = B // num_cores
    cap = _per_block_cap_bytes()
    while tile_b * C * tile_t * itemsize > cap and tile_t % 256 == 0:
        tile_t //= 2
    return tile_b, tile_t


# ---------------------------------------------------------------------------
# Wrapper
# ---------------------------------------------------------------------------
def vsampler_pallas(x_noisy, w1, b1, w2, num_steps, *, max_unroll_steps=32):
    B, C, T = x_noisy.shape
    H = w1.shape[0]

    # LinearSchedule(1.0 -> 0.0) over num_steps + 1 points; fused per-step
    # coefficients cA = cos(dθ), cB = sin(dθ) with θ = sigma * pi/2.
    sig_f = [1.0 - i / num_steps for i in range(num_steps + 1)]
    d_ang = [(sig_f[i + 1] - sig_f[i]) * (pi / 2.0) for i in range(num_steps)]
    ca_f = [cos(d) for d in d_ang]
    cb_f = [sin(d) for d in d_ang]

    unrolled = num_steps <= max_unroll_steps
    num_cores = _num_tensorcores()
    tile_b, tile_t = _choose_tiles(B, C, T, x_noisy.dtype.itemsize, num_cores)
    multi_core = tile_b != B

    def run(tile_b, tile_t, semantics):
        grid = (B // tile_b, T // tile_t)
        x_spec = pl.BlockSpec((tile_b, C, tile_t), lambda i, j: (i, 0, j))
        # Constant-index weight blocks: Mosaic keeps these resident across
        # grid cells (tiny anyway; single cell on single-TC chips).
        w_specs = [
            pl.BlockSpec((H, C), lambda i, j: (0, 0)),
            pl.BlockSpec((H, 1), lambda i, j: (0, 0)),
            pl.BlockSpec((C, H), lambda i, j: (0, 0)),
        ]
        out_spec = pl.BlockSpec((tile_b, C, tile_t), lambda i, j: (i, 0, j))
        params = pltpu.CompilerParams(dimension_semantics=semantics)

        if unrolled:
            kern = partial(_vsampler_unrolled_kernel,
                           coeffs=tuple(zip(ca_f, cb_f)),
                           sigmas=tuple(sig_f[:num_steps]))
            return pl.pallas_call(
                kern,
                out_shape=jax.ShapeDtypeStruct((B, C, T), x_noisy.dtype),
                grid=grid,
                in_specs=[x_spec] + w_specs,
                out_specs=out_spec,
                compiler_params=params,
            )(x_noisy, w1, b1, w2)

        smem_spec = pl.BlockSpec(memory_space=pltpu.MemorySpace.SMEM)
        kern = partial(_vsampler_loop_kernel, num_steps=num_steps, unroll=4)
        ca = jnp.asarray(ca_f, dtype=jnp.float32)
        cb = jnp.asarray(cb_f, dtype=jnp.float32)
        sg = jnp.asarray(sig_f[:num_steps], dtype=jnp.float32)
        return pl.pallas_call(
            kern,
            out_shape=jax.ShapeDtypeStruct((B, C, T), x_noisy.dtype),
            grid=grid,
            in_specs=[smem_spec, smem_spec, smem_spec, x_spec] + w_specs,
            out_specs=out_spec,
            compiler_params=params,
        )(ca, cb, sg, x_noisy, w1, b1, w2)

    if multi_core:
        # v7x: shard the batch-tile axis across the two TensorCores.
        core_par = getattr(pltpu, "CORE_PARALLEL", None)
        arb = getattr(pltpu, "ARBITRARY", "arbitrary")
        sem = (core_par if core_par is not None else "parallel", arb)
        try:
            return run(tile_b, tile_t, sem)
        except Exception:
            pass  # fall back to the serial single-cell configuration below

    # Single-TensorCore chips (v5e/v6e): one batch-covering grid cell — the
    # grid is a serial loop there, so splitting only adds per-step overhead.
    _, tile_t1 = _choose_tiles(B, C, T, x_noisy.dtype.itemsize, 1)
    return run(B, tile_t1, ("arbitrary", "arbitrary"))


# ---------------------------------------------------------------------------
# Plain-JAX reference mirroring VSampler.forward (non-fused update path)
# ---------------------------------------------------------------------------
def vsampler_ref(x_noisy, w1, b1, w2, num_steps):
    sigmas = jnp.linspace(1.0, 0.0, num_steps + 1, dtype=jnp.float32)
    alphas = jnp.cos(sigmas * (pi / 2.0))
    betas = jnp.sin(sigmas * (pi / 2.0))
    x = x_noisy
    for i in range(num_steps):
        h = jnp.tanh(jnp.einsum('hc,bct->bht', w1, x) + sigmas[i] * b1[None])
        v_pred = jnp.einsum('ch,bht->bct', w2, h)
        x_pred = alphas[i] * x - betas[i] * v_pred
        noise_pred = betas[i] * x + alphas[i] * v_pred
        x = alphas[i + 1] * x_pred + betas[i + 1] * noise_pred
    return x


if __name__ == "__main__":
    B, C, T, H = 2, 8, 256, 32
    num_steps = 8

    key = jax.random.PRNGKey(0)
    kx, k1, kb, k2 = jax.random.split(key, 4)
    x_noisy = jax.random.normal(kx, (B, C, T), dtype=jnp.float32)
    # Deterministic synthetic "net" parameters (sigma-conditioned 1x1-conv MLP).
    # TODO(synk): the real `net` is an arbitrary UNet1d; here it is a small
    # in-kernel sigma-conditioned MLP so the sampling loop stays in Pallas.
    w1 = 0.1 * jax.random.normal(k1, (H, C), dtype=jnp.float32)
    b1 = 0.1 * jax.random.normal(kb, (H, 1), dtype=jnp.float32)
    w2 = 0.1 * jax.random.normal(k2, (C, H), dtype=jnp.float32)

    # Short schedule: fully unrolled kernel.
    out = jax.block_until_ready(vsampler_pallas(x_noisy, w1, b1, w2, num_steps))
    ref = vsampler_ref(x_noisy, w1, b1, w2, num_steps)
    assert out.shape == (B, C, T) and out.dtype == jnp.float32
    assert jnp.allclose(out, ref, atol=1e-4, rtol=1e-4), "mismatch (unrolled)"

    # Long schedule: exercises the fori_loop + SMEM schedule-table path.
    long_steps = 48
    out_l = jax.block_until_ready(vsampler_pallas(x_noisy, w1, b1, w2, long_steps))
    ref_l = vsampler_ref(x_noisy, w1, b1, w2, long_steps)
    assert jnp.allclose(out_l, ref_l, atol=1e-4, rtol=1e-4), "mismatch (loop)"

    print("KERNEL_OK")
</pallas_src>

<mosaic_0001>
module attributes {stable_mosaic.version = 11 : i64} {
  func.func @_vsampler_unrolled_kernel(%arg0: i32, %arg1: i32, %arg2: memref<2x8x256xf32, #tpu.memory_space<vmem>>, %arg3: memref<32x8xf32, #tpu.memory_space<vmem>>, %arg4: memref<32x1xf32, #tpu.memory_space<vmem>>, %arg5: memref<8x32xf32, #tpu.memory_space<vmem>>, %arg6: memref<2x8x256xf32, #tpu.memory_space<vmem>>) attributes {dimension_semantics = [#tpu.dimension_semantics<arbitrary>, #tpu.dimension_semantics<arbitrary>], iteration_bounds = array<i64: 1, 1>, scalar_prefetch = 0 : i64, scratch_operands = 0 : i64, tpu.core_type = #tpu.core_type<tc>, window_params = [{transform_indices = @transform_0, window_bounds = array<i64: 2, 8, 256>}, {pipeline_mode = #tpu.pipeline_mode<synchronous>, transform_indices = @transform_1, window_bounds = array<i64: 32, 8>}, {pipeline_mode = #tpu.pipeline_mode<synchronous>, transform_indices = @transform_2, window_bounds = array<i64: 32, 1>}, {pipeline_mode = #tpu.pipeline_mode<synchronous>, transform_indices = @transform_3, window_bounds = array<i64: 8, 32>}, {transform_indices = @transform_4, window_bounds = array<i64: 2, 8, 256>}]} {
    %c0 = arith.constant 0 : index
    %c0_0 = arith.constant 0 : index
    %c0_1 = arith.constant 0 : index
    %0 = vector.load %arg2[%c0, %c0_0, %c0_1] : memref<2x8x256xf32, #tpu.memory_space<vmem>>, vector<2x8x256xf32>
    %c0_2 = arith.constant 0 : index
    %c0_3 = arith.constant 0 : index
    %1 = vector.load %arg3[%c0_2, %c0_3] : memref<32x8xf32, #tpu.memory_space<vmem>>, vector<32x8xf32>
    %c0_4 = arith.constant 0 : index
    %c0_5 = arith.constant 0 : index
    %2 = vector.load %arg4[%c0_4, %c0_5] : memref<32x1xf32, #tpu.memory_space<vmem>>, vector<32x1xf32>
    %c0_6 = arith.constant 0 : index
    %c0_7 = arith.constant 0 : index
    %3 = vector.load %arg5[%c0_6, %c0_7] : memref<8x32xf32, #tpu.memory_space<vmem>>, vector<8x32xf32>
    %cst = arith.constant 1.000000e+00 : f32
    %4 = vector.broadcast %cst : f32 to vector<32x1xf32>
    %5 = arith.mulf %4, %2 : vector<32x1xf32>
    "tpu.trace_start"() <{level = 10 : i32, message = "hc,bct->bht"}> : () -> ()
    %cst_8 = arith.constant dense<0.000000e+00> : vector<2x256x32xf32>
    %6 = tpu.matmul %0, %1, %cst_8 {dimension_numbers = #tpu.dot_dimension_numbers<[1], [1], [0, 2], [0], [0, 0, 0, 2, 1, 0], [], []>} : vector<2x8x256xf32>, vector<32x8xf32>, vector<2x256x32xf32> -> vector<2x256x32xf32>
    %7 = tpu.transpose %6, [0, 2, 1] : vector<2x256x32xf32> -> vector<2x32x256xf32>
    "tpu.trace_stop"() : () -> ()
    %8 = vector.shape_cast %5 : vector<32x1xf32> to vector<1x32x1xf32>
    %9 = vector.broadcast %8 : vector<1x32x1xf32> to vector<2x32x256xf32>
    %10 = arith.addf %7, %9 : vector<2x32x256xf32>
    %11 = math.tanh %10 : vector<2x32x256xf32>
    "tpu.trace_start"() <{level = 10 : i32, message = "ch,bht->bct"}> : () -> ()
    %cst_9 = arith.constant dense<0.000000e+00> : vector<2x256x8xf32>
    %12 = tpu.matmul %11, %3, %cst_9 {dimension_numbers = #tpu.dot_dimension_numbers<[1], [1], [0, 2], [0], [0, 0, 0, 2, 1, 0], [], []>} : vector<2x32x256xf32>, vector<8x32xf32>, vector<2x256x8xf32> -> vector<2x256x8xf32>
    %13 = tpu.transpose %12, [0, 2, 1] : vector<2x256x8xf32> -> vector<2x8x256xf32>
    "tpu.trace_stop"() : () -> ()
    %cst_10 = arith.constant 0.98078525 : f32
    %14 = vector.broadcast %cst_10 : f32 to vector<2x8x256xf32>
    %15 = arith.mulf %14, %0 : vector<2x8x256xf32>
    %cst_11 = arith.constant -0.195090324 : f32
    %16 = vector.broadcast %cst_11 : f32 to vector<2x8x256xf32>
    %17 = arith.mulf %16, %13 : vector<2x8x256xf32>
    %18 = arith.addf %15, %17 : vector<2x8x256xf32>
    %cst_12 = arith.constant 8.750000e-01 : f32
    %19 = vector.broadcast %cst_12 : f32 to vector<32x1xf32>
    %20 = arith.mulf %19, %2 : vector<32x1xf32>
    "tpu.trace_start"() <{level = 10 : i32, message = "hc,bct->bht"}> : () -> ()
    %cst_13 = arith.constant dense<0.000000e+00> : vector<2x256x32xf32>
    %21 = tpu.matmul %18, %1, %cst_13 {dimension_numbers = #tpu.dot_dimension_numbers<[1], [1], [0, 2], [0], [0, 0, 0, 2, 1, 0], [], []>} : vector<2x8x256xf32>, vector<32x8xf32>, vector<2x256x32xf32> -> vector<2x256x32xf32>
    %22 = tpu.transpose %21, [0, 2, 1] : vector<2x256x32xf32> -> vector<2x32x256xf32>
    "tpu.trace_stop"() : () -> ()
    %23 = vector.shape_cast %20 : vector<32x1xf32> to vector<1x32x1xf32>
    %24 = vector.broadcast %23 : vector<1x32x1xf32> to vector<2x32x256xf32>
    %25 = arith.addf %22, %24 : vector<2x32x256xf32>
    %26 = math.tanh %25 : vector<2x32x256xf32>
    "tpu.trace_start"() <{level = 10 : i32, message = "ch,bht->bct"}> : () -> ()
    %cst_14 = arith.constant dense<0.000000e+00> : vector<2x256x8xf32>
    %27 = tpu.matmul %26, %3, %cst_14 {dimension_numbers = #tpu.dot_dimension_numbers<[1], [1], [0, 2], [0], [0, 0, 0, 2, 1, 0], [], []>} : vector<2x32x256xf32>, vector<8x32xf32>, vector<2x256x8xf32> -> vector<2x256x8xf32>
    %28 = tpu.transpose %27, [0, 2, 1] : vector<2x256x8xf32> -> vector<2x8x256xf32>
    "tpu.trace_stop"() : () -> ()
    %cst_15 = arith.constant 0.98078525 : f32
    %29 = vector.broadcast %cst_15 : f32 to vector<2x8x256xf32>
    %30 = arith.mulf %29, %18 : vector<2x8x256xf32>
    %cst_16 = arith.constant -0.195090324 : f32
    %31 = vector.broadcast %cst_16 : f32 to vector<2x8x256xf32>
    %32 = arith.mulf %31, %28 : vector<2x8x256xf32>
    %33 = arith.addf %30, %32 : vector<2x8x256xf32>
    %cst_17 = arith.constant 7.500000e-01 : f32
    %34 = vector.broadcast %cst_17 : f32 to vector<32x1xf32>
    %35 = arith.mulf %34, %2 : vector<32x1xf32>
    "tpu.trace_start"() <{level = 10 : i32, message = "hc,bct->bht"}> : () -> ()
    %cst_18 = arith.constant dense<0.000000e+00> : vector<2x256x32xf32>
    %36 = tpu.matmul %33, %1, %cst_18 {dimension_numbers = #tpu.dot_dimension_numbers<[1], [1], [0, 2], [0], [0, 0, 0, 2, 1, 0], [], []>} : vector<2x8x256xf32>, vector<32x8xf32>, vector<2x256x32xf32> -> vector<2x256x32xf32>
    %37 = tpu.transpose %36, [0, 2, 1] : vector<2x256x32xf32> -> vector<2x32x256xf32>
    "tpu.trace_stop"() : () -> ()
    %38 = vector.shape_cast %35 : vector<32x1xf32> to vector<1x32x1xf32>
    %39 = vector.broadcast %38 : vector<1x32x1xf32> to vector<2x32x256xf32>
    %40 = arith.addf %37, %39 : vector<2x32x256xf32>
    %41 = math.tanh %40 : vector<2x32x256xf32>
    "tpu.trace_start"() <{level = 10 : i32, message = "ch,bht->bct"}> : () -> ()
    %cst_19 = arith.constant dense<0.000000e+00> : vector<2x256x8xf32>
    %42 = tpu.matmul %41, %3, %cst_19 {dimension_numbers = #tpu.dot_dimension_numbers<[1], [1], [0, 2], [0], [0, 0, 0, 2, 1, 0], [], []>} : vector<2x32x256xf32>, vector<8x32xf32>, vector<2x256x8xf32> -> vector<2x256x8xf32>
    %43 = tpu.transpose %42, [0, 2, 1] : vector<2x256x8xf32> -> vector<2x8x256xf32>
    "tpu.trace_stop"() : () -> ()
    %cst_20 = arith.constant 0.98078525 : f32
    %44 = vector.broadcast %cst_20 : f32 to vector<2x8x256xf32>
    %45 = arith.mulf %44, %33 : vector<2x8x256xf32>
    %cst_21 = arith.constant -0.195090324 : f32
    %46 = vector.broadcast %cst_21 : f32 to vector<2x8x256xf32>
    %47 = arith.mulf %46, %43 : vector<2x8x256xf32>
    %48 = arith.addf %45, %47 : vector<2x8x256xf32>
    %cst_22 = arith.constant 6.250000e-01 : f32
    %49 = vector.broadcast %cst_22 : f32 to vector<32x1xf32>
    %50 = arith.mulf %49, %2 : vector<32x1xf32>
    "tpu.trace_start"() <{level = 10 : i32, message = "hc,bct->bht"}> : () -> ()
    %cst_23 = arith.constant dense<0.000000e+00> : vector<2x256x32xf32>
    %51 = tpu.matmul %48, %1, %cst_23 {dimension_numbers = #tpu.dot_dimension_numbers<[1], [1], [0, 2], [0], [0, 0, 0, 2, 1, 0], [], []>} : vector<2x8x256xf32>, vector<32x8xf32>, vector<2x256x32xf32> -> vector<2x256x32xf32>
    %52 = tpu.transpose %51, [0, 2, 1] : vector<2x256x32xf32> -> vector<2x32x256xf32>
    "tpu.trace_stop"() : () -> ()
    %53 = vector.shape_cast %50 : vector<32x1xf32> to vector<1x32x1xf32>
    %54 = vector.broadcast %53 : vector<1x32x1xf32> to vector<2x32x256xf32>
    %55 = arith.addf %52, %54 : vector<2x32x256xf32>
    %56 = math.tanh %55 : vector<2x32x256xf32>
    "tpu.trace_start"() <{level = 10 : i32, message = "ch,bht->bct"}> : () -> ()
    %cst_24 = arith.constant dense<0.000000e+00> : vector<2x256x8xf32>
    %57 = tpu.matmul %56, %3, %cst_24 {dimension_numbers = #tpu.dot_dimension_numbers<[1], [1], [0, 2], [0], [0, 0, 0, 2, 1, 0], [], []>} : vector<2x32x256xf32>, vector<8x32xf32>, vector<2x256x8xf32> -> vector<2x256x8xf32>
    %58 = tpu.transpose %57, [0, 2, 1] : vector<2x256x8xf32> -> vector<2x8x256xf32>
    "tpu.trace_stop"() : () -> ()
    %cst_25 = arith.constant 0.98078525 : f32
    %59 = vector.broadcast %cst_25 : f32 to vector<2x8x256xf32>
    %60 = arith.mulf %59, %48 : vector<2x8x256xf32>
    %cst_26 = arith.constant -0.195090324 : f32
    %61 = vector.broadcast %cst_26 : f32 to vector<2x8x256xf32>
    %62 = arith.mulf %61, %58 : vector<2x8x256xf32>
    %63 = arith.addf %60, %62 : vector<2x8x256xf32>
    %cst_27 = arith.constant 5.000000e-01 : f32
    %64 = vector.broadcast %cst_27 : f32 to vector<32x1xf32>
    %65 = arith.mulf %64, %2 : vector<32x1xf32>
    "tpu.trace_start"() <{level = 10 : i32, message = "hc,bct->bht"}> : () -> ()
    %cst_28 = arith.constant dense<0.000000e+00> : vector<2x256x32xf32>
    %66 = tpu.matmul %63, %1, %cst_28 {dimension_numbers = #tpu.dot_dimension_numbers<[1], [1], [0, 2], [0], [0, 0, 0, 2, 1, 0], [], []>} : vector<2x8x256xf32>, vector<32x8xf32>, vector<2x256x32xf32> -> vector<2x256x32xf32>
    %67 = tpu.transpose %66, [0, 2, 1] : vector<2x256x32xf32> -> vector<2x32x256xf32>
    "tpu.trace_stop"() : () -> ()
    %68 = vector.shape_cast %65 : vector<32x1xf32> to vector<1x32x1xf32>
    %69 = vector.broadcast %68 : vector<1x32x1xf32> to vector<2x32x256xf32>
    %70 = arith.addf %67, %69 : vector<2x32x256xf32>
    %71 = math.tanh %70 : vector<2x32x256xf32>
    "tpu.trace_start"() <{level = 10 : i32, message = "ch,bht->bct"}> : () -> ()
    %cst_29 = arith.constant dense<0.000000e+00> : vector<2x256x8xf32>
    %72 = tpu.matmul %71, %3, %cst_29 {dimension_numbers = #tpu.dot_dimension_numbers<[1], [1], [0, 2], [0], [0, 0, 0, 2, 1, 0], [], []>} : vector<2x32x256xf32>, vector<8x32xf32>, vector<2x256x8xf32> -> vector<2x256x8xf32>
    %73 = tpu.transpose %72, [0, 2, 1] : vector<2x256x8xf32> -> vector<2x8x256xf32>
    "tpu.trace_stop"() : () -> ()
    %cst_30 = arith.constant 0.98078525 : f32
    %74 = vector.broadcast %cst_30 : f32 to vector<2x8x256xf32>
    %75 = arith.mulf %74, %63 : vector<2x8x256xf32>
    %cst_31 = arith.constant -0.195090324 : f32
    %76 = vector.broadcast %cst_31 : f32 to vector<2x8x256xf32>
    %77 = arith.mulf %76, %73 : vector<2x8x256xf32>
    %78 = arith.addf %75, %77 : vector<2x8x256xf32>
    %cst_32 = arith.constant 3.750000e-01 : f32
    %79 = vector.broadcast %cst_32 : f32 to vector<32x1xf32>
    %80 = arith.mulf %79, %2 : vector<32x1xf32>
    "tpu.trace_start"() <{level = 10 : i32, message = "hc,bct->bht"}> : () -> ()
    %cst_33 = arith.constant dense<0.000000e+00> : vector<2x256x32xf32>
    %81 = tpu.matmul %78, %1, %cst_33 {dimension_numbers = #tpu.dot_dimension_numbers<[1], [1], [0, 2], [0], [0, 0, 0, 2, 1, 0], [], []>} : vector<2x8x256xf32>, vector<32x8xf32>, vector<2x256x32xf32> -> vector<2x256x32xf32>
    %82 = tpu.transpose %81, [0, 2, 1] : vector<2x256x32xf32> -> vector<2x32x256xf32>
    "tpu.trace_stop"() : () -> ()
    %83 = vector.shape_cast %80 : vector<32x1xf32> to vector<1x32x1xf32>
    %84 = vector.broadcast %83 : vector<1x32x1xf32> to vector<2x32x256xf32>
    %85 = arith.addf %82, %84 : vector<2x32x256xf32>
    %86 = math.tanh %85 : vector<2x32x256xf32>
    "tpu.trace_start"() <{level = 10 : i32, message = "ch,bht->bct"}> : () -> ()
    %cst_34 = arith.constant dense<0.000000e+00> : vector<2x256x8xf32>
    %87 = tpu.matmul %86, %3, %cst_34 {dimension_numbers = #tpu.dot_dimension_numbers<[1], [1], [0, 2], [0], [0, 0, 0, 2, 1, 0], [], []>} : vector<2x32x256xf32>, vector<8x32xf32>, vector<2x256x8xf32> -> vector<2x256x8xf32>
    %88 = tpu.transpose %87, [0, 2, 1] : vector<2x256x8xf32> -> vector<2x8x256xf32>
    "tpu.trace_stop"() : () -> ()
    %cst_35 = arith.constant 0.98078525 : f32
    %89 = vector.broadcast %cst_35 : f32 to vector<2x8x256xf32>
    %90 = arith.mulf %89, %78 : vector<2x8x256xf32>
    %cst_36 = arith.constant -0.195090324 : f32
    %91 = vector.broadcast %cst_36 : f32 to vector<2x8x256xf32>
    %92 = arith.mulf %91, %88 : vector<2x8x256xf32>
    %93 = arith.addf %90, %92 : vector<2x8x256xf32>
    %cst_37 = arith.constant 2.500000e-01 : f32
    %94 = vector.broadcast %cst_37 : f32 to vector<32x1xf32>
    %95 = arith.mulf %94, %2 : vector<32x1xf32>
    "tpu.trace_start"() <{level = 10 : i32, message = "hc,bct->bht"}> : () -> ()
    %cst_38 = arith.constant dense<0.000000e+00> : vector<2x256x32xf32>
    %96 = tpu.matmul %93, %1, %cst_38 {dimension_numbers = #tpu.dot_dimension_numbers<[1], [1], [0, 2], [0], [0, 0, 0, 2, 1, 0], [], []>} : vector<2x8x256xf32>, vector<32x8xf32>, vector<2x256x32xf32> -> vector<2x256x32xf32>
    %97 = tpu.transpose %96, [0, 2, 1] : vector<2x256x32xf32> -> vector<2x32x256xf32>
    "tpu.trace_stop"() : () -> ()
    %98 = vector.shape_cast %95 : vector<32x1xf32> to vector<1x32x1xf32>
    %99 = vector.broadcast %98 : vector<1x32x1xf32> to vector<2x32x256xf32>
    %100 = arith.addf %97, %99 : vector<2x32x256xf32>
    %101 = math.tanh %100 : vector<2x32x256xf32>
    "tpu.trace_start"() <{level = 10 : i32, message = "ch,bht->bct"}> : () -> ()
    %cst_39 = arith.constant dense<0.000000e+00> : vector<2x256x8xf32>
    %102 = tpu.matmul %101, %3, %cst_39 {dimension_numbers = #tpu.dot_dimension_numbers<[1], [1], [0, 2], [0], [0, 0, 0, 2, 1, 0], [], []>} : vector<2x32x256xf32>, vector<8x32xf32>, vector<2x256x8xf32> -> vector<2x256x8xf32>
    %103 = tpu.transpose %102, [0, 2, 1] : vector<2x256x8xf32> -> vector<2x8x256xf32>
    "tpu.trace_stop"() : () -> ()
    %cst_40 = arith.constant 0.98078525 : f32
    %104 = vector.broadcast %cst_40 : f32 to vector<2x8x256xf32>
    %105 = arith.mulf %104, %93 : vector<2x8x256xf32>
    %cst_41 = arith.constant -0.195090324 : f32
    %106 = vector.broadcast %cst_41 : f32 to vector<2x8x256xf32>
    %107 = arith.mulf %106, %103 : vector<2x8x256xf32>
    %108 = arith.addf %105, %107 : vector<2x8x256xf32>
    %cst_42 = arith.constant 1.250000e-01 : f32
    %109 = vector.broadcast %cst_42 : f32 to vector<32x1xf32>
    %110 = arith.mulf %109, %2 : vector<32x1xf32>
    "tpu.trace_start"() <{level = 10 : i32, message = "hc,bct->bht"}> : () -> ()
    %cst_43 = arith.constant dense<0.000000e+00> : vector<2x256x32xf32>
    %111 = tpu.matmul %108, %1, %cst_43 {dimension_numbers = #tpu.dot_dimension_numbers<[1], [1], [0, 2], [0], [0, 0, 0, 2, 1, 0], [], []>} : vector<2x8x256xf32>, vector<32x8xf32>, vector<2x256x32xf32> -> vector<2x256x32xf32>
    %112 = tpu.transpose %111, [0, 2, 1] : vector<2x256x32xf32> -> vector<2x32x256xf32>
    "tpu.trace_stop"() : () -> ()
    %113 = vector.shape_cast %110 : vector<32x1xf32> to vector<1x32x1xf32>
    %114 = vector.broadcast %113 : vector<1x32x1xf32> to vector<2x32x256xf32>
    %115 = arith.addf %112, %114 : vector<2x32x256xf32>
    %116 = math.tanh %115 : vector<2x32x256xf32>
    "tpu.trace_start"() <{level = 10 : i32, message = "ch,bht->bct"}> : () -> ()
    %cst_44 = arith.constant dense<0.000000e+00> : vector<2x256x8xf32>
    %117 = tpu.matmul %116, %3, %cst_44 {dimension_numbers = #tpu.dot_dimension_numbers<[1], [1], [0, 2], [0], [0, 0, 0, 2, 1, 0], [], []>} : vector<2x32x256xf32>, vector<8x32xf32>, vector<2x256x8xf32> -> vector<2x256x8xf32>
    %118 = tpu.transpose %117, [0, 2, 1] : vector<2x256x8xf32> -> vector<2x8x256xf32>
    "tpu.trace_stop"() : () -> ()
    %cst_45 = arith.constant 0.98078525 : f32
    %119 = vector.broadcast %cst_45 : f32 to vector<2x8x256xf32>
    %120 = arith.mulf %119, %108 : vector<2x8x256xf32>
    %cst_46 = arith.constant -0.195090324 : f32
    %121 = vector.broadcast %cst_46 : f32 to vector<2x8x256xf32>
    %122 = arith.mulf %121, %118 : vector<2x8x256xf32>
    %123 = arith.addf %120, %122 : vector<2x8x256xf32>
    %c0_47 = arith.constant 0 : index
    %c0_48 = arith.constant 0 : index
    %c0_49 = arith.constant 0 : index
    %124 = vector.load %arg6[%c0_47, %c0_48, %c0_49] : memref<2x8x256xf32, #tpu.memory_space<vmem>>, vector<2x8x256xf32>
    tpu.vector_store %arg6[%c0_47, %c0_48, %c0_49], %123 {strides = array<i32>} : memref<2x8x256xf32, #tpu.memory_space<vmem>>, vector<2x8x256xf32>,
    return
  }
  func.func @transform_0(%arg0: i32, %arg1: i32) -> (i32, i32, i32) {
    %c0_i32 = arith.constant 0 : i32
    %c0_i32_0 = arith.constant 0 : i32
    return %arg0, %c0_i32, %arg1 : i32, i32, i32
  }
  func.func @transform_1(%arg0: i32, %arg1: i32) -> (i32, i32) {
    %c0_i32 = arith.constant 0 : i32
    %c0_i32_0 = arith.constant 0 : i32
    %c0_i32_1 = arith.constant 0 : i32
    return %c0_i32, %c0_i32_0 : i32, i32
  }
  func.func @transform_2(%arg0: i32, %arg1: i32) -> (i32, i32) {
    %c0_i32 = arith.constant 0 : i32
    %c0_i32_0 = arith.constant 0 : i32
    %c0_i32_1 = arith.constant 0 : i32
    return %c0_i32, %c0_i32_0 : i32, i32
  }
  func.func @transform_3(%arg0: i32, %arg1: i32) -> (i32, i32) {
    %c0_i32 = arith.constant 0 : i32
    %c0_i32_0 = arith.constant 0 : i32
    %c0_i32_1 = arith.constant 0 : i32
    return %c0_i32, %c0_i32_0 : i32, i32
  }
  func.func @transform_4(%arg0: i32, %arg1: i32) -> (i32, i32, i32) {
    %c0_i32 = arith.constant 0 : i32
    %c0_i32_0 = arith.constant 0 : i32
    return %arg0, %c0_i32, %arg1 : i32, i32, i32
  }
}

</mosaic_0001>

<llo_original>
// kernel: tpu_custom_call.1
$region0: #{tpu_custom_call.1}
  #allocation0 [shape = 'u32[]', space=smem, size = 0x4, offset = 0x4, fixed_abs, tag = 'smem constant byte address 0x4 - core index']
  #allocation1 [shape = 'u32[144,128]{1,0:T(1,128)}', space=vmem, size = 0x12000, scoped, tag = 'internal scratch']
  %s0 = inlined_call_operand.vmem [shape: f32[2,8,256], index: 0, kind: input, shape index: {}]
  %s1 = inlined_call_operand.vmem [shape: f32[32,8], index: 1, kind: input, shape index: {}]
  %s2 = inlined_call_operand.vmem [shape: f32[32,1], index: 2, kind: input, shape index: {}]
  %s3 = inlined_call_operand.vmem [shape: f32[8,32], index: 3, kind: input, shape index: {}]
  %s4 = inlined_call_operand.hbm [shape: f32[2,8,256], index: 4, kind: output, shape index: {}]
  %s5 = sld [smem:[#allocation0]]
  $region26: #{tpu_custom_call.1} parent=0
    _
  %s7 = ssub.s32 1, %s5
  %s8 = scalar_select 0, %s7, %s5
  $region1: #{tpu_custom_call.1} parent=0
    #allocation2 [shape = 'u8[16384]{0}', space=vmem, size = 0x4000, scoped, tag = 'output window, operand 0, single buffered']
    #allocation3 [shape = 's32[1]{0}', space=sflag, size = 0x4, scoped, tag = 'scoped memory for tpu_custom_call.1']
    %9 = vsyncpa [#allocation3], 0
    // Predicated region
    $region2: #{tpu_custom_call.1} parent=1 // pred_check
      _
    $region3: #{tpu_custom_call.1} parent=1 // pred_check_branch
      %11 = sbr.rel (0) target = $region5
    $region4: #{tpu_custom_call.1} parent=1 // pred_region
      _
    $region5: #{tpu_custom_call.1} parent=1 // pred_fallthru
      _
    // Predicated region
    $region6: #{tpu_custom_call.1} parent=1 // pred_check
      _
    $region7: #{tpu_custom_call.1} parent=1 // pred_check_branch
      %13 = sbr.rel (0) target = $region9
    $region8: #{tpu_custom_call.1} parent=1 // pred_region
      _
    $region9: #{tpu_custom_call.1} parent=1 // pred_fallthru
      _
    // Predicated region
    $region10: #{tpu_custom_call.1} parent=1 // pred_check
      _
    $region11: #{tpu_custom_call.1} parent=1 // pred_check_branch
      %15 = sbr.rel (0) target = $region13
    $region12: #{tpu_custom_call.1} parent=1 // pred_region
      _
    $region13: #{tpu_custom_call.1} parent=1 // pred_fallthru
      _
    // Predicated region
    $region14: #{tpu_custom_call.1} parent=1 // pred_check
      _
    $region15: #{tpu_custom_call.1} parent=1 // pred_check_branch
      %17 = sbr.rel (0) target = $region17
    $region16: #{tpu_custom_call.1} parent=1 // pred_region
      _
    $region17: #{tpu_custom_call.1} parent=1 // pred_fallthru
      _
    %v18 = vld [vmem:[%s0] sm:$0xff]
    %v19 = vld [vmem:[%s0 + $0x8] sm:$0xff]
    %v20 = vld [vmem:[%s0 + $0x10] sm:$0xff]
    %v21 = vld [vmem:[%s0 + $0x18] sm:$0xff]
    %v22 = vld [vmem:[%s1] sm:$0xff]
    %v23 = vld [vmem:[%s1 + $0x8] sm:$0xff]
    %v24 = vld [vmem:[%s1 + $0x10] sm:$0xff]
    %v25 = vld [vmem:[%s1 + $0x18] sm:$0xff]
    %v26 = vld [vmem:[%s2] sm:$0xff]
    %v27 = vld [vmem:[%s2 + $0x8] sm:$0xff]
    %v28 = vld [vmem:[%s2 + $0x10] sm:$0xff]
    %v29 = vld [vmem:[%s2 + $0x18] sm:$0xff]
    %v30 = vld [vmem:[%s3] sm:$0xff]
    %31 = vxpose.xlu0.b32.start [1/16] %v18, 128
    %32 = vxpose.xlu0.b32.cont [2/16] 0.0, 128
    %33 = vxpose.xlu0.b32.cont [3/16] 0.0, 128
    %34 = vxpose.xlu0.b32.cont [4/16] 0.0, 128
    %35 = vxpose.xlu0.b32.cont [5/16] 0.0, 128
    %36 = vxpose.xlu0.b32.cont [6/16] 0.0, 128
    %37 = vxpose.xlu0.b32.cont [7/16] 0.0, 128
    %38 = vxpose.xlu0.b32.cont [8/16] 0.0, 128
    %39 = vxpose.xlu0.b32.cont [9/16] 0.0, 128
    %40 = vxpose.xlu0.b32.cont [10/16] 0.0, 128
    %41 = vxpose.xlu0.b32.cont [11/16] 0.0, 128
    %42 = vxpose.xlu0.b32.cont [12/16] 0.0, 128
    %43 = vxpose.xlu0.b32.cont [13/16] 0.0, 128
    %44 = vxpose.xlu0.b32.cont [14/16] 0.0, 128
    %45 = vxpose.xlu0.b32.cont [15/16] 0.0, 128
    %46 = vxpose.xlu0.b32.end [16/16] 0.0, 128
    %v47 = vpop.trf.xlu0
    %v48 = vpop.trf.xlu0
    %v49 = vpop.trf.xlu0
    %v50 = vpop.trf.xlu0
    %v51 = vpop.trf.xlu0
    %v52 = vpop.trf.xlu0
    %v53 = vpop.trf.xlu0
    %v54 = vpop.trf.xlu0
    %v55 = vpop.trf.xlu0
    %v56 = vpop.trf.xlu0
    %v57 = vpop.trf.xlu0
    %v58 = vpop.trf.xlu0
    %v59 = vpop.trf.xlu0
    %v60 = vpop.trf.xlu0
    %v61 = vpop.trf.xlu0
    %v62 = vpop.trf.xlu0
    %63 = vxpose.xlu0.b32.start [1/16] %v19, 128
    %64 = vxpose.xlu0.b32.cont [2/16] 0.0, 128
    %65 = vxpose.xlu0.b32.cont [3/16] 0.0, 128
    %66 = vxpose.xlu0.b32.cont [4/16] 0.0, 128
    %67 = vxpose.xlu0.b32.cont [5/16] 0.0, 128
    %68 = vxpose.xlu0.b32.cont [6/16] 0.0, 128
    %69 = vxpose.xlu0.b32.cont [7/16] 0.0, 128
    %70 = vxpose.xlu0.b32.cont [8/16] 0.0, 128
    %71 = vxpose.xlu0.b32.cont [9/16] 0.0, 128
    %72 = vxpose.xlu0.b32.cont [10/16] 0.0, 128
    %73 = vxpose.xlu0.b32.cont [11/16] 0.0, 128
    %74 = vxpose.xlu0.b32.cont [12/16] 0.0, 128
    %75 = vxpose.xlu0.b32.cont [13/16] 0.0, 128
    %76 = vxpose.xlu0.b32.cont [14/16] 0.0, 128
    %77 = vxpose.xlu0.b32.cont [15/16] 0.0, 128
    %78 = vxpose.xlu0.b32.end [16/16] 0.0, 128
    %v79 = vpop.trf.xlu0
    %v80 = vpop.trf.xlu0
    %v81 = vpop.trf.xlu0
    %v82 = vpop.trf.xlu0
    %v83 = vpop.trf.xlu0
    %v84 = vpop.trf.xlu0
    %v85 = vpop.trf.xlu0
    %v86 = vpop.trf.xlu0
    %v87 = vpop.trf.xlu0
    %v88 = vpop.trf.xlu0
    %v89 = vpop.trf.xlu0
    %v90 = vpop.trf.xlu0
    %v91 = vpop.trf.xlu0
    %v92 = vpop.trf.xlu0
    %v93 = vpop.trf.xlu0
    %v94 = vpop.trf.xlu0
    %95 = vxpose.xlu0.b32.start [1/16] %v20, 128
    %96 = vxpose.xlu0.b32.cont [2/16] 0.0, 128
    %97 = vxpose.xlu0.b32.cont [3/16] 0.0, 128
    %98 = vxpose.xlu0.b32.cont [4/16] 0.0, 128
    %99 = vxpose.xlu0.b32.cont [5/16] 0.0, 128
    %100 = vxpose.xlu0.b32.cont [6/16] 0.0, 128
    %101 = vxpose.xlu0.b32.cont [7/16] 0.0, 128
    %102 = vxpose.xlu0.b32.cont [8/16] 0.0, 128
    %103 = vxpose.xlu0.b32.cont [9/16] 0.0, 128
    %104 = vxpose.xlu0.b32.cont [10/16] 0.0, 128
    %105 = vxpose.xlu0.b32.cont [11/16] 0.0, 128
    %106 = vxpose.xlu0.b32.cont [12/16] 0.0, 128
    %107 = vxpose.xlu0.b32.cont [13/16] 0.0, 128
    %108 = vxpose.xlu0.b32.cont [14/16] 0.0, 128
    %109 = vxpose.xlu0.b32.cont [15/16] 0.0, 128
    %110 = vxpose.xlu0.b32.end [16/16] 0.0, 128
    %v111 = vpop.trf.xlu0
    %v112 = vpop.trf.xlu0
    %v113 = vpop.trf.xlu0
    %v114 = vpop.trf.xlu0
    %v115 = vpop.trf.xlu0
    %v116 = vpop.trf.xlu0
    %v117 = vpop.trf.xlu0
    %v118 = vpop.trf.xlu0
    %v119 = vpop.trf.xlu0
    %v120 = vpop.trf.xlu0
    %v121 = vpop.trf.xlu0
    %v122 = vpop.trf.xlu0
    %v123 = vpop.trf.xlu0
    %v124 = vpop.trf.xlu0
    %v125 = vpop.trf.xlu0
    %v126 = vpop.trf.xlu0
    %127 = vxpose.xlu0.b32.start [1/16] %v21, 128
    %128 = vxpose.xlu0.b32.cont [2/16] 0.0, 128
    %129 = vxpose.xlu0.b32.cont [3/16] 0.0, 128
    %130 = vxpose.xlu0.b32.cont [4/16] 0.0, 128
    %131 = vxpose.xlu0.b32.cont [5/16] 0.0, 128
    %132 = vxpose.xlu0.b32.cont [6/16] 0.0, 128
    %133 = vxpose.xlu0.b32.cont [7/16] 0.0, 128
    %134 = vxpose.xlu0.b32.cont [8/16] 0.0, 128
    %135 = vxpose.xlu0.b32.cont [9/16] 0.0, 128
    %136 = vxpose.xlu0.b32.cont [10/16] 0.0, 128
    %137 = vxpose.xlu0.b32.cont [11/16] 0.0, 128
    %138 = vxpose.xlu0.b32.cont [12/16] 0.0, 128
    %139 = vxpose.xlu0.b32.cont [13/16] 0.0, 128
    %140 = vxpose.xlu0.b32.cont [14/16] 0.0, 128
    %141 = vxpose.xlu0.b32.cont [15/16] 0.0, 128
    %142 = vxpose.xlu0.b32.end [16/16] 0.0, 128
    %v143 = vpop.trf.xlu0
    %v144 = vpop.trf.xlu0
    %v145 = vpop.trf.xlu0
    %v146 = vpop.trf.xlu0
    %v147 = vpop.trf.xlu0
    %v148 = vpop.trf.xlu0
    %v149 = vpop.trf.xlu0
    %v150 = vpop.trf.xlu0
    %v151 = vpop.trf.xlu0
    %v152 = vpop.trf.xlu0
    %v153 = vpop.trf.xlu0
    %v154 = vpop.trf.xlu0
    %v155 = vpop.trf.xlu0
    %v156 = vpop.trf.xlu0
    %v157 = vpop.trf.xlu0
    %v158 = vpop.trf.xlu0
    %vm159 = vcmask 64512
    %v161 = vsel %vm159, %v47, 0
    %v164 = vsel %vm159, %v48, 0
    %v167 = vsel %vm159, %v49, 0
    %v170 = vsel %vm159, %v50, 0
    %v173 = vsel %vm159, %v51, 0
    %v176 = vsel %vm159, %v52, 0
    %v179 = vsel %vm159, %v53, 0
    %v182 = vsel %vm159, %v54, 0
    %v185 = vsel %vm159, %v55, 0
    %v188 = vsel %vm159, %v56, 0
    %v191 = vsel %vm159, %v57, 0
    %v194 = vsel %vm159, %v58, 0
    %v197 = vsel %vm159, %v59, 0
    %v200 = vsel %vm159, %v60, 0
    %v203 = vsel %vm159, %v61, 0
    %v206 = vsel %vm159, %v62, 0
    %v209 = vsel %vm159, %v79, 0
    %v212 = vsel %vm159, %v80, 0
    %v215 = vsel %vm159, %v81, 0
    %v218 = vsel %vm159, %v82, 0
    %v221 = vsel %vm159, %v83, 0
    %v224 = vsel %vm159, %v84, 0
    %v227 = vsel %vm159, %v85, 0
    %v230 = vsel %vm159, %v86, 0
    %v233 = vsel %vm159, %v87, 0
    %v236 = vsel %vm159, %v88, 0
    %v239 = vsel %vm159, %v89, 0
    %v242 = vsel %vm159, %v90, 0
    %v245 = vsel %vm159, %v91, 0
    %v248 = vsel %vm159, %v92, 0
    %v251 = vsel %vm159, %v93, 0
    %v254 = vsel %vm159, %v94, 0
    %v257 = vsel %vm159, %v111, 0
    %v260 = vsel %vm159, %v112, 0
    %v263 = vsel %vm159, %v113, 0
    %v266 = vsel %vm159, %v114, 0
    %v269 = vsel %vm159, %v115, 0
    %v272 = vsel %vm159, %v116, 0
    %v275 = vsel %vm159, %v117, 0
    %v278 = vsel %vm159, %v118, 0
    %v281 = vsel %vm159, %v119, 0
    %v284 = vsel %vm159, %v120, 0
    %v287 = vsel %vm159, %v121, 0
    %v290 = vsel %vm159, %v122, 0
    %v293 = vsel %vm159, %v123, 0
    %v296 = vsel %vm159, %v124, 0
    %v299 = vsel %vm159, %v125, 0
    %v302 = vsel %vm159, %v126, 0
    %v305 = vsel %vm159, %v143, 0
    %v308 = vsel %vm159, %v144, 0
    %v311 = vsel %vm159, %v145, 0
    %v314 = vsel %vm159, %v146, 0
    %v317 = vsel %vm159, %v147, 0
    %v320 = vsel %vm159, %v148, 0
    %v323 = vsel %vm159, %v149, 0
    %v326 = vsel %vm159, %v150, 0
    %v329 = vsel %vm159, %v151, 0
    %v332 = vsel %vm159, %v152, 0
    %v335 = vsel %vm159, %v153, 0
    %v338 = vsel %vm159, %v154, 0
    %v341 = vsel %vm159, %v155, 0
    %v344 = vsel %vm159, %v156, 0
    %v347 = vsel %vm159, %v157, 0
    %v350 = vsel %vm159, %v158, 0
    %v353 = vsel %vm159, %v22, 0
    %v356 = vsel %vm159, %v23, 0
    %v359 = vsel %vm159, %v24, 0
    %v362 = vsel %vm159, %v25, 0
    %364 = vmatprep.subr.mxu0 0.0
    %365 = vmatpush1.xpose.msra.mxu0 %v353
    %366 = vmatprep.subr.mxu0 0.0
    %367 = vmatpush1.xpose.msra.mxu0 %v356
    %368 = vmatprep.subr.mxu0 0.0
    %369 = vmatpush1.xpose.msra.mxu0 %v359
    %370 = vmatprep.subr.mxu0 0.0
    %371 = vmatpush1.xpose.msra.mxu0 %v362
    %372 = vmatprep.subr.mxu0 0.0
    %373 = vmatpush1.xpose.msra.mxu0 0.0
    %374 = vmatprep.subr.mxu0 0.0
    %375 = vmatpush1.xpose.msra.mxu0 0.0
    %376 = vmatprep.subr.mxu0 0.0
    %377 = vmatpush1.xpose.msra.mxu0 0.0
    %378 = vmatprep.subr.mxu0 0.0
    %379 = vmatpush1.xpose.msra.mxu0 0.0
    %380 = vmatprep.subr.mxu0 0.0
    %381 = vmatpush1.xpose.msra.mxu0 0.0
    %382 = vmatprep.subr.mxu0 0.0
    %383 = vmatpush1.xpose.msra.mxu0 0.0
    %384 = vmatprep.subr.mxu0 0.0
    %385 = vmatpush1.xpose.msra.mxu0 0.0
    %386 = vmatprep.subr.mxu0 0.0
    %387 = vmatpush1.xpose.msra.mxu0 0.0
    %388 = vmatprep.subr.mxu0 0.0
    %389 = vmatpush1.xpose.msra.mxu0 0.0
    %390 = vmatprep.subr.mxu0 0.0
    %391 = vmatpush1.xpose.msra.mxu0 0.0
    %392 = vmatprep.subr.mxu0 0.0
    %393 = vmatpush1.xpose.msra.mxu0 0.0
    %394 = vmatprep.subr.mxu0 0.0
    %395 = vmatpush1.xpose.msra.mxu0 0.0
    %396 = vmatprep.subr.mxu0 0.0
    %397 = vmatpush1.xpose.msra.mxu0 0.0
    %398 = vmatprep.subr.mxu0 0.0
    %399 = vmatpush1.xpose.msra.mxu0 0.0
    %400 = vmatprep.subr.mxu0 0.0
    %401 = vmatpush1.xpose.msra.mxu0 0.0
    %402 = vmatprep.subr.mxu0 0.0
    %403 = vmatpush1.xpose.msra.mxu0 0.0
    %404 = vmatprep.subr.mxu0 0.0
    %405 = vmatpush1.xpose.msra.mxu0 0.0
    %406 = vmatprep.subr.mxu0 0.0
    %407 = vmatpush1.xpose.msra.mxu0 0.0
    %408 = vmatprep.subr.mxu0 0.0
    %409 = vmatpush1.xpose.msra.mxu0 0.0
    %410 = vmatprep.subr.mxu0 0.0
    %411 = vmatpush1.xpose.msra.mxu0 0.0
    %412 = vmatprep.subr.mxu0 0.0
    %413 = vmatpush1.xpose.msra.mxu0 0.0
    %414 = vmatprep.subr.mxu0 0.0
    %415 = vmatpush1.xpose.msra.mxu0 0.0
    %416 = vmatprep.subr.mxu0 0.0
    %417 = vmatpush1.xpose.msra.mxu0 0.0
    %418 = vmatprep.subr.mxu0 0.0
    %419 = vmatpush1.xpose.msra.mxu0 0.0
    %420 = vmatprep.subr.mxu0 0.0
    %421 = vmatpush1.xpose.msra.mxu0 0.0
    %422 = vmatprep.subr.mxu0 0.0
    %423 = vmatpush1.xpose.msra.mxu0 0.0
    %424 = vmatprep.subr.mxu0 0.0
    %425 = vmatpush1.xpose.msra.mxu0 0.0
    %426 = vmatprep.subr.mxu0 0.0
    %427 = vmatpush1.xpose.msra.mxu0 0.0
    %428 = vmatprep.mubr.f32.mxu0 0.0
    %429 = vmatmul.mubr.f32.gmra.mrb[0].mxu0 %v161
    %v430 = vpop.f32.mrb[0].mxu0
    %v431 = vadd.f32 0.0, %v430
    %v432 = vpop.f32.mrb[0].mxu0
    %433 = vmatprep.mubr.f32.mxu0 0.0
    %434 = vmatmul.mubr.f32.gmra.mrb[0].mxu0 %v164
    %v435 = vpop.f32.mrb[0].mxu0
    %v436 = vadd.f32 0.0, %v435
    %v437 = vpop.f32.mrb[0].mxu0
    %438 = vmatprep.mubr.f32.mxu0 0.0
    %439 = vmatmul.mubr.f32.gmra.mrb[0].mxu0 %v167
    %v440 = vpop.f32.mrb[0].mxu0
    %v441 = vadd.f32 0.0, %v440
    %v442 = vpop.f32.mrb[0].mxu0
    %443 = vmatprep.mubr.f32.mxu0 0.0
    %444 = vmatmul.mubr.f32.gmra.mrb[0].mxu0 %v170
    %v445 = vpop.f32.mrb[0].mxu0
    %v446 = vadd.f32 0.0, %v445
    %v447 = vpop.f32.mrb[0].mxu0
    %448 = vmatprep.mubr.f32.mxu0 0.0
    %449 = vmatmul.mubr.f32.gmra.mrb[0].mxu0 %v173
    %v450 = vpop.f32.mrb[0].mxu0
    %v451 = vadd.f32 0.0, %v450
    %v452 = vpop.f32.mrb[0].mxu0
    %453 = vmatprep.mubr.f32.mxu0 0.0
    %454 = vmatmul.mubr.f32.gmra.mrb[0].mxu0 %v176
    %v455 = vpop.f32.mrb[0].mxu0
    %v456 = vadd.f32 0.0, %v455
    %v457 = vpop.f32.mrb[0].mxu0
    %458 = vmatprep.mubr.f32.mxu0 0.0
    %459 = vmatmul.mubr.f32.gmra.mrb[0].mxu0 %v179
    %v460 = vpop.f32.mrb[0].mxu0
    %v461 = vadd.f32 0.0, %v460
    %v462 = vpop.f32.mrb[0].mxu0
    %463 = vmatprep.mubr.f32.mxu0 0.0
    %464 = vmatmul.mubr.f32.gmra.mrb[0].mxu0 %v182
    %v465 = vpop.f32.mrb[0].mxu0
    %v466 = vadd.f32 0.0, %v465
    %v467 = vpop.f32.mrb[0].mxu0
    %468 = vmatprep.mubr.f32.mxu0 0.0
    %469 = vmatmul.mubr.f32.gmra.mrb[0].mxu0 %v185
    %v470 = vpop.f32.mrb[0].mxu0
    %v471 = vadd.f32 0.0, %v470
    %v472 = vpop.f32.mrb[0].mxu0
    %473 = vmatprep.mubr.f32.mxu0 0.0
    %474 = vmatmul.mubr.f32.gmra.mrb[0].mxu0 %v188
    %v475 = vpop.f32.mrb[0].mxu0
    %v476 = vadd.f32 0.0, %v475
    %v477 = vpop.f32.mrb[0].mxu0
    %478 = vmatprep.mubr.f32.mxu0 0.0
    %479 = vmatmul.mubr.f32.gmra.mrb[0].mxu0 %v191
    %v480 = vpop.f32.mrb[0].mxu0
    %v481 = vadd.f32 0.0, %v480
    %v482 = vpop.f32.mrb[0].mxu0
    %483 = vmatprep.mubr.f32.mxu0 0.0
    %484 = vmatmul.mubr.f32.gmra.mrb[0].mxu0 %v194
    %v485 = vpop.f32.mrb[0].mxu0
    %v486 = vadd.f32 0.0, %v485
    %v487 = vpop.f32.mrb[0].mxu0
    %488 = vmatprep.mubr.f32.mxu0 0.0
    %489 = vmatmul.mubr.f32.gmra.mrb[0].mxu0 %v197
    %v490 = vpop.f32.mrb[0].mxu0
    %v491 = vadd.f32 0.0, %v490
    %v492 = vpop.f32.mrb[0].mxu0
    %493 = vmatprep.mubr.f32.mxu0 0.0
    %494 = vmatmul.mubr.f32.gmra.mrb[0].mxu0 %v200
    %v495 = vpop.f32.mrb[0].mxu0
    %v496 = vadd.f32 0.0, %v495
    %v497 = vpop.f32.mrb[0].mxu0
    %498 = vmatprep.mubr.f32.mxu0 0.0
    %499 = vmatmul.mubr.f32.gmra.mrb[0].mxu0 %v203
    %v500 = vpop.f32.mrb[0].mxu0
    %v501 = vadd.f32 0.0, %v500
    %v502 = vpop.f32.mrb[0].mxu0
    %503 = vmatprep.mubr.f32.mxu0 0.0
    %504 = vmatmul.mubr.f32.gmra.mrb[0].mxu0 %v206
    %v505 = vpop.f32.mrb[0].mxu0
    %v506 = vadd.f32 0.0, %v505
    %v507 = vpop.f32.mrb[0].mxu0
    %508 = vmatprep.mubr.f32.mxu0 0.0
    %509 = vmatmul.mubr.f32.gmra.mrb[0].mxu0 %v209
    %v510 = vpop.f32.mrb[0].mxu0
    %v511 = vadd.f32 0.0, %v510
    %v512 = vpop.f32.mrb[0].mxu0
    %513 = vmatprep.mubr.f32.mxu0 0.0
    %514 = vmatmul.mubr.f32.gmra.mrb[0].mxu0 %v212
    %v515 = vpop.f32.mrb[0].mxu0
    %v516 = vadd.f32 0.0, %v515
    %v517 = vpop.f32.mrb[0].mxu0
    %518 = vmatprep.mubr.f32.mxu0 0.0
    %519 = vmatmul.mubr.f32.gmra.mrb[0].mxu0 %v215
    %v520 = vpop.f32.mrb[0].mxu0
    %v521 = vadd.f32 0.0, %v520
    %v522 = vpop.f32.mrb[0].mxu0
    %523 = vmatprep.mubr.f32.mxu0 0.0
    %524 = vmatmul.mubr.f32.gmra.mrb[0].mxu0 %v218
    %v525 = vpop.f32.mrb[0].mxu0
    %v526 = vadd.f32 0.0, %v525
    %v527 = vpop.f32.mrb[0].mxu0
    %528 = vmatprep.mubr.f32.mxu0 0.0
    %529 = vmatmul.mubr.f32.gmra.mrb[0].mxu0 %v221
    %v530 = vpop.f32.mrb[0].mxu0
    %v531 = vadd.f32 0.0, %v530
    %v532 = vpop.f32.mrb[0].mxu0
    %533 = vmatprep.mubr.f32.mxu0 0.0
    %534 = vmatmul.mubr.f32.gmra.mrb[0].mxu0 %v224
    %v535 = vpop.f32.mrb[0].mxu0
    %v536 = vadd.f32 0.0, %v535
    %v537 = vpop.f32.mrb[0].mxu0
    %538 = vmatprep.mubr.f32.mxu0 0.0
    %539 = vmatmul.mubr.f32.gmra.mrb[0].mxu0 %v227
    %v540 = vpop.f32.mrb[0].mxu0
    %v541 = vadd.f32 0.0, %v540
    %v542 = vpop.f32.mrb[0].mxu0
    %543 = vmatprep.mubr.f32.mxu0 0.0
    %544 = vmatmul.mubr.f32.gmra.mrb[0].mxu0 %v230
    %v545 = vpop.f32.mrb[0].mxu0
    %v546 = vadd.f32 0.0, %v545
    %v547 = vpop.f32.mrb[0].mxu0
    %548 = vmatprep.mubr.f32.mxu0 0.0
    %549 = vmatmul.mubr.f32.gmra.mrb[0].mxu0 %v233
    %v550 = vpop.f32.mrb[0].mxu0
    %v551 = vadd.f32 0.0, %v550
    %v552 = vpop.f32.mrb[0].mxu0
    %553 = vmatprep.mubr.f32.mxu0 0.0
    %554 = vmatmul.mubr.f32.gmra.mrb[0].mxu0 %v236
    %v555 = vpop.f32.mrb[0].mxu0
    %v556 = vadd.f32 0.0, %v555
    %v557 = vpop.f32.mrb[0].mxu0
    %558 = vmatprep.mubr.f32.mxu0 0.0
    %559 = vmatmul.mubr.f32.gmra.mrb[0].mxu0 %v239
    %v560 = vpop.f32.mrb[0].mxu0
    %v561 = vadd.f32 0.0, %v560
    %v562 = vpop.f32.mrb[0].mxu0
    %563 = vmatprep.mubr.f32.mxu0 0.0
    %564 = vmatmul.mubr.f32.gmra.mrb[0].mxu0 %v242
    %v565 = vpop.f32.mrb[0].mxu0
    %v566 = vadd.f32 0.0, %v565
    %v567 = vpop.f32.mrb[0].mxu0
    %568 = vmatprep.mubr.f32.mxu0 0.0
    %569 = vmatmul.mubr.f32.gmra.mrb[0].mxu0 %v245
    %v570 = vpop.f32.mrb[0].mxu0
    %v571 = vadd.f32 0.0, %v570
    %v572 = vpop.f32.mrb[0].mxu0
    %573 = vmatprep.mubr.f32.mxu0 0.0
    %574 = vmatmul.mubr.f32.gmra.mrb[0].mxu0 %v248
    %v575 = vpop.f32.mrb[0].mxu0
    %v576 = vadd.f32 0.0, %v575
    %v577 = vpop.f32.mrb[0].mxu0
    %578 = vmatprep.mubr.f32.mxu0 0.0
    %579 = vmatmul.mubr.f32.gmra.mrb[0].mxu0 %v251
    %v580 = vpop.f32.mrb[0].mxu0
    %v581 = vadd.f32 0.0, %v580
    %v582 = vpop.f32.mrb[0].mxu0
    %583 = vmatprep.mubr.f32.mxu0 0.0
    %584 = vmatmul.mubr.f32.gmra.mrb[0].mxu0 %v254
    %v585 = vpop.f32.mrb[0].mxu0
    %v586 = vadd.f32 0.0, %v585
    %v587 = vpop.f32.mrb[0].mxu0
    %588 = vmatprep.mubr.f32.mxu0 0.0
    %589 = vmatmul.mubr.f32.gmra.mrb[0].mxu0 %v257
    %v590 = vpop.f32.mrb[0].mxu0
    %v591 = vadd.f32 0.0, %v590
    %v592 = vpop.f32.mrb[0].mxu0
    %593 = vmatprep.mubr.f32.mxu0 0.0
    %594 = vmatmul.mubr.f32.gmra.mrb[0].mxu0 %v260
    %v595 = vpop.f32.mrb[0].mxu0
    %v596 = vadd.f32 0.0, %v595
    %v597 = vpop.f32.mrb[0].mxu0
    %598 = vmatprep.mubr.f32.mxu0 0.0
    %599 = vmatmul.mubr.f32.gmra.mrb[0].mxu0 %v263
    %v600 = vpop.f32.mrb[0].mxu0
    %v601 = vadd.f32 0.0, %v600
    %v602 = vpop.f32.mrb[0].mxu0
    %603 = vmatprep.mubr.f32.mxu0 0.0
    %604 = vmatmul.mubr.f32.gmra.mrb[0].mxu0 %v266
    %v605 = vpop.f32.mrb[0].mxu0
    %v606 = vadd.f32 0.0, %v605
    %v607 = vpop.f32.mrb[0].mxu0
    %608 = vmatprep.mubr.f32.mxu0 0.0
    %609 = vmatmul.mubr.f32.gmra.mrb[0].mxu0 %v269
    %v610 = vpop.f32.mrb[0].mxu0
    %v611 = vadd.f32 0.0, %v610
    %v612 = vpop.f32.mrb[0].mxu0
    %613 = vmatprep.mubr.f32.mxu0 0.0
    %614 = vmatmul.mubr.f32.gmra.mrb[0].mxu0 %v272
    %v615 = vpop.f32.mrb[0].mxu0
    %v616 = vadd.f32 0.0, %v615
    %v617 = vpop.f32.mrb[0].mxu0
    %618 = vmatprep.mubr.f32.mxu0 0.0
    %619 = vmatmul.mubr.f32.gmra.mrb[0].mxu0 %v275
    %v620 = vpop.f32.mrb[0].mxu0
    %v621 = vadd.f32 0.0, %v620
    %v622 = vpop.f32.mrb[0].mxu0
    %623 = vmatprep.mubr.f32.mxu0 0.0
    %624 = vmatmul.mubr.f32.gmra.mrb[0].mxu0 %v278
    %v625 = vpop.f32.mrb[0].mxu0
    %v626 = vadd.f32 0.0, %v625
    %v627 = vpop.f32.mrb[0].mxu0
    %628 = vmatprep.mubr.f32.mxu0 0.0
    %629 = vmatmul.mubr.f32.gmra.mrb[0].mxu0 %v281
    %v630 = vpop.f32.mrb[0].mxu0
    %v631 = vadd.f32 0.0, %v630
    %v632 = vpop.f32.mrb[0].mxu0
    %633 = vmatprep.mubr.f32.mxu0 0.0
    %634 = vmatmul.mubr.f32.gmra.mrb[0].mxu0 %v284
    %v635 = vpop.f32.mrb[0].mxu0
    %v636 = vadd.f32 0.0, %v635
    %v637 = vpop.f32.mrb[0].mxu0
    %638 = vmatprep.mubr.f32.mxu0 0.0
    %639 = vmatmul.mubr.f32.gmra.mrb[0].mxu0 %v287
    %v640 = vpop.f32.mrb[0].mxu0
    %v641 = vadd.f32 0.0, %v640
    %v642 = vpop.f32.mrb[0].mxu0
    %643 = vmatprep.mubr.f32.mxu0 0.0
    %644 = vmatmul.mubr.f32.gmra.mrb[0].mxu0 %v290
    %v645 = vpop.f32.mrb[0].mxu0
    %v646 = vadd.f32 0.0, %v645
    %v647 = vpop.f32.mrb[0].mxu0
    %648 = vmatprep.mubr.f32.mxu0 0.0
    %649 = vmatmul.mubr.f32.gmra.mrb[0].mxu0 %v293
    %v650 = vpop.f32.mrb[0].mxu0
    %v651 = vadd.f32 0.0, %v650
    %v652 = vpop.f32.mrb[0].mxu0
    %653 = vmatprep.mubr.f32.mxu0 0.0
    %654 = vmatmul.mubr.f32.gmra.mrb[0].mxu0 %v296
    %v655 = vpop.f32.mrb[0].mxu0
    %v656 = vadd.f32 0.0, %v655
    %v657 = vpop.f32.mrb[0].mxu0
    %658 = vmatprep.mubr.f32.mxu0 0.0
    %659 = vmatmul.mubr.f32.gmra.mrb[0].mxu0 %v299
    %v660 = vpop.f32.mrb[0].mxu0
    %v661 = vadd.f32 0.0, %v660
    %v662 = vpop.f32.mrb[0].mxu0
    %663 = vmatprep.mubr.f32.mxu0 0.0
    %664 = vmatmul.mubr.f32.gmra.mrb[0].mxu0 %v302
    %v665 = vpop.f32.mrb[0].mxu0
    %v666 = vadd.f32 0.0, %v665
    %v667 = vpop.f32.mrb[0].mxu0
    %668 = vmatprep.mubr.f32.mxu0 0.0
    %669 = vmatmul.mubr.f32.gmra.mrb[0].mxu0 %v305
    %v670 = vpop.f32.mrb[0].mxu0
    %v671 = vadd.f32 0.0, %v670
    %v672 = vpop.f32.mrb[0].mxu0
    %673 = vmatprep.mubr.f32.mxu0 0.0
    %674 = vmatmul.mubr.f32.gmra.mrb[0].mxu0 %v308
    %v675 = vpop.f32.mrb[0].mxu0
    %v676 = vadd.f32 0.0, %v675
    %v677 = vpop.f32.mrb[0].mxu0
    %678 = vmatprep.mubr.f32.mxu0 0.0
    %679 = vmatmul.mubr.f32.gmra.mrb[0].mxu0 %v311
    %v680 = vpop.f32.mrb[0].mxu0
    %v681 = vadd.f32 0.0, %v680
    %v682 = vpop.f32.mrb[0].mxu0
    %683 = vmatprep.mubr.f32.mxu0 0.0
    %684 = vmatmul.mubr.f32.gmra.mrb[0].mxu0 %v314
    %v685 = vpop.f32.mrb[0].mxu0
    %v686 = vadd.f32 0.0, %v685
    %v687 = vpop.f32.mrb[0].mxu0
    %688 = vmatprep.mubr.f32.mxu0 0.0
    %689 = vmatmul.mubr.f32.gmra.mrb[0].mxu0 %v317
    %v690 = vpop.f32.mrb[0].mxu0
    %v691 = vadd.f32 0.0, %v690
    %v692 = vpop.f32.mrb[0].mxu0
    %693 = vmatprep.mubr.f32.mxu0 0.0
    %694 = vmatmul.mubr.f32.gmra.mrb[0].mxu0 %v320
    %v695 = vpop.f32.mrb[0].mxu0
    %v696 = vadd.f32 0.0, %v695
    %v697 = vpop.f32.mrb[0].mxu0
    %698 = vmatprep.mubr.f32.mxu0 0.0
    %699 = vmatmul.mubr.f32.gmra.mrb[0].mxu0 %v323
    %v700 = vpop.f32.mrb[0].mxu0
    %v701 = vadd.f32 0.0, %v700
    %v702 = vpop.f32.mrb[0].mxu0
    %703 = vmatprep.mubr.f32.mxu0 0.0
    %704 = vmatmul.mubr.f32.gmra.mrb[0].mxu0 %v326
    %v705 = vpop.f32.mrb[0].mxu0
    %v706 = vadd.f32 0.0, %v705
    %v707 = vpop.f32.mrb[0].mxu0
    %708 = vmatprep.mubr.f32.mxu0 0.0
    %709 = vmatmul.mubr.f32.gmra.mrb[0].mxu0 %v329
    %v710 = vpop.f32.mrb[0].mxu0
    %v711 = vadd.f32 0.0, %v710
    %v712 = vpop.f32.mrb[0].mxu0
    %713 = vmatprep.mubr.f32.mxu0 0.0
    %714 = vmatmul.mubr.f32.gmra.mrb[0].mxu0 %v332
    %v715 = vpop.f32.mrb[0].mxu0
    %v716 = vadd.f32 0.0, %v715
    %v717 = vpop.f32.mrb[0].mxu0
    %718 = vmatprep.mubr.f32.mxu0 0.0
    %719 = vmatmul.mubr.f32.gmra.mrb[0].mxu0 %v335
    %v720 = vpop.f32.mrb[0].mxu0
    %v721 = vadd.f32 0.0, %v720
    %v722 = vpop.f32.mrb[0].mxu0
    %723 = vmatprep.mubr.f32.mxu0 0.0
    %724 = vmatmul.mubr.f32.gmra.mrb[0].mxu0 %v338
    %v725 = vpop.f32.mrb[0].mxu0
    %v726 = vadd.f32 0.0, %v725
    %v727 = vpop.f32.mrb[0].mxu0
    %728 = vmatprep.mubr.f32.mxu0 0.0
    %729 = vmatmul.mubr.f32.gmra.mrb[0].mxu0 %v341
    %v730 = vpop.f32.mrb[0].mxu0
    %v731 = vadd.f32 0.0, %v730
    %v732 = vpop.f32.mrb[0].mxu0
    %733 = vmatprep.mubr.f32.mxu0 0.0
    %734 = vmatmul.mubr.f32.gmra.mrb[0].mxu0 %v344
    %v735 = vpop.f32.mrb[0].mxu0
    %v736 = vadd.f32 0.0, %v735
    %v737 = vpop.f32.mrb[0].mxu0
    %738 = vmatprep.mubr.f32.mxu0 0.0
    %739 = vmatmul.mubr.f32.gmra.mrb[0].mxu0 %v347
    %v740 = vpop.f32.mrb[0].mxu0
    %v741 = vadd.f32 0.0, %v740
    %v742 = vpop.f32.mrb[0].mxu0
    %743 = vmatprep.mubr.f32.mxu0 0.0
    %744 = vmatmul.mubr.f32.gmra.mrb[0].mxu0 %v350
    %v745 = vpop.f32.mrb[0].mxu0
    %v746 = vadd.f32 0.0, %v745
    %v747 = vpop.f32.mrb[0].mxu0
    %748 = vdwg.mxu0
    %749 = vxpose.xlu0.b32.start [1/16] %v431, 128
    %750 = vxpose.xlu0.b32.cont [2/16] %v436, 128
    %751 = vxpose.xlu0.b32.cont [3/16] %v441, 128
    %752 = vxpose.xlu0.b32.cont [4/16] %v446, 128
    %753 = vxpose.xlu0.b32.cont [5/16] %v451, 128
    %754 = vxpose.xlu0.b32.cont [6/16] %v456, 128
    %755 = vxpose.xlu0.b32.cont [7/16] %v461, 128
    %756 = vxpose.xlu0.b32.cont [8/16] %v466, 128
    %757 = vxpose.xlu0.b32.cont [9/16] %v471, 128
    %758 = vxpose.xlu0.b32.cont [10/16] %v476, 128
    %759 = vxpose.xlu0.b32.cont [11/16] %v481, 128
    %760 = vxpose.xlu0.b32.cont [12/16] %v486, 128
    %761 = vxpose.xlu0.b32.cont [13/16] %v491, 128
    %762 = vxpose.xlu0.b32.cont [14/16] %v496, 128
    %763 = vxpose.xlu0.b32.cont [15/16] %v501, 128
    %764 = vxpose.xlu0.b32.end [16/16] %v506, 128
    %v765 = vpop.trf.xlu0
    %v766 = vpop.trf.xlu0
    %v767 = vpop.trf.xlu0
    %v768 = vpop.trf.xlu0
    %v769 = vpop.trf.xlu0
    %v770 = vpop.trf.xlu0
    %v771 = vpop.trf.xlu0
    %v772 = vpop.trf.xlu0
    %v773 = vpop.trf.xlu0
    %v774 = vpop.trf.xlu0
    %v775 = vpop.trf.xlu0
    %v776 = vpop.trf.xlu0
    %v777 = vpop.trf.xlu0
    %v778 = vpop.trf.xlu0
    %v779 = vpop.trf.xlu0
    %v780 = vpop.trf.xlu0
    %781 = vxpose.xlu0.b32.start [1/16] %v511, 128
    %782 = vxpose.xlu0.b32.cont [2/16] %v516, 128
    %783 = vxpose.xlu0.b32.cont [3/16] %v521, 128
    %784 = vxpose.xlu0.b32.cont [4/16] %v526, 128
    %785 = vxpose.xlu0.b32.cont [5/16] %v531, 128
    %786 = vxpose.xlu0.b32.cont [6/16] %v536, 128
    %787 = vxpose.xlu0.b32.cont [7/16] %v541, 128
    %788 = vxpose.xlu0.b32.cont [8/16] %v546, 128
    %789 = vxpose.xlu0.b32.cont [9/16] %v551, 128
    %790 = vxpose.xlu0.b32.cont [10/16] %v556, 128
    %791 = vxpose.xlu0.b32.cont [11/16] %v561, 128
    %792 = vxpose.xlu0.b32.cont [12/16] %v566, 128
    %793 = vxpose.xlu0.b32.cont [13/16] %v571, 128
    %794 = vxpose.xlu0.b32.cont [14/16] %v576, 128
    %795 = vxpose.xlu0.b32.cont [15/16] %v581, 128
    %796 = vxpose.xlu0.b32.end [16/16] %v586, 128
    %v797 = vpop.trf.xlu0
    %v798 = vpop.trf.xlu0
    %v799 = vpop.trf.xlu0
    %v800 = vpop.trf.xlu0
    %v801 = vpop.trf.xlu0
    %v802 = vpop.trf.xlu0
    %v803 = vpop.trf.xlu0
    %v804 = vpop.trf.xlu0
    %v805 = vpop.trf.xlu0
    %v806 = vpop.trf.xlu0
    %v807 = vpop.trf.xlu0
    %v808 = vpop.trf.xlu0
    %v809 = vpop.trf.xlu0
    %v810 = vpop.trf.xlu0
    %v811 = vpop.trf.xlu0
    %v812 = vpop.trf.xlu0
    %813 = vxpose.xlu0.b32.start [1/16] %v591, 128
    %814 = vxpose.xlu0.b32.cont [2/16] %v596, 128
    %815 = vxpose.xlu0.b32.cont [3/16] %v601, 128
    %816 = vxpose.xlu0.b32.cont [4/16] %v606, 128
    %817 = vxpose.xlu0.b32.cont [5/16] %v611, 128
    %818 = vxpose.xlu0.b32.cont [6/16] %v616, 128
    %819 = vxpose.xlu0.b32.cont [7/16] %v621, 128
    %820 = vxpose.xlu0.b32.cont [8/16] %v626, 128
    %821 = vxpose.xlu0.b32.cont [9/16] %v631, 128
    %822 = vxpose.xlu0.b32.cont [10/16] %v636, 128
    %823 = vxpose.xlu0.b32.cont [11/16] %v641, 128
    %824 = vxpose.xlu0.b32.cont [12/16] %v646, 128
    %825 = vxpose.xlu0.b32.cont [13/16] %v651, 128
    %826 = vxpose.xlu0.b32.cont [14/16] %v656, 128
    %827 = vxpose.xlu0.b32.cont [15/16] %v661, 128
    %828 = vxpose.xlu0.b32.end [16/16] %v666, 128
    %v829 = vpop.trf.xlu0
    %v830 = vpop.trf.xlu0
    %v831 = vpop.trf.xlu0
    %v832 = vpop.trf.xlu0
    %v833 = vpop.trf.xlu0
    %v834 = vpop.trf.xlu0
    %v835 = vpop.trf.xlu0
    %v836 = vpop.trf.xlu0
    %v837 = vpop.trf.xlu0
    %v838 = vpop.trf.xlu0
    %v839 = vpop.trf.xlu0
    %v840 = vpop.trf.xlu0
    %v841 = vpop.trf.xlu0
    %v842 = vpop.trf.xlu0
    %v843 = vpop.trf.xlu0
    %v844 = vpop.trf.xlu0
    %845 = vxpose.xlu0.b32.start [1/16] %v671, 128
    %846 = vxpose.xlu0.b32.cont [2/16] %v676, 128
    %847 = vxpose.xlu0.b32.cont [3/16] %v681, 128
    %848 = vxpose.xlu0.b32.cont [4/16] %v686, 128
    %849 = vxpose.xlu0.b32.cont [5/16] %v691, 128
    %850 = vxpose.xlu0.b32.cont [6/16] %v696, 128
    %851 = vxpose.xlu0.b32.cont [7/16] %v701, 128
    %852 = vxpose.xlu0.b32.cont [8/16] %v706, 128
    %853 = vxpose.xlu0.b32.cont [9/16] %v711, 128
    %854 = vxpose.xlu0.b32.cont [10/16] %v716, 128
    %855 = vxpose.xlu0.b32.cont [11/16] %v721, 128
    %856 = vxpose.xlu0.b32.cont [12/16] %v726, 128
    %857 = vxpose.xlu0.b32.cont [13/16] %v731, 128
    %858 = vxpose.xlu0.b32.cont [14/16] %v736, 128
    %859 = vxpose.xlu0.b32.cont [15/16] %v741, 128
    %860 = vxpose.xlu0.b32.end [16/16] %v746, 128
    %v861 = vpop.trf.xlu0
    %v862 = vpop.trf.xlu0
    %v863 = vpop.trf.xlu0
    %v864 = vpop.trf.xlu0
    %v865 = vpop.trf.xlu0
    %v866 = vpop.trf.xlu0
    %v867 = vpop.trf.xlu0
    %v868 = vpop.trf.xlu0
    %v869 = vpop.trf.xlu0
    %v870 = vpop.trf.xlu0
    %v871 = vpop.trf.xlu0
    %v872 = vpop.trf.xlu0
    %v873 = vpop.trf.xlu0
    %v874 = vpop.trf.xlu0
    %v875 = vpop.trf.xlu0
    %v876 = vpop.trf.xlu0
    %878 = vset.pattern.permute.xlu0 0
    %879 = vperm.xlu0 %878, %v26
    %v880 = vpop.permute.xlu0 %879
    %883 = vset.pattern.permute.xlu0 0
    %884 = vperm.xlu0 %883, %v27
    %v885 = vpop.permute.xlu0 %884
    %888 = vset.pattern.permute.xlu0 0
    %889 = vperm.xlu0 %888, %v28
    %v890 = vpop.permute.xlu0 %889
    %893 = vset.pattern.permute.xlu0 0
    %894 = vperm.xlu0 %893, %v29
    %v895 = vpop.permute.xlu0 %894
    %v897 = vadd.f32 %v765, %v880
    %v898 = vadd.f32 %v797, %v880
    %v899 = vadd.f32 %v766, %v885
    %v900 = vadd.f32 %v798, %v885
    %v901 = vadd.f32 %v767, %v890
    %v902 = vadd.f32 %v799, %v890
    %v903 = vadd.f32 %v768, %v895
    %v904 = vadd.f32 %v800, %v895
    %v905 = vadd.f32 %v829, %v880
    %v906 = vadd.f32 %v861, %v880
    %v907 = vadd.f32 %v830, %v885
    %v908 = vadd.f32 %v862, %v885
    %v909 = vadd.f32 %v831, %v890
    %v910 = vadd.f32 %v863, %v890
    %v911 = vadd.f32 %v832, %v895
    %v912 = vadd.f32 %v864, %v895
    %v913 = vtanh.pop %v897
    %v914 = vtanh.pop %v898
    %v915 = vtanh.pop %v899
    %v916 = vtanh.pop %v900
    %v917 = vtanh.pop %v901
    %v918 = vtanh.pop %v902
    %v919 = vtanh.pop %v903
    %v920 = vtanh.pop %v904
    %v921 = vtanh.pop %v905
    %v922 = vtanh.pop %v906
    %v923 = vtanh.pop %v907
    %v924 = vtanh.pop %v908
    %v925 = vtanh.pop %v909
    %v926 = vtanh.pop %v910
    %v927 = vtanh.pop %v911
    %v928 = vtanh.pop %v912
    %929 = vxpose.xlu0.b32.start [1/16] %v913, 128
    %930 = vxpose.xlu0.b32.cont [2/16] %v915, 128
    %931 = vxpose.xlu0.b32.cont [3/16] %v917, 128
    %932 = vxpose.xlu0.b32.cont [4/16] %v919, 128
    %933 = vxpose.xlu0.b32.cont [5/16] 0.0, 128
    %934 = vxpose.xlu0.b32.cont [6/16] 0.0, 128
    %935 = vxpose.xlu0.b32.cont [7/16] 0.0, 128
    %936 = vxpose.xlu0.b32.cont [8/16] 0.0, 128
    %937 = vxpose.xlu0.b32.cont [9/16] 0.0, 128
    %938 = vxpose.xlu0.b32.cont [10/16] 0.0, 128
    %939 = vxpose.xlu0.b32.cont [11/16] 0.0, 128
    %940 = vxpose.xlu0.b32.cont [12/16] 0.0, 128
    %941 = vxpose.xlu0.b32.cont [13/16] 0.0, 128
    %942 = vxpose.xlu0.b32.cont [14/16] 0.0, 128
    %943 = vxpose.xlu0.b32.cont [15/16] 0.0, 128
    %944 = vxpose.xlu0.b32.end [16/16] 0.0, 128
    %v945 = vpop.trf.xlu0
    %v946 = vpop.trf.xlu0
    %v947 = vpop.trf.xlu0
    %v948 = vpop.trf.xlu0
    %v949 = vpop.trf.xlu0
    %v950 = vpop.trf.xlu0
    %v951 = vpop.trf.xlu0
    %v952 = vpop.trf.xlu0
    %v953 = vpop.trf.xlu0
    %v954 = vpop.trf.xlu0
    %v955 = vpop.trf.xlu0
    %v956 = vpop.trf.xlu0
    %v957 = vpop.trf.xlu0
    %v958 = vpop.trf.xlu0
    %v959 = vpop.trf.xlu0
    %v960 = vpop.trf.xlu0
    %961 = vxpose.xlu0.b32.start [1/16] %v914, 128
    %962 = vxpose.xlu0.b32.cont [2/16] %v916, 128
    %963 = vxpose.xlu0.b32.cont [3/16] %v918, 128
    %964 = vxpose.xlu0.b32.cont [4/16] %v920, 128
    %965 = vxpose.xlu0.b32.cont [5/16] 0.0, 128
    %966 = vxpose.xlu0.b32.cont [6/16] 0.0, 128
    %967 = vxpose.xlu0.b32.cont [7/16] 0.0, 128
    %968 = vxpose.xlu0.b32.cont [8/16] 0.0, 128
    %969 = vxpose.xlu0.b32.cont [9/16] 0.0, 128
    %970 = vxpose.xlu0.b32.cont [10/16] 0.0, 128
    %971 = vxpose.xlu0.b32.cont [11/16] 0.0, 128
    %972 = vxpose.xlu0.b32.cont [12/16] 0.0, 128
    %973 = vxpose.xlu0.b32.cont [13/16] 0.0, 128
    %974 = vxpose.xlu0.b32.cont [14/16] 0.0, 128
    %975 = vxpose.xlu0.b32.cont [15/16] 0.0, 128
    %976 = vxpose.xlu0.b32.end [16/16] 0.0, 128
    %v977 = vpop.trf.xlu0
    %v978 = vpop.trf.xlu0
    %v979 = vpop.trf.xlu0
    %v980 = vpop.trf.xlu0
    %v981 = vpop.trf.xlu0
    %v982 = vpop.trf.xlu0
    %v983 = vpop.trf.xlu0
    %v984 = vpop.trf.xlu0
    %v985 = vpop.trf.xlu0
    %v986 = vpop.trf.xlu0
    %v987 = vpop.trf.xlu0
    %v988 = vpop.trf.xlu0
    %v989 = vpop.trf.xlu0
    %v990 = vpop.trf.xlu0
    %v991 = vpop.trf.xlu0
    %v992 = vpop.trf.xlu0
    %993 = vxpose.xlu0.b32.start [1/16] %v921, 128
    %994 = vxpose.xlu0.b32.cont [2/16] %v923, 128
    %995 = vxpose.xlu0.b32.cont [3/16] %v925, 128
    %996 = vxpose.xlu0.b32.cont [4/16] %v927, 128
    %997 = vxpose.xlu0.b32.cont [5/16] 0.0, 128
    %998 = vxpose.xlu0.b32.cont [6/16] 0.0, 128
    %999 = vxpose.xlu0.b32.cont [7/16] 0.0, 128
    %1000 = vxpose.xlu0.b32.cont [8/16] 0.0, 128
    %1001 = vxpose.xlu0.b32.cont [9/16] 0.0, 128
    %1002 = vxpose.xlu0.b32.cont [10/16] 0.0, 128
    %1003 = vxpose.xlu0.b32.cont [11/16] 0.0, 128
    %1004 = vxpose.xlu0.b32.cont [12/16] 0.0, 128
    %1005 = vxpose.xlu0.b32.cont [13/16] 0.0, 128
    %1006 = vxpose.xlu0.b32.cont [14/16] 0.0, 128
    %1007 = vxpose.xlu0.b32.cont [15/16] 0.0, 128
    %1008 = vxpose.xlu0.b32.end [16/16] 0.0, 128
    %v1009 = vpop.trf.xlu0
    %v1010 = vpop.trf.xlu0
    %v1011 = vpop.trf.xlu0
    %v1012 = vpop.trf.xlu0
    %v1013 = vpop.trf.xlu0
    %v1014 = vpop.trf.xlu0
    %v1015 = vpop.trf.xlu0
    %v1016 = vpop.trf.xlu0
    %v1017 = vpop.trf.xlu0
    %v1018 = vpop.trf.xlu0
    %v1019 = vpop.trf.xlu0
    %v1020 = vpop.trf.xlu0
    %v1021 = vpop.trf.xlu0
    %v1022 = vpop.trf.xlu0
    %v1023 = vpop.trf.xlu0
    %v1024 = vpop.trf.xlu0
    %1025 = vxpose.xlu0.b32.start [1/16] %v922, 128
    %1026 = vxpose.xlu0.b32.cont [2/16] %v924, 128
    %1027 = vxpose.xlu0.b32.cont [3/16] %v926, 128
    %1028 = vxpose.xlu0.b32.cont [4/16] %v928, 128
    %1029 = vxpose.xlu0.b32.cont [5/16] 0.0, 128
    %1030 = vxpose.xlu0.b32.cont [6/16] 0.0, 128
    %1031 = vxpose.xlu0.b32.cont [7/16] 0.0, 128
    %1032 = vxpose.xlu0.b32.cont [8/16] 0.0, 128
    %1033 = vxpose.xlu0.b32.cont [9/16] 0.0, 128
    %1034 = vxpose.xlu0.b32.cont [10/16] 0.0, 128
    %1035 = vxpose.xlu0.b32.cont [11/16] 0.0, 128
    %1036 = vxpose.xlu0.b32.cont [12/16] 0.0, 128
    %1037 = vxpose.xlu0.b32.cont [13/16] 0.0, 128
    %1038 = vxpose.xlu0.b32.cont [14/16] 0.0, 128
    %1039 = vxpose.xlu0.b32.cont [15/16] 0.0, 128
    %1040 = vxpose.xlu0.b32.end [16/16] 0.0, 128
    %v1041 = vpop.trf.xlu0
    %v1042 = vpop.trf.xlu0
    %v1043 = vpop.trf.xlu0
    %v1044 = vpop.trf.xlu0
    %v1045 = vpop.trf.xlu0
    %v1046 = vpop.trf.xlu0
    %v1047 = vpop.trf.xlu0
    %v1048 = vpop.trf.xlu0
    %v1049 = vpop.trf.xlu0
    %v1050 = vpop.trf.xlu0
    %v1051 = vpop.trf.xlu0
    %v1052 = vpop.trf.xlu0
    %v1053 = vpop.trf.xlu0
    %v1054 = vpop.trf.xlu0
    %v1055 = vpop.trf.xlu0
    %v1056 = vpop.trf.xlu0
    %vm1057 = vcmask 261120
    %v1059 = vsel %vm1057, %v945, 0
    %v1062 = vsel %vm1057, %v946, 0
    %v1065 = vsel %vm1057, %v947, 0
    %v1068 = vsel %vm1057, %v948, 0
    %v1071 = vsel %vm1057, %v949, 0
    %v1074 = vsel %vm1057, %v950, 0
    %v1077 = vsel %vm1057, %v951, 0
    %v1080 = vsel %vm1057, %v952, 0
    %v1083 = vsel %vm1057, %v953, 0
    %v1086 = vsel %vm1057, %v954, 0
    %v1089 = vsel %vm1057, %v955, 0
    %v1092 = vsel %vm1057, %v956, 0
    %v1095 = vsel %vm1057, %v957, 0
    %v1098 = vsel %vm1057, %v958, 0
    %v1101 = vsel %vm1057, %v959, 0
    %v1104 = vsel %vm1057, %v960, 0
    %v1107 = vsel %vm1057, %v977, 0
    %v1110 = vsel %vm1057, %v978, 0
    %v1113 = vsel %vm1057, %v979, 0
    %v1116 = vsel %vm1057, %v980, 0
    %v1119 = vsel %vm1057, %v981, 0
    %v1122 = vsel %vm1057, %v982, 0
    %v1125 = vsel %vm1057, %v983, 0
    %v1128 = vsel %vm1057, %v984, 0
    %v1131 = vsel %vm1057, %v985, 0
    %v1134 = vsel %vm1057, %v986, 0
    %v1137 = vsel %vm1057, %v987, 0
    %v1140 = vsel %vm1057, %v988, 0
    %v1143 = vsel %vm1057, %v989, 0
    %v1146 = vsel %vm1057, %v990, 0
    %v1149 = vsel %vm1057, %v991, 0
    %v1152 = vsel %vm1057, %v992, 0
    %v1155 = vsel %vm1057, %v1009, 0
    %v1158 = vsel %vm1057, %v1010, 0
    %v1161 = vsel %vm1057, %v1011, 0
    %v1164 = vsel %vm1057, %v1012, 0
    %v1167 = vsel %vm1057, %v1013, 0
    %v1170 = vsel %vm1057, %v1014, 0
    %v1173 = vsel %vm1057, %v1015, 0
    %v1176 = vsel %vm1057, %v1016, 0
    %v1179 = vsel %vm1057, %v1017, 0
    %v1182 = vsel %vm1057, %v1018, 0
    %v1185 = vsel %vm1057, %v1019, 0
    %v1188 = vsel %vm1057, %v1020, 0
    %v1191 = vsel %vm1057, %v1021, 0
    %v1194 = vsel %vm1057, %v1022, 0
    %v1197 = vsel %vm1057, %v1023, 0
    %v1200 = vsel %vm1057, %v1024, 0
    %v1203 = vsel %vm1057, %v1041, 0
    %v1206 = vsel %vm1057, %v1042, 0
    %v1209 = vsel %vm1057, %v1043, 0
    %v1212 = vsel %vm1057, %v1044, 0
    %v1215 = vsel %vm1057, %v1045, 0
    %v1218 = vsel %vm1057, %v1046, 0
    %v1221 = vsel %vm1057, %v1047, 0
    %v1224 = vsel %vm1057, %v1048, 0
    %v1227 = vsel %vm1057, %v1049, 0
    %v1230 = vsel %vm1057, %v1050, 0
    %v1233 = vsel %vm1057, %v1051, 0
    %v1236 = vsel %vm1057, %v1052, 0
    %v1239 = vsel %vm1057, %v1053, 0
    %v1242 = vsel %vm1057, %v1054, 0
    %v1245 = vsel %vm1057, %v1055, 0
    %v1248 = vsel %vm1057, %v1056, 0
    %v1251 = vsel %vm1057, %v30, 0
    %1253 = vmatprep.subr.mxu0 0.0
    %1254 = vmatpush1.xpose.msra.mxu0 %v1251
    %1255 = vmatprep.subr.mxu0 0.0
    %1256 = vmatpush1.xpose.msra.mxu0 0.0
    %1257 = vmatprep.subr.mxu0 0.0
    %1258 = vmatpush1.xpose.msra.mxu0 0.0
    %1259 = vmatprep.subr.mxu0 0.0
    %1260 = vmatpush1.xpose.msra.mxu0 0.0
    %1261 = vmatprep.subr.mxu0 0.0
    %1262 = vmatpush1.xpose.msra.mxu0 0.0
    %1263 = vmatprep.subr.mxu0 0.0
    %1264 = vmatpush1.xpose.msra.mxu0 0.0
    %1265 = vmatprep.subr.mxu0 0.0
    %1266 = vmatpush1.xpose.msra.mxu0 0.0
    %1267 = vmatprep.subr.mxu0 0.0
    %1268 = vmatpush1.xpose.msra.mxu0 0.0
    %1269 = vmatprep.subr.mxu0 0.0
    %1270 = vmatpush1.xpose.msra.mxu0 0.0
    %1271 = vmatprep.subr.mxu0 0.0
    %1272 = vmatpush1.xpose.msra.mxu0 0.0
    %1273 = vmatprep.subr.mxu0 0.0
    %1274 = vmatpush1.xpose.msra.mxu0 0.0
    %1275 = vmatprep.subr.mxu0 0.0
    %1276 = vmatpush1.xpose.msra.mxu0 0.0
    %1277 = vmatprep.subr.mxu0 0.0
    %1278 = vmatpush1.xpose.msra.mxu0 0.0
    %1279 = vmatprep.subr.mxu0 0.0
    %1280 = vmatpush1.xpose.msra.mxu0 0.0
    %1281 = vmatprep.subr.mxu0 0.0
    %1282 = vmatpush1.xpose.msra.mxu0 0.0
    %1283 = vmatprep.subr.mxu0 0.0
    %1284 = vmatpush1.xpose.msra.mxu0 0.0
    %1285 = vmatprep.subr.mxu0 0.0
    %1286 = vmatpush1.xpose.msra.mxu0 0.0
    %1287 = vmatprep.subr.mxu0 0.0
    %1288 = vmatpush1.xpose.msra.mxu0 0.0
    %1289 = vmatprep.subr.mxu0 0.0
    %1290 = vmatpush1.xpose.msra.mxu0 0.0
    %1291 = vmatprep.subr.mxu0 0.0
    %1292 = vmatpush1.xpose.msra.mxu0 0.0
    %1293 = vmatprep.subr.mxu0 0.0
    %1294 = vmatpush1.xpose.msra.mxu0 0.0
    %1295 = vmatprep.subr.mxu0 0.0
    %1296 = vmatpush1.xpose.msra.mxu0 0.0
    %1297 = vmatprep.subr.mxu0 0.0
    %1298 = vmatpush1.xpose.msra.mxu0 0.0
    %1299 = vmatprep.subr.mxu0 0.0
    %1300 = vmatpush1.xpose.msra.mxu0 0.0
    %1301 = vmatprep.subr.mxu0 0.0
    %1302 = vmatpush1.xpose.msra.mxu0 0.0
    %1303 = vmatprep.subr.mxu0 0.0
    %1304 = vmatpush1.xpose.msra.mxu0 0.0
    %1305 = vmatprep.subr.mxu0 0.0
    %1306 = vmatpush1.xpose.msra.mxu0 0.0
    %1307 = vmatprep.subr.mxu0 0.0
    %1308 = vmatpush1.xpose.msra.mxu0 0.0
    %1309 = vmatprep.subr.mxu0 0.0
    %1310 = vmatpush1.xpose.msra.mxu0 0.0
    %1311 = vmatprep.subr.mxu0 0.0
    %1312 = vmatpush1.xpose.msra.mxu0 0.0
    %1313 = vmatprep.subr.mxu0 0.0
    %1314 = vmatpush1.xpose.msra.mxu0 0.0
    %1315 = vmatprep.subr.mxu0 0.0
    %1316 = vmatpush1.xpose.msra.mxu0 0.0
    %1317 = vmatprep.mubr.f32.mxu0 0.0
    %1318 = vmatmul.mubr.f32.gmra.mrb[0].mxu0 %v1059
    %v1319 = vpop.f32.mrb[0].mxu0
    %v1320 = vadd.f32 0.0, %v1319
    %v1321 = vpop.f32.mrb[0].mxu0
    %1322 = vmatprep.mubr.f32.mxu0 0.0
    %1323 = vmatmul.mubr.f32.gmra.mrb[0].mxu0 %v1062
    %v1324 = vpop.f32.mrb[0].mxu0
    %v1325 = vadd.f32 0.0, %v1324
    %v1326 = vpop.f32.mrb[0].mxu0
    %1327 = vmatprep.mubr.f32.mxu0 0.0
    %1328 = vmatmul.mubr.f32.gmra.mrb[0].mxu0 %v1065
    %v1329 = vpop.f32.mrb[0].mxu0
    %v1330 = vadd.f32 0.0, %v1329
    %v1331 = vpop.f32.mrb[0].mxu0
    %1332 = vmatprep.mubr.f32.mxu0 0.0
    %1333 = vmatmul.mubr.f32.gmra.mrb[0].mxu0 %v1068
    %v1334 = vpop.f32.mrb[0].mxu0
    %v1335 = vadd.f32 0.0, %v1334
    %v1336 = vpop.f32.mrb[0].mxu0
    %1337 = vmatprep.mubr.f32.mxu0 0.0
    %1338 = vmatmul.mubr.f32.gmra.mrb[0].mxu0 %v1071
    %v1339 = vpop.f32.mrb[0].mxu0
    %v1340 = vadd.f32 0.0, %v1339
    %v1341 = vpop.f32.mrb[0].mxu0
    %1342 = vmatprep.mubr.f32.mxu0 0.0
    %1343 = vmatmul.mubr.f32.gmra.mrb[0].mxu0 %v1074
    %v1344 = vpop.f32.mrb[0].mxu0
    %v1345 = vadd.f32 0.0, %v1344
    %v1346 = vpop.f32.mrb[0].mxu0
    %1347 = vmatprep.mubr.f32.mxu0 0.0
    %1348 = vmatmul.mubr.f32.gmra.mrb[0].mxu0 %v1077
    %v1349 = vpop.f32.mrb[0].mxu0
    %v1350 = vadd.f32 0.0, %v1349
    %v1351 = vpop.f32.mrb[0].mxu0
    %1352 = vmatprep.mubr.f32.mxu0 0.0
    %1353 = vmatmul.mubr.f32.gmra.mrb[0].mxu0 %v1080
    %v1354 = vpop.f32.mrb[0].mxu0
    %v1355 = vadd.f32 0.0, %v1354
    %v1356 = vpop.f32.mrb[0].mxu0
    %1357 = vmatprep.mubr.f32.mxu0 0.0
    %1358 = vmatmul.mubr.f32.gmra.mrb[0].mxu0 %v1083
    %v1359 = vpop.f32.mrb[0].mxu0
    %v1360 = vadd.f32 0.0, %v1359
    %v1361 = vpop.f32.mrb[0].mxu0
    %1362 = vmatprep.mubr.f32.mxu0 0.0
    %1363 = vmatmul.mubr.f32.gmra.mrb[0].mxu0 %v1086
    %v1364 = vpop.f32.mrb[0].mxu0
    %v1365 = vadd.f32 0.0, %v1364
    %v1366 = vpop.f32.mrb[0].mxu0
    %1367 = vmatprep.mubr.f32.mxu0 0.0
    %1368 = vmatmul.mubr.f32.gmra.mrb[0].mxu0 %v1089
    %v1369 = vpop.f32.mrb[0].mxu0
    %v1370 = vadd.f32 0.0, %v1369
    %v1371 = vpop.f32.mrb[0].mxu0
    %1372 = vmatprep.mubr.f32.mxu0 0.0
    %1373 = vmatmul.mubr.f32.gmra.mrb[0].mxu0 %v1092
    %v1374 = vpop.f32.mrb[0].mxu0
    %v1375 = vadd.f32 0.0, %v1374
    %v1376 = vpop.f32.mrb[0].mxu0
    %1377 = vmatprep.mubr.f32.mxu0 0.0
    %1378 = vmatmul.mubr.f32.gmra.mrb[0].mxu0 %v1095
    %v1379 = vpop.f32.mrb[0].mxu0
    %v1380 = vadd.f32 0.0, %v1379
    %v1381 = vpop.f32.mrb[0].mxu0
    %1382 = vmatprep.mubr.f32.mxu0 0.0
    %1383 = vmatmul.mubr.f32.gmra.mrb[0].mxu0 %v1098
    %v1384 = vpop.f32.mrb[0].mxu0
    %v1385 = vadd.f32 0.0, %v1384
    %v1386 = vpop.f32.mrb[0].mxu0
    %1387 = vmatprep.mubr.f32.mxu0 0.0
    %1388 = vmatmul.mubr.f32.gmra.mrb[0].mxu0 %v1101
    %v1389 = vpop.f32.mrb[0].mxu0
    %v1390 = vadd.f32 0.0, %v1389
    %v1391 = vpop.f32.mrb[0].mxu0
    %1392 = vmatprep.mubr.f32.mxu0 0.0
    %1393 = vmatmul.mubr.f32.gmra.mrb[0].mxu0 %v1104
    %v1394 = vpop.f32.mrb[0].mxu0
    %v1395 = vadd.f32 0.0, %v1394
    %v1396 = vpop.f32.mrb[0].mxu0
    %1397 = vmatprep.mubr.f32.mxu0 0.0
    %1398 = vmatmul.mubr.f32.gmra.mrb[0].mxu0 %v1107
    %v1399 = vpop.f32.mrb[0].mxu0
    %v1400 = vadd.f32 0.0, %v1399
    %v1401 = vpop.f32.mrb[0].mxu0
    %1402 = vmatprep.mubr.f32.mxu0 0.0
    %1403 = vmatmul.mubr.f32.gmra.mrb[0].mxu0 %v1110
    %v1404 = vpop.f32.mrb[0].mxu0
    %v1405 = vadd.f32 0.0, %v1404
    %v1406 = vpop.f32.mrb[0].mxu0
    %1407 = vmatprep.mubr.f32.mxu0 0.0
    %1408 = vmatmul.mubr.f32.gmra.mrb[0].mxu0 %v1113
    %v1409 = vpop.f32.mrb[0].mxu0
    %v1410 = vadd.f32 0.0, %v1409
    %v1411 = vpop.f32.mrb[0].mxu0
    %1412 = vmatprep.mubr.f32.mxu0 0.0
    %1413 = vmatmul.mubr.f32.gmra.mrb[0].mxu0 %v1116
    %v1414 = vpop.f32.mrb[0].mxu0
    %v1415 = vadd.f32 0.0, %v1414
    %v1416 = vpop.f32.mrb[0].mxu0
    %1417 = vmatprep.mubr.f32.mxu0 0.0
    %1418 = vmatmul.mubr.f32.gmra.mrb[0].mxu0 %v1119
    %v1419 = vpop.f32.mrb[0].mxu0
    %v1420 = vadd.f32 0.0, %v1419
    %v1421 = vpop.f32.mrb[0].mxu0
    %1422 = vmatprep.mubr.f32.mxu0 0.0
    %1423 = vmatmul.mubr.f32.gmra.mrb[0].mxu0 %v1122
    %v1424 = vpop.f32.mrb[0].mxu0
    %v1425 = vadd.f32 0.0, %v1424
    %v1426 = vpop.f32.mrb[0].mxu0
    %1427 = vmatprep.mubr.f32.mxu0 0.0
    %1428 = vmatmul.mubr.f32.gmra.mrb[0].mxu0 %v1125
    %v1429 = vpop.f32.mrb[0].mxu0
    %v1430 = vadd.f32 0.0, %v1429
    %v1431 = vpop.f32.mrb[0].mxu0
    %1432 = vmatprep.mubr.f32.mxu0 0.0
    %1433 = vmatmul.mubr.f32.gmra.mrb[0].mxu0 %v1128
    %v1434 = vpop.f32.mrb[0].mxu0
    %v1435 = vadd.f32 0.0, %v1434
    %v1436 = vpop.f32.mrb[0].mxu0
    %1437 = vmatprep.mubr.f32.mxu0 0.0
    %1438 = vmatmul.mubr.f32.gmra.mrb[0].mxu0 %v1131
    %v1439 = vpop.f32.mrb[0].mxu0
    %v1440 = vadd.f32 0.0, %v1439
    %v1441 = vpop.f32.mrb[0].mxu0
    %1442 = vmatprep.mubr.f32.mxu0 0.0
    %1443 = vmatmul.mubr.f32.gmra.mrb[0].mxu0 %v1134
    %v1444 = vpop.f32.mrb[0].mxu0
    %v1445 = vadd.f32 0.0, %v1444
    %v1446 = vpop.f32.mrb[0].mxu0
    %1447 = vmatprep.mubr.f32.mxu0 0.0
    %1448 = vmatmul.mubr.f32.gmra.mrb[0].mxu0 %v1137
    %v1449 = vpop.f32.mrb[0].mxu0
    %v1450 = vadd.f32 0.0, %v1449
    %v1451 = vpop.f32.mrb[0].mxu0
    %1452 = vmatprep.mubr.f32.mxu0 0.0
    %1453 = vmatmul.mubr.f32.gmra.mrb[0].mxu0 %v1140
    %v1454 = vpop.f32.mrb[0].mxu0
    %v1455 = vadd.f32 0.0, %v1454
    %v1456 = vpop.f32.mrb[0].mxu0
    %1457 = vmatprep.mubr.f32.mxu0 0.0
    %1458 = vmatmul.mubr.f32.gmra.mrb[0].mxu0 %v1143
    %v1459 = vpop.f32.mrb[0].mxu0
    %v1460 = vadd.f32 0.0, %v1459
    %v1461 = vpop.f32.mrb[0].mxu0
    %1462 = vmatprep.mubr.f32.mxu0 0.0
    %1463 = vmatmul.mubr.f32.gmra.mrb[0].mxu0 %v1146
    %v1464 = vpop.f32.mrb[0].mxu0
    %v1465 = vadd.f32 0.0, %v1464
    %v1466 = vpop.f32.mrb[0].mxu0
    %1467 = vmatprep.mubr.f32.mxu0 0.0
    %1468 = vmatmul.mubr.f32.gmra.mrb[0].mxu0 %v1149
    %v1469 = vpop.f32.mrb[0].mxu0
    %v1470 = vadd.f32 0.0, %v1469
    %v1471 = vpop.f32.mrb[0].mxu0
    %1472 = vmatprep.mubr.f32.mxu0 0.0
    %1473 = vmatmul.mubr.f32.gmra.mrb[0].mxu0 %v1152
    %v1474 = vpop.f32.mrb[0].mxu0
    %v1475 = vadd.f32 0.0, %v1474
    %v1476 = vpop.f32.mrb[0].mxu0
    %1477 = vmatprep.mubr.f32.mxu0 0.0
    %1478 = vmatmul.mubr.f32.gmra.mrb[0].mxu0 %v1155
    %v1479 = vpop.f32.mrb[0].mxu0
    %v1480 = vadd.f32 0.0, %v1479
    %v1481 = vpop.f32.mrb[0].mxu0
    %1482 = vmatprep.mubr.f32.mxu0 0.0
    %1483 = vmatmul.mubr.f32.gmra.mrb[0].mxu0 %v1158
    %v1484 = vpop.f32.mrb[0].mxu0
    %v1485 = vadd.f32 0.0, %v1484
    %v1486 = vpop.f32.mrb[0].mxu0
    %1487 = vmatprep.mubr.f32.mxu0 0.0
    %1488 = vmatmul.mubr.f32.gmra.mrb[0].mxu0 %v1161
    %v1489 = vpop.f32.mrb[0].mxu0
    %v1490 = vadd.f32 0.0, %v1489
    %v1491 = vpop.f32.mrb[0].mxu0
    %1492 = vmatprep.mubr.f32.mxu0 0.0
    %1493 = vmatmul.mubr.f32.gmra.mrb[0].mxu0 %v1164
    %v1494 = vpop.f32.mrb[0].mxu0
    %v1495 = vadd.f32 0.0, %v1494
    %v1496 = vpop.f32.mrb[0].mxu0
    %1497 = vmatprep.mubr.f32.mxu0 0.0
    %1498 = vmatmul.mubr.f32.gmra.mrb[0].mxu0 %v1167
    %v1499 = vpop.f32.mrb[0].mxu0
    %v1500 = vadd.f32 0.0, %v1499
    %v1501 = vpop.f32.mrb[0].mxu0
    %1502 = vmatprep.mubr.f32.mxu0 0.0
    %1503 = vmatmul.mubr.f32.gmra.mrb[0].mxu0 %v1170
    %v1504 = vpop.f32.mrb[0].mxu0
    %v1505 = vadd.f32 0.0, %v1504
    %v1506 = vpop.f32.mrb[0].mxu0
    %1507 = vmatprep.mubr.f32.mxu0 0.0
    %1508 = vmatmul.mubr.f32.gmra.mrb[0].mxu0 %v1173
    %v1509 = vpop.f32.mrb[0].mxu0
    %v1510 = vadd.f32 0.0, %v1509
    %v1511 = vpop.f32.mrb[0].mxu0
    %1512 = vmatprep.mubr.f32.mxu0 0.0
    %1513 = vmatmul.mubr.f32.gmra.mrb[0].mxu0 %v1176
    %v1514 = vpop.f32.mrb[0].mxu0
    %v1515 = vadd.f32 0.0, %v1514
    %v1516 = vpop.f32.mrb[0].mxu0
    %1517 = vmatprep.mubr.f32.mxu0 0.0
    %1518 = vmatmul.mubr.f32.gmra.mrb[0].mxu0 %v1179
    %v1519 = vpop.f32.mrb[0].mxu0
    %v1520 = vadd.f32 0.0, %v1519
    %v1521 = vpop.f32.mrb[0].mxu0
    %1522 = vmatprep.mubr.f32.mxu0 0.0
    %1523 = vmatmul.mubr.f32.gmra.mrb[0].mxu0 %v1182
    %v1524 = vpop.f32.mrb[0].mxu0
    %v1525 = vadd.f32 0.0, %v1524
    %v1526 = vpop.f32.mrb[0].mxu0
    %1527 = vmatprep.mubr.f32.mxu0 0.0
    %1528 = vmatmul.mubr.f32.gmra.mrb[0].mxu0 %v1185
    %v1529 = vpop.f32.mrb[0].mxu0
    %v1530 = vadd.f32 0.0, %v1529
    %v1531 = vpop.f32.mrb[0].mxu0
    %1532 = vmatprep.mubr.f32.mxu0 0.0
    %1533 = vmatmul.mubr.f32.gmra.mrb[0].mxu0 %v1188
    %v1534 = vpop.f32.mrb[0].mxu0
    %v1535 = vadd.f32 0.0, %v1534
    %v1536 = vpop.f32.mrb[0].mxu0
    %1537 = vmatprep.mubr.f32.mxu0 0.0
    %1538 = vmatmul.mubr.f32.gmra.mrb[0].mxu0 %v1191
    %v1539 = vpop.f32.mrb[0].mxu0
    %v1540 = vadd.f32 0.0, %v1539
    %v1541 = vpop.f32.mrb[0].mxu0
    %1542 = vmatprep.mubr.f32.mxu0 0.0
    %1543 = vmatmul.mubr.f32.gmra.mrb[0].mxu0 %v1194
    %v1544 = vpop.f32.mrb[0].mxu0
    %v1545 = vadd.f32 0.0, %v1544
    %v1546 = vpop.f32.mrb[0].mxu0
    %1547 = vmatprep.mubr.f32.mxu0 0.0
    %1548 = vmatmul.mubr.f32.gmra.mrb[0].mxu0 %v1197
    %v1549 = vpop.f32.mrb[0].mxu0
    %v1550 = vadd.f32 0.0, %v1549
    %v1551 = vpop.f32.mrb[0].mxu0
    %1552 = vmatprep.mubr.f32.mxu0 0.0
    %1553 = vmatmul.mubr.f32.gmra.mrb[0].mxu0 %v1200
    %v1554 = vpop.f32.mrb[0].mxu0
    %v1555 = vadd.f32 0.0, %v1554
    %v1556 = vpop.f32.mrb[0].mxu0
    %1557 = vmatprep.mubr.f32.mxu0 0.0
    %1558 = vmatmul.mubr.f32.gmra.mrb[0].mxu0 %v1203
    %v1559 = vpop.f32.mrb[0].mxu0
    %v1560 = vadd.f32 0.0, %v1559
    %v1561 = vpop.f32.mrb[0].mxu0
    %1562 = vmatprep.mubr.f32.mxu0 0.0
    %1563 = vmatmul.mubr.f32.gmra.mrb[0].mxu0 %v1206
    %v1564 = vpop.f32.mrb[0].mxu0
    %v1565 = vadd.f32 0.0, %v1564
    %v1566 = vpop.f32.mrb[0].mxu0
    %1567 = vmatprep.mubr.f32.mxu0 0.0
    %1568 = vmatmul.mubr.f32.gmra.mrb[0].mxu0 %v1209
    %v1569 = vpop.f32.mrb[0].mxu0
    %v1570 = vadd.f32 0.0, %v1569
    %v1571 = vpop.f32.mrb[0].mxu0
    %1572 = vmatprep.mubr.f32.mxu0 0.0
    %1573 = vmatmul.mubr.f32.gmra.mrb[0].mxu0 %v1212
    %v1574 = vpop.f32.mrb[0].mxu0
    %v1575 = vadd.f32 0.0, %v1574
    %v1576 = vpop.f32.mrb[0].mxu0
    %1577 = vmatprep.mubr.f32.mxu0 0.0
    %1578 = vmatmul.mubr.f32.gmra.mrb[0].mxu0 %v1215
    %v1579 = vpop.f32.mrb[0].mxu0
    %v1580 = vadd.f32 0.0, %v1579
    %v1581 = vpop.f32.mrb[0].mxu0
    %1582 = vmatprep.mubr.f32.mxu0 0.0
    %1583 = vmatmul.mubr.f32.gmra.mrb[0].mxu0 %v1218
    %v1584 = vpop.f32.mrb[0].mxu0
    %v1585 = vadd.f32 0.0, %v1584
    %v1586 = vpop.f32.mrb[0].mxu0
    %1587 = vmatprep.mubr.f32.mxu0 0.0
    %1588 = vmatmul.mubr.f32.gmra.mrb[0].mxu0 %v1221
    %v1589 = vpop.f32.mrb[0].mxu0
    %v1590 = vadd.f32 0.0, %v1589
    %v1591 = vpop.f32.mrb[0].mxu0
    %1592 = vmatprep.mubr.f32.mxu0 0.0
    %1593 = vmatmul.mubr.f32.gmra.mrb[0].mxu0 %v1224
    %v1594 = vpop.f32.mrb[0].mxu0
    %v1595 = vadd.f32 0.0, %v1594
    %v1596 = vpop.f32.mrb[0].mxu0
    %1597 = vmatprep.mubr.f32.mxu0 0.0
    %1598 = vmatmul.mubr.f32.gmra.mrb[0].mxu0 %v1227
    %v1599 = vpop.f32.mrb[0].mxu0
    %v1600 = vadd.f32 0.0, %v1599
    %v1601 = vpop.f32.mrb[0].mxu0
    %1602 = vmatprep.mubr.f32.mxu0 0.0
    %1603 = vmatmul.mubr.f32.gmra.mrb[0].mxu0 %v1230
    %v1604 = vpop.f32.mrb[0].mxu0
    %v1605 = vadd.f32 0.0, %v1604
    %v1606 = vpop.f32.mrb[0].mxu0
    %1607 = vmatprep.mubr.f32.mxu0 0.0
    %1608 = vmatmul.mubr.f32.gmra.mrb[0].mxu0 %v1233
    %v1609 = vpop.f32.mrb[0].mxu0
    %v1610 = vadd.f32 0.0, %v1609
    %v1611 = vpop.f32.mrb[0].mxu0
    %1612 = vmatprep.mubr.f32.mxu0 0.0
    %1613 = vmatmul.mubr.f32.gmra.mrb[0].mxu0 %v1236
    %v1614 = vpop.f32.mrb[0].mxu0
    %v1615 = vadd.f32 0.0, %v1614
    %v1616 = vpop.f32.mrb[0].mxu0
    %1617 = vmatprep.mubr.f32.mxu0 0.0
    %1618 = vmatmul.mubr.f32.gmra.mrb[0].mxu0 %v1239
    %v1619 = vpop.f32.mrb[0].mxu0
    %v1620 = vadd.f32 0.0, %v1619
    %v1621 = vpop.f32.mrb[0].mxu0
    %1622 = vmatprep.mubr.f32.mxu0 0.0
    %1623 = vmatmul.mubr.f32.gmra.mrb[0].mxu0 %v1242
    %v1624 = vpop.f32.mrb[0].mxu0
    %v1625 = vadd.f32 0.0, %v1624
    %v1626 = vpop.f32.mrb[0].mxu0
    %1627 = vmatprep.mubr.f32.mxu0 0.0
    %1628 = vmatmul.mubr.f32.gmra.mrb[0].mxu0 %v1245
    %v1629 = vpop.f32.mrb[0].mxu0
    %v1630 = vadd.f32 0.0, %v1629
    %v1631 = vpop.f32.mrb[0].mxu0
    %1632 = vmatprep.mubr.f32.mxu0 0.0
    %1633 = vmatmul.mubr.f32.gmra.mrb[0].mxu0 %v1248
    %v1634 = vpop.f32.mrb[0].mxu0
    %v1635 = vadd.f32 0.0, %v1634
    %v1636 = vpop.f32.mrb[0].mxu0
    %1637 = vdwg.mxu0
    %1638 = vxpose.xlu0.b32.start [1/16] %v1320, 128
    %1639 = vxpose.xlu0.b32.cont [2/16] %v1325, 128
    %1640 = vxpose.xlu0.b32.cont [3/16] %v1330, 128
    %1641 = vxpose.xlu0.b32.cont [4/16] %v1335, 128
    %1642 = vxpose.xlu0.b32.cont [5/16] %v1340, 128
    %1643 = vxpose.xlu0.b32.cont [6/16] %v1345, 128
    %1644 = vxpose.xlu0.b32.cont [7/16] %v1350, 128
    %1645 = vxpose.xlu0.b32.cont [8/16] %v1355, 128
    %1646 = vxpose.xlu0.b32.cont [9/16] %v1360, 128
    %1647 = vxpose.xlu0.b32.cont [10/16] %v1365, 128
    %1648 = vxpose.xlu0.b32.cont [11/16] %v1370, 128
    %1649 = vxpose.xlu0.b32.cont [12/16] %v1375, 128
    %1650 = vxpose.xlu0.b32.cont [13/16] %v1380, 128
    %1651 = vxpose.xlu0.b32.cont [14/16] %v1385, 128
    %1652 = vxpose.xlu0.b32.cont [15/16] %v1390, 128
    %1653 = vxpose.xlu0.b32.end [16/16] %v1395, 128
    %v1654 = vpop.trf.xlu0
    %v1655 = vpop.trf.xlu0
    %v1656 = vpop.trf.xlu0
    %v1657 = vpop.trf.xlu0
    %v1658 = vpop.trf.xlu0
    %v1659 = vpop.trf.xlu0
    %v1660 = vpop.trf.xlu0
    %v1661 = vpop.trf.xlu0
    %v1662 = vpop.trf.xlu0
    %v1663 = vpop.trf.xlu0
    %v1664 = vpop.trf.xlu0
    %v1665 = vpop.trf.xlu0
    %v1666 = vpop.trf.xlu0
    %v1667 = vpop.trf.xlu0
    %v1668 = vpop.trf.xlu0
    %v1669 = vpop.trf.xlu0
    %1670 = vxpose.xlu0.b32.start [1/16] %v1400, 128
    %1671 = vxpose.xlu0.b32.cont [2/16] %v1405, 128
    %1672 = vxpose.xlu0.b32.cont [3/16] %v1410, 128
    %1673 = vxpose.xlu0.b32.cont [4/16] %v1415, 128
    %1674 = vxpose.xlu0.b32.cont [5/16] %v1420, 128
    %1675 = vxpose.xlu0.b32.cont [6/16] %v1425, 128
    %1676 = vxpose.xlu0.b32.cont [7/16] %v1430, 128
    %1677 = vxpose.xlu0.b32.cont [8/16] %v1435, 128
    %1678 = vxpose.xlu0.b32.cont [9/16] %v1440, 128
    %1679 = vxpose.xlu0.b32.cont [10/16] %v1445, 128
    %1680 = vxpose.xlu0.b32.cont [11/16] %v1450, 128
    %1681 = vxpose.xlu0.b32.cont [12/16] %v1455, 128
    %1682 = vxpose.xlu0.b32.cont [13/16] %v1460, 128
    %1683 = vxpose.xlu0.b32.cont [14/16] %v1465, 128
    %1684 = vxpose.xlu0.b32.cont [15/16] %v1470, 128
    %1685 = vxpose.xlu0.b32.end [16/16] %v1475, 128
    %v1686 = vpop.trf.xlu0
    %v1687 = vpop.trf.xlu0
    %v1688 = vpop.trf.xlu0
    %v1689 = vpop.trf.xlu0
    %v1690 = vpop.trf.xlu0
    %v1691 = vpop.trf.xlu0
    %v1692 = vpop.trf.xlu0
    %v1693 = vpop.trf.xlu0
    %v1694 = vpop.trf.xlu0
    %v1695 = vpop.trf.xlu0
    %v1696 = vpop.trf.xlu0
    %v1697 = vpop.trf.xlu0
    %v1698 = vpop.trf.xlu0
    %v1699 = vpop.trf.xlu0
    %v1700 = vpop.trf.xlu0
    %v1701 = vpop.trf.xlu0
    %1702 = vxpose.xlu0.b32.start [1/16] %v1480, 128
    %1703 = vxpose.xlu0.b32.cont [2/16] %v1485, 128
    %1704 = vxpose.xlu0.b32.cont [3/16] %v1490, 128
    %1705 = vxpose.xlu0.b32.cont [4/16] %v1495, 128
    %1706 = vxpose.xlu0.b32.cont [5/16] %v1500, 128
    %1707 = vxpose.xlu0.b32.cont [6/16] %v1505, 128
    %1708 = vxpose.xlu0.b32.cont [7/16] %v1510, 128
    %1709 = vxpose.xlu0.b32.cont [8/16] %v1515, 128
    %1710 = vxpose.xlu0.b32.cont [9/16] %v1520, 128
    %1711 = vxpose.xlu0.b32.cont [10/16] %v1525, 128
    %1712 = vxpose.xlu0.b32.cont [11/16] %v1530, 128
    %1713 = vxpose.xlu0.b32.cont [12/16] %v1535, 128
    %1714 = vxpose.xlu0.b32.cont [13/16] %v1540, 128
    %1715 = vxpose.xlu0.b32.cont [14/16] %v1545, 128
    %1716 = vxpose.xlu0.b32.cont [15/16] %v1550, 128
    %1717 = vxpose.xlu0.b32.end [16/16] %v1555, 128
    %v1718 = vpop.trf.xlu0
    %v1719 = vpop.trf.xlu0
    %v1720 = vpop.trf.xlu0
    %v1721 = vpop.trf.xlu0
    %v1722 = vpop.trf.xlu0
    %v1723 = vpop.trf.xlu0
    %v1724 = vpop.trf.xlu0
    %v1725 = vpop.trf.xlu0
    %v1726 = vpop.trf.xlu0
    %v1727 = vpop.trf.xlu0
    %v1728 = vpop.trf.xlu0
    %v1729 = vpop.trf.xlu0
    %v1730 = vpop.trf.xlu0
    %v1731 = vpop.trf.xlu0
    %v1732 = vpop.trf.xlu0
    %v1733 = vpop.trf.xlu0
    %1734 = vxpose.xlu0.b32.start [1/16] %v1560, 128
    %1735 = vxpose.xlu0.b32.cont [2/16] %v1565, 128
    %1736 = vxpose.xlu0.b32.cont [3/16] %v1570, 128
    %1737 = vxpose.xlu0.b32.cont [4/16] %v1575, 128
    %1738 = vxpose.xlu0.b32.cont [5/16] %v1580, 128
    %1739 = vxpose.xlu0.b32.cont [6/16] %v1585, 128
    %1740 = vxpose.xlu0.b32.cont [7/16] %v1590, 128
    %1741 = vxpose.xlu0.b32.cont [8/16] %v1595, 128
    %1742 = vxpose.xlu0.b32.cont [9/16] %v1600, 128
    %1743 = vxpose.xlu0.b32.cont [10/16] %v1605, 128
    %1744 = vxpose.xlu0.b32.cont [11/16] %v1610, 128
    %1745 = vxpose.xlu0.b32.cont [12/16] %v1615, 128
    %1746 = vxpose.xlu0.b32.cont [13/16] %v1620, 128
    %1747 = vxpose.xlu0.b32.cont [14/16] %v1625, 128
    %1748 = vxpose.xlu0.b32.cont [15/16] %v1630, 128
    %1749 = vxpose.xlu0.b32.end [16/16] %v1635, 128
    %v1750 = vpop.trf.xlu0
    %v1751 = vpop.trf.xlu0
    %v1752 = vpop.trf.xlu0
    %v1753 = vpop.trf.xlu0
    %v1754 = vpop.trf.xlu0
    %v1755 = vpop.trf.xlu0
    %v1756 = vpop.trf.xlu0
    %v1757 = vpop.trf.xlu0
    %v1758 = vpop.trf.xlu0
    %v1759 = vpop.trf.xlu0
    %v1760 = vpop.trf.xlu0
    %v1761 = vpop.trf.xlu0
    %v1762 = vpop.trf.xlu0
    %v1763 = vpop.trf.xlu0
    %v1764 = vpop.trf.xlu0
    %v1765 = vpop.trf.xlu0
    %v1766 = vmul.f32 %v18, 0.98078525
    %v1767 = vmul.f32 %v19, 0.98078525
    %v1768 = vmul.f32 %v20, 0.98078525
    %v1769 = vmul.f32 %v21, 0.98078525
    %v1770 = vmul.f32 %v1654, -0.19509032
    %v1771 = vmul.f32 %v1686, -0.19509032
    %v1772 = vmul.f32 %v1718, -0.19509032
    %v1773 = vmul.f32 %v1750, -0.19509032
    %v1774 = vadd.f32 %v1766, %v1770
    %v1775 = vadd.f32 %v1767, %v1771
    %v1776 = vadd.f32 %v1768, %v1772
    %v1777 = vadd.f32 %v1769, %v1773
    %v1778 = vmul.f32 %v26, 0.875
    %v1779 = vmul.f32 %v27, 0.875
    %v1780 = vmul.f32 %v28, 0.875
    %v1781 = vmul.f32 %v29, 0.875
    %1782 = vxpose.xlu0.b32.start [1/16] %v1774, 128
    %1783 = vxpose.xlu0.b32.cont [2/16] 0.0, 128
    %1784 = vxpose.xlu0.b32.cont [3/16] 0.0, 128
    %1785 = vxpose.xlu0.b32.cont [4/16] 0.0, 128
    %1786 = vxpose.xlu0.b32.cont [5/16] 0.0, 128
    %1787 = vxpose.xlu0.b32.cont [6/16] 0.0, 128
    %1788 = vxpose.xlu0.b32.cont [7/16] 0.0, 128
    %1789 = vxpose.xlu0.b32.cont [8/16] 0.0, 128
    %1790 = vxpose.xlu0.b32.cont [9/16] 0.0, 128
    %1791 = vxpose.xlu0.b32.cont [10/16] 0.0, 128
    %1792 = vxpose.xlu0.b32.cont [11/16] 0.0, 128
    %1793 = vxpose.xlu0.b32.cont [12/16] 0.0, 128
    %1794 = vxpose.xlu0.b32.cont [13/16] 0.0, 128
    %1795 = vxpose.xlu0.b32.cont [14/16] 0.0, 128
    %1796 = vxpose.xlu0.b32.cont [15/16] 0.0, 128
    %1797 = vxpose.xlu0.b32.end [16/16] 0.0, 128
    %v1798 = vpop.trf.xlu0
    %v1799 = vpop.trf.xlu0
    %v1800 = vpop.trf.xlu0
    %v1801 = vpop.trf.xlu0
    %v1802 = vpop.trf.xlu0
    %v1803 = vpop.trf.xlu0
    %v1804 = vpop.trf.xlu0
    %v1805 = vpop.trf.xlu0
    %v1806 = vpop.trf.xlu0
    %v1807 = vpop.trf.xlu0
    %v1808 = vpop.trf.xlu0
    %v1809 = vpop.trf.xlu0
    %v1810 = vpop.trf.xlu0
    %v1811 = vpop.trf.xlu0
    %v1812 = vpop.trf.xlu0
    %v1813 = vpop.trf.xlu0
    %1814 = vxpose.xlu0.b32.start [1/16] %v1775, 128
    %1815 = vxpose.xlu0.b32.cont [2/16] 0.0, 128
    %1816 = vxpose.xlu0.b32.cont [3/16] 0.0, 128
    %1817 = vxpose.xlu0.b32.cont [4/16] 0.0, 128
    %1818 = vxpose.xlu0.b32.cont [5/16] 0.0, 128
    %1819 = vxpose.xlu0.b32.cont [6/16] 0.0, 128
    %1820 = vxpose.xlu0.b32.cont [7/16] 0.0, 128
    %1821 = vxpose.xlu0.b32.cont [8/16] 0.0, 128
    %1822 = vxpose.xlu0.b32.cont [9/16] 0.0, 128
    %1823 = vxpose.xlu0.b32.cont [10/16] 0.0, 128
    %1824 = vxpose.xlu0.b32.cont [11/16] 0.0, 128
    %1825 = vxpose.xlu0.b32.cont [12/16] 0.0, 128
    %1826 = vxpose.xlu0.b32.cont [13/16] 0.0, 128
    %1827 = vxpose.xlu0.b32.cont [14/16] 0.0, 128
    %1828 = vxpose.xlu0.b32.cont [15/16] 0.0, 128
    %1829 = vxpose.xlu0.b32.end [16/16] 0.0, 128
    %v1830 = vpop.trf.xlu0
    %v1831 = vpop.trf.xlu0
    %v1832 = vpop.trf.xlu0
    %v1833 = vpop.trf.xlu0
    %v1834 = vpop.trf.xlu0
    %v1835 = vpop.trf.xlu0
    %v1836 = vpop.trf.xlu0
    %v1837 = vpop.trf.xlu0
    %v1838 = vpop.trf.xlu0
    %v1839 = vpop.trf.xlu0
    %v1840 = vpop.trf.xlu0
    %v1841 = vpop.trf.xlu0
    %v1842 = vpop.trf.xlu0
    %v1843 = vpop.trf.xlu0
    %v1844 = vpop.trf.xlu0
    %v1845 = vpop.trf.xlu0
    %1846 = vxpose.xlu0.b32.start [1/16] %v1776, 128
    %1847 = vxpose.xlu0.b32.cont [2/16] 0.0, 128
    %1848 = vxpose.xlu0.b32.cont [3/16] 0.0, 128
    %1849 = vxpose.xlu0.b32.cont [4/16] 0.0, 128
    %1850 = vxpose.xlu0.b32.cont [5/16] 0.0, 128
    %1851 = vxpose.xlu0.b32.cont [6/16] 0.0, 128
    %1852 = vxpose.xlu0.b32.cont [7/16] 0.0, 128
    %1853 = vxpose.xlu0.b32.cont [8/16] 0.0, 128
    %1854 = vxpose.xlu0.b32.cont [9/16] 0.0, 128
    %1855 = vxpose.xlu0.b32.cont [10/16] 0.0, 128
    %1856 = vxpose.xlu0.b32.cont [11/16] 0.0, 128
    %1857 = vxpose.xlu0.b32.cont [12/16] 0.0, 128
    %1858 = vxpose.xlu0.b32.cont [13/16] 0.0, 128
    %1859 = vxpose.xlu0.b32.cont [14/16] 0.0, 128
    %1860 = vxpose.xlu0.b32.cont [15/16] 0.0, 128
    %1861 = vxpose.xlu0.b32.end [16/16] 0.0, 128
    %v1862 = vpop.trf.xlu0
    %v1863 = vpop.trf.xlu0
    %v1864 = vpop.trf.xlu0
    %v1865 = vpop.trf.xlu0
    %v1866 = vpop.trf.xlu0
    %v1867 = vpop.trf.xlu0
    %v1868 = vpop.trf.xlu0
    %v1869 = vpop.trf.xlu0
    %v1870 = vpop.trf.xlu0
    %v1871 = vpop.trf.xlu0
    %v1872 = vpop.trf.xlu0
    %v1873 = vpop.trf.xlu0
    %v1874 = vpop.trf.xlu0
    %v1875 = vpop.trf.xlu0
    %v1876 = vpop.trf.xlu0
    %v1877 = vpop.trf.xlu0
    %1878 = vxpose.xlu0.b32.start [1/16] %v1777, 128
    %1879 = vxpose.xlu0.b32.cont [2/16] 0.0, 128
    %1880 = vxpose.xlu0.b32.cont [3/16] 0.0, 128
    %1881 = vxpose.xlu0.b32.cont [4/16] 0.0, 128
    %1882 = vxpose.xlu0.b32.cont [5/16] 0.0, 128
    %1883 = vxpose.xlu0.b32.cont [6/16] 0.0, 128
    %1884 = vxpose.xlu0.b32.cont [7/16] 0.0, 128
    %1885 = vxpose.xlu0.b32.cont [8/16] 0.0, 128
    %1886 = vxpose.xlu0.b32.cont [9/16] 0.0, 128
    %1887 = vxpose.xlu0.b32.cont [10/16] 0.0, 128
    %1888 = vxpose.xlu0.b32.cont [11/16] 0.0, 128
    %1889 = vxpose.xlu0.b32.cont [12/16] 0.0, 128
    %1890 = vxpose.xlu0.b32.cont [13/16] 0.0, 128
    %1891 = vxpose.xlu0.b32.cont [14/16] 0.0, 128
    %1892 = vxpose.xlu0.b32.cont [15/16] 0.0, 128
    %1893 = vxpose.xlu0.b32.end [16/16] 0.0, 128
    %v1894 = vpop.trf.xlu0
    %v1895 = vpop.trf.xlu0
    %v1896 = vpop.trf.xlu0
    %v1897 = vpop.trf.xlu0
    %v1898 = vpop.trf.xlu0
    %v1899 = vpop.trf.xlu0
    %v1900 = vpop.trf.xlu0
    %v1901 = vpop.trf.xlu0
    %v1902 = vpop.trf.xlu0
    %v1903 = vpop.trf.xlu0
    %v1904 = vpop.trf.xlu0
    %v1905 = vpop.trf.xlu0
    %v1906 = vpop.trf.xlu0
    %v1907 = vpop.trf.xlu0
    %v1908 = vpop.trf.xlu0
    %v1909 = vpop.trf.xlu0
    %v1911 = vsel %vm159, %v1798, 0
    %v1914 = vsel %vm159, %v1799, 0
    %v1917 = vsel %vm159, %v1800, 0
    %v1920 = vsel %vm159, %v1801, 0
    %v1923 = vsel %vm159, %v1802, 0
    %v1926 = vsel %vm159, %v1803, 0
    %v1929 = vsel %vm159, %v1804, 0
    %v1932 = vsel %vm159, %v1805, 0
    %v1935 = vsel %vm159, %v1806, 0
    %v1938 = vsel %vm159, %v1807, 0
    %v1941 = vsel %vm159, %v1808, 0
    %v1944 = vsel %vm159, %v1809, 0
    %v1947 = vsel %vm159, %v1810, 0
    %v1950 = vsel %vm159, %v1811, 0
    %v1953 = vsel %vm159, %v1812, 0
    %v1956 = vsel %vm159, %v1813, 0
    %v1959 = vsel %vm159, %v1830, 0
    %v1962 = vsel %vm159, %v1831, 0
    %v1965 = vsel %vm159, %v1832, 0
    %v1968 = vsel %vm159, %v1833, 0
    %v1971 = vsel %vm159, %v1834, 0
    %v1974 = vsel %vm159, %v1835, 0
    %v1977 = vsel %vm159, %v1836, 0
    %v1980 = vsel %vm159, %v1837, 0
    %v1983 = vsel %vm159, %v1838, 0
    %v1986 = vsel %vm159, %v1839, 0
    %v1989 = vsel %vm159, %v1840, 0
    %v1992 = vsel %vm159, %v1841, 0
    %v1995 = vsel %vm159, %v1842, 0
    %v1998 = vsel %vm159, %v1843, 0
    %v2001 = vsel %vm159, %v1844, 0
    %v2004 = vsel %vm159, %v1845, 0
    %v2007 = vsel %vm159, %v1862, 0
    %v2010 = vsel %vm159, %v1863, 0
    %v2013 = vsel %vm159, %v1864, 0
    %v2016 = vsel %vm159, %v1865, 0
    %v2019 = vsel %vm159, %v1866, 0
    %v2022 = vsel %vm159, %v1867, 0
    %v2025 = vsel %vm159, %v1868, 0
    %v2028 = vsel %vm159, %v1869, 0
    %v2031 = vsel %vm159, %v1870, 0
    %v2034 = vsel %vm159, %v1871, 0
    %v2037 = vsel %vm159, %v1872, 0
    %v2040 = vsel %vm159, %v1873, 0
    %v2043 = vsel %vm159, %v1874, 0
    %v2046 = vsel %vm159, %v1875, 0
    %v2049 = vsel %vm159, %v1876, 0
    %v2052 = vsel %vm159, %v1877, 0
    %v2055 = vsel %vm159, %v1894, 0
    %v2058 = vsel %vm159, %v1895, 0
    %v2061 = vsel %vm159, %v1896, 0
    %v2064 = vsel %vm159, %v1897, 0
    %v2067 = vsel %vm159, %v1898, 0
    %v2070 = vsel %vm159, %v1899, 0
    %v2073 = vsel %vm159, %v1900, 0
    %v2076 = vsel %vm159, %v1901, 0
    %v2079 = vsel %vm159, %v1902, 0
    %v2082 = vsel %vm159, %v1903, 0
    %v2085 = vsel %vm159, %v1904, 0
    %v2088 = vsel %vm159, %v1905, 0
    %v2091 = vsel %vm159, %v1906, 0
    %v2094 = vsel %vm159, %v1907, 0
    %v2097 = vsel %vm159, %v1908, 0
    %v2100 = vsel %vm159, %v1909, 0
    %2102 = vmatprep.subr.mxu0 0.0
    %2103 = vmatpush1.xpose.msra.mxu0 %v353
    %2104 = vmatprep.subr.mxu0 0.0
    %2105 = vmatpush1.xpose.msra.mxu0 %v356
    %2106 = vmatprep.subr.mxu0 0.0
    %2107 = vmatpush1.xpose.msra.mxu0 %v359
    %2108 = vmatprep.subr.mxu0 0.0
    %2109 = vmatpush1.xpose.msra.mxu0 %v362
    %2110 = vmatprep.subr.mxu0 0.0
    %2111 = vmatpush1.xpose.msra.mxu0 0.0
    %2112 = vmatprep.subr.mxu0 0.0
    %2113 = vmatpush1.xpose.msra.mxu0 0.0
    %2114 = vmatprep.subr.mxu0 0.0
    %2115 = vmatpush1.xpose.msra.mxu0 0.0
    %2116 = vmatprep.subr.mxu0 0.0
    %2117 = vmatpush1.xpose.msra.mxu0 0.0
    %2118 = vmatprep.subr.mxu0 0.0
    %2119 = vmatpush1.xpose.msra.mxu0 0.0
    %2120 = vmatprep.subr.mxu0 0.0
    %2121 = vmatpush1.xpose.msra.mxu0 0.0
    %2122 = vmatprep.subr.mxu0 0.0
    %2123 = vmatpush1.xpose.msra.mxu0 0.0
    %2124 = vmatprep.subr.mxu0 0.0
    %2125 = vmatpush1.xpose.msra.mxu0 0.0
    %2126 = vmatprep.subr.mxu0 0.0
    %2127 = vmatpush1.xpose.msra.mxu0 0.0
    %2128 = vmatprep.subr.mxu0 0.0
    %2129 = vmatpush1.xpose.msra.mxu0 0.0
    %2130 = vmatprep.subr.mxu0 0.0
    %2131 = vmatpush1.xpose.msra.mxu0 0.0
    %2132 = vmatprep.subr.mxu0 0.0
    %2133 = vmatpush1.xpose.msra.mxu0 0.0
    %2134 = vmatprep.subr.mxu0 0.0
    %2135 = vmatpush1.xpose.msra.mxu0 0.0
    %2136 = vmatprep.subr.mxu0 0.0
    %2137 = vmatpush1.xpose.msra.mxu0 0.0
    %2138 = vmatprep.subr.mxu0 0.0
    %2139 = vmatpush1.xpose.msra.mxu0 0.0
    %2140 = vmatprep.subr.mxu0 0.0
    %2141 = vmatpush1.xpose.msra.mxu0 0.0
    %2142 = vmatprep.subr.mxu0 0.0
    %2143 = vmatpush1.xpose.msra.mxu0 0.0
    %2144 = vmatprep.subr.mxu0 0.0
    %2145 = vmatpush1.xpose.msra.mxu0 0.0
    %2146 = vmatprep.subr.mxu0 0.0
    %2147 = vmatpush1.xpose.msra.mxu0 0.0
    %2148 = vmatprep.subr.mxu0 0.0
    %2149 = vmatpush1.xpose.msra.mxu0 0.0
    %2150 = vmatprep.subr.mxu0 0.0
    %2151 = vmatpush1.xpose.msra.mxu0 0.0
    %2152 = vmatprep.subr.mxu0 0.0
    %2153 = vmatpush1.xpose.msra.mxu0 0.0
    %2154 = vmatprep.subr.mxu0 0.0
    %2155 = vmatpush1.xpose.msra.mxu0 0.0
    %2156 = vmatprep.subr.mxu0 0.0
    %2157 = vmatpush1.xpose.msra.mxu0 0.0
    %2158 = vmatprep.subr.mxu0 0.0
    %2159 = vmatpush1.xpose.msra.mxu0 0.0
    %2160 = vmatprep.subr.mxu0 0.0
    %2161 = vmatpush1.xpose.msra.mxu0 0.0
    %2162 = vmatprep.subr.mxu0 0.0
    %2163 = vmatpush1.xpose.msra.mxu0 0.0
    %2164 = vmatprep.subr.mxu0 0.0
    %2165 = vmatpush1.xpose.msra.mxu0 0.0
    %2166 = vmatprep.mubr.f32.mxu0 0.0
    %2167 = vmatmul.mubr.f32.gmra.mrb[0].mxu0 %v1911
    %v2168 = vpop.f32.mrb[0].mxu0
    %v2169 = vadd.f32 0.0, %v2168
    %v2170 = vpop.f32.mrb[0].mxu0
    %2171 = vmatprep.mubr.f32.mxu0 0.0
    %2172 = vmatmul.mubr.f32.gmra.mrb[0].mxu0 %v1914
    %v2173 = vpop.f32.mrb[0].mxu0
    %v2174 = vadd.f32 0.0, %v2173
    %v2175 = vpop.f32.mrb[0].mxu0
    %2176 = vmatprep.mubr.f32.mxu0 0.0
    %2177 = vmatmul.mubr.f32.gmra.mrb[0].mxu0 %v1917
    %v2178 = vpop.f32.mrb[0].mxu0
    %v2179 = vadd.f32 0.0, %v2178
    %v2180 = vpop.f32.mrb[0].mxu0
    %2181 = vmatprep.mubr.f32.mxu0 0.0
    %2182 = vmatmul.mubr.f32.gmra.mrb[0].mxu0 %v1920
    %v2183 = vpop.f32.mrb[0].mxu0
    %v2184 = vadd.f32 0.0, %v2183
    %v2185 = vpop.f32.mrb[0].mxu0
    %2186 = vmatprep.mubr.f32.mxu0 0.0
    %2187 = vmatmul.mubr.f32.gmra.mrb[0].mxu0 %v1923
    %v2188 = vpop.f32.mrb[0].mxu0
    %v2189 = vadd.f32 0.0, %v2188
    %v2190 = vpop.f32.mrb[0].mxu0
    %2191 = vmatprep.mubr.f32.mxu0 0.0
    %2192 = vmatmul.mubr.f32.gmra.mrb[0].mxu0 %v1926
    %v2193 = vpop.f32.mrb[0].mxu0
    %v2194 = vadd.f32 0.0, %v2193
    %v2195 = vpop.f32.mrb[0].mxu0
    %2196 = vmatprep.mubr.f32.mxu0 0.0
    %2197 = vmatmul.mubr.f32.gmra.mrb[0].mxu0 %v1929
    %v2198 = vpop.f32.mrb[0].mxu0
    %v2199 = vadd.f32 0.0, %v2198
    %v2200 = vpop.f32.mrb[0].mxu0
    %2201 = vmatprep.mubr.f32.mxu0 0.0
    %2202 = vmatmul.mubr.f32.gmra.mrb[0].mxu0 %v1932
    %v2203 = vpop.f32.mrb[0].mxu0
    %v2204 = vadd.f32 0.0, %v2203
    %v2205 = vpop.f32.mrb[0].mxu0
    %2206 = vmatprep.mubr.f32.mxu0 0.0
    %2207 = vmatmul.mubr.f32.gmra.mrb[0].mxu0 %v1935
    %v2208 = vpop.f32.mrb[0].mxu0
    %v2209 = vadd.f32 0.0, %v2208
    %v2210 = vpop.f32.mrb[0].mxu0
    %2211 = vmatprep.mubr.f32.mxu0 0.0
    %2212 = vmatmul.mubr.f32.gmra.mrb[0].mxu0 %v1938
    %v2213 = vpop.f32.mrb[0].mxu0
    %v2214 = vadd.f32 0.0, %v2213
    %v2215 = vpop.f32.mrb[0].mxu0
    %2216 = vmatprep.mubr.f32.mxu0 0.0
    %2217 = vmatmul.mubr.f32.gmra.mrb[0].mxu0 %v1941
    %v2218 = vpop.f32.mrb[0].mxu0
    %v2219 = vadd.f32 0.0, %v2218
    %v2220 = vpop.f32.mrb[0].mxu0
    %2221 = vmatprep.mubr.f32.mxu0 0.0
    %2222 = vmatmul.mubr.f32.gmra.mrb[0].mxu0 %v1944
    %v2223 = vpop.f32.mrb[0].mxu0
    %v2224 = vadd.f32 0.0, %v2223
    %v2225 = vpop.f32.mrb[0].mxu0
    %2226 = vmatprep.mubr.f32.mxu0 0.0
    %2227 = vmatmul.mubr.f32.gmra.mrb[0].mxu0 %v1947
    %v2228 = vpop.f32.mrb[0].mxu0
    %v2229 = vadd.f32 0.0, %v2228
    %v2230 = vpop.f32.mrb[0].mxu0
    %2231 = vmatprep.mubr.f32.mxu0 0.0
    %2232 = vmatmul.mubr.f32.gmra.mrb[0].mxu0 %v1950
    %v2233 = vpop.f32.mrb[0].mxu0
    %v2234 = vadd.f32 0.0, %v2233
    %v2235 = vpop.f32.mrb[0].mxu0
    %2236 = vmatprep.mubr.f32.mxu0 0.0
    %2237 = vmatmul.mubr.f32.gmra.mrb[0].mxu0 %v1953
    %v2238 = vpop.f32.mrb[0].mxu0
    %v2239 = vadd.f32 0.0, %v2238
    %v2240 = vpop.f32.mrb[0].mxu0
    %2241 = vmatprep.mubr.f32.mxu0 0.0
    %2242 = vmatmul.mubr.f32.gmra.mrb[0].mxu0 %v1956
    %v2243 = vpop.f32.mrb[0].mxu0
    %v2244 = vadd.f32 0.0, %v2243
    %v2245 = vpop.f32.mrb[0].mxu0
    %2246 = vmatprep.mubr.f32.mxu0 0.0
    %2247 = vmatmul.mubr.f32.gmra.mrb[0].mxu0 %v1959
    %v2248 = vpop.f32.mrb[0].mxu0
    %v2249 = vadd.f32 0.0, %v2248
    %v2250 = vpop.f32.mrb[0].mxu0
    %2251 = vmatprep.mubr.f32.mxu0 0.0
    %2252 = vmatmul.mubr.f32.gmra.mrb[0].mxu0 %v1962
    %v2253 = vpop.f32.mrb[0].mxu0
    %v2254 = vadd.f32 0.0, %v2253
    %v2255 = vpop.f32.mrb[0].mxu0
    %2256 = vmatprep.mubr.f32.mxu0 0.0
    %2257 = vmatmul.mubr.f32.gmra.mrb[0].mxu0 %v1965
    %v2258 = vpop.f32.mrb[0].mxu0
    %v2259 = vadd.f32 0.0, %v2258
    %v2260 = vpop.f32.mrb[0].mxu0
    %2261 = vmatprep.mubr.f32.mxu0 0.0
    %2262 = vmatmul.mubr.f32.gmra.mrb[0].mxu0 %v1968
    %v2263 = vpop.f32.mrb[0].mxu0
    %v2264 = vadd.f32 0.0, %v2263
    %v2265 = vpop.f32.mrb[0].mxu0
    %2266 = vmatprep.mubr.f32.mxu0 0.0
    %2267 = vmatmul.mubr.f32.gmra.mrb[0].mxu0 %v1971
    %v2268 = vpop.f32.mrb[0].mxu0
    %v2269 = vadd.f32 0.0, %v2268
    %v2270 = vpop.f32.mrb[0].mxu0
    %2271 = vmatprep.mubr.f32.mxu0 0.0
    %2272 = vmatmul.mubr.f32.gmra.mrb[0].mxu0 %v1974
    %v2273 = vpop.f32.mrb[0].mxu0
    %v2274 = vadd.f32 0.0, %v2273
    %v2275 = vpop.f32.mrb[0].mxu0
    %2276 = vmatprep.mubr.f32.mxu0 0.0
    %2277 = vmatmul.mubr.f32.gmra.mrb[0].mxu0 %v1977
    %v2278 = vpop.f32.mrb[0].mxu0
    %v2279 = vadd.f32 0.0, %v2278
    %v2280 = vpop.f32.mrb[0].mxu0
    %2281 = vmatprep.mubr.f32.mxu0 0.0
    %2282 = vmatmul.mubr.f32.gmra.mrb[0].mxu0 %v1980
    %v2283 = vpop.f32.mrb[0].mxu0
    %v2284 = vadd.f32 0.0, %v2283
    %v2285 = vpop.f32.mrb[0].mxu0
    %2286 = vmatprep.mubr.f32.mxu0 0.0
    %2287 = vmatmul.mubr.f32.gmra.mrb[0].mxu0 %v1983
    %v2288 = vpop.f32.mrb[0].mxu0
    %v2289 = vadd.f32 0.0, %v2288
    %v2290 = vpop.f32.mrb[0].mxu0
    %2291 = vmatprep.mubr.f32.mxu0 0.0
    %2292 = vmatmul.mubr.f32.gmra.mrb[0].mxu0 %v1986
    %v2293 = vpop.f32.mrb[0].mxu0
    %v2294 = vadd.f32 0.0, %v2293
    %v2295 = vpop.f32.mrb[0].mxu0
    %2296 = vmatprep.mubr.f32.mxu0 0.0
    %2297 = vmatmul.mubr.f32.gmra.mrb[0].mxu0 %v1989
    %v2298 = vpop.f32.mrb[0].mxu0
    %v2299 = vadd.f32 0.0, %v2298
    %v2300 = vpop.f32.mrb[0].mxu0
    %2301 = vmatprep.mubr.f32.mxu0 0.0
    %2302 = vmatmul.mubr.f32.gmra.mrb[0].mxu0 %v1992
    %v2303 = vpop.f32.mrb[0].mxu0
    %v2304 = vadd.f32 0.0, %v2303
    %v2305 = vpop.f32.mrb[0].mxu0
    %2306 = vmatprep.mubr.f32.mxu0 0.0
    %2307 = vmatmul.mubr.f32.gmra.mrb[0].mxu0 %v1995
    %v2308 = vpop.f32.mrb[0].mxu0
    %v2309 = vadd.f32 0.0, %v2308
    %v2310 = vpop.f32.mrb[0].mxu0
    %2311 = vmatprep.mubr.f32.mxu0 0.0
    %2312 = vmatmul.mubr.f32.gmra.mrb[0].mxu0 %v1998
    %v2313 = vpop.f32.mrb[0].mxu0
    %v2314 = vadd.f32 0.0, %v2313
    %v2315 = vpop.f32.mrb[0].mxu0
    %2316 = vmatprep.mubr.f32.mxu0 0.0
    %2317 = vmatmul.mubr.f32.gmra.mrb[0].mxu0 %v2001
    %v2318 = vpop.f32.mrb[0].mxu0
    %v2319 = vadd.f32 0.0, %v2318
    %v2320 = vpop.f32.mrb[0].mxu0
    %2321 = vmatprep.mubr.f32.mxu0 0.0
    %2322 = vmatmul.mubr.f32.gmra.mrb[0].mxu0 %v2004
    %v2323 = vpop.f32.mrb[0].mxu0
    %v2324 = vadd.f32 0.0, %v2323
    %v2325 = vpop.f32.mrb[0].mxu0
    %2326 = vmatprep.mubr.f32.mxu0 0.0
    %2327 = vmatmul.mubr.f32.gmra.mrb[0].mxu0 %v2007
    %v2328 = vpop.f32.mrb[0].mxu0
    %v2329 = vadd.f32 0.0, %v2328
    %v2330 = vpop.f32.mrb[0].mxu0
    %2331 = vmatprep.mubr.f32.mxu0 0.0
    %2332 = vmatmul.mubr.f32.gmra.mrb[0].mxu0 %v2010
    %v2333 = vpop.f32.mrb[0].mxu0
    %v2334 = vadd.f32 0.0, %v2333
    %v2335 = vpop.f32.mrb[0].mxu0
    %2336 = vmatprep.mubr.f32.mxu0 0.0
    %2337 = vmatmul.mubr.f32.gmra.mrb[0].mxu0 %v2013
    %v2338 = vpop.f32.mrb[0].mxu0
    %v2339 = vadd.f32 0.0, %v2338
    %v2340 = vpop.f32.mrb[0].mxu0
    %2341 = vmatprep.mubr.f32.mxu0 0.0
    %2342 = vmatmul.mubr.f32.gmra.mrb[0].mxu0 %v2016
    %v2343 = vpop.f32.mrb[0].mxu0
    %v2344 = vadd.f32 0.0, %v2343
    %v2345 = vpop.f32.mrb[0].mxu0
    %2346 = vmatprep.mubr.f32.mxu0 0.0
    %2347 = vmatmul.mubr.f32.gmra.mrb[0].mxu0 %v2019
    %v2348 = vpop.f32.mrb[0].mxu0
    %v2349 = vadd.f32 0.0, %v2348
    %v2350 = vpop.f32.mrb[0].mxu0
    %2351 = vmatprep.mubr.f32.mxu0 0.0
    %2352 = vmatmul.mubr.f32.gmra.mrb[0].mxu0 %v2022
    %v2353 = vpop.f32.mrb[0].mxu0
    %v2354 = vadd.f32 0.0, %v2353
    %v2355 = vpop.f32.mrb[0].mxu0
    %2356 = vmatprep.mubr.f32.mxu0 0.0
    %2357 = vmatmul.mubr.f32.gmra.mrb[0].mxu0 %v2025
    %v2358 = vpop.f32.mrb[0].mxu0
    %v2359 = vadd.f32 0.0, %v2358
    %v2360 = vpop.f32.mrb[0].mxu0
    %2361 = vmatprep.mubr.f32.mxu0 0.0
    %2362 = vmatmul.mubr.f32.gmra.mrb[0].mxu0 %v2028
    %v2363 = vpop.f32.mrb[0].mxu0
    %v2364 = vadd.f32 0.0, %v2363
    %v2365 = vpop.f32.mrb[0].mxu0
    %2366 = vmatprep.mubr.f32.mxu0 0.0
    %2367 = vmatmul.mubr.f32.gmra.mrb[0].mxu0 %v2031
    %v2368 = vpop.f32.mrb[0].mxu0
    %v2369 = vadd.f32 0.0, %v2368
    %v2370 = vpop.f32.mrb[0].mxu0
    %2371 = vmatprep.mubr.f32.mxu0 0.0
    %2372 = vmatmul.mubr.f32.gmra.mrb[0].mxu0 %v2034
    %v2373 = vpop.f32.mrb[0].mxu0
    %v2374 = vadd.f32 0.0, %v2373
    %v2375 = vpop.f32.mrb[0].mxu0
    %2376 = vmatprep.mubr.f32.mxu0 0.0
    %2377 = vmatmul.mubr.f32.gmra.mrb[0].mxu0 %v2037
    %v2378 = vpop.f32.mrb[0].mxu0
    %v2379 = vadd.f32 0.0, %v2378
    %v2380 = vpop.f32.mrb[0].mxu0
    %2381 = vmatprep.mubr.f32.mxu0 0.0
    %2382 = vmatmul.mubr.f32.gmra.mrb[0].mxu0 %v2040
    %v2383 = vpop.f32.mrb[0].mxu0
    %v2384 = vadd.f32 0.0, %v2383
    %v2385 = vpop.f32.mrb[0].mxu0
    %2386 = vmatprep.mubr.f32.mxu0 0.0
    %2387 = vmatmul.mubr.f32.gmra.mrb[0].mxu0 %v2043
    %v2388 = vpop.f32.mrb[0].mxu0
    %v2389 = vadd.f32 0.0, %v2388
    %v2390 = vpop.f32.mrb[0].mxu0
    %2391 = vmatprep.mubr.f32.mxu0 0.0
    %2392 = vmatmul.mubr.f32.gmra.mrb[0].mxu0 %v2046
    %v2393 = vpop.f32.mrb[0].mxu0
    %v2394 = vadd.f32 0.0, %v2393
    %v2395 = vpop.f32.mrb[0].mxu0
    %2396 = vmatprep.mubr.f32.mxu0 0.0
    %2397 = vmatmul.mubr.f32.gmra.mrb[0].mxu0 %v2049
    %v2398 = vpop.f32.mrb[0].mxu0
    %v2399 = vadd.f32 0.0, %v2398
    %v2400 = vpop.f32.mrb[0].mxu0
    %2401 = vmatprep.mubr.f32.mxu0 0.0
    %2402 = vmatmul.mubr.f32.gmra.mrb[0].mxu0 %v2052
    %v2403 = vpop.f32.mrb[0].mxu0
    %v2404 = vadd.f32 0.0, %v2403
    %v2405 = vpop.f32.mrb[0].mxu0
    %2406 = vmatprep.mubr.f32.mxu0 0.0
    %2407 = vmatmul.mubr.f32.gmra.mrb[0].mxu0 %v2055
    %v2408 = vpop.f32.mrb[0].mxu0
    %v2409 = vadd.f32 0.0, %v2408
    %v2410 = vpop.f32.mrb[0].mxu0
    %2411 = vmatprep.mubr.f32.mxu0 0.0
    %2412 = vmatmul.mubr.f32.gmra.mrb[0].mxu0 %v2058
    %v2413 = vpop.f32.mrb[0].mxu0
    %v2414 = vadd.f32 0.0, %v2413
    %v2415 = vpop.f32.mrb[0].mxu0
    %2416 = vmatprep.mubr.f32.mxu0 0.0
    %2417 = vmatmul.mubr.f32.gmra.mrb[0].mxu0 %v2061
    %v2418 = vpop.f32.mrb[0].mxu0
    %v2419 = vadd.f32 0.0, %v2418
    %v2420 = vpop.f32.mrb[0].mxu0
    %2421 = vmatprep.mubr.f32.mxu0 0.0
    %2422 = vmatmul.mubr.f32.gmra.mrb[0].mxu0 %v2064
    %v2423 = vpop.f32.mrb[0].mxu0
    %v2424 = vadd.f32 0.0, %v2423
    %v2425 = vpop.f32.mrb[0].mxu0
    %2426 = vmatprep.mubr.f32.mxu0 0.0
    %2427 = vmatmul.mubr.f32.gmra.mrb[0].mxu0 %v2067
    %v2428 = vpop.f32.mrb[0].mxu0
    %v2429 = vadd.f32 0.0, %v2428
    %v2430 = vpop.f32.mrb[0].mxu0
    %2431 = vmatprep.mubr.f32.mxu0 0.0
    %2432 = vmatmul.mubr.f32.gmra.mrb[0].mxu0 %v2070
    %v2433 = vpop.f32.mrb[0].mxu0
    %v2434 = vadd.f32 0.0, %v2433
    %v2435 = vpop.f32.mrb[0].mxu0
    %2436 = vmatprep.mubr.f32.mxu0 0.0
    %2437 = vmatmul.mubr.f32.gmra.mrb[0].mxu0 %v2073
    %v2438 = vpop.f32.mrb[0].mxu0
    %v2439 = vadd.f32 0.0, %v2438
    %v2440 = vpop.f32.mrb[0].mxu0
    %2441 = vmatprep.mubr.f32.mxu0 0.0
    %2442 = vmatmul.mubr.f32.gmra.mrb[0].mxu0 %v2076
    %v2443 = vpop.f32.mrb[0].mxu0
    %v2444 = vadd.f32 0.0, %v2443
    %v2445 = vpop.f32.mrb[0].mxu0
    %2446 = vmatprep.mubr.f32.mxu0 0.0
    %2447 = vmatmul.mubr.f32.gmra.mrb[0].mxu0 %v2079
    %v2448 = vpop.f32.mrb[0].mxu0
    %v2449 = vadd.f32 0.0, %v2448
    %v2450 = vpop.f32.mrb[0].mxu0
    %2451 = vmatprep.mubr.f32.mxu0 0.0
    %2452 = vmatmul.mubr.f32.gmra.mrb[0].mxu0 %v2082
    %v2453 = vpop.f32.mrb[0].mxu0
    %v2454 = vadd.f32 0.0, %v2453
    %v2455 = vpop.f32.mrb[0].mxu0
    %2456 = vmatprep.mubr.f32.mxu0 0.0
    %2457 = vmatmul.mubr.f32.gmra.mrb[0].mxu0 %v2085
    %v2458 = vpop.f32.mrb[0].mxu0
    %v2459 = vadd.f32 0.0, %v2458
    %v2460 = vpop.f32.mrb[0].mxu0
    %2461 = vmatprep.mubr.f32.mxu0 0.0
    %2462 = vmatmul.mubr.f32.gmra.mrb[0].mxu0 %v2088
    %v2463 = vpop.f32.mrb[0].mxu0
    %v2464 = vadd.f32 0.0, %v2463
    %v2465 = vpop.f32.mrb[0].mxu0
    %2466 = vmatprep.mubr.f32.mxu0 0.0
    %2467 = vmatmul.mubr.f32.gmra.mrb[0].mxu0 %v2091
    %v2468 = vpop.f32.mrb[0].mxu0
    %v2469 = vadd.f32 0.0, %v2468
    %v2470 = vpop.f32.mrb[0].mxu0
    %2471 = vmatprep.mubr.f32.mxu0 0.0
    %2472 = vmatmul.mubr.f32.gmra.mrb[0].mxu0 %v2094
    %v2473 = vpop.f32.mrb[0].mxu0
    %v2474 = vadd.f32 0.0, %v2473
    %v2475 = vpop.f32.mrb[0].mxu0
    %2476 = vmatprep.mubr.f32.mxu0 0.0
    %2477 = vmatmul.mubr.f32.gmra.mrb[0].mxu0 %v2097
    %v2478 = vpop.f32.mrb[0].mxu0
    %v2479 = vadd.f32 0.0, %v2478
    %v2480 = vpop.f32.mrb[0].mxu0
    %2481 = vmatprep.mubr.f32.mxu0 0.0
    %2482 = vmatmul.mubr.f32.gmra.mrb[0].mxu0 %v2100
    %v2483 = vpop.f32.mrb[0].mxu0
    %v2484 = vadd.f32 0.0, %v2483
    %v2485 = vpop.f32.mrb[0].mxu0
    %2486 = vdwg.mxu0
    %2487 = vxpose.xlu0.b32.start [1/16] %v2169, 128
    %2488 = vxpose.xlu0.b32.cont [2/16] %v2174, 128
    %2489 = vxpose.xlu0.b32.cont [3/16] %v2179, 128
    %2490 = vxpose.xlu0.b32.cont [4/16] %v2184, 128
    %2491 = vxpose.xlu0.b32.cont [5/16] %v2189, 128
    %2492 = vxpose.xlu0.b32.cont [6/16] %v2194, 128
    %2493 = vxpose.xlu0.b32.cont [7/16] %v2199, 128
    %2494 = vxpose.xlu0.b32.cont [8/16] %v2204, 128
    %2495 = vxpose.xlu0.b32.cont [9/16] %v2209, 128
    %2496 = vxpose.xlu0.b32.cont [10/16] %v2214, 128
    %2497 = vxpose.xlu0.b32.cont [11/16] %v2219, 128
    %2498 = vxpose.xlu0.b32.cont [12/16] %v2224, 128
    %2499 = vxpose.xlu0.b32.cont [13/16] %v2229, 128
    %2500 = vxpose.xlu0.b32.cont [14/16] %v2234, 128
    %2501 = vxpose.xlu0.b32.cont [15/16] %v2239, 128
    %2502 = vxpose.xlu0.b32.end [16/16] %v2244, 128
    %v2503 = vpop.trf.xlu0
    %v2504 = vpop.trf.xlu0
    %v2505 = vpop.trf.xlu0
    %v2506 = vpop.trf.xlu0
    %v2507 = vpop.trf.xlu0
    %v2508 = vpop.trf.xlu0
    %v2509 = vpop.trf.xlu0
    %v2510 = vpop.trf.xlu0
    %v2511 = vpop.trf.xlu0
    %v2512 = vpop.trf.xlu0
    %v2513 = vpop.trf.xlu0
    %v2514 = vpop.trf.xlu0
    %v2515 = vpop.trf.xlu0
    %v2516 = vpop.trf.xlu0
    %v2517 = vpop.trf.xlu0
    %v2518 = vpop.trf.xlu0
    %2519 = vxpose.xlu0.b32.start [1/16] %v2249, 128
    %2520 = vxpose.xlu0.b32.cont [2/16] %v2254, 128
    %2521 = vxpose.xlu0.b32.cont [3/16] %v2259, 128
    %2522 = vxpose.xlu0.b32.cont [4/16] %v2264, 128
    %2523 = vxpose.xlu0.b32.cont [5/16] %v2269, 128
    %2524 = vxpose.xlu0.b32.cont [6/16] %v2274, 128
    %2525 = vxpose.xlu0.b32.cont [7/16] %v2279, 128
    %2526 = vxpose.xlu0.b32.cont [8/16] %v2284, 128
    %2527 = vxpose.xlu0.b32.cont [9/16] %v2289, 128
    %2528 = vxpose.xlu0.b32.cont [10/16] %v2294, 128
    %2529 = vxpose.xlu0.b32.cont [11/16] %v2299, 128
    %2530 = vxpose.xlu0.b32.cont [12/16] %v2304, 128
    %2531 = vxpose.xlu0.b32.cont [13/16] %v2309, 128
    %2532 = vxpose.xlu0.b32.cont [14/16] %v2314, 128
    %2533 = vxpose.xlu0.b32.cont [15/16] %v2319, 128
    %2534 = vxpose.xlu0.b32.end [16/16] %v2324, 128
    %v2535 = vpop.trf.xlu0
    %v2536 = vpop.trf.xlu0
    %v2537 = vpop.trf.xlu0
    %v2538 = vpop.trf.xlu0
    %v2539 = vpop.trf.xlu0
    %v2540 = vpop.trf.xlu0
    %v2541 = vpop.trf.xlu0
    %v2542 = vpop.trf.xlu0
    %v2543 = vpop.trf.xlu0
    %v2544 = vpop.trf.xlu0
    %v2545 = vpop.trf.xlu0
    %v2546 = vpop.trf.xlu0
    %v2547 = vpop.trf.xlu0
    %v2548 = vpop.trf.xlu0
    %v2549 = vpop.trf.xlu0
    %v2550 = vpop.trf.xlu0
    %2551 = vxpose.xlu0.b32.start [1/16] %v2329, 128
    %2552 = vxpose.xlu0.b32.cont [2/16] %v2334, 128
    %2553 = vxpose.xlu0.b32.cont [3/16] %v2339, 128
    %2554 = vxpose.xlu0.b32.cont [4/16] %v2344, 128
    %2555 = vxpose.xlu0.b32.cont [5/16] %v2349, 128
    %2556 = vxpose.xlu0.b32.cont [6/16] %v2354, 128
    %2557 = vxpose.xlu0.b32.cont [7/16] %v2359, 128
    %2558 = vxpose.xlu0.b32.cont [8/16] %v2364, 128
    %2559 = vxpose.xlu0.b32.cont [9/16] %v2369, 128
    %2560 = vxpose.xlu0.b32.cont [10/16] %v2374, 128
    %2561 = vxpose.xlu0.b32.cont [11/16] %v2379, 128
    %2562 = vxpose.xlu0.b32.cont [12/16] %v2384, 128
    %2563 = vxpose.xlu0.b32.cont [13/16] %v2389, 128
    %2564 = vxpose.xlu0.b32.cont [14/16] %v2394, 128
    %2565 = vxpose.xlu0.b32.cont [15/16] %v2399, 128
    %2566 = vxpose.xlu0.b32.end [16/16] %v2404, 128
    %v2567 = vpop.trf.xlu0
    %v2568 = vpop.trf.xlu0
    %v2569 = vpop.trf.xlu0
    %v2570 = vpop.trf.xlu0
    %v2571 = vpop.trf.xlu0
    %v2572 = vpop.trf.xlu0
    %v2573 = vpop.trf.xlu0
    %v2574 = vpop.trf.xlu0
    %v2575 = vpop.trf.xlu0
    %v2576 = vpop.trf.xlu0
    %v2577 = vpop.trf.xlu0
    %v2578 = vpop.trf.xlu0
    %v2579 = vpop.trf.xlu0
    %v2580 = vpop.trf.xlu0
    %v2581 = vpop.trf.xlu0
    %v2582 = vpop.trf.xlu0
    %2583 = vxpose.xlu0.b32.start [1/16] %v2409, 128
    %2584 = vxpose.xlu0.b32.cont [2/16] %v2414, 128
    %2585 = vxpose.xlu0.b32.cont [3/16] %v2419, 128
    %2586 = vxpose.xlu0.b32.cont [4/16] %v2424, 128
    %2587 = vxpose.xlu0.b32.cont [5/16] %v2429, 128
    %2588 = vxpose.xlu0.b32.cont [6/16] %v2434, 128
    %2589 = vxpose.xlu0.b32.cont [7/16] %v2439, 128
    %2590 = vxpose.xlu0.b32.cont [8/16] %v2444, 128
    %2591 = vxpose.xlu0.b32.cont [9/16] %v2449, 128
    %2592 = vxpose.xlu0.b32.cont [10/16] %v2454, 128
    %2593 = vxpose.xlu0.b32.cont [11/16] %v2459, 128
    %2594 = vxpose.xlu0.b32.cont [12/16] %v2464, 128
    %2595 = vxpose.xlu0.b32.cont [13/16] %v2469, 128
    %2596 = vxpose.xlu0.b32.cont [14/16] %v2474, 128
    %2597 = vxpose.xlu0.b32.cont [15/16] %v2479, 128
    %2598 = vxpose.xlu0.b32.end [16/16] %v2484, 128
    %v2599 = vpop.trf.xlu0
    %v2600 = vpop.trf.xlu0
    %v2601 = vpop.trf.xlu0
    %v2602 = vpop.trf.xlu0
    %v2603 = vpop.trf.xlu0
    %v2604 = vpop.trf.xlu0
    %v2605 = vpop.trf.xlu0
    %v2606 = vpop.trf.xlu0
    %v2607 = vpop.trf.xlu0
    %v2608 = vpop.trf.xlu0
    %v2609 = vpop.trf.xlu0
    %v2610 = vpop.trf.xlu0
    %v2611 = vpop.trf.xlu0
    %v2612 = vpop.trf.xlu0
    %v2613 = vpop.trf.xlu0
    %v2614 = vpop.trf.xlu0
    %2616 = vset.pattern.permute.xlu0 0
    %2617 = vperm.xlu0 %2616, %v1778
    %v2618 = vpop.permute.xlu0 %2617
    %2621 = vset.pattern.permute.xlu0 0
    %2622 = vperm.xlu0 %2621, %v1779
    %v2623 = vpop.permute.xlu0 %2622
    %2626 = vset.pattern.permute.xlu0 0
    %2627 = vperm.xlu0 %2626, %v1780
    %v2628 = vpop.permute.xlu0 %2627
    %2631 = vset.pattern.permute.xlu0 0
    %2632 = vperm.xlu0 %2631, %v1781
    %v2633 = vpop.permute.xlu0 %2632
    %v2635 = vadd.f32 %v2503, %v2618
    %v2636 = vadd.f32 %v2535, %v2618
    %v2637 = vadd.f32 %v2504, %v2623
    %v2638 = vadd.f32 %v2536, %v2623
    %v2639 = vadd.f32 %v2505, %v2628
    %v2640 = vadd.f32 %v2537, %v2628
    %v2641 = vadd.f32 %v2506, %v2633
    %v2642 = vadd.f32 %v2538, %v2633
    %v2643 = vadd.f32 %v2567, %v2618
    %v2644 = vadd.f32 %v2599, %v2618
    %v2645 = vadd.f32 %v2568, %v2623
    %v2646 = vadd.f32 %v2600, %v2623
    %v2647 = vadd.f32 %v2569, %v2628
    %v2648 = vadd.f32 %v2601, %v2628
    %v2649 = vadd.f32 %v2570, %v2633
    %v2650 = vadd.f32 %v2602, %v2633
    %v2651 = vtanh.pop %v2635
    %v2652 = vtanh.pop %v2636
    %v2653 = vtanh.pop %v2637
    %v2654 = vtanh.pop %v2638
    %v2655 = vtanh.pop %v2639
    %v2656 = vtanh.pop %v2640
    %v2657 = vtanh.pop %v2641
    %v2658 = vtanh.pop %v2642
    %v2659 = vtanh.pop %v2643
    %v2660 = vtanh.pop %v2644
    %v2661 = vtanh.pop %v2645
    %v2662 = vtanh.pop %v2646
    %v2663 = vtanh.pop %v2647
    %v2664 = vtanh.pop %v2648
    %v2665 = vtanh.pop %v2649
    %v2666 = vtanh.pop %v2650
    %2667 = vxpose.xlu0.b32.start [1/16] %v2651, 128
    %2668 = vxpose.xlu0.b32.cont [2/16] %v2653, 128
    %2669 = vxpose.xlu0.b32.cont [3/16] %v2655, 128
    %2670 = vxpose.xlu0.b32.cont [4/16] %v2657, 128
    %2671 = vxpose.xlu0.b32.cont [5/16] 0.0, 128
    %2672 = vxpose.xlu0.b32.cont [6/16] 0.0, 128
    %2673 = vxpose.xlu0.b32.cont [7/16] 0.0, 128
    %2674 = vxpose.xlu0.b32.cont [8/16] 0.0, 128
    %2675 = vxpose.xlu0.b32.cont [9/16] 0.0, 128
    %2676 = vxpose.xlu0.b32.cont [10/16] 0.0, 128
    %2677 = vxpose.xlu0.b32.cont [11/16] 0.0, 128
    %2678 = vxpose.xlu0.b32.cont [12/16] 0.0, 128
    %2679 = vxpose.xlu0.b32.cont [13/16] 0.0, 128
    %2680 = vxpose.xlu0.b32.cont [14/16] 0.0, 128
    %2681 = vxpose.xlu0.b32.cont [15/16] 0.0, 128
    %2682 = vxpose.xlu0.b32.end [16/16] 0.0, 128
    %v2683 = vpop.trf.xlu0
    %v2684 = vpop.trf.xlu0
    %v2685 = vpop.trf.xlu0
    %v2686 = vpop.trf.xlu0
    %v2687 = vpop.trf.xlu0
    %v2688 = vpop.trf.xlu0
    %v2689 = vpop.trf.xlu0
    %v2690 = vpop.trf.xlu0
    %v2691 = vpop.trf.xlu0
    %v2692 = vpop.trf.xlu0
    %v2693 = vpop.trf.xlu0
    %v2694 = vpop.trf.xlu0
    %v2695 = vpop.trf.xlu0
    %v2696 = vpop.trf.xlu0
    %v2697 = vpop.trf.xlu0
    %v2698 = vpop.trf.xlu0
    %2699 = vxpose.xlu0.b32.start [1/16] %v2652, 128
    %2700 = vxpose.xlu0.b32.cont [2/16] %v2654, 128
    %2701 = vxpose.xlu0.b32.cont [3/16] %v2656, 128
    %2702 = vxpose.xlu0.b32.cont [4/16] %v2658, 128
    %2703 = vxpose.xlu0.b32.cont [5/16] 0.0, 128
    %2704 = vxpose.xlu0.b32.cont [6/16] 0.0, 128
    %2705 = vxpose.xlu0.b32.cont [7/16] 0.0, 128
    %2706 = vxpose.xlu0.b32.cont [8/16] 0.0, 128
    %2707 = vxpose.xlu0.b32.cont [9/16] 0.0, 128
    %2708 = vxpose.xlu0.b32.cont [10/16] 0.0, 128
    %2709 = vxpose.xlu0.b32.cont [11/16] 0.0, 128
    %2710 = vxpose.xlu0.b32.cont [12/16] 0.0, 128
    %2711 = vxpose.xlu0.b32.cont [13/16] 0.0, 128
    %2712 = vxpose.xlu0.b32.cont [14/16] 0.0, 128
    %2713 = vxpose.xlu0.b32.cont [15/16] 0.0, 128
    %2714 = vxpose.xlu0.b32.end [16/16] 0.0, 128
    %v2715 = vpop.trf.xlu0
    %v2716 = vpop.trf.xlu0
    %v2717 = vpop.trf.xlu0
    %v2718 = vpop.trf.xlu0
    %v2719 = vpop.trf.xlu0
    %v2720 = vpop.trf.xlu0
    %v2721 = vpop.trf.xlu0
    %v2722 = vpop.trf.xlu0
    %v2723 = vpop.trf.xlu0
    %v2724 = vpop.trf.xlu0
    %v2725 = vpop.trf.xlu0
    %v2726 = vpop.trf.xlu0
    %v2727 = vpop.trf.xlu0
    %v2728 = vpop.trf.xlu0
    %v2729 = vpop.trf.xlu0
    %v2730 = vpop.trf.xlu0
    %2731 = vxpose.xlu0.b32.start [1/16] %v2659, 128
    %2732 = vxpose.xlu0.b32.cont [2/16] %v2661, 128
    %2733 = vxpose.xlu0.b32.cont [3/16] %v2663, 128
    %2734 = vxpose.xlu0.b32.cont [4/16] %v2665, 128
    %2735 = vxpose.xlu0.b32.cont [5/16] 0.0, 128
    %2736 = vxpose.xlu0.b32.cont [6/16] 0.0, 128
    %2737 = vxpose.xlu0.b32.cont [7/16] 0.0, 128
    %2738 = vxpose.xlu0.b32.cont [8/16] 0.0, 128
    %2739 = vxpose.xlu0.b32.cont [9/16] 0.0, 128
    %2740 = vxpose.xlu0.b32.cont [10/16] 0.0, 128
    %2741 = vxpose.xlu0.b32.cont [11/16] 0.0, 128
    %2742 = vxpose.xlu0.b32.cont [12/16] 0.0, 128
    %2743 = vxpose.xlu0.b32.cont [13/16] 0.0, 128
    %2744 = vxpose.xlu0.b32.cont [14/16] 0.0, 128
    %2745 = vxpose.xlu0.b32.cont [15/16] 0.0, 128
    %2746 = vxpose.xlu0.b32.end [16/16] 0.0, 128
    %v2747 = vpop.trf.xlu0
    %v2748 = vpop.trf.xlu0
    %v2749 = vpop.trf.xlu0
    %v2750 = vpop.trf.xlu0
    %v2751 = vpop.trf.xlu0
    %v2752 = vpop.trf.xlu0
    %v2753 = vpop.trf.xlu0
    %v2754 = vpop.trf.xlu0
    %v2755 = vpop.trf.xlu0
    %v2756 = vpop.trf.xlu0
    %v2757 = vpop.trf.xlu0
    %v2758 = vpop.trf.xlu0
    %v2759 = vpop.trf.xlu0
    %v2760 = vpop.trf.xlu0
    %v2761 = vpop.trf.xlu0
    %v2762 = vpop.trf.xlu0
    %2763 = vxpose.xlu0.b32.start [1/16] %v2660, 128
    %2764 = vxpose.xlu0.b32.cont [2/16] %v2662, 128
    %2765 = vxpose.xlu0.b32.cont [3/16] %v2664, 128
    %2766 = vxpose.xlu0.b32.cont [4/16] %v2666, 128
    %2767 = vxpose.xlu0.b32.cont [5/16] 0.0, 128
    %2768 = vxpose.xlu0.b32.cont [6/16] 0.0, 128
    %2769 = vxpose.xlu0.b32.cont [7/16] 0.0, 128
    %2770 = vxpose.xlu0.b32.cont [8/16] 0.0, 128
    %2771 = vxpose.xlu0.b32.cont [9/16] 0.0, 128
    %2772 = vxpose.xlu0.b32.cont [10/16] 0.0, 128
    %2773 = vxpose.xlu0.b32.cont [11/16] 0.0, 128
    %2774 = vxpose.xlu0.b32.cont [12/16] 0.0, 128
    %2775 = vxpose.xlu0.b32.cont [13/16] 0.0, 128
    %2776 = vxpose.xlu0.b32.cont [14/16] 0.0, 128
    %2777 = vxpose.xlu0.b32.cont [15/16] 0.0, 128
    %2778 = vxpose.xlu0.b32.end [16/16] 0.0, 128
    %v2779 = vpop.trf.xlu0
    %v2780 = vpop.trf.xlu0
    %v2781 = vpop.trf.xlu0
    %v2782 = vpop.trf.xlu0
    %v2783 = vpop.trf.xlu0
    %v2784 = vpop.trf.xlu0
    %v2785 = vpop.trf.xlu0
    %v2786 = vpop.trf.xlu0
    %v2787 = vpop.trf.xlu0
    %v2788 = vpop.trf.xlu0
    %v2789 = vpop.trf.xlu0
    %v2790 = vpop.trf.xlu0
    %v2791 = vpop.trf.xlu0
    %v2792 = vpop.trf.xlu0
    %v2793 = vpop.trf.xlu0
    %v2794 = vpop.trf.xlu0
    %v2796 = vsel %vm1057, %v2683, 0
    %v2799 = vsel %vm1057, %v2684, 0
    %v2802 = vsel %vm1057, %v2685, 0
    %v2805 = vsel %vm1057, %v2686, 0
    %v2808 = vsel %vm1057, %v2687, 0
    %v2811 = vsel %vm1057, %v2688, 0
    %v2814 = vsel %vm1057, %v2689, 0
    %v2817 = vsel %vm1057, %v2690, 0
    %v2820 = vsel %vm1057, %v2691, 0
    %v2823 = vsel %vm1057, %v2692, 0
    %v2826 = vsel %vm1057, %v2693, 0
    %v2829 = vsel %vm1057, %v2694, 0
    %v2832 = vsel %vm1057, %v2695, 0
    %v2835 = vsel %vm1057, %v2696, 0
    %v2838 = vsel %vm1057, %v2697, 0
    %v2841 = vsel %vm1057, %v2698, 0
    %v2844 = vsel %vm1057, %v2715, 0
    %v2847 = vsel %vm1057, %v2716, 0
    %v2850 = vsel %vm1057, %v2717, 0
    %v2853 = vsel %vm1057, %v2718, 0
    %v2856 = vsel %vm1057, %v2719, 0
    %v2859 = vsel %vm1057, %v2720, 0
    %v2862 = vsel %vm1057, %v2721, 0
    %v2865 = vsel %vm1057, %v2722, 0
    %v2868 = vsel %vm1057, %v2723, 0
    %v2871 = vsel %vm1057, %v2724, 0
    %v2874 = vsel %vm1057, %v2725, 0
    %v2877 = vsel %vm1057, %v2726, 0
    %v2880 = vsel %vm1057, %v2727, 0
    %v2883 = vsel %vm1057, %v2728, 0
    %v2886 = vsel %vm1057, %v2729, 0
    %v2889 = vsel %vm1057, %v2730, 0
    %v2892 = vsel %vm1057, %v2747, 0
    %v2895 = vsel %vm1057, %v2748, 0
    %v2898 = vsel %vm1057, %v2749, 0
    %v2901 = vsel %vm1057, %v2750, 0
    %v2904 = vsel %vm1057, %v2751, 0
    %v2907 = vsel %vm1057, %v2752, 0
    %v2910 = vsel %vm1057, %v2753, 0
    %v2913 = vsel %vm1057, %v2754, 0
    %v2916 = vsel %vm1057, %v2755, 0
    %v2919 = vsel %vm1057, %v2756, 0
    %v2922 = vsel %vm1057, %v2757, 0
    %v2925 = vsel %vm1057, %v2758, 0
    %v2928 = vsel %vm1057, %v2759, 0
    %v2931 = vsel %vm1057, %v2760, 0
    %v2934 = vsel %vm1057, %v2761, 0
    %v2937 = vsel %vm1057, %v2762, 0
    %v2940 = vsel %vm1057, %v2779, 0
    %v2943 = vsel %vm1057, %v2780, 0
    %v2946 = vsel %vm1057, %v2781, 0
    %v2949 = vsel %vm1057, %v2782, 0
    %v2952 = vsel %vm1057, %v2783, 0
    %v2955 = vsel %vm1057, %v2784, 0
    %v2958 = vsel %vm1057, %v2785, 0
    %v2961 = vsel %vm1057, %v2786, 0
    %v2964 = vsel %vm1057, %v2787, 0
    %v2967 = vsel %vm1057, %v2788, 0
    %v2970 = vsel %vm1057, %v2789, 0
    %v2973 = vsel %vm1057, %v2790, 0
    %v2976 = vsel %vm1057, %v2791, 0
    %v2979 = vsel %vm1057, %v2792, 0
    %v2982 = vsel %vm1057, %v2793, 0
    %v2985 = vsel %vm1057, %v2794, 0
    %2987 = vmatprep.subr.mxu0 0.0
    %2988 = vmatpush1.xpose.msra.mxu0 %v1251
    %2989 = vmatprep.subr.mxu0 0.0
    %2990 = vmatpush1.xpose.msra.mxu0 0.0
    %2991 = vmatprep.subr.mxu0 0.0
    %2992 = vmatpush1.xpose.msra.mxu0 0.0
    %2993 = vmatprep.subr.mxu0 0.0
    %2994 = vmatpush1.xpose.msra.mxu0 0.0
    %2995 = vmatprep.subr.mxu0 0.0
    %2996 = vmatpush1.xpose.msra.mxu0 0.0
    %2997 = vmatprep.subr.mxu0 0.0
    %2998 = vmatpush1.xpose.msra.mxu0 0.0
    %2999 = vmatprep.subr.mxu0 0.0
    %3000 = vmatpush1.xpose.msra.mxu0 0.0
    %3001 = vmatprep.subr.mxu0 0.0
    %3002 = vmatpush1.xpose.msra.mxu0 0.0
    %3003 = vmatprep.subr.mxu0 0.0
    %3004 = vmatpush1.xpose.msra.mxu0 0.0
    %3005 = vmatprep.subr.mxu0 0.0
    %3006 = vmatpush1.xpose.msra.mxu0 0.0
    %3007 = vmatprep.subr.mxu0 0.0
    %3008 = vmatpush1.xpose.msra.mxu0 0.0
    %3009 = vmatprep.subr.mxu0 0.0
    %3010 = vmatpush1.xpose.msra.mxu0 0.0
    %3011 = vmatprep.subr.mxu0 0.0
    %3012 = vmatpush1.xpose.msra.mxu0 0.0
    %3013 = vmatprep.subr.mxu0 0.0
    %3014 = vmatpush1.xpose.msra.mxu0 0.0
    %3015 = vmatprep.subr.mxu0 0.0
    %3016 = vmatpush1.xpose.msra.mxu0 0.0
    %3017 = vmatprep.subr.mxu0 0.0
    %3018 = vmatpush1.xpose.msra.mxu0 0.0
    %3019 = vmatprep.subr.mxu0 0.0
    %3020 = vmatpush1.xpose.msra.mxu0 0.0
    %3021 = vmatprep.subr.mxu0 0.0
    %3022 = vmatpush1.xpose.msra.mxu0 0.0
    %3023 = vmatprep.subr.mxu0 0.0
    %3024 = vmatpush1.xpose.msra.mxu0 0.0
    %3025 = vmatprep.subr.mxu0 0.0
    %3026 = vmatpush1.xpose.msra.mxu0 0.0
    %3027 = vmatprep.subr.mxu0 0.0
    %3028 = vmatpush1.xpose.msra.mxu0 0.0
    %3029 = vmatprep.subr.mxu0 0.0
    %3030 = vmatpush1.xpose.msra.mxu0 0.0
    %3031 = vmatprep.subr.mxu0 0.0
    %3032 = vmatpush1.xpose.msra.mxu0 0.0
    %3033 = vmatprep.subr.mxu0 0.0
    %3034 = vmatpush1.xpose.msra.mxu0 0.0
    %3035 = vmatprep.subr.mxu0 0.0
    %3036 = vmatpush1.xpose.msra.mxu0 0.0
    %3037 = vmatprep.subr.mxu0 0.0
    %3038 = vmatpush1.xpose.msra.mxu0 0.0
    %3039 = vmatprep.subr.mxu0 0.0
    %3040 = vmatpush1.xpose.msra.mxu0 0.0
    %3041 = vmatprep.subr.mxu0 0.0
    %3042 = vmatpush1.xpose.msra.mxu0 0.0
    %3043 = vmatprep.subr.mxu0 0.0
    %3044 = vmatpush1.xpose.msra.mxu0 0.0
    %3045 = vmatprep.subr.mxu0 0.0
    %3046 = vmatpush1.xpose.msra.mxu0 0.0
    %3047 = vmatprep.subr.mxu0 0.0
    %3048 = vmatpush1.xpose.msra.mxu0 0.0
    %3049 = vmatprep.subr.mxu0 0.0
    %3050 = vmatpush1.xpose.msra.mxu0 0.0
    %3051 = vmatprep.mubr.f32.mxu0 0.0
    %3052 = vmatmul.mubr.f32.gmra.mrb[0].mxu0 %v2796
    %v3053 = vpop.f32.mrb[0].mxu0
    %v3054 = vadd.f32 0.0, %v3053
    %v3055 = vpop.f32.mrb[0].mxu0
    %3056 = vmatprep.mubr.f32.mxu0 0.0
    %3057 = vmatmul.mubr.f32.gmra.mrb[0].mxu0 %v2799
    %v3058 = vpop.f32.mrb[0].mxu0
    %v3059 = vadd.f32 0.0, %v3058
    %v3060 = vpop.f32.mrb[0].mxu0
    %3061 = vmatprep.mubr.f32.mxu0 0.0
    %3062 = vmatmul.mubr.f32.gmra.mrb[0].mxu0 %v2802
    %v3063 = vpop.f32.mrb[0].mxu0
    %v3064 = vadd.f32 0.0, %v3063
    %v3065 = vpop.f32.mrb[0].mxu0
    %3066 = vmatprep.mubr.f32.mxu0 0.0
    %3067 = vmatmul.mubr.f32.gmra.mrb[0].mxu0 %v2805
    %v3068 = vpop.f32.mrb[0].mxu0
    %v3069 = vadd.f32 0.0, %v3068
    %v3070 = vpop.f32.mrb[0].mxu0
    %3071 = vmatprep.mubr.f32.mxu0 0.0
    %3072 = vmatmul.mubr.f32.gmra.mrb[0].mxu0 %v2808
    %v3073 = vpop.f32.mrb[0].mxu0
    %v3074 = vadd.f32 0.0, %v3073
    %v3075 = vpop.f32.mrb[0].mxu0
    %3076 = vmatprep.mubr.f32.mxu0 0.0
    %3077 = vmatmul.mubr.f32.gmra.mrb[0].mxu0 %v2811
    %v3078 = vpop.f32.mrb[0].mxu0
    %v3079 = vadd.f32 0.0, %v3078
    %v3080 = vpop.f32.mrb[0].mxu0
    %3081 = vmatprep.mubr.f32.mxu0 0.0
    %3082 = vmatmul.mubr.f32.gmra.mrb[0].mxu0 %v2814
    %v3083 = vpop.f32.mrb[0].mxu0
    %v3084 = vadd.f32 0.0, %v3083
    %v3085 = vpop.f32.mrb[0].mxu0
    %3086 = vmatprep.mubr.f32.mxu0 0.0
    %3087 = vmatmul.mubr.f32.gmra.mrb[0].mxu0 %v2817
    %v3088 = vpop.f32.mrb[0].mxu0
    %v3089 = vadd.f32 0.0, %v3088
    %v3090 = vpop.f32.mrb[0].mxu0
    %3091 = vmatprep.mubr.f32.mxu0 0.0
    %3092 = vmatmul.mubr.f32.gmra.mrb[0].mxu0 %v2820
    %v3093 = vpop.f32.mrb[0].mxu0
    %v3094 = vadd.f32 0.0, %v3093
    %v3095 = vpop.f32.mrb[0].mxu0
    %3096 = vmatprep.mubr.f32.mxu0 0.0
    %3097 = vmatmul.mubr.f32.gmra.mrb[0].mxu0 %v2823
    %v3098 = vpop.f32.mrb[0].mxu0
    %v3099 = vadd.f32 0.0, %v3098
    %v3100 = vpop.f32.mrb[0].mxu0
    %3101 = vmatprep.mubr.f32.mxu0 0.0
    %3102 = vmatmul.mubr.f32.gmra.mrb[0].mxu0 %v2826
    %v3103 = vpop.f32.mrb[0].mxu0
    %v3104 = vadd.f32 0.0, %v3103
    %v3105 = vpop.f32.mrb[0].mxu0
    %3106 = vmatprep.mubr.f32.mxu0 0.0
    %3107 = vmatmul.mubr.f32.gmra.mrb[0].mxu0 %v2829
    %v3108 = vpop.f32.mrb[0].mxu0
    %v3109 = vadd.f32 0.0, %v3108
    %v3110 = vpop.f32.mrb[0].mxu0
    %3111 = vmatprep.mubr.f32.mxu0 0.0
    %3112 = vmatmul.mubr.f32.gmra.mrb[0].mxu0 %v2832
    %v3113 = vpop.f32.mrb[0].mxu0
    %v3114 = vadd.f32 0.0, %v3113
    %v3115 = vpop.f32.mrb[0].mxu0
    %3116 = vmatprep.mubr.f32.mxu0 0.0
    %3117 = vmatmul.mubr.f32.gmra.mrb[0].mxu0 %v2835
    %v3118 = vpop.f32.mrb[0].mxu0
    %v3119 = vadd.f32 0.0, %v3118
    %v3120 = vpop.f32.mrb[0].mxu0
    %3121 = vmatprep.mubr.f32.mxu0 0.0
    %3122 = vmatmul.mubr.f32.gmra.mrb[0].mxu0 %v2838
    %v3123 = vpop.f32.mrb[0].mxu0
    %v3124 = vadd.f32 0.0, %v3123
    %v3125 = vpop.f32.mrb[0].mxu0
    %3126 = vmatprep.mubr.f32.mxu0 0.0
    %3127 = vmatmul.mubr.f32.gmra.mrb[0].mxu0 %v2841
    %v3128 = vpop.f32.mrb[0].mxu0
    %v3129 = vadd.f32 0.0, %v3128
    %v3130 = vpop.f32.mrb[0].mxu0
    %3131 = vmatprep.mubr.f32.mxu0 0.0
    %3132 = vmatmul.mubr.f32.gmra.mrb[0].mxu0 %v2844
    %v3133 = vpop.f32.mrb[0].mxu0
    %v3134 = vadd.f32 0.0, %v3133
    %v3135 = vpop.f32.mrb[0].mxu0
    %3136 = vmatprep.mubr.f32.mxu0 0.0
    %3137 = vmatmul.mubr.f32.gmra.mrb[0].mxu0 %v2847
    %v3138 = vpop.f32.mrb[0].mxu0
    %v3139 = vadd.f32 0.0, %v3138
    %v3140 = vpop.f32.mrb[0].mxu0
    %3141 = vmatprep.mubr.f32.mxu0 0.0
    %3142 = vmatmul.mubr.f32.gmra.mrb[0].mxu0 %v2850
    %v3143 = vpop.f32.mrb[0].mxu0
    %v3144 = vadd.f32 0.0, %v3143
    %v3145 = vpop.f32.mrb[0].mxu0
    %3146 = vmatprep.mubr.f32.mxu0 0.0
    %3147 = vmatmul.mubr.f32.gmra.mrb[0].mxu0 %v2853
    %v3148 = vpop.f32.mrb[0].mxu0
    %v3149 = vadd.f32 0.0, %v3148
    %v3150 = vpop.f32.mrb[0].mxu0
    %3151 = vmatprep.mubr.f32.mxu0 0.0
    %3152 = vmatmul.mubr.f32.gmra.mrb[0].mxu0 %v2856
    %v3153 = vpop.f32.mrb[0].mxu0
    %v3154 = vadd.f32 0.0, %v3153
    %v3155 = vpop.f32.mrb[0].mxu0
    %3156 = vmatprep.mubr.f32.mxu0 0.0
    %3157 = vmatmul.mubr.f32.gmra.mrb[0].mxu0 %v2859
    %v3158 = vpop.f32.mrb[0].mxu0
    %v3159 = vadd.f32 0.0, %v3158
    %v3160 = vpop.f32.mrb[0].mxu0
    %3161 = vmatprep.mubr.f32.mxu0 0.0
    %3162 = vmatmul.mubr.f32.gmra.mrb[0].mxu0 %v2862
    %v3163 = vpop.f32.mrb[0].mxu0
    %v3164 = vadd.f32 0.0, %v3163
    %v3165 = vpop.f32.mrb[0].mxu0
    %3166 = vmatprep.mubr.f32.mxu0 0.0
    %3167 = vmatmul.mubr.f32.gmra.mrb[0].mxu0 %v2865
    %v3168 = vpop.f32.mrb[0].mxu0
    %v3169 = vadd.f32 0.0, %v3168
    %v3170 = vpop.f32.mrb[0].mxu0
    %3171 = vmatprep.mubr.f32.mxu0 0.0
    %3172 = vmatmul.mubr.f32.gmra.mrb[0].mxu0 %v2868
    %v3173 = vpop.f32.mrb[0].mxu0
    %v3174 = vadd.f32 0.0, %v3173
    %v3175 = vpop.f32.mrb[0].mxu0
    %3176 = vmatprep.mubr.f32.mxu0 0.0
    %3177 = vmatmul.mubr.f32.gmra.mrb[0].mxu0 %v2871
    %v3178 = vpop.f32.mrb[0].mxu0
    %v3179 = vadd.f32 0.0, %v3178
    %v3180 = vpop.f32.mrb[0].mxu0
    %3181 = vmatprep.mubr.f32.mxu0 0.0
    %3182 = vmatmul.mubr.f32.gmra.mrb[0].mxu0 %v2874
    %v3183 = vpop.f32.mrb[0].mxu0
    %v3184 = vadd.f32 0.0, %v3183
    %v3185 = vpop.f32.mrb[0].mxu0
    %3186 = vmatprep.mubr.f32.mxu0 0.0
    %3187 = vmatmul.mubr.f32.gmra.mrb[0].mxu0 %v2877
    %v3188 = vpop.f32.mrb[0].mxu0
    %v3189 = vadd.f32 0.0, %v3188
    %v3190 = vpop.f32.mrb[0].mxu0
    %3191 = vmatprep.mubr.f32.mxu0 0.0
    %3192 = vmatmul.mubr.f32.gmra.mrb[0].mxu0 %v2880
    %v3193 = vpop.f32.mrb[0].mxu0
    %v3194 = vadd.f32 0.0, %v3193
    %v3195 = vpop.f32.mrb[0].mxu0
    %3196 = vmatprep.mubr.f32.mxu0 0.0
    %3197 = vmatmul.mubr.f32.gmra.mrb[0].mxu0 %v2883
    %v3198 = vpop.f32.mrb[0].mxu0
    %v3199 = vadd.f32 0.0, %v3198
    %v3200 = vpop.f32.mrb[0].mxu0
    %3201 = vmatprep.mubr.f32.mxu0 0.0
    %3202 = vmatmul.mubr.f32.gmra.mrb[0].mxu0 %v2886
    %v3203 = vpop.f32.mrb[0].mxu0
    %v3204 = vadd.f32 0.0, %v3203
    %v3205 = vpop.f32.mrb[0].mxu0
    %3206 = vmatprep.mubr.f32.mxu0 0.0
    %3207 = vmatmul.mubr.f32.gmra.mrb[0].mxu0 %v2889
    %v3208 = vpop.f32.mrb[0].mxu0
    %v3209 = vadd.f32 0.0, %v3208
    %v3210 = vpop.f32.mrb[0].mxu0
    %3211 = vmatprep.mubr.f32.mxu0 0.0
    %3212 = vmatmul.mubr.f32.gmra.mrb[0].mxu0 %v2892
    %v3213 = vpop.f32.mrb[0].mxu0
    %v3214 = vadd.f32 0.0, %v3213
    %v3215 = vpop.f32.mrb[0].mxu0
    %3216 = vmatprep.mubr.f32.mxu0 0.0
    %3217 = vmatmul.mubr.f32.gmra.mrb[0].mxu0 %v2895
    %v3218 = vpop.f32.mrb[0].mxu0
    %v3219 = vadd.f32 0.0, %v3218
    %v3220 = vpop.f32.mrb[0].mxu0
    %3221 = vmatprep.mubr.f32.mxu0 0.0
    %3222 = vmatmul.mubr.f32.gmra.mrb[0].mxu0 %v2898
    %v3223 = vpop.f32.mrb[0].mxu0
    %v3224 = vadd.f32 0.0, %v3223
    %v3225 = vpop.f32.mrb[0].mxu0
    %3226 = vmatprep.mubr.f32.mxu0 0.0
    %3227 = vmatmul.mubr.f32.gmra.mrb[0].mxu0 %v2901
    %v3228 = vpop.f32.mrb[0].mxu0
    %v3229 = vadd.f32 0.0, %v3228
    %v3230 = vpop.f32.mrb[0].mxu0
    %3231 = vmatprep.mubr.f32.mxu0 0.0
    %3232 = vmatmul.mubr.f32.gmra.mrb[0].mxu0 %v2904
    %v3233 = vpop.f32.mrb[0].mxu0
    %v3234 = vadd.f32 0.0, %v3233
    %v3235 = vpop.f32.mrb[0].mxu0
    %3236 = vmatprep.mubr.f32.mxu0 0.0
    %3237 = vmatmul.mubr.f32.gmra.mrb[0].mxu0 %v2907
    %v3238 = vpop.f32.mrb[0].mxu0
    %v3239 = vadd.f32 0.0, %v3238
    %v3240 = vpop.f32.mrb[0].mxu0
    %3241 = vmatprep.mubr.f32.mxu0 0.0
    %3242 = vmatmul.mubr.f32.gmra.mrb[0].mxu0 %v2910
    %v3243 = vpop.f32.mrb[0].mxu0
    %v3244 = vadd.f32 0.0, %v3243
    %v3245 = vpop.f32.mrb[0].mxu0
    %3246 = vmatprep.mubr.f32.mxu0 0.0
    %3247 = vmatmul.mubr.f32.gmra.mrb[0].mxu0 %v2913
    %v3248 = vpop.f32.mrb[0].mxu0
    %v3249 = vadd.f32 0.0, %v3248
    %v3250 = vpop.f32.mrb[0].mxu0
    %3251 = vmatprep.mubr.f32.mxu0 0.0
    %3252 = vmatmul.mubr.f32.gmra.mrb[0].mxu0 %v2916
    %v3253 = vpop.f32.mrb[0].mxu0
    %v3254 = vadd.f32 0.0, %v3253
    %v3255 = vpop.f32.mrb[0].mxu0
    %3256 = vmatprep.mubr.f32.mxu0 0.0
    %3257 = vmatmul.mubr.f32.gmra.mrb[0].mxu0 %v2919
    %v3258 = vpop.f32.mrb[0].mxu0
    %v3259 = vadd.f32 0.0, %v3258
    %v3260 = vpop.f32.mrb[0].mxu0
    %3261 = vmatprep.mubr.f32.mxu0 0.0
    %3262 = vmatmul.mubr.f32.gmra.mrb[0].mxu0 %v2922
    %v3263 = vpop.f32.mrb[0].mxu0
    %v3264 = vadd.f32 0.0, %v3263
    %v3265 = vpop.f32.mrb[0].mxu0
    %3266 = vmatprep.mubr.f32.mxu0 0.0
    %3267 = vmatmul.mubr.f32.gmra.mrb[0].mxu0 %v2925
    %v3268 = vpop.f32.mrb[0].mxu0
    %v3269 = vadd.f32 0.0, %v3268
    %v3270 = vpop.f32.mrb[0].mxu0
    %3271 = vmatprep.mubr.f32.mxu0 0.0
    %3272 = vmatmul.mubr.f32.gmra.mrb[0].mxu0 %v2928
    %v3273 = vpop.f32.mrb[0].mxu0
    %v3274 = vadd.f32 0.0, %v3273
    %v3275 = vpop.f32.mrb[0].mxu0
    %3276 = vmatprep.mubr.f32.mxu0 0.0
    %3277 = vmatmul.mubr.f32.gmra.mrb[0].mxu0 %v2931
    %v3278 = vpop.f32.mrb[0].mxu0
    %v3279 = vadd.f32 0.0, %v3278
    %v3280 = vpop.f32.mrb[0].mxu0
    %3281 = vmatprep.mubr.f32.mxu0 0.0
    %3282 = vmatmul.mubr.f32.gmra.mrb[0].mxu0 %v2934
    %v3283 = vpop.f32.mrb[0].mxu0
    %v3284 = vadd.f32 0.0, %v3283
    %v3285 = vpop.f32.mrb[0].mxu0
    %3286 = vmatprep.mubr.f32.mxu0 0.0
    %3287 = vmatmul.mubr.f32.gmra.mrb[0].mxu0 %v2937
    %v3288 = vpop.f32.mrb[0].mxu0
    %v3289 = vadd.f32 0.0, %v3288
    %v3290 = vpop.f32.mrb[0].mxu0
    %3291 = vmatprep.mubr.f32.mxu0 0.0
    %3292 = vmatmul.mubr.f32.gmra.mrb[0].mxu0 %v2940
    %v3293 = vpop.f32.mrb[0].mxu0
    %v3294 = vadd.f32 0.0, %v3293
    %v3295 = vpop.f32.mrb[0].mxu0
    %3296 = vmatprep.mubr.f32.mxu0 0.0
    %3297 = vmatmul.mubr.f32.gmra.mrb[0].mxu0 %v2943
    %v3298 = vpop.f32.mrb[0].mxu0
    %v3299 = vadd.f32 0.0, %v3298
    %v3300 = vpop.f32.mrb[0].mxu0
    %3301 = vmatprep.mubr.f32.mxu0 0.0
    %3302 = vmatmul.mubr.f32.gmra.mrb[0].mxu0 %v2946
    %v3303 = vpop.f32.mrb[0].mxu0
    %v3304 = vadd.f32 0.0, %v3303
    %v3305 = vpop.f32.mrb[0].mxu0
    %3306 = vmatprep.mubr.f32.mxu0 0.0
    %3307 = vmatmul.mubr.f32.gmra.mrb[0].mxu0 %v2949
    %v3308 = vpop.f32.mrb[0].mxu0
    %v3309 = vadd.f32 0.0, %v3308
    %v3310 = vpop.f32.mrb[0].mxu0
    %3311 = vmatprep.mubr.f32.mxu0 0.0
    %3312 = vmatmul.mubr.f32.gmra.mrb[0].mxu0 %v2952
    %v3313 = vpop.f32.mrb[0].mxu0
    %v3314 = vadd.f32 0.0, %v3313
    %v3315 = vpop.f32.mrb[0].mxu0
    %3316 = vmatprep.mubr.f32.mxu0 0.0
    %3317 = vmatmul.mubr.f32.gmra.mrb[0].mxu0 %v2955
    %v3318 = vpop.f32.mrb[0].mxu0
    %v3319 = vadd.f32 0.0, %v3318
    %v3320 = vpop.f32.mrb[0].mxu0
    %3321 = vmatprep.mubr.f32.mxu0 0.0
    %3322 = vmatmul.mubr.f32.gmra.mrb[0].mxu0 %v2958
    %v3323 = vpop.f32.mrb[0].mxu0
    %v3324 = vadd.f32 0.0, %v3323
    %v3325 = vpop.f32.mrb[0].mxu0
    %3326 = vmatprep.mubr.f32.mxu0 0.0
    %3327 = vmatmul.mubr.f32.gmra.mrb[0].mxu0 %v2961
    %v3328 = vpop.f32.mrb[0].mxu0
    %v3329 = vadd.f32 0.0, %v3328
    %v3330 = vpop.f32.mrb[0].mxu0
    %3331 = vmatprep.mubr.f32.mxu0 0.0
    %3332 = vmatmul.mubr.f32.gmra.mrb[0].mxu0 %v2964
    %v3333 = vpop.f32.mrb[0].mxu0
    %v3334 = vadd.f32 0.0, %v3333
    %v3335 = vpop.f32.mrb[0].mxu0
    %3336 = vmatprep.mubr.f32.mxu0 0.0
    %3337 = vmatmul.mubr.f32.gmra.mrb[0].mxu0 %v2967
    %v3338 = vpop.f32.mrb[0].mxu0
    %v3339 = vadd.f32 0.0, %v3338
    %v3340 = vpop.f32.mrb[0].mxu0
    %3341 = vmatprep.mubr.f32.mxu0 0.0
    %3342 = vmatmul.mubr.f32.gmra.mrb[0].mxu0 %v2970
    %v3343 = vpop.f32.mrb[0].mxu0
    %v3344 = vadd.f32 0.0, %v3343
    %v3345 = vpop.f32.mrb[0].mxu0
    %3346 = vmatprep.mubr.f32.mxu0 0.0
    %3347 = vmatmul.mubr.f32.gmra.mrb[0].mxu0 %v2973
    %v3348 = vpop.f32.mrb[0].mxu0
    %v3349 = vadd.f32 0.0, %v3348
    %v3350 = vpop.f32.mrb[0].mxu0
    %3351 = vmatprep.mubr.f32.mxu0 0.0
    %3352 = vmatmul.mubr.f32.gmra.mrb[0].mxu0 %v2976
    %v3353 = vpop.f32.mrb[0].mxu0
    %v3354 = vadd.f32 0.0, %v3353
    %v3355 = vpop.f32.mrb[0].mxu0
    %3356 = vmatprep.mubr.f32.mxu0 0.0
    %3357 = vmatmul.mubr.f32.gmra.mrb[0].mxu0 %v2979
    %v3358 = vpop.f32.mrb[0].mxu0
    %v3359 = vadd.f32 0.0, %v3358
    %v3360 = vpop.f32.mrb[0].mxu0
    %3361 = vmatprep.mubr.f32.mxu0 0.0
    %3362 = vmatmul.mubr.f32.gmra.mrb[0].mxu0 %v2982
    %v3363 = vpop.f32.mrb[0].mxu0
    %v3364 = vadd.f32 0.0, %v3363
    %v3365 = vpop.f32.mrb[0].mxu0
    %3366 = vmatprep.mubr.f32.mxu0 0.0
    %3367 = vmatmul.mubr.f32.gmra.mrb[0].mxu0 %v2985
    %v3368 = vpop.f32.mrb[0].mxu0
    %v3369 = vadd.f32 0.0, %v3368
    %v3370 = vpop.f32.mrb[0].mxu0
    %3371 = vdwg.mxu0
    %3372 = vxpose.xlu0.b32.start [1/16] %v3054, 128
    %3373 = vxpose.xlu0.b32.cont [2/16] %v3059, 128
    %3374 = vxpose.xlu0.b32.cont [3/16] %v3064, 128
    %3375 = vxpose.xlu0.b32.cont [4/16] %v3069, 128
    %3376 = vxpose.xlu0.b32.cont [5/16] %v3074, 128
    %3377 = vxpose.xlu0.b32.cont [6/16] %v3079, 128
    %3378 = vxpose.xlu0.b32.cont [7/16] %v3084, 128
    %3379 = vxpose.xlu0.b32.cont [8/16] %v3089, 128
    %3380 = vxpose.xlu0.b32.cont [9/16] %v3094, 128
    %3381 = vxpose.xlu0.b32.cont [10/16] %v3099, 128
    %3382 = vxpose.xlu0.b32.cont [11/16] %v3104, 128
    %3383 = vxpose.xlu0.b32.cont [12/16] %v3109, 128
    %3384 = vxpose.xlu0.b32.cont [13/16] %v3114, 128
    %3385 = vxpose.xlu0.b32.cont [14/16] %v3119, 128
    %3386 = vxpose.xlu0.b32.cont [15/16] %v3124, 128
    %3387 = vxpose.xlu0.b32.end [16/16] %v3129, 128
    %v3388 = vpop.trf.xlu0
    %v3389 = vpop.trf.xlu0
    %v3390 = vpop.trf.xlu0
    %v3391 = vpop.trf.xlu0
    %v3392 = vpop.trf.xlu0
    %v3393 = vpop.trf.xlu0
    %v3394 = vpop.trf.xlu0
    %v3395 = vpop.trf.xlu0
    %v3396 = vpop.trf.xlu0
    %v3397 = vpop.trf.xlu0
    %v3398 = vpop.trf.xlu0
    %v3399 = vpop.trf.xlu0
    %v3400 = vpop.trf.xlu0
    %v3401 = vpop.trf.xlu0
    %v3402 = vpop.trf.xlu0
    %v3403 = vpop.trf.xlu0
    %3404 = vxpose.xlu0.b32.start [1/16] %v3134, 128
    %3405 = vxpose.xlu0.b32.cont [2/16] %v3139, 128
    %3406 = vxpose.xlu0.b32.cont [3/16] %v3144, 128
    %3407 = vxpose.xlu0.b32.cont [4/16] %v3149, 128
    %3408 = vxpose.xlu0.b32.cont [5/16] %v3154, 128
    %3409 = vxpose.xlu0.b32.cont [6/16] %v3159, 128
    %3410 = vxpose.xlu0.b32.cont [7/16] %v3164, 128
    %3411 = vxpose.xlu0.b32.cont [8/16] %v3169, 128
    %3412 = vxpose.xlu0.b32.cont [9/16] %v3174, 128
    %3413 = vxpose.xlu0.b32.cont [10/16] %v3179, 128
    %3414 = vxpose.xlu0.b32.cont [11/16] %v3184, 128
    %3415 = vxpose.xlu0.b32.cont [12/16] %v3189, 128
    %3416 = vxpose.xlu0.b32.cont [13/16] %v3194, 128
    %3417 = vxpose.xlu0.b32.cont [14/16] %v3199, 128
    %3418 = vxpose.xlu0.b32.cont [15/16] %v3204, 128
    %3419 = vxpose.xlu0.b32.end [16/16] %v3209, 128
    %v3420 = vpop.trf.xlu0
    %v3421 = vpop.trf.xlu0
    %v3422 = vpop.trf.xlu0
    %v3423 = vpop.trf.xlu0
    %v3424 = vpop.trf.xlu0
    %v3425 = vpop.trf.xlu0
    %v3426 = vpop.trf.xlu0
    %v3427 = vpop.trf.xlu0
    %v3428 = vpop.trf.xlu0
    %v3429 = vpop.trf.xlu0
    %v3430 = vpop.trf.xlu0
    %v3431 = vpop.trf.xlu0
    %v3432 = vpop.trf.xlu0
    %v3433 = vpop.trf.xlu0
    %v3434 = vpop.trf.xlu0
    %v3435 = vpop.trf.xlu0
    %3436 = vxpose.xlu0.b32.start [1/16] %v3214, 128
    %3437 = vxpose.xlu0.b32.cont [2/16] %v3219, 128
    %3438 = vxpose.xlu0.b32.cont [3/16] %v3224, 128
    %3439 = vxpose.xlu0.b32.cont [4/16] %v3229, 128
    %3440 = vxpose.xlu0.b32.cont [5/16] %v3234, 128
    %3441 = vxpose.xlu0.b32.cont [6/16] %v3239, 128
    %3442 = vxpose.xlu0.b32.cont [7/16] %v3244, 128
    %3443 = vxpose.xlu0.b32.cont [8/16] %v3249, 128
    %3444 = vxpose.xlu0.b32.cont [9/16] %v3254, 128
    %3445 = vxpose.xlu0.b32.cont [10/16] %v3259, 128
    %3446 = vxpose.xlu0.b32.cont [11/16] %v3264, 128
    %3447 = vxpose.xlu0.b32.cont [12/16] %v3269, 128
    %3448 = vxpose.xlu0.b32.cont [13/16] %v3274, 128
    %3449 = vxpose.xlu0.b32.cont [14/16] %v3279, 128
    %3450 = vxpose.xlu0.b32.cont [15/16] %v3284, 128
    %3451 = vxpose.xlu0.b32.end [16/16] %v3289, 128
    %v3452 = vpop.trf.xlu0
    %v3453 = vpop.trf.xlu0
    %v3454 = vpop.trf.xlu0
    %v3455 = vpop.trf.xlu0
    %v3456 = vpop.trf.xlu0
    %v3457 = vpop.trf.xlu0
    %v3458 = vpop.trf.xlu0
    %v3459 = vpop.trf.xlu0
    %v3460 = vpop.trf.xlu0
    %v3461 = vpop.trf.xlu0
    %v3462 = vpop.trf.xlu0
    %v3463 = vpop.trf.xlu0
    %v3464 = vpop.trf.xlu0
    %v3465 = vpop.trf.xlu0
    %v3466 = vpop.trf.xlu0
    %v3467 = vpop.trf.xlu0
    %3468 = vxpose.xlu0.b32.start [1/16] %v3294, 128
    %3469 = vxpose.xlu0.b32.cont [2/16] %v3299, 128
    %3470 = vxpose.xlu0.b32.cont [3/16] %v3304, 128
    %3471 = vxpose.xlu0.b32.cont [4/16] %v3309, 128
    %3472 = vxpose.xlu0.b32.cont [5/16] %v3314, 128
    %3473 = vxpose.xlu0.b32.cont [6/16] %v3319, 128
    %3474 = vxpose.xlu0.b32.cont [7/16] %v3324, 128
    %3475 = vxpose.xlu0.b32.cont [8/16] %v3329, 128
    %3476 = vxpose.xlu0.b32.cont [9/16] %v3334, 128
    %3477 = vxpose.xlu0.b32.cont [10/16] %v3339, 128
    %3478 = vxpose.xlu0.b32.cont [11/16] %v3344, 128
    %3479 = vxpose.xlu0.b32.cont [12/16] %v3349, 128
    %3480 = vxpose.xlu0.b32.cont [13/16] %v3354, 128
    %3481 = vxpose.xlu0.b32.cont [14/16] %v3359, 128
    %3482 = vxpose.xlu0.b32.cont [15/16] %v3364, 128
    %3483 = vxpose.xlu0.b32.end [16/16] %v3369, 128
    %v3484 = vpop.trf.xlu0
    %v3485 = vpop.trf.xlu0
    %v3486 = vpop.trf.xlu0
    %v3487 = vpop.trf.xlu0
    %v3488 = vpop.trf.xlu0
    %v3489 = vpop.trf.xlu0
    %v3490 = vpop.trf.xlu0
    %v3491 = vpop.trf.xlu0
    %v3492 = vpop.trf.xlu0
    %v3493 = vpop.trf.xlu0
    %v3494 = vpop.trf.xlu0
    %v3495 = vpop.trf.xlu0
    %v3496 = vpop.trf.xlu0
    %v3497 = vpop.trf.xlu0
    %v3498 = vpop.trf.xlu0
    %v3499 = vpop.trf.xlu0
    %v3500 = vmul.f32 %v1774, 0.98078525
    %v3501 = vmul.f32 %v1775, 0.98078525
    %v3502 = vmul.f32 %v1776, 0.98078525
    %v3503 = vmul.f32 %v1777, 0.98078525
    %v3504 = vmul.f32 %v3388, -0.19509032
    %v3505 = vmul.f32 %v3420, -0.19509032
    %v3506 = vmul.f32 %v3452, -0.19509032
    %v3507 = vmul.f32 %v3484, -0.19509032
    %v3508 = vadd.f32 %v3500, %v3504
    %v3509 = vadd.f32 %v3501, %v3505
    %v3510 = vadd.f32 %v3502, %v3506
    %v3511 = vadd.f32 %v3503, %v3507
    %v3512 = vmul.f32 %v26, 0.75
    %v3513 = vmul.f32 %v27, 0.75
    %v3514 = vmul.f32 %v28, 0.75
    %v3515 = vmul.f32 %v29, 0.75
    %3516 = vxpose.xlu0.b32.start [1/16] %v3508, 128
    %3517 = vxpose.xlu0.b32.cont [2/16] 0.0, 128
    %3518 = vxpose.xlu0.b32.cont [3/16] 0.0, 128
    %3519 = vxpose.xlu0.b32.cont [4/16] 0.0, 128
    %3520 = vxpose.xlu0.b32.cont [5/16] 0.0, 128
    %3521 = vxpose.xlu0.b32.cont [6/16] 0.0, 128
    %3522 = vxpose.xlu0.b32.cont [7/16] 0.0, 128
    %3523 = vxpose.xlu0.b32.cont [8/16] 0.0, 128
    %3524 = vxpose.xlu0.b32.cont [9/16] 0.0, 128
    %3525 = vxpose.xlu0.b32.cont [10/16] 0.0, 128
    %3526 = vxpose.xlu0.b32.cont [11/16] 0.0, 128
    %3527 = vxpose.xlu0.b32.cont [12/16] 0.0, 128
    %3528 = vxpose.xlu0.b32.cont [13/16] 0.0, 128
    %3529 = vxpose.xlu0.b32.cont [14/16] 0.0, 128
    %3530 = vxpose.xlu0.b32.cont [15/16] 0.0, 128
    %3531 = vxpose.xlu0.b32.end [16/16] 0.0, 128
    %v3532 = vpop.trf.xlu0
    %v3533 = vpop.trf.xlu0
    %v3534 = vpop.trf.xlu0
    %v3535 = vpop.trf.xlu0
    %v3536 = vpop.trf.xlu0
    %v3537 = vpop.trf.xlu0
    %v3538 = vpop.trf.xlu0
    %v3539 = vpop.trf.xlu0
    %v3540 = vpop.trf.xlu0
    %v3541 = vpop.trf.xlu0
    %v3542 = vpop.trf.xlu0
    %v3543 = vpop.trf.xlu0
    %v3544 = vpop.trf.xlu0
    %v3545 = vpop.trf.xlu0
    %v3546 = vpop.trf.xlu0
    %v3547 = vpop.trf.xlu0
    %3548 = vxpose.xlu0.b32.start [1/16] %v3509, 128
    %3549 = vxpose.xlu0.b32.cont [2/16] 0.0, 128
    %3550 = vxpose.xlu0.b32.cont [3/16] 0.0, 128
    %3551 = vxpose.xlu0.b32.cont [4/16] 0.0, 128
    %3552 = vxpose.xlu0.b32.cont [5/16] 0.0, 128
    %3553 = vxpose.xlu0.b32.cont [6/16] 0.0, 128
    %3554 = vxpose.xlu0.b32.cont [7/16] 0.0, 128
    %3555 = vxpose.xlu0.b32.cont [8/16] 0.0, 128
    %3556 = vxpose.xlu0.b32.cont [9/16] 0.0, 128
    %3557 = vxpose.xlu0.b32.cont [10/16] 0.0, 128
    %3558 = vxpose.xlu0.b32.cont [11/16] 0.0, 128
    %3559 = vxpose.xlu0.b32.cont [12/16] 0.0, 128
    %3560 = vxpose.xlu0.b32.cont [13/16] 0.0, 128
    %3561 = vxpose.xlu0.b32.cont [14/16] 0.0, 128
    %3562 = vxpose.xlu0.b32.cont [15/16] 0.0, 128
    %3563 = vxpose.xlu0.b32.end [16/16] 0.0, 128
    %v3564 = vpop.trf.xlu0
    %v3565 = vpop.trf.xlu0
    %v3566 = vpop.trf.xlu0
    %v3567 = vpop.trf.xlu0
    %v3568 = vpop.trf.xlu0
    %v3569 = vpop.trf.xlu0
    %v3570 = vpop.trf.xlu0
    %v3571 = vpop.trf.xlu0
    %v3572 = vpop.trf.xlu0
    %v3573 = vpop.trf.xlu0
    %v3574 = vpop.trf.xlu0
    %v3575 = vpop.trf.xlu0
    %v3576 = vpop.trf.xlu0
    %v3577 = vpop.trf.xlu0
    %v3578 = vpop.trf.xlu0
    %v3579 = vpop.trf.xlu0
    %3580 = vxpose.xlu0.b32.start [1/16] %v3510, 128
    %3581 = vxpose.xlu0.b32.cont [2/16] 0.0, 128
    %3582 = vxpose.xlu0.b32.cont [3/16] 0.0, 128
    %3583 = vxpose.xlu0.b32.cont [4/16] 0.0, 128
    %3584 = vxpose.xlu0.b32.cont [5/16] 0.0, 128
    %3585 = vxpose.xlu0.b32.cont [6/16] 0.0, 128
    %3586 = vxpose.xlu0.b32.cont [7/16] 0.0, 128
    %3587 = vxpose.xlu0.b32.cont [8/16] 0.0, 128
    %3588 = vxpose.xlu0.b32.cont [9/16] 0.0, 128
    %3589 = vxpose.xlu0.b32.cont [10/16] 0.0, 128
    %3590 = vxpose.xlu0.b32.cont [11/16] 0.0, 128
    %3591 = vxpose.xlu0.b32.cont [12/16] 0.0, 128
    %3592 = vxpose.xlu0.b32.cont [13/16] 0.0, 128
    %3593 = vxpose.xlu0.b32.cont [14/16] 0.0, 128
    %3594 = vxpose.xlu0.b32.cont [15/16] 0.0, 128
    %3595 = vxpose.xlu0.b32.end [16/16] 0.0, 128
    %v3596 = vpop.trf.xlu0
    %v3597 = vpop.trf.xlu0
    %v3598 = vpop.trf.xlu0
    %v3599 = vpop.trf.xlu0
    %v3600 = vpop.trf.xlu0
    %v3601 = vpop.trf.xlu0
    %v3602 = vpop.trf.xlu0
    %v3603 = vpop.trf.xlu0
    %v3604 = vpop.trf.xlu0
    %v3605 = vpop.trf.xlu0
    %v3606 = vpop.trf.xlu0
    %v3607 = vpop.trf.xlu0
    %v3608 = vpop.trf.xlu0
    %v3609 = vpop.trf.xlu0
    %v3610 = vpop.trf.xlu0
    %v3611 = vpop.trf.xlu0
    %3612 = vxpose.xlu0.b32.start [1/16] %v3511, 128
    %3613 = vxpose.xlu0.b32.cont [2/16] 0.0, 128
    %3614 = vxpose.xlu0.b32.cont [3/16] 0.0, 128
    %3615 = vxpose.xlu0.b32.cont [4/16] 0.0, 128
    %3616 = vxpose.xlu0.b32.cont [5/16] 0.0, 128
    %3617 = vxpose.xlu0.b32.cont [6/16] 0.0, 128
    %3618 = vxpose.xlu0.b32.cont [7/16] 0.0, 128
    %3619 = vxpose.xlu0.b32.cont [8/16] 0.0, 128
    %3620 = vxpose.xlu0.b32.cont [9/16] 0.0, 128
    %3621 = vxpose.xlu0.b32.cont [10/16] 0.0, 128
    %3622 = vxpose.xlu0.b32.cont [11/16] 0.0, 128
    %3623 = vxpose.xlu0.b32.cont [12/16] 0.0, 128
    %3624 = vxpose.xlu0.b32.cont [13/16] 0.0, 128
    %3625 = vxpose.xlu0.b32.cont [14/16] 0.0, 128
    %3626 = vxpose.xlu0.b32.cont [15/16] 0.0, 128
    %3627 = vxpose.xlu0.b32.end [16/16] 0.0, 128
    %v3628 = vpop.trf.xlu0
    %v3629 = vpop.trf.xlu0
    %v3630 = vpop.trf.xlu0
    %v3631 = vpop.trf.xlu0
    %v3632 = vpop.trf.xlu0
    %v3633 = vpop.trf.xlu0
    %v3634 = vpop.trf.xlu0
    %v3635 = vpop.trf.xlu0
    %v3636 = vpop.trf.xlu0
    %v3637 = vpop.trf.xlu0
    %v3638 = vpop.trf.xlu0
    %v3639 = vpop.trf.xlu0
    %v3640 = vpop.trf.xlu0
    %v3641 = vpop.trf.xlu0
    %v3642 = vpop.trf.xlu0
    %v3643 = vpop.trf.xlu0
    %v3645 = vsel %vm159, %v3532, 0
    %v3648 = vsel %vm159, %v3533, 0
    %v3651 = vsel %vm159, %v3534, 0
    %v3654 = vsel %vm159, %v3535, 0
    %v3657 = vsel %vm159, %v3536, 0
    %v3660 = vsel %vm159, %v3537, 0
    %v3663 = vsel %vm159, %v3538, 0
    %v3666 = vsel %vm159, %v3539, 0
    %v3669 = vsel %vm159, %v3540, 0
    %v3672 = vsel %vm159, %v3541, 0
    %v3675 = vsel %vm159, %v3542, 0
    %v3678 = vsel %vm159, %v3543, 0
    %v3681 = vsel %vm159, %v3544, 0
    %v3684 = vsel %vm159, %v3545, 0
    %v3687 = vsel %vm159, %v3546, 0
    %v3690 = vsel %vm159, %v3547, 0
    %v3693 = vsel %vm159, %v3564, 0
    %v3696 = vsel %vm159, %v3565, 0
    %v3699 = vsel %vm159, %v3566, 0
    %v3702 = vsel %vm159, %v3567, 0
    %v3705 = vsel %vm159, %v3568, 0
    %v3708 = vsel %vm159, %v3569, 0
    %v3711 = vsel %vm159, %v3570, 0
    %v3714 = vsel %vm159, %v3571, 0
    %v3717 = vsel %vm159, %v3572, 0
    %v3720 = vsel %vm159, %v3573, 0
    %v3723 = vsel %vm159, %v3574, 0
    %v3726 = vsel %vm159, %v3575, 0
    %v3729 = vsel %vm159, %v3576, 0
    %v3732 = vsel %vm159, %v3577, 0
    %v3735 = vsel %vm159, %v3578, 0
    %v3738 = vsel %vm159, %v3579, 0
    %v3741 = vsel %vm159, %v3596, 0
    %v3744 = vsel %vm159, %v3597, 0
    %v3747 = vsel %vm159, %v3598, 0
    %v3750 = vsel %vm159, %v3599, 0
    %v3753 = vsel %vm159, %v3600, 0
    %v3756 = vsel %vm159, %v3601, 0
    %v3759 = vsel %vm159, %v3602, 0
    %v3762 = vsel %vm159, %v3603, 0
    %v3765 = vsel %vm159, %v3604, 0
    %v3768 = vsel %vm159, %v3605, 0
    %v3771 = vsel %vm159, %v3606, 0
    %v3774 = vsel %vm159, %v3607, 0
    %v3777 = vsel %vm159, %v3608, 0
    %v3780 = vsel %vm159, %v3609, 0
    %v3783 = vsel %vm159, %v3610, 0
    %v3786 = vsel %vm159, %v3611, 0
    %v3789 = vsel %vm159, %v3628, 0
    %v3792 = vsel %vm159, %v3629, 0
    %v3795 = vsel %vm159, %v3630, 0
    %v3798 = vsel %vm159, %v3631, 0
    %v3801 = vsel %vm159, %v3632, 0
    %v3804 = vsel %vm159, %v3633, 0
    %v3807 = vsel %vm159, %v3634, 0
    %v3810 = vsel %vm159, %v3635, 0
    %v3813 = vsel %vm159, %v3636, 0
    %v3816 = vsel %vm159, %v3637, 0
    %v3819 = vsel %vm159, %v3638, 0
    %v3822 = vsel %vm159, %v3639, 0
    %v3825 = vsel %vm159, %v3640, 0
    %v3828 = vsel %vm159, %v3641, 0
    %v3831 = vsel %vm159, %v3642, 0
    %v3834 = vsel %vm159, %v3643, 0
    %3836 = vmatprep.subr.mxu0 0.0
    %3837 = vmatpush1.xpose.msra.mxu0 %v353
    %3838 = vmatprep.subr.mxu0 0.0
    %3839 = vmatpush1.xpose.msra.mxu0 %v356
    %3840 = vmatprep.subr.mxu0 0.0
    %3841 = vmatpush1.xpose.msra.mxu0 %v359
    %3842 = vmatprep.subr.mxu0 0.0
    %3843 = vmatpush1.xpose.msra.mxu0 %v362
    %3844 = vmatprep.subr.mxu0 0.0
    %3845 = vmatpush1.xpose.msra.mxu0 0.0
    %3846 = vmatprep.subr.mxu0 0.0
    %3847 = vmatpush1.xpose.msra.mxu0 0.0
    %3848 = vmatprep.subr.mxu0 0.0
    %3849 = vmatpush1.xpose.msra.mxu0 0.0
    %3850 = vmatprep.subr.mxu0 0.0
    %3851 = vmatpush1.xpose.msra.mxu0 0.0
    %3852 = vmatprep.subr.mxu0 0.0
    %3853 = vmatpush1.xpose.msra.mxu0 0.0
    %3854 = vmatprep.subr.mxu0 0.0
    %3855 = vmatpush1.xpose.msra.mxu0 0.0
    %3856 = vmatprep.subr.mxu0 0.0
    %3857 = vmatpush1.xpose.msra.mxu0 0.0
    %3858 = vmatprep.subr.mxu0 0.0
    %3859 = vmatpush1.xpose.msra.mxu0 0.0
    %3860 = vmatprep.subr.mxu0 0.0
    %3861 = vmatpush1.xpose.msra.mxu0 0.0
    %3862 = vmatprep.subr.mxu0 0.0
    %3863 = vmatpush1.xpose.msra.mxu0 0.0
    %3864 = vmatprep.subr.mxu0 0.0
    %3865 = vmatpush1.xpose.msra.mxu0 0.0
    %3866 = vmatprep.subr.mxu0 0.0
    %3867 = vmatpush1.xpose.msra.mxu0 0.0
    %3868 = vmatprep.subr.mxu0 0.0
    %3869 = vmatpush1.xpose.msra.mxu0 0.0
    %3870 = vmatprep.subr.mxu0 0.0
    %3871 = vmatpush1.xpose.msra.mxu0 0.0
    %3872 = vmatprep.subr.mxu0 0.0
    %3873 = vmatpush1.xpose.msra.mxu0 0.0
    %3874 = vmatprep.subr.mxu0 0.0
    %3875 = vmatpush1.xpose.msra.mxu0 0.0
    %3876 = vmatprep.subr.mxu0 0.0
    %3877 = vmatpush1.xpose.msra.mxu0 0.0
    %3878 = vmatprep.subr.mxu0 0.0
    %3879 = vmatpush1.xpose.msra.mxu0 0.0
    %3880 = vmatprep.subr.mxu0 0.0
    %3881 = vmatpush1.xpose.msra.mxu0 0.0
    %3882 = vmatprep.subr.mxu0 0.0
    %3883 = vmatpush1.xpose.msra.mxu0 0.0
    %3884 = vmatprep.subr.mxu0 0.0
    %3885 = vmatpush1.xpose.msra.mxu0 0.0
    %3886 = vmatprep.subr.mxu0 0.0
    %3887 = vmatpush1.xpose.msra.mxu0 0.0
    %3888 = vmatprep.subr.mxu0 0.0
    %3889 = vmatpush1.xpose.msra.mxu0 0.0
    %3890 = vmatprep.subr.mxu0 0.0
    %3891 = vmatpush1.xpose.msra.mxu0 0.0
    %3892 = vmatprep.subr.mxu0 0.0
    %3893 = vmatpush1.xpose.msra.mxu0 0.0
    %3894 = vmatprep.subr.mxu0 0.0
    %3895 = vmatpush1.xpose.msra.mxu0 0.0
    %3896 = vmatprep.subr.mxu0 0.0
    %3897 = vmatpush1.xpose.msra.mxu0 0.0
    %3898 = vmatprep.subr.mxu0 0.0
    %3899 = vmatpush1.xpose.msra.mxu0 0.0
    %3900 = vmatprep.mubr.f32.mxu0 0.0
    %3901 = vmatmul.mubr.f32.gmra.mrb[0].mxu0 %v3645
    %v3902 = vpop.f32.mrb[0].mxu0
    %v3903 = vadd.f32 0.0, %v3902
    %v3904 = vpop.f32.mrb[0].mxu0
    %3905 = vmatprep.mubr.f32.mxu0 0.0
    %3906 = vmatmul.mubr.f32.gmra.mrb[0].mxu0 %v3648
    %v3907 = vpop.f32.mrb[0].mxu0
    %v3908 = vadd.f32 0.0, %v3907
    %v3909 = vpop.f32.mrb[0].mxu0
    %3910 = vmatprep.mubr.f32.mxu0 0.0
    %3911 = vmatmul.mubr.f32.gmra.mrb[0].mxu0 %v3651
    %v3912 = vpop.f32.mrb[0].mxu0
    %v3913 = vadd.f32 0.0, %v3912
    %v3914 = vpop.f32.mrb[0].mxu0
    %3915 = vmatprep.mubr.f32.mxu0 0.0
    %3916 = vmatmul.mubr.f32.gmra.mrb[0].mxu0 %v3654
    %v3917 = vpop.f32.mrb[0].mxu0
    %v3918 = vadd.f32 0.0, %v3917
    %v3919 = vpop.f32.mrb[0].mxu0
    %3920 = vmatprep.mubr.f32.mxu0 0.0
    %3921 = vmatmul.mubr.f32.gmra.mrb[0].mxu0 %v3657
    %v3922 = vpop.f32.mrb[0].mxu0
    %v3923 = vadd.f32 0.0, %v3922
    %v3924 = vpop.f32.mrb[0].mxu0
    %3925 = vmatprep.mubr.f32.mxu0 0.0
    %3926 = vmatmul.mubr.f32.gmra.mrb[0].mxu0 %v3660
    %v3927 = vpop.f32.mrb[0].mxu0
    %v3928 = vadd.f32 0.0, %v3927
    %v3929 = vpop.f32.mrb[0].mxu0
    %3930 = vmatprep.mubr.f32.mxu0 0.0
    %3931 = vmatmul.mubr.f32.gmra.mrb[0].mxu0 %v3663
    %v3932 = vpop.f32.mrb[0].mxu0
    %v3933 = vadd.f32 0.0, %v3932
    %v3934 = vpop.f32.mrb[0].mxu0
    %3935 = vmatprep.mubr.f32.mxu0 0.0
    %3936 = vmatmul.mubr.f32.gmra.mrb[0].mxu0 %v3666
    %v3937 = vpop.f32.mrb[0].mxu0
    %v3938 = vadd.f32 0.0, %v3937
    %v3939 = vpop.f32.mrb[0].mxu0
    %3940 = vmatprep.mubr.f32.mxu0 0.0
    %3941 = vmatmul.mubr.f32.gmra.mrb[0].mxu0 %v3669
    %v3942 = vpop.f32.mrb[0].mxu0
    %v3943 = vadd.f32 0.0, %v3942
    %v3944 = vpop.f32.mrb[0].mxu0
    %3945 = vmatprep.mubr.f32.mxu0 0.0
    %3946 = vmatmul.mubr.f32.gmra.mrb[0].mxu0 %v3672
    %v3947 = vpop.f32.mrb[0].mxu0
    %v3948 = vadd.f32 0.0, %v3947
    %v3949 = vpop.f32.mrb[0].mxu0
    %3950 = vmatprep.mubr.f32.mxu0 0.0
    %3951 = vmatmul.mubr.f32.gmra.mrb[0].mxu0 %v3675
    %v3952 = vpop.f32.mrb[0].mxu0
    %v3953 = vadd.f32 0.0, %v3952
    %v3954 = vpop.f32.mrb[0].mxu0
    %3955 = vmatprep.mubr.f32.mxu0 0.0
    %3956 = vmatmul.mubr.f32.gmra.mrb[0].mxu0 %v3678
    %v3957 = vpop.f32.mrb[0].mxu0
    %v3958 = vadd.f32 0.0, %v3957
    %v3959 = vpop.f32.mrb[0].mxu0
    %3960 = vmatprep.mubr.f32.mxu0 0.0
    %3961 = vmatmul.mubr.f32.gmra.mrb[0].mxu0 %v3681
    %v3962 = vpop.f32.mrb[0].mxu0
    %v3963 = vadd.f32 0.0, %v3962
    %v3964 = vpop.f32.mrb[0].mxu0
    %3965 = vmatprep.mubr.f32.mxu0 0.0
    %3966 = vmatmul.mubr.f32.gmra.mrb[0].mxu0 %v3684
    %v3967 = vpop.f32.mrb[0].mxu0
    %v3968 = vadd.f32 0.0, %v3967
    %v3969 = vpop.f32.mrb[0].mxu0
    %3970 = vmatprep.mubr.f32.mxu0 0.0
    %3971 = vmatmul.mubr.f32.gmra.mrb[0].mxu0 %v3687
    %v3972 = vpop.f32.mrb[0].mxu0
    %v3973 = vadd.f32 0.0, %v3972
    %v3974 = vpop.f32.mrb[0].mxu0
    %3975 = vmatprep.mubr.f32.mxu0 0.0
    %3976 = vmatmul.mubr.f32.gmra.mrb[0].mxu0 %v3690
    %v3977 = vpop.f32.mrb[0].mxu0
    %v3978 = vadd.f32 0.0, %v3977
    %v3979 = vpop.f32.mrb[0].mxu0
    %3980 = vmatprep.mubr.f32.mxu0 0.0
    %3981 = vmatmul.mubr.f32.gmra.mrb[0].mxu0 %v3693
    %v3982 = vpop.f32.mrb[0].mxu0
    %v3983 = vadd.f32 0.0, %v3982
    %v3984 = vpop.f32.mrb[0].mxu0
    %3985 = vmatprep.mubr.f32.mxu0 0.0
    %3986 = vmatmul.mubr.f32.gmra.mrb[0].mxu0 %v3696
    %v3987 = vpop.f32.mrb[0].mxu0
    %v3988 = vadd.f32 0.0, %v3987
    %v3989 = vpop.f32.mrb[0].mxu0
    %3990 = vmatprep.mubr.f32.mxu0 0.0
    %3991 = vmatmul.mubr.f32.gmra.mrb[0].mxu0 %v3699
    %v3992 = vpop.f32.mrb[0].mxu0
    %v3993 = vadd.f32 0.0, %v3992
    %v3994 = vpop.f32.mrb[0].mxu0
    %3995 = vmatprep.mubr.f32.mxu0 0.0
    %3996 = vmatmul.mubr.f32.gmra.mrb[0].mxu0 %v3702
    %v3997 = vpop.f32.mrb[0].mxu0
    %v3998 = vadd.f32 0.0, %v3997
    %v3999 = vpop.f32.mrb[0].mxu0
    %4000 = vmatprep.mubr.f32.mxu0 0.0
    %4001 = vmatmul.mubr.f32.gmra.mrb[0].mxu0 %v3705
    %v4002 = vpop.f32.mrb[0].mxu0
    %v4003 = vadd.f32 0.0, %v4002
    %v4004 = vpop.f32.mrb[0].mxu0
    %4005 = vmatprep.mubr.f32.mxu0 0.0
    %4006 = vmatmul.mubr.f32.gmra.mrb[0].mxu0 %v3708
    %v4007 = vpop.f32.mrb[0].mxu0
    %v4008 = vadd.f32 0.0, %v4007
    %v4009 = vpop.f32.mrb[0].mxu0
    %4010 = vmatprep.mubr.f32.mxu0 0.0
    %4011 = vmatmul.mubr.f32.gmra.mrb[0].mxu0 %v3711
    %v4012 = vpop.f32.mrb[0].mxu0
    %v4013 = vadd.f32 0.0, %v4012
    %v4014 = vpop.f32.mrb[0].mxu0
    %4015 = vmatprep.mubr.f32.mxu0 0.0
    %4016 = vmatmul.mubr.f32.gmra.mrb[0].mxu0 %v3714
    %v4017 = vpop.f32.mrb[0].mxu0
    %v4018 = vadd.f32 0.0, %v4017
    %v4019 = vpop.f32.mrb[0].mxu0
    %4020 = vmatprep.mubr.f32.mxu0 0.0
    %4021 = vmatmul.mubr.f32.gmra.mrb[0].mxu0 %v3717
    %v4022 = vpop.f32.mrb[0].mxu0
    %v4023 = vadd.f32 0.0, %v4022
    %v4024 = vpop.f32.mrb[0].mxu0
    %4025 = vmatprep.mubr.f32.mxu0 0.0
    %4026 = vmatmul.mubr.f32.gmra.mrb[0].mxu0 %v3720
    %v4027 = vpop.f32.mrb[0].mxu0
    %v4028 = vadd.f32 0.0, %v4027
    %v4029 = vpop.f32.mrb[0].mxu0
    %4030 = vmatprep.mubr.f32.mxu0 0.0
    %4031 = vmatmul.mubr.f32.gmra.mrb[0].mxu0 %v3723
    %v4032 = vpop.f32.mrb[0].mxu0
    %v4033 = vadd.f32 0.0, %v4032
    %v4034 = vpop.f32.mrb[0].mxu0
    %4035 = vmatprep.mubr.f32.mxu0 0.0
    %4036 = vmatmul.mubr.f32.gmra.mrb[0].mxu0 %v3726
    %v4037 = vpop.f32.mrb[0].mxu0
    %v4038 = vadd.f32 0.0, %v4037
    %v4039 = vpop.f32.mrb[0].mxu0
    %4040 = vmatprep.mubr.f32.mxu0 0.0
    %4041 = vmatmul.mubr.f32.gmra.mrb[0].mxu0 %v3729
    %v4042 = vpop.f32.mrb[0].mxu0
    %v4043 = vadd.f32 0.0, %v4042
    %v4044 = vpop.f32.mrb[0].mxu0
    %4045 = vmatprep.mubr.f32.mxu0 0.0
    %4046 = vmatmul.mubr.f32.gmra.mrb[0].mxu0 %v3732
    %v4047 = vpop.f32.mrb[0].mxu0
    %v4048 = vadd.f32 0.0, %v4047
    %v4049 = vpop.f32.mrb[0].mxu0
    %4050 = vmatprep.mubr.f32.mxu0 0.0
    %4051 = vmatmul.mubr.f32.gmra.mrb[0].mxu0 %v3735
    %v4052 = vpop.f32.mrb[0].mxu0
    %v4053 = vadd.f32 0.0, %v4052
    %v4054 = vpop.f32.mrb[0].mxu0
    %4055 = vmatprep.mubr.f32.mxu0 0.0
    %4056 = vmatmul.mubr.f32.gmra.mrb[0].mxu0 %v3738
    %v4057 = vpop.f32.mrb[0].mxu0
    %v4058 = vadd.f32 0.0, %v4057
    %v4059 = vpop.f32.mrb[0].mxu0
    %4060 = vmatprep.mubr.f32.mxu0 0.0
    %4061 = vmatmul.mubr.f32.gmra.mrb[0].mxu0 %v3741
    %v4062 = vpop.f32.mrb[0].mxu0
    %v4063 = vadd.f32 0.0, %v4062
    %v4064 = vpop.f32.mrb[0].mxu0
    %4065 = vmatprep.mubr.f32.mxu0 0.0
    %4066 = vmatmul.mubr.f32.gmra.mrb[0].mxu0 %v3744
    %v4067 = vpop.f32.mrb[0].mxu0
    %v4068 = vadd.f32 0.0, %v4067
    %v4069 = vpop.f32.mrb[0].mxu0
    %4070 = vmatprep.mubr.f32.mxu0 0.0
    %4071 = vmatmul.mubr.f32.gmra.mrb[0].mxu0 %v3747
    %v4072 = vpop.f32.mrb[0].mxu0
    %v4073 = vadd.f32 0.0, %v4072
    %v4074 = vpop.f32.mrb[0].mxu0
    %4075 = vmatprep.mubr.f32.mxu0 0.0
    %4076 = vmatmul.mubr.f32.gmra.mrb[0].mxu0 %v3750
    %v4077 = vpop.f32.mrb[0].mxu0
    %v4078 = vadd.f32 0.0, %v4077
    %v4079 = vpop.f32.mrb[0].mxu0
    %4080 = vmatprep.mubr.f32.mxu0 0.0
    %4081 = vmatmul.mubr.f32.gmra.mrb[0].mxu0 %v3753
    %v4082 = vpop.f32.mrb[0].mxu0
    %v4083 = vadd.f32 0.0, %v4082
    %v4084 = vpop.f32.mrb[0].mxu0
    %4085 = vmatprep.mubr.f32.mxu0 0.0
    %4086 = vmatmul.mubr.f32.gmra.mrb[0].mxu0 %v3756
    %v4087 = vpop.f32.mrb[0].mxu0
    %v4088 = vadd.f32 0.0, %v4087
    %v4089 = vpop.f32.mrb[0].mxu0
    %4090 = vmatprep.mubr.f32.mxu0 0.0
    %4091 = vmatmul.mubr.f32.gmra.mrb[0].mxu0 %v3759
    %v4092 = vpop.f32.mrb[0].mxu0
    %v4093 = vadd.f32 0.0, %v4092
    %v4094 = vpop.f32.mrb[0].mxu0
    %4095 = vmatprep.mubr.f32.mxu0 0.0
    %4096 = vmatmul.mubr.f32.gmra.mrb[0].mxu0 %v3762
    %v4097 = vpop.f32.mrb[0].mxu0
    %v4098 = vadd.f32 0.0, %v4097
    %v4099 = vpop.f32.mrb[0].mxu0
    %4100 = vmatprep.mubr.f32.mxu0 0.0
    %4101 = vmatmul.mubr.f32.gmra.mrb[0].mxu0 %v3765
    %v4102 = vpop.f32.mrb[0].mxu0
    %v4103 = vadd.f32 0.0, %v4102
    %v4104 = vpop.f32.mrb[0].mxu0
    %4105 = vmatprep.mubr.f32.mxu0 0.0
    %4106 = vmatmul.mubr.f32.gmra.mrb[0].mxu0 %v3768
    %v4107 = vpop.f32.mrb[0].mxu0
    %v4108 = vadd.f32 0.0, %v4107
    %v4109 = vpop.f32.mrb[0].mxu0
    %4110 = vmatprep.mubr.f32.mxu0 0.0
    %4111 = vmatmul.mubr.f32.gmra.mrb[0].mxu0 %v3771
    %v4112 = vpop.f32.mrb[0].mxu0
    %v4113 = vadd.f32 0.0, %v4112
    %v4114 = vpop.f32.mrb[0].mxu0
    %4115 = vmatprep.mubr.f32.mxu0 0.0
    %4116 = vmatmul.mubr.f32.gmra.mrb[0].mxu0 %v3774
    %v4117 = vpop.f32.mrb[0].mxu0
    %v4118 = vadd.f32 0.0, %v4117
    %v4119 = vpop.f32.mrb[0].mxu0
    %4120 = vmatprep.mubr.f32.mxu0 0.0
    %4121 = vmatmul.mubr.f32.gmra.mrb[0].mxu0 %v3777
    %v4122 = vpop.f32.mrb[0].mxu0
    %v4123 = vadd.f32 0.0, %v4122
    %v4124 = vpop.f32.mrb[0].mxu0
    %4125 = vmatprep.mubr.f32.mxu0 0.0
    %4126 = vmatmul.mubr.f32.gmra.mrb[0].mxu0 %v3780
    %v4127 = vpop.f32.mrb[0].mxu0
    %v4128 = vadd.f32 0.0, %v4127
    %v4129 = vpop.f32.mrb[0].mxu0
    %4130 = vmatprep.mubr.f32.mxu0 0.0
    %4131 = vmatmul.mubr.f32.gmra.mrb[0].mxu0 %v3783
    %v4132 = vpop.f32.mrb[0].mxu0
    %v4133 = vadd.f32 0.0, %v4132
    %v4134 = vpop.f32.mrb[0].mxu0
    %4135 = vmatprep.mubr.f32.mxu0 0.0
    %4136 = vmatmul.mubr.f32.gmra.mrb[0].mxu0 %v3786
    %v4137 = vpop.f32.mrb[0].mxu0
    %v4138 = vadd.f32 0.0, %v4137
    %v4139 = vpop.f32.mrb[0].mxu0
    %4140 = vmatprep.mubr.f32.mxu0 0.0
    %4141 = vmatmul.mubr.f32.gmra.mrb[0].mxu0 %v3789
    %v4142 = vpop.f32.mrb[0].mxu0
    %v4143 = vadd.f32 0.0, %v4142
    %v4144 = vpop.f32.mrb[0].mxu0
    %4145 = vmatprep.mubr.f32.mxu0 0.0
    %4146 = vmatmul.mubr.f32.gmra.mrb[0].mxu0 %v3792
    %v4147 = vpop.f32.mrb[0].mxu0
    %v4148 = vadd.f32 0.0, %v4147
    %v4149 = vpop.f32.mrb[0].mxu0
    %4150 = vmatprep.mubr.f32.mxu0 0.0
    %4151 = vmatmul.mubr.f32.gmra.mrb[0].mxu0 %v3795
    %v4152 = vpop.f32.mrb[0].mxu0
    %v4153 = vadd.f32 0.0, %v4152
    %v4154 = vpop.f32.mrb[0].mxu0
    %4155 = vmatprep.mubr.f32.mxu0 0.0
    %4156 = vmatmul.mubr.f32.gmra.mrb[0].mxu0 %v3798
    %v4157 = vpop.f32.mrb[0].mxu0
    %v4158 = vadd.f32 0.0, %v4157
    %v4159 = vpop.f32.mrb[0].mxu0
    %4160 = vmatprep.mubr.f32.mxu0 0.0
    %4161 = vmatmul.mubr.f32.gmra.mrb[0].mxu0 %v3801
    %v4162 = vpop.f32.mrb[0].mxu0
    %v4163 = vadd.f32 0.0, %v4162
    %v4164 = vpop.f32.mrb[0].mxu0
    %4165 = vmatprep.mubr.f32.mxu0 0.0
    %4166 = vmatmul.mubr.f32.gmra.mrb[0].mxu0 %v3804
    %v4167 = vpop.f32.mrb[0].mxu0
    %v4168 = vadd.f32 0.0, %v4167
    %v4169 = vpop.f32.mrb[0].mxu0
    %4170 = vmatprep.mubr.f32.mxu0 0.0
    %4171 = vmatmul.mubr.f32.gmra.mrb[0].mxu0 %v3807
    %v4172 = vpop.f32.mrb[0].mxu0
    %v4173 = vadd.f32 0.0, %v4172
    %v4174 = vpop.f32.mrb[0].mxu0
    %4175 = vmatprep.mubr.f32.mxu0 0.0
    %4176 = vmatmul.mubr.f32.gmra.mrb[0].mxu0 %v3810
    %v4177 = vpop.f32.mrb[0].mxu0
    %v4178 = vadd.f32 0.0, %v4177
    %v4179 = vpop.f32.mrb[0].mxu0
    %4180 = vmatprep.mubr.f32.mxu0 0.0
    %4181 = vmatmul.mubr.f32.gmra.mrb[0].mxu0 %v3813
    %v4182 = vpop.f32.mrb[0].mxu0
    %v4183 = vadd.f32 0.0, %v4182
    %v4184 = vpop.f32.mrb[0].mxu0
    %4185 = vmatprep.mubr.f32.mxu0 0.0
    %4186 = vmatmul.mubr.f32.gmra.mrb[0].mxu0 %v3816
    %v4187 = vpop.f32.mrb[0].mxu0
    %v4188 = vadd.f32 0.0, %v4187
    %v4189 = vpop.f32.mrb[0].mxu0
    %4190 = vmatprep.mubr.f32.mxu0 0.0
    %4191 = vmatmul.mubr.f32.gmra.mrb[0].mxu0 %v3819
    %v4192 = vpop.f32.mrb[0].mxu0
    %v4193 = vadd.f32 0.0, %v4192
    %v4194 = vpop.f32.mrb[0].mxu0
    %4195 = vmatprep.mubr.f32.mxu0 0.0
    %4196 = vmatmul.mubr.f32.gmra.mrb[0].mxu0 %v3822
    %v4197 = vpop.f32.mrb[0].mxu0
    %v4198 = vadd.f32 0.0, %v4197
    %v4199 = vpop.f32.mrb[0].mxu0
    %4200 = vmatprep.mubr.f32.mxu0 0.0
    %4201 = vmatmul.mubr.f32.gmra.mrb[0].mxu0 %v3825
    %v4202 = vpop.f32.mrb[0].mxu0
    %v4203 = vadd.f32 0.0, %v4202
    %v4204 = vpop.f32.mrb[0].mxu0
    %4205 = vmatprep.mubr.f32.mxu0 0.0
    %4206 = vmatmul.mubr.f32.gmra.mrb[0].mxu0 %v3828
    %v4207 = vpop.f32.mrb[0].mxu0
    %v4208 = vadd.f32 0.0, %v4207
    %v4209 = vpop.f32.mrb[0].mxu0
    %4210 = vmatprep.mubr.f32.mxu0 0.0
    %4211 = vmatmul.mubr.f32.gmra.mrb[0].mxu0 %v3831
    %v4212 = vpop.f32.mrb[0].mxu0
    %v4213 = vadd.f32 0.0, %v4212
    %v4214 = vpop.f32.mrb[0].mxu0
    %4215 = vmatprep.mubr.f32.mxu0 0.0
    %4216 = vmatmul.mubr.f32.gmra.mrb[0].mxu0 %v3834
    %v4217 = vpop.f32.mrb[0].mxu0
    %v4218 = vadd.f32 0.0, %v4217
    %v4219 = vpop.f32.mrb[0].mxu0
    %4220 = vdwg.mxu0
    %4221 = vxpose.xlu0.b32.start [1/16] %v3903, 128
    %4222 = vxpose.xlu0.b32.cont [2/16] %v3908, 128
    %4223 = vxpose.xlu0.b32.cont [3/16] %v3913, 128
    %4224 = vxpose.xlu0.b32.cont [4/16] %v3918, 128
    %4225 = vxpose.xlu0.b32.cont [5/16] %v3923, 128
    %4226 = vxpose.xlu0.b32.cont [6/16] %v3928, 128
    %4227 = vxpose.xlu0.b32.cont [7/16] %v3933, 128
    %4228 = vxpose.xlu0.b32.cont [8/16] %v3938, 128
    %4229 = vxpose.xlu0.b32.cont [9/16] %v3943, 128
    %4230 = vxpose.xlu0.b32.cont [10/16] %v3948, 128
    %4231 = vxpose.xlu0.b32.cont [11/16] %v3953, 128
    %4232 = vxpose.xlu0.b32.cont [12/16] %v3958, 128
    %4233 = vxpose.xlu0.b32.cont [13/16] %v3963, 128
    %4234 = vxpose.xlu0.b32.cont [14/16] %v3968, 128
    %4235 = vxpose.xlu0.b32.cont [15/16] %v3973, 128
    %4236 = vxpose.xlu0.b32.end [16/16] %v3978, 128
    %v4237 = vpop.trf.xlu0
    %v4238 = vpop.trf.xlu0
    %v4239 = vpop.trf.xlu0
    %v4240 = vpop.trf.xlu0
    %v4241 = vpop.trf.xlu0
    %v4242 = vpop.trf.xlu0
    %v4243 = vpop.trf.xlu0
    %v4244 = vpop.trf.xlu0
    %v4245 = vpop.trf.xlu0
    %v4246 = vpop.trf.xlu0
    %v4247 = vpop.trf.xlu0
    %v4248 = vpop.trf.xlu0
    %v4249 = vpop.trf.xlu0
    %v4250 = vpop.trf.xlu0
    %v4251 = vpop.trf.xlu0
    %v4252 = vpop.trf.xlu0
    %4253 = vxpose.xlu0.b32.start [1/16] %v3983, 128
    %4254 = vxpose.xlu0.b32.cont [2/16] %v3988, 128
    %4255 = vxpose.xlu0.b32.cont [3/16] %v3993, 128
    %4256 = vxpose.xlu0.b32.cont [4/16] %v3998, 128
    %4257 = vxpose.xlu0.b32.cont [5/16] %v4003, 128
    %4258 = vxpose.xlu0.b32.cont [6/16] %v4008, 128
    %4259 = vxpose.xlu0.b32.cont [7/16] %v4013, 128
    %4260 = vxpose.xlu0.b32.cont [8/16] %v4018, 128
    %4261 = vxpose.xlu0.b32.cont [9/16] %v4023, 128
    %4262 = vxpose.xlu0.b32.cont [10/16] %v4028, 128
    %4263 = vxpose.xlu0.b32.cont [11/16] %v4033, 128
    %4264 = vxpose.xlu0.b32.cont [12/16] %v4038, 128
    %4265 = vxpose.xlu0.b32.cont [13/16] %v4043, 128
    %4266 = vxpose.xlu0.b32.cont [14/16] %v4048, 128
    %4267 = vxpose.xlu0.b32.cont [15/16] %v4053, 128
    %4268 = vxpose.xlu0.b32.end [16/16] %v4058, 128
    %v4269 = vpop.trf.xlu0
    %v4270 = vpop.trf.xlu0
    %v4271 = vpop.trf.xlu0
    %v4272 = vpop.trf.xlu0
    %v4273 = vpop.trf.xlu0
    %v4274 = vpop.trf.xlu0
    %v4275 = vpop.trf.xlu0
    %v4276 = vpop.trf.xlu0
    %v4277 = vpop.trf.xlu0
    %v4278 = vpop.trf.xlu0
    %v4279 = vpop.trf.xlu0
    %v4280 = vpop.trf.xlu0
    %v4281 = vpop.trf.xlu0
    %v4282 = vpop.trf.xlu0
    %v4283 = vpop.trf.xlu0
    %v4284 = vpop.trf.xlu0
    %4285 = vxpose.xlu0.b32.start [1/16] %v4063, 128
    %4286 = vxpose.xlu0.b32.cont [2/16] %v4068, 128
    %4287 = vxpose.xlu0.b32.cont [3/16] %v4073, 128
    %4288 = vxpose.xlu0.b32.cont [4/16] %v4078, 128
    %4289 = vxpose.xlu0.b32.cont [5/16] %v4083, 128
    %4290 = vxpose.xlu0.b32.cont [6/16] %v4088, 128
    %4291 = vxpose.xlu0.b32.cont [7/16] %v4093, 128
    %4292 = vxpose.xlu0.b32.cont [8/16] %v4098, 128
    %4293 = vxpose.xlu0.b32.cont [9/16] %v4103, 128
    %4294 = vxpose.xlu0.b32.cont [10/16] %v4108, 128
    %4295 = vxpose.xlu0.b32.cont [11/16] %v4113, 128
    %4296 = vxpose.xlu0.b32.cont [12/16] %v4118, 128
    %4297 = vxpose.xlu0.b32.cont [13/16] %v4123, 128
    %4298 = vxpose.xlu0.b32.cont [14/16] %v4128, 128
    %4299 = vxpose.xlu0.b32.cont [15/16] %v4133, 128
    %4300 = vxpose.xlu0.b32.end [16/16] %v4138, 128
    %v4301 = vpop.trf.xlu0
    %v4302 = vpop.trf.xlu0
    %v4303 = vpop.trf.xlu0
    %v4304 = vpop.trf.xlu0
    %v4305 = vpop.trf.xlu0
    %v4306 = vpop.trf.xlu0
    %v4307 = vpop.trf.xlu0
    %v4308 = vpop.trf.xlu0
    %v4309 = vpop.trf.xlu0
    %v4310 = vpop.trf.xlu0
    %v4311 = vpop.trf.xlu0
    %v4312 = vpop.trf.xlu0
    %v4313 = vpop.trf.xlu0
    %v4314 = vpop.trf.xlu0
    %v4315 = vpop.trf.xlu0
    %v4316 = vpop.trf.xlu0
    %4317 = vxpose.xlu0.b32.start [1/16] %v4143, 128
    %4318 = vxpose.xlu0.b32.cont [2/16] %v4148, 128
    %4319 = vxpose.xlu0.b32.cont [3/16] %v4153, 128
    %4320 = vxpose.xlu0.b32.cont [4/16] %v4158, 128
    %4321 = vxpose.xlu0.b32.cont [5/16] %v4163, 128
    %4322 = vxpose.xlu0.b32.cont [6/16] %v4168, 128
    %4323 = vxpose.xlu0.b32.cont [7/16] %v4173, 128
    %4324 = vxpose.xlu0.b32.cont [8/16] %v4178, 128
    %4325 = vxpose.xlu0.b32.cont [9/16] %v4183, 128
    %4326 = vxpose.xlu0.b32.cont [10/16] %v4188, 128
    %4327 = vxpose.xlu0.b32.cont [11/16] %v4193, 128
    %4328 = vxpose.xlu0.b32.cont [12/16] %v4198, 128
    %4329 = vxpose.xlu0.b32.cont [13/16] %v4203, 128
    %4330 = vxpose.xlu0.b32.cont [14/16] %v4208, 128
    %4331 = vxpose.xlu0.b32.cont [15/16] %v4213, 128
    %4332 = vxpose.xlu0.b32.end [16/16] %v4218, 128
    %v4333 = vpop.trf.xlu0
    %v4334 = vpop.trf.xlu0
    %v4335 = vpop.trf.xlu0
    %v4336 = vpop.trf.xlu0
    %v4337 = vpop.trf.xlu0
    %v4338 = vpop.trf.xlu0
    %v4339 = vpop.trf.xlu0
    %v4340 = vpop.trf.xlu0
    %v4341 = vpop.trf.xlu0
    %v4342 = vpop.trf.xlu0
    %v4343 = vpop.trf.xlu0
    %v4344 = vpop.trf.xlu0
    %v4345 = vpop.trf.xlu0
    %v4346 = vpop.trf.xlu0
    %v4347 = vpop.trf.xlu0
    %v4348 = vpop.trf.xlu0
    %4350 = vset.pattern.permute.xlu0 0
    %4351 = vperm.xlu0 %4350, %v3512
    %v4352 = vpop.permute.xlu0 %4351
    %4355 = vset.pattern.permute.xlu0 0
    %4356 = vperm.xlu0 %4355, %v3513
    %v4357 = vpop.permute.xlu0 %4356
    %4360 = vset.pattern.permute.xlu0 0
    %4361 = vperm.xlu0 %4360, %v3514
    %v4362 = vpop.permute.xlu0 %4361
    %4365 = vset.pattern.permute.xlu0 0
    %4366 = vperm.xlu0 %4365, %v3515
    %v4367 = vpop.permute.xlu0 %4366
    %v4369 = vadd.f32 %v4237, %v4352
    %v4370 = vadd.f32 %v4269, %v4352
    %v4371 = vadd.f32 %v4238, %v4357
    %v4372 = vadd.f32 %v4270, %v4357
    %v4373 = vadd.f32 %v4239, %v4362
    %v4374 = vadd.f32 %v4271, %v4362
    %v4375 = vadd.f32 %v4240, %v4367
    %v4376 = vadd.f32 %v4272, %v4367
    %v4377 = vadd.f32 %v4301, %v4352
    %v4378 = vadd.f32 %v4333, %v4352
    %v4379 = vadd.f32 %v4302, %v4357
    %v4380 = vadd.f32 %v4334, %v4357
    %v4381 = vadd.f32 %v4303, %v4362
    %v4382 = vadd.f32 %v4335, %v4362
    %v4383 = vadd.f32 %v4304, %v4367
    %v4384 = vadd.f32 %v4336, %v4367
    %v4385 = vtanh.pop %v4369
    %v4386 = vtanh.pop %v4370
    %v4387 = vtanh.pop %v4371
    %v4388 = vtanh.pop %v4372
    %v4389 = vtanh.pop %v4373
    %v4390 = vtanh.pop %v4374
    %v4391 = vtanh.pop %v4375
    %v4392 = vtanh.pop %v4376
    %v4393 = vtanh.pop %v4377
    %v4394 = vtanh.pop %v4378
    %v4395 = vtanh.pop %v4379
    %v4396 = vtanh.pop %v4380
    %v4397 = vtanh.pop %v4381
    %v4398 = vtanh.pop %v4382
    %v4399 = vtanh.pop %v4383
    %v4400 = vtanh.pop %v4384
    %4401 = vxpose.xlu0.b32.start [1/16] %v4385, 128
    %4402 = vxpose.xlu0.b32.cont [2/16] %v4387, 128
    %4403 = vxpose.xlu0.b32.cont [3/16] %v4389, 128
    %4404 = vxpose.xlu0.b32.cont [4/16] %v4391, 128
    %4405 = vxpose.xlu0.b32.cont [5/16] 0.0, 128
    %4406 = vxpose.xlu0.b32.cont [6/16] 0.0, 128
    %4407 = vxpose.xlu0.b32.cont [7/16] 0.0, 128
    %4408 = vxpose.xlu0.b32.cont [8/16] 0.0, 128
    %4409 = vxpose.xlu0.b32.cont [9/16] 0.0, 128
    %4410 = vxpose.xlu0.b32.cont [10/16] 0.0, 128
    %4411 = vxpose.xlu0.b32.cont [11/16] 0.0, 128
    %4412 = vxpose.xlu0.b32.cont [12/16] 0.0, 128
    %4413 = vxpose.xlu0.b32.cont [13/16] 0.0, 128
    %4414 = vxpose.xlu0.b32.cont [14/16] 0.0, 128
    %4415 = vxpose.xlu0.b32.cont [15/16] 0.0, 128
    %4416 = vxpose.xlu0.b32.end [16/16] 0.0, 128
    %v4417 = vpop.trf.xlu0
    %v4418 = vpop.trf.xlu0
    %v4419 = vpop.trf.xlu0
    %v4420 = vpop.trf.xlu0
    %v4421 = vpop.trf.xlu0
    %v4422 = vpop.trf.xlu0
    %v4423 = vpop.trf.xlu0
    %v4424 = vpop.trf.xlu0
    %v4425 = vpop.trf.xlu0
    %v4426 = vpop.trf.xlu0
    %v4427 = vpop.trf.xlu0
    %v4428 = vpop.trf.xlu0
    %v4429 = vpop.trf.xlu0
    %v4430 = vpop.trf.xlu0
    %v4431 = vpop.trf.xlu0
    %v4432 = vpop.trf.xlu0
    %4433 = vxpose.xlu0.b32.start [1/16] %v4386, 128
    %4434 = vxpose.xlu0.b32.cont [2/16] %v4388, 128
    %4435 = vxpose.xlu0.b32.cont [3/16] %v4390, 128
    %4436 = vxpose.xlu0.b32.cont [4/16] %v4392, 128
    %4437 = vxpose.xlu0.b32.cont [5/16] 0.0, 128
    %4438 = vxpose.xlu0.b32.cont [6/16] 0.0, 128
    %4439 = vxpose.xlu0.b32.cont [7/16] 0.0, 128
    %4440 = vxpose.xlu0.b32.cont [8/16] 0.0, 128
    %4441 = vxpose.xlu0.b32.cont [9/16] 0.0, 128
    %4442 = vxpose.xlu0.b32.cont [10/16] 0.0, 128
    %4443 = vxpose.xlu0.b32.cont [11/16] 0.0, 128
    %4444 = vxpose.xlu0.b32.cont [12/16] 0.0, 128
    %4445 = vxpose.xlu0.b32.cont [13/16] 0.0, 128
    %4446 = vxpose.xlu0.b32.cont [14/16] 0.0, 128
    %4447 = vxpose.xlu0.b32.cont [15/16] 0.0, 128
    %4448 = vxpose.xlu0.b32.end [16/16] 0.0, 128
    %v4449 = vpop.trf.xlu0
    %v4450 = vpop.trf.xlu0
    %v4451 = vpop.trf.xlu0
    %v4452 = vpop.trf.xlu0
    %v4453 = vpop.trf.xlu0
    %v4454 = vpop.trf.xlu0
    %v4455 = vpop.trf.xlu0
    %v4456 = vpop.trf.xlu0
    %v4457 = vpop.trf.xlu0
    %v4458 = vpop.trf.xlu0
    %v4459 = vpop.trf.xlu0
    %v4460 = vpop.trf.xlu0
    %v4461 = vpop.trf.xlu0
    %v4462 = vpop.trf.xlu0
    %v4463 = vpop.trf.xlu0
    %v4464 = vpop.trf.xlu0
    %4465 = vxpose.xlu0.b32.start [1/16] %v4393, 128
    %4466 = vxpose.xlu0.b32.cont [2/16] %v4395, 128
    %4467 = vxpose.xlu0.b32.cont [3/16] %v4397, 128
    %4468 = vxpose.xlu0.b32.cont [4/16] %v4399, 128
    %4469 = vxpose.xlu0.b32.cont [5/16] 0.0, 128
    %4470 = vxpose.xlu0.b32.cont [6/16] 0.0, 128
    %4471 = vxpose.xlu0.b32.cont [7/16] 0.0, 128
    %4472 = vxpose.xlu0.b32.cont [8/16] 0.0, 128
    %4473 = vxpose.xlu0.b32.cont [9/16] 0.0, 128
    %4474 = vxpose.xlu0.b32.cont [10/16] 0.0, 128
    %4475 = vxpose.xlu0.b32.cont [11/16] 0.0, 128
    %4476 = vxpose.xlu0.b32.cont [12/16] 0.0, 128
    %4477 = vxpose.xlu0.b32.cont [13/16] 0.0, 128
    %4478 = vxpose.xlu0.b32.cont [14/16] 0.0, 128
    %4479 = vxpose.xlu0.b32.cont [15/16] 0.0, 128
    %4480 = vxpose.xlu0.b32.end [16/16] 0.0, 128
    %v4481 = vpop.trf.xlu0
    %v4482 = vpop.trf.xlu0
    %v4483 = vpop.trf.xlu0
    %v4484 = vpop.trf.xlu0
    %v4485 = vpop.trf.xlu0
    %v4486 = vpop.trf.xlu0
    %v4487 = vpop.trf.xlu0
    %v4488 = vpop.trf.xlu0
    %v4489 = vpop.trf.xlu0
    %v4490 = vpop.trf.xlu0
    %v4491 = vpop.trf.xlu0
    %v4492 = vpop.trf.xlu0
    %v4493 = vpop.trf.xlu0
    %v4494 = vpop.trf.xlu0
    %v4495 = vpop.trf.xlu0
    %v4496 = vpop.trf.xlu0
    %4497 = vxpose.xlu0.b32.start [1/16] %v4394, 128
    %4498 = vxpose.xlu0.b32.cont [2/16] %v4396, 128
    %4499 = vxpose.xlu0.b32.cont [3/16] %v4398, 128
    %4500 = vxpose.xlu0.b32.cont [4/16] %v4400, 128
    %4501 = vxpose.xlu0.b32.cont [5/16] 0.0, 128
    %4502 = vxpose.xlu0.b32.cont [6/16] 0.0, 128
    %4503 = vxpose.xlu0.b32.cont [7/16] 0.0, 128
    %4504 = vxpose.xlu0.b32.cont [8/16] 0.0, 128
    %4505 = vxpose.xlu0.b32.cont [9/16] 0.0, 128
    %4506 = vxpose.xlu0.b32.cont [10/16] 0.0, 128
    %4507 = vxpose.xlu0.b32.cont [11/16] 0.0, 128
    %4508 = vxpose.xlu0.b32.cont [12/16] 0.0, 128
    %4509 = vxpose.xlu0.b32.cont [13/16] 0.0, 128
    %4510 = vxpose.xlu0.b32.cont [14/16] 0.0, 128
    %4511 = vxpose.xlu0.b32.cont [15/16] 0.0, 128
    %4512 = vxpose.xlu0.b32.end [16/16] 0.0, 128
    %v4513 = vpop.trf.xlu0
    %v4514 = vpop.trf.xlu0
    %v4515 = vpop.trf.xlu0
    %v4516 = vpop.trf.xlu0
    %v4517 = vpop.trf.xlu0
    %v4518 = vpop.trf.xlu0
    %v4519 = vpop.trf.xlu0
    %v4520 = vpop.trf.xlu0
    %v4521 = vpop.trf.xlu0
    %v4522 = vpop.trf.xlu0
    %v4523 = vpop.trf.xlu0
    %v4524 = vpop.trf.xlu0
    %v4525 = vpop.trf.xlu0
    %v4526 = vpop.trf.xlu0
    %v4527 = vpop.trf.xlu0
    %v4528 = vpop.trf.xlu0
    %v4530 = vsel %vm1057, %v4417, 0
    %v4533 = vsel %vm1057, %v4418, 0
    %v4536 = vsel %vm1057, %v4419, 0
    %v4539 = vsel %vm1057, %v4420, 0
    %v4542 = vsel %vm1057, %v4421, 0
    %v4545 = vsel %vm1057, %v4422, 0
    %v4548 = vsel %vm1057, %v4423, 0
    %v4551 = vsel %vm1057, %v4424, 0
    %v4554 = vsel %vm1057, %v4425, 0
    %v4557 = vsel %vm1057, %v4426, 0
    %v4560 = vsel %vm1057, %v4427, 0
    %v4563 = vsel %vm1057, %v4428, 0
    %v4566 = vsel %vm1057, %v4429, 0
    %v4569 = vsel %vm1057, %v4430, 0
    %v4572 = vsel %vm1057, %v4431, 0
    %v4575 = vsel %vm1057, %v4432, 0
    %v4578 = vsel %vm1057, %v4449, 0
    %v4581 = vsel %vm1057, %v4450, 0
    %v4584 = vsel %vm1057, %v4451, 0
    %v4587 = vsel %vm1057, %v4452, 0
    %v4590 = vsel %vm1057, %v4453, 0
    %v4593 = vsel %vm1057, %v4454, 0
    %v4596 = vsel %vm1057, %v4455, 0
    %v4599 = vsel %vm1057, %v4456, 0
    %v4602 = vsel %vm1057, %v4457, 0
    %v4605 = vsel %vm1057, %v4458, 0
    %v4608 = vsel %vm1057, %v4459, 0
    %v4611 = vsel %vm1057, %v4460, 0
    %v4614 = vsel %vm1057, %v4461, 0
    %v4617 = vsel %vm1057, %v4462, 0
    %v4620 = vsel %vm1057, %v4463, 0
    %v4623 = vsel %vm1057, %v4464, 0
    %v4626 = vsel %vm1057, %v4481, 0
    %v4629 = vsel %vm1057, %v4482, 0
    %v4632 = vsel %vm1057, %v4483, 0
    %v4635 = vsel %vm1057, %v4484, 0
    %v4638 = vsel %vm1057, %v4485, 0
    %v4641 = vsel %vm1057, %v4486, 0
    %v4644 = vsel %vm1057, %v4487, 0
    %v4647 = vsel %vm1057, %v4488, 0
    %v4650 = vsel %vm1057, %v4489, 0
    %v4653 = vsel %vm1057, %v4490, 0
    %v4656 = vsel %vm1057, %v4491, 0
    %v4659 = vsel %vm1057, %v4492, 0
    %v4662 = vsel %vm1057, %v4493, 0
    %v4665 = vsel %vm1057, %v4494, 0
    %v4668 = vsel %vm1057, %v4495, 0
    %v4671 = vsel %vm1057, %v4496, 0
    %v4674 = vsel %vm1057, %v4513, 0
    %v4677 = vsel %vm1057, %v4514, 0
    %v4680 = vsel %vm1057, %v4515, 0
    %v4683 = vsel %vm1057, %v4516, 0
    %v4686 = vsel %vm1057, %v4517, 0
    %v4689 = vsel %vm1057, %v4518, 0
    %v4692 = vsel %vm1057, %v4519, 0
    %v4695 = vsel %vm1057, %v4520, 0
    %v4698 = vsel %vm1057, %v4521, 0
    %v4701 = vsel %vm1057, %v4522, 0
    %v4704 = vsel %vm1057, %v4523, 0
    %v4707 = vsel %vm1057, %v4524, 0
    %v4710 = vsel %vm1057, %v4525, 0
    %v4713 = vsel %vm1057, %v4526, 0
    %v4716 = vsel %vm1057, %v4527, 0
    %v4719 = vsel %vm1057, %v4528, 0
    %4721 = vmatprep.subr.mxu0 0.0
    %4722 = vmatpush1.xpose.msra.mxu0 %v1251
    %4723 = vmatprep.subr.mxu0 0.0
    %4724 = vmatpush1.xpose.msra.mxu0 0.0
    %4725 = vmatprep.subr.mxu0 0.0
    %4726 = vmatpush1.xpose.msra.mxu0 0.0
    %4727 = vmatprep.subr.mxu0 0.0
    %4728 = vmatpush1.xpose.msra.mxu0 0.0
    %4729 = vmatprep.subr.mxu0 0.0
    %4730 = vmatpush1.xpose.msra.mxu0 0.0
    %4731 = vmatprep.subr.mxu0 0.0
    %4732 = vmatpush1.xpose.msra.mxu0 0.0
    %4733 = vmatprep.subr.mxu0 0.0
    %4734 = vmatpush1.xpose.msra.mxu0 0.0
    %4735 = vmatprep.subr.mxu0 0.0
    %4736 = vmatpush1.xpose.msra.mxu0 0.0
    %4737 = vmatprep.subr.mxu0 0.0
    %4738 = vmatpush1.xpose.msra.mxu0 0.0
    %4739 = vmatprep.subr.mxu0 0.0
    %4740 = vmatpush1.xpose.msra.mxu0 0.0
    %4741 = vmatprep.subr.mxu0 0.0
    %4742 = vmatpush1.xpose.msra.mxu0 0.0
    %4743 = vmatprep.subr.mxu0 0.0
    %4744 = vmatpush1.xpose.msra.mxu0 0.0
    %4745 = vmatprep.subr.mxu0 0.0
    %4746 = vmatpush1.xpose.msra.mxu0 0.0
    %4747 = vmatprep.subr.mxu0 0.0
    %4748 = vmatpush1.xpose.msra.mxu0 0.0
    %4749 = vmatprep.subr.mxu0 0.0
    %4750 = vmatpush1.xpose.msra.mxu0 0.0
    %4751 = vmatprep.subr.mxu0 0.0
    %4752 = vmatpush1.xpose.msra.mxu0 0.0
    %4753 = vmatprep.subr.mxu0 0.0
    %4754 = vmatpush1.xpose.msra.mxu0 0.0
    %4755 = vmatprep.subr.mxu0 0.0
    %4756 = vmatpush1.xpose.msra.mxu0 0.0
    %4757 = vmatprep.subr.mxu0 0.0
    %4758 = vmatpush1.xpose.msra.mxu0 0.0
    %4759 = vmatprep.subr.mxu0 0.0
    %4760 = vmatpush1.xpose.msra.mxu0 0.0
    %4761 = vmatprep.subr.mxu0 0.0
    %4762 = vmatpush1.xpose.msra.mxu0 0.0
    %4763 = vmatprep.subr.mxu0 0.0
    %4764 = vmatpush1.xpose.msra.mxu0 0.0
    %4765 = vmatprep.subr.mxu0 0.0
    %4766 = vmatpush1.xpose.msra.mxu0 0.0
    %4767 = vmatprep.subr.mxu0 0.0
    %4768 = vmatpush1.xpose.msra.mxu0 0.0
    %4769 = vmatprep.subr.mxu0 0.0
    %4770 = vmatpush1.xpose.msra.mxu0 0.0
    %4771 = vmatprep.subr.mxu0 0.0
    %4772 = vmatpush1.xpose.msra.mxu0 0.0
    %4773 = vmatprep.subr.mxu0 0.0
    %4774 = vmatpush1.xpose.msra.mxu0 0.0
    %4775 = vmatprep.subr.mxu0 0.0
    %4776 = vmatpush1.xpose.msra.mxu0 0.0
    %4777 = vmatprep.subr.mxu0 0.0
    %4778 = vmatpush1.xpose.msra.mxu0 0.0
    %4779 = vmatprep.subr.mxu0 0.0
    %4780 = vmatpush1.xpose.msra.mxu0 0.0
    %4781 = vmatprep.subr.mxu0 0.0
    %4782 = vmatpush1.xpose.msra.mxu0 0.0
    %4783 = vmatprep.subr.mxu0 0.0
    %4784 = vmatpush1.xpose.msra.mxu0 0.0
    %4785 = vmatprep.mubr.f32.mxu0 0.0
    %4786 = vmatmul.mubr.f32.gmra.mrb[0].mxu0 %v4530
    %v4787 = vpop.f32.mrb[0].mxu0
    %v4788 = vadd.f32 0.0, %v4787
    %v4789 = vpop.f32.mrb[0].mxu0
    %4790 = vmatprep.mubr.f32.mxu0 0.0
    %4791 = vmatmul.mubr.f32.gmra.mrb[0].mxu0 %v4533
    %v4792 = vpop.f32.mrb[0].mxu0
    %v4793 = vadd.f32 0.0, %v4792
    %v4794 = vpop.f32.mrb[0].mxu0
    %4795 = vmatprep.mubr.f32.mxu0 0.0
    %4796 = vmatmul.mubr.f32.gmra.mrb[0].mxu0 %v4536
    %v4797 = vpop.f32.mrb[0].mxu0
    %v4798 = vadd.f32 0.0, %v4797
    %v4799 = vpop.f32.mrb[0].mxu0
    %4800 = vmatprep.mubr.f32.mxu0 0.0
    %4801 = vmatmul.mubr.f32.gmra.mrb[0].mxu0 %v4539
    %v4802 = vpop.f32.mrb[0].mxu0
    %v4803 = vadd.f32 0.0, %v4802
    %v4804 = vpop.f32.mrb[0].mxu0
    %4805 = vmatprep.mubr.f32.mxu0 0.0
    %4806 = vmatmul.mubr.f32.gmra.mrb[0].mxu0 %v4542
    %v4807 = vpop.f32.mrb[0].mxu0
    %v4808 = vadd.f32 0.0, %v4807
    %v4809 = vpop.f32.mrb[0].mxu0
    %4810 = vmatprep.mubr.f32.mxu0 0.0
    %4811 = vmatmul.mubr.f32.gmra.mrb[0].mxu0 %v4545
    %v4812 = vpop.f32.mrb[0].mxu0
    %v4813 = vadd.f32 0.0, %v4812
    %v4814 = vpop.f32.mrb[0].mxu0
    %4815 = vmatprep.mubr.f32.mxu0 0.0
    %4816 = vmatmul.mubr.f32.gmra.mrb[0].mxu0 %v4548
    %v4817 = vpop.f32.mrb[0].mxu0
    %v4818 = vadd.f32 0.0, %v4817
    %v4819 = vpop.f32.mrb[0].mxu0
    %4820 = vmatprep.mubr.f32.mxu0 0.0
    %4821 = vmatmul.mubr.f32.gmra.mrb[0].mxu0 %v4551
    %v4822 = vpop.f32.mrb[0].mxu0
    %v4823 = vadd.f32 0.0, %v4822
    %v4824 = vpop.f32.mrb[0].mxu0
    %4825 = vmatprep.mubr.f32.mxu0 0.0
    %4826 = vmatmul.mubr.f32.gmra.mrb[0].mxu0 %v4554
    %v4827 = vpop.f32.mrb[0].mxu0
    %v4828 = vadd.f32 0.0, %v4827
    %v4829 = vpop.f32.mrb[0].mxu0
    %4830 = vmatprep.mubr.f32.mxu0 0.0
    %4831 = vmatmul.mubr.f32.gmra.mrb[0].mxu0 %v4557
    %v4832 = vpop.f32.mrb[0].mxu0
    %v4833 = vadd.f32 0.0, %v4832
    %v4834 = vpop.f32.mrb[0].mxu0
    %4835 = vmatprep.mubr.f32.mxu0 0.0
    %4836 = vmatmul.mubr.f32.gmra.mrb[0].mxu0 %v4560
    %v4837 = vpop.f32.mrb[0].mxu0
    %v4838 = vadd.f32 0.0, %v4837
    %v4839 = vpop.f32.mrb[0].mxu0
    %4840 = vmatprep.mubr.f32.mxu0 0.0
    %4841 = vmatmul.mubr.f32.gmra.mrb[0].mxu0 %v4563
    %v4842 = vpop.f32.mrb[0].mxu0
    %v4843 = vadd.f32 0.0, %v4842
    %v4844 = vpop.f32.mrb[0].mxu0
    %4845 = vmatprep.mubr.f32.mxu0 0.0
    %4846 = vmatmul.mubr.f32.gmra.mrb[0].mxu0 %v4566
    %v4847 = vpop.f32.mrb[0].mxu0
    %v4848 = vadd.f32 0.0, %v4847
    %v4849 = vpop.f32.mrb[0].mxu0
    %4850 = vmatprep.mubr.f32.mxu0 0.0
    %4851 = vmatmul.mubr.f32.gmra.mrb[0].mxu0 %v4569
    %v4852 = vpop.f32.mrb[0].mxu0
    %v4853 = vadd.f32 0.0, %v4852
    %v4854 = vpop.f32.mrb[0].mxu0
    %4855 = vmatprep.mubr.f32.mxu0 0.0
    %4856 = vmatmul.mubr.f32.gmra.mrb[0].mxu0 %v4572
    %v4857 = vpop.f32.mrb[0].mxu0
    %v4858 = vadd.f32 0.0, %v4857
    %v4859 = vpop.f32.mrb[0].mxu0
    %4860 = vmatprep.mubr.f32.mxu0 0.0
    %4861 = vmatmul.mubr.f32.gmra.mrb[0].mxu0 %v4575
    %v4862 = vpop.f32.mrb[0].mxu0
    %v4863 = vadd.f32 0.0, %v4862
    %v4864 = vpop.f32.mrb[0].mxu0
    %4865 = vmatprep.mubr.f32.mxu0 0.0
    %4866 = vmatmul.mubr.f32.gmra.mrb[0].mxu0 %v4578
    %v4867 = vpop.f32.mrb[0].mxu0
    %v4868 = vadd.f32 0.0, %v4867
    %v4869 = vpop.f32.mrb[0].mxu0
    %4870 = vmatprep.mubr.f32.mxu0 0.0
    %4871 = vmatmul.mubr.f32.gmra.mrb[0].mxu0 %v4581
    %v4872 = vpop.f32.mrb[0].mxu0
    %v4873 = vadd.f32 0.0, %v4872
    %v4874 = vpop.f32.mrb[0].mxu0
    %4875 = vmatprep.mubr.f32.mxu0 0.0
    %4876 = vmatmul.mubr.f32.gmra.mrb[0].mxu0 %v4584
    %v4877 = vpop.f32.mrb[0].mxu0
    %v4878 = vadd.f32 0.0, %v4877
    %v4879 = vpop.f32.mrb[0].mxu0
    %4880 = vmatprep.mubr.f32.mxu0 0.0
    %4881 = vmatmul.mubr.f32.gmra.mrb[0].mxu0 %v4587
    %v4882 = vpop.f32.mrb[0].mxu0
    %v4883 = vadd.f32 0.0, %v4882
    %v4884 = vpop.f32.mrb[0].mxu0
    %4885 = vmatprep.mubr.f32.mxu0 0.0
    %4886 = vmatmul.mubr.f32.gmra.mrb[0].mxu0 %v4590
    %v4887 = vpop.f32.mrb[0].mxu0
    %v4888 = vadd.f32 0.0, %v4887
    %v4889 = vpop.f32.mrb[0].mxu0
    %4890 = vmatprep.mubr.f32.mxu0 0.0
    %4891 = vmatmul.mubr.f32.gmra.mrb[0].mxu0 %v4593
    %v4892 = vpop.f32.mrb[0].mxu0
    %v4893 = vadd.f32 0.0, %v4892
    %v4894 = vpop.f32.mrb[0].mxu0
    %4895 = vmatprep.mubr.f32.mxu0 0.0
    %4896 = vmatmul.mubr.f32.gmra.mrb[0].mxu0 %v4596
    %v4897 = vpop.f32.mrb[0].mxu0
    %v4898 = vadd.f32 0.0, %v4897
    %v4899 = vpop.f32.mrb[0].mxu0
    %4900 = vmatprep.mubr.f32.mxu0 0.0
    %4901 = vmatmul.mubr.f32.gmra.mrb[0].mxu0 %v4599
    %v4902 = vpop.f32.mrb[0].mxu0
    %v4903 = vadd.f32 0.0, %v4902
    %v4904 = vpop.f32.mrb[0].mxu0
    %4905 = vmatprep.mubr.f32.mxu0 0.0
    %4906 = vmatmul.mubr.f32.gmra.mrb[0].mxu0 %v4602
    %v4907 = vpop.f32.mrb[0].mxu0
    %v4908 = vadd.f32 0.0, %v4907
    %v4909 = vpop.f32.mrb[0].mxu0
    %4910 = vmatprep.mubr.f32.mxu0 0.0
    %4911 = vmatmul.mubr.f32.gmra.mrb[0].mxu0 %v4605
    %v4912 = vpop.f32.mrb[0].mxu0
    %v4913 = vadd.f32 0.0, %v4912
    %v4914 = vpop.f32.mrb[0].mxu0
    %4915 = vmatprep.mubr.f32.mxu0 0.0
    %4916 = vmatmul.mubr.f32.gmra.mrb[0].mxu0 %v4608
    %v4917 = vpop.f32.mrb[0].mxu0
    %v4918 = vadd.f32 0.0, %v4917
    %v4919 = vpop.f32.mrb[0].mxu0
    %4920 = vmatprep.mubr.f32.mxu0 0.0
    %4921 = vmatmul.mubr.f32.gmra.mrb[0].mxu0 %v4611
    %v4922 = vpop.f32.mrb[0].mxu0
    %v4923 = vadd.f32 0.0, %v4922
    %v4924 = vpop.f32.mrb[0].mxu0
    %4925 = vmatprep.mubr.f32.mxu0 0.0
    %4926 = vmatmul.mubr.f32.gmra.mrb[0].mxu0 %v4614
    %v4927 = vpop.f32.mrb[0].mxu0
    %v4928 = vadd.f32 0.0, %v4927
    %v4929 = vpop.f32.mrb[0].mxu0
    %4930 = vmatprep.mubr.f32.mxu0 0.0
    %4931 = vmatmul.mubr.f32.gmra.mrb[0].mxu0 %v4617
    %v4932 = vpop.f32.mrb[0].mxu0
    %v4933 = vadd.f32 0.0, %v4932
    %v4934 = vpop.f32.mrb[0].mxu0
    %4935 = vmatprep.mubr.f32.mxu0 0.0
    %4936 = vmatmul.mubr.f32.gmra.mrb[0].mxu0 %v4620
    %v4937 = vpop.f32.mrb[0].mxu0
    %v4938 = vadd.f32 0.0, %v4937
    %v4939 = vpop.f32.mrb[0].mxu0
    %4940 = vmatprep.mubr.f32.mxu0 0.0
    %4941 = vmatmul.mubr.f32.gmra.mrb[0].mxu0 %v4623
    %v4942 = vpop.f32.mrb[0].mxu0
    %v4943 = vadd.f32 0.0, %v4942
    %v4944 = vpop.f32.mrb[0].mxu0
    %4945 = vmatprep.mubr.f32.mxu0 0.0
    %4946 = vmatmul.mubr.f32.gmra.mrb[0].mxu0 %v4626
    %v4947 = vpop.f32.mrb[0].mxu0
    %v4948 = vadd.f32 0.0, %v4947
    %v4949 = vpop.f32.mrb[0].mxu0
    %4950 = vmatprep.mubr.f32.mxu0 0.0
    %4951 = vmatmul.mubr.f32.gmra.mrb[0].mxu0 %v4629
    %v4952 = vpop.f32.mrb[0].mxu0
    %v4953 = vadd.f32 0.0, %v4952
    %v4954 = vpop.f32.mrb[0].mxu0
    %4955 = vmatprep.mubr.f32.mxu0 0.0
    %4956 = vmatmul.mubr.f32.gmra.mrb[0].mxu0 %v4632
    %v4957 = vpop.f32.mrb[0].mxu0
    %v4958 = vadd.f32 0.0, %v4957
    %v4959 = vpop.f32.mrb[0].mxu0
    %4960 = vmatprep.mubr.f32.mxu0 0.0
    %4961 = vmatmul.mubr.f32.gmra.mrb[0].mxu0 %v4635
    %v4962 = vpop.f32.mrb[0].mxu0
    %v4963 = vadd.f32 0.0, %v4962
    %v4964 = vpop.f32.mrb[0].mxu0
    %4965 = vmatprep.mubr.f32.mxu0 0.0
    %4966 = vmatmul.mubr.f32.gmra.mrb[0].mxu0 %v4638
    %v4967 = vpop.f32.mrb[0].mxu0
    %v4968 = vadd.f32 0.0, %v4967
    %v4969 = vpop.f32.mrb[0].mxu0
    %4970 = vmatprep.mubr.f32.mxu0 0.0
    %4971 = vmatmul.mubr.f32.gmra.mrb[0].mxu0 %v4641
    %v4972 = vpop.f32.mrb[0].mxu0
    %v4973 = vadd.f32 0.0, %v4972
    %v4974 = vpop.f32.mrb[0].mxu0
    %4975 = vmatprep.mubr.f32.mxu0 0.0
    %4976 = vmatmul.mubr.f32.gmra.mrb[0].mxu0 %v4644
    %v4977 = vpop.f32.mrb[0].mxu0
    %v4978 = vadd.f32 0.0, %v4977
    %v4979 = vpop.f32.mrb[0].mxu0
    %4980 = vmatprep.mubr.f32.mxu0 0.0
    %4981 = vmatmul.mubr.f32.gmra.mrb[0].mxu0 %v4647
    %v4982 = vpop.f32.mrb[0].mxu0
    %v4983 = vadd.f32 0.0, %v4982
    %v4984 = vpop.f32.mrb[0].mxu0
    %4985 = vmatprep.mubr.f32.mxu0 0.0
    %4986 = vmatmul.mubr.f32.gmra.mrb[0].mxu0 %v4650
    %v4987 = vpop.f32.mrb[0].mxu0
    %v4988 = vadd.f32 0.0, %v4987
    %v4989 = vpop.f32.mrb[0].mxu0
    %4990 = vmatprep.mubr.f32.mxu0 0.0
    %4991 = vmatmul.mubr.f32.gmra.mrb[0].mxu0 %v4653
    %v4992 = vpop.f32.mrb[0].mxu0
    %v4993 = vadd.f32 0.0, %v4992
    %v4994 = vpop.f32.mrb[0].mxu0
    %4995 = vmatprep.mubr.f32.mxu0 0.0
    %4996 = vmatmul.mubr.f32.gmra.mrb[0].mxu0 %v4656
    %v4997 = vpop.f32.mrb[0].mxu0
    %v4998 = vadd.f32 0.0, %v4997
    %v4999 = vpop.f32.mrb[0].mxu0
    %5000 = vmatprep.mubr.f32.mxu0 0.0
    %5001 = vmatmul.mubr.f32.gmra.mrb[0].mxu0 %v4659
    %v5002 = vpop.f32.mrb[0].mxu0
    %v5003 = vadd.f32 0.0, %v5002
    %v5004 = vpop.f32.mrb[0].mxu0
    %5005 = vmatprep.mubr.f32.mxu0 0.0
    %5006 = vmatmul.mubr.f32.gmra.mrb[0].mxu0 %v4662
    %v5007 = vpop.f32.mrb[0].mxu0
    %v5008 = vadd.f32 0.0, %v5007
    %v5009 = vpop.f32.mrb[0].mxu0
    %5010 = vmatprep.mubr.f32.mxu0 0.0
    %5011 = vmatmul.mubr.f32.gmra.mrb[0].mxu0 %v4665
    %v5012 = vpop.f32.mrb[0].mxu0
    %v5013 = vadd.f32 0.0, %v5012
    %v5014 = vpop.f32.mrb[0].mxu0
    %5015 = vmatprep.mubr.f32.mxu0 0.0
    %5016 = vmatmul.mubr.f32.gmra.mrb[0].mxu0 %v4668
    %v5017 = vpop.f32.mrb[0].mxu0
    %v5018 = vadd.f32 0.0, %v5017
    %v5019 = vpop.f32.mrb[0].mxu0
    %5020 = vmatprep.mubr.f32.mxu0 0.0
    %5021 = vmatmul.mubr.f32.gmra.mrb[0].mxu0 %v4671
    %v5022 = vpop.f32.mrb[0].mxu0
    %v5023 = vadd.f32 0.0, %v5022
    %v5024 = vpop.f32.mrb[0].mxu0
    %5025 = vmatprep.mubr.f32.mxu0 0.0
    %5026 = vmatmul.mubr.f32.gmra.mrb[0].mxu0 %v4674
    %v5027 = vpop.f32.mrb[0].mxu0
    %v5028 = vadd.f32 0.0, %v5027
    %v5029 = vpop.f32.mrb[0].mxu0
    %5030 = vmatprep.mubr.f32.mxu0 0.0
    %5031 = vmatmul.mubr.f32.gmra.mrb[0].mxu0 %v4677
    %v5032 = vpop.f32.mrb[0].mxu0
    %v5033 = vadd.f32 0.0, %v5032
    %v5034 = vpop.f32.mrb[0].mxu0
    %5035 = vmatprep.mubr.f32.mxu0 0.0
    %5036 = vmatmul.mubr.f32.gmra.mrb[0].mxu0 %v4680
    %v5037 = vpop.f32.mrb[0].mxu0
    %v5038 = vadd.f32 0.0, %v5037
    %v5039 = vpop.f32.mrb[0].mxu0
    %5040 = vmatprep.mubr.f32.mxu0 0.0
    %5041 = vmatmul.mubr.f32.gmra.mrb[0].mxu0 %v4683
    %v5042 = vpop.f32.mrb[0].mxu0
    %v5043 = vadd.f32 0.0, %v5042
    %v5044 = vpop.f32.mrb[0].mxu0
    %5045 = vmatprep.mubr.f32.mxu0 0.0
    %5046 = vmatmul.mubr.f32.gmra.mrb[0].mxu0 %v4686
    %v5047 = vpop.f32.mrb[0].mxu0
    %v5048 = vadd.f32 0.0, %v5047
    %v5049 = vpop.f32.mrb[0].mxu0
    %5050 = vmatprep.mubr.f32.mxu0 0.0
    %5051 = vmatmul.mubr.f32.gmra.mrb[0].mxu0 %v4689
    %v5052 = vpop.f32.mrb[0].mxu0
    %v5053 = vadd.f32 0.0, %v5052
    %v5054 = vpop.f32.mrb[0].mxu0
    %5055 = vmatprep.mubr.f32.mxu0 0.0
    %5056 = vmatmul.mubr.f32.gmra.mrb[0].mxu0 %v4692
    %v5057 = vpop.f32.mrb[0].mxu0
    %v5058 = vadd.f32 0.0, %v5057
    %v5059 = vpop.f32.mrb[0].mxu0
    %5060 = vmatprep.mubr.f32.mxu0 0.0
    %5061 = vmatmul.mubr.f32.gmra.mrb[0].mxu0 %v4695
    %v5062 = vpop.f32.mrb[0].mxu0
    %v5063 = vadd.f32 0.0, %v5062
    %v5064 = vpop.f32.mrb[0].mxu0
    %5065 = vmatprep.mubr.f32.mxu0 0.0
    %5066 = vmatmul.mubr.f32.gmra.mrb[0].mxu0 %v4698
    %v5067 = vpop.f32.mrb[0].mxu0
    %v5068 = vadd.f32 0.0, %v5067
    %v5069 = vpop.f32.mrb[0].mxu0
    %5070 = vmatprep.mubr.f32.mxu0 0.0
    %5071 = vmatmul.mubr.f32.gmra.mrb[0].mxu0 %v4701
    %v5072 = vpop.f32.mrb[0].mxu0
    %v5073 = vadd.f32 0.0, %v5072
    %v5074 = vpop.f32.mrb[0].mxu0
    %5075 = vmatprep.mubr.f32.mxu0 0.0
    %5076 = vmatmul.mubr.f32.gmra.mrb[0].mxu0 %v4704
    %v5077 = vpop.f32.mrb[0].mxu0
    %v5078 = vadd.f32 0.0, %v5077
    %v5079 = vpop.f32.mrb[0].mxu0
    %5080 = vmatprep.mubr.f32.mxu0 0.0
    %5081 = vmatmul.mubr.f32.gmra.mrb[0].mxu0 %v4707
    %v5082 = vpop.f32.mrb[0].mxu0
    %v5083 = vadd.f32 0.0, %v5082
    %v5084 = vpop.f32.mrb[0].mxu0
    %5085 = vmatprep.mubr.f32.mxu0 0.0
    %5086 = vmatmul.mubr.f32.gmra.mrb[0].mxu0 %v4710
    %v5087 = vpop.f32.mrb[0].mxu0
    %v5088 = vadd.f32 0.0, %v5087
    %v5089 = vpop.f32.mrb[0].mxu0
    %5090 = vmatprep.mubr.f32.mxu0 0.0
    %5091 = vmatmul.mubr.f32.gmra.mrb[0].mxu0 %v4713
    %v5092 = vpop.f32.mrb[0].mxu0
    %v5093 = vadd.f32 0.0, %v5092
    %v5094 = vpop.f32.mrb[0].mxu0
    %5095 = vmatprep.mubr.f32.mxu0 0.0
    %5096 = vmatmul.mubr.f32.gmra.mrb[0].mxu0 %v4716
    %v5097 = vpop.f32.mrb[0].mxu0
    %v5098 = vadd.f32 0.0, %v5097
    %v5099 = vpop.f32.mrb[0].mxu0
    %5100 = vmatprep.mubr.f32.mxu0 0.0
    %5101 = vmatmul.mubr.f32.gmra.mrb[0].mxu0 %v4719
    %v5102 = vpop.f32.mrb[0].mxu0
    %v5103 = vadd.f32 0.0, %v5102
    %v5104 = vpop.f32.mrb[0].mxu0
    %5105 = vdwg.mxu0
    %5106 = vxpose.xlu0.b32.start [1/16] %v4788, 128
    %5107 = vxpose.xlu0.b32.cont [2/16] %v4793, 128
    %5108 = vxpose.xlu0.b32.cont [3/16] %v4798, 128
    %5109 = vxpose.xlu0.b32.cont [4/16] %v4803, 128
    %5110 = vxpose.xlu0.b32.cont [5/16] %v4808, 128
    %5111 = vxpose.xlu0.b32.cont [6/16] %v4813, 128
    %5112 = vxpose.xlu0.b32.cont [7/16] %v4818, 128
    %5113 = vxpose.xlu0.b32.cont [8/16] %v4823, 128
    %5114 = vxpose.xlu0.b32.cont [9/16] %v4828, 128
    %5115 = vxpose.xlu0.b32.cont [10/16] %v4833, 128
    %5116 = vxpose.xlu0.b32.cont [11/16] %v4838, 128
    %5117 = vxpose.xlu0.b32.cont [12/16] %v4843, 128
    %5118 = vxpose.xlu0.b32.cont [13/16] %v4848, 128
    %5119 = vxpose.xlu0.b32.cont [14/16] %v4853, 128
    %5120 = vxpose.xlu0.b32.cont [15/16] %v4858, 128
    %5121 = vxpose.xlu0.b32.end [16/16] %v4863, 128
    %v5122 = vpop.trf.xlu0
    %v5123 = vpop.trf.xlu0
    %v5124 = vpop.trf.xlu0
    %v5125 = vpop.trf.xlu0
    %v5126 = vpop.trf.xlu0
    %v5127 = vpop.trf.xlu0
    %v5128 = vpop.trf.xlu0
    %v5129 = vpop.trf.xlu0
    %v5130 = vpop.trf.xlu0
    %v5131 = vpop.trf.xlu0
    %v5132 = vpop.trf.xlu0
    %v5133 = vpop.trf.xlu0
    %v5134 = vpop.trf.xlu0
    %v5135 = vpop.trf.xlu0
    %v5136 = vpop.trf.xlu0
    %v5137 = vpop.trf.xlu0
    %5138 = vxpose.xlu0.b32.start [1/16] %v4868, 128
    %5139 = vxpose.xlu0.b32.cont [2/16] %v4873, 128
    %5140 = vxpose.xlu0.b32.cont [3/16] %v4878, 128
    %5141 = vxpose.xlu0.b32.cont [4/16] %v4883, 128
    %5142 = vxpose.xlu0.b32.cont [5/16] %v4888, 128
    %5143 = vxpose.xlu0.b32.cont [6/16] %v4893, 128
    %5144 = vxpose.xlu0.b32.cont [7/16] %v4898, 128
    %5145 = vxpose.xlu0.b32.cont [8/16] %v4903, 128
    %5146 = vxpose.xlu0.b32.cont [9/16] %v4908, 128
    %5147 = vxpose.xlu0.b32.cont [10/16] %v4913, 128
    %5148 = vxpose.xlu0.b32.cont [11/16] %v4918, 128
    %5149 = vxpose.xlu0.b32.cont [12/16] %v4923, 128
    %5150 = vxpose.xlu0.b32.cont [13/16] %v4928, 128
    %5151 = vxpose.xlu0.b32.cont [14/16] %v4933, 128
    %5152 = vxpose.xlu0.b32.cont [15/16] %v4938, 128
    %5153 = vxpose.xlu0.b32.end [16/16] %v4943, 128
    %v5154 = vpop.trf.xlu0
    %v5155 = vpop.trf.xlu0
    %v5156 = vpop.trf.xlu0
    %v5157 = vpop.trf.xlu0
    %v5158 = vpop.trf.xlu0
    %v5159 = vpop.trf.xlu0
    %v5160 = vpop.trf.xlu0
    %v5161 = vpop.trf.xlu0
    %v5162 = vpop.trf.xlu0
    %v5163 = vpop.trf.xlu0
    %v5164 = vpop.trf.xlu0
    %v5165 = vpop.trf.xlu0
    %v5166 = vpop.trf.xlu0
    %v5167 = vpop.trf.xlu0
    %v5168 = vpop.trf.xlu0
    %v5169 = vpop.trf.xlu0
    %5170 = vxpose.xlu0.b32.start [1/16] %v4948, 128
    %5171 = vxpose.xlu0.b32.cont [2/16] %v4953, 128
    %5172 = vxpose.xlu0.b32.cont [3/16] %v4958, 128
    %5173 = vxpose.xlu0.b32.cont [4/16] %v4963, 128
    %5174 = vxpose.xlu0.b32.cont [5/16] %v4968, 128
    %5175 = vxpose.xlu0.b32.cont [6/16] %v4973, 128
    %5176 = vxpose.xlu0.b32.cont [7/16] %v4978, 128
    %5177 = vxpose.xlu0.b32.cont [8/16] %v4983, 128
    %5178 = vxpose.xlu0.b32.cont [9/16] %v4988, 128
    %5179 = vxpose.xlu0.b32.cont [10/16] %v4993, 128
    %5180 = vxpose.xlu0.b32.cont [11/16] %v4998, 128
    %5181 = vxpose.xlu0.b32.cont [12/16] %v5003, 128
    %5182 = vxpose.xlu0.b32.cont [13/16] %v5008, 128
    %5183 = vxpose.xlu0.b32.cont [14/16] %v5013, 128
    %5184 = vxpose.xlu0.b32.cont [15/16] %v5018, 128
    %5185 = vxpose.xlu0.b32.end [16/16] %v5023, 128
    %v5186 = vpop.trf.xlu0
    %v5187 = vpop.trf.xlu0
    %v5188 = vpop.trf.xlu0
    %v5189 = vpop.trf.xlu0
    %v5190 = vpop.trf.xlu0
    %v5191 = vpop.trf.xlu0
    %v5192 = vpop.trf.xlu0
    %v5193 = vpop.trf.xlu0
    %v5194 = vpop.trf.xlu0
    %v5195 = vpop.trf.xlu0
    %v5196 = vpop.trf.xlu0
    %v5197 = vpop.trf.xlu0
    %v5198 = vpop.trf.xlu0
    %v5199 = vpop.trf.xlu0
    %v5200 = vpop.trf.xlu0
    %v5201 = vpop.trf.xlu0
    %5202 = vxpose.xlu0.b32.start [1/16] %v5028, 128
    %5203 = vxpose.xlu0.b32.cont [2/16] %v5033, 128
    %5204 = vxpose.xlu0.b32.cont [3/16] %v5038, 128
    %5205 = vxpose.xlu0.b32.cont [4/16] %v5043, 128
    %5206 = vxpose.xlu0.b32.cont [5/16] %v5048, 128
    %5207 = vxpose.xlu0.b32.cont [6/16] %v5053, 128
    %5208 = vxpose.xlu0.b32.cont [7/16] %v5058, 128
    %5209 = vxpose.xlu0.b32.cont [8/16] %v5063, 128
    %5210 = vxpose.xlu0.b32.cont [9/16] %v5068, 128
    %5211 = vxpose.xlu0.b32.cont [10/16] %v5073, 128
    %5212 = vxpose.xlu0.b32.cont [11/16] %v5078, 128
    %5213 = vxpose.xlu0.b32.cont [12/16] %v5083, 128
    %5214 = vxpose.xlu0.b32.cont [13/16] %v5088, 128
    %5215 = vxpose.xlu0.b32.cont [14/16] %v5093, 128
    %5216 = vxpose.xlu0.b32.cont [15/16] %v5098, 128
    %5217 = vxpose.xlu0.b32.end [16/16] %v5103, 128
    %v5218 = vpop.trf.xlu0
    %v5219 = vpop.trf.xlu0
    %v5220 = vpop.trf.xlu0
    %v5221 = vpop.trf.xlu0
    %v5222 = vpop.trf.xlu0
    %v5223 = vpop.trf.xlu0
    %v5224 = vpop.trf.xlu0
    %v5225 = vpop.trf.xlu0
    %v5226 = vpop.trf.xlu0
    %v5227 = vpop.trf.xlu0
    %v5228 = vpop.trf.xlu0
    %v5229 = vpop.trf.xlu0
    %v5230 = vpop.trf.xlu0
    %v5231 = vpop.trf.xlu0
    %v5232 = vpop.trf.xlu0
    %v5233 = vpop.trf.xlu0
    %v5234 = vmul.f32 %v3508, 0.98078525
    %v5235 = vmul.f32 %v3509, 0.98078525
    %v5236 = vmul.f32 %v3510, 0.98078525
    %v5237 = vmul.f32 %v3511, 0.98078525
    %v5238 = vmul.f32 %v5122, -0.19509032
    %v5239 = vmul.f32 %v5154, -0.19509032
    %v5240 = vmul.f32 %v5186, -0.19509032
    %v5241 = vmul.f32 %v5218, -0.19509032
    %v5242 = vadd.f32 %v5234, %v5238
    %v5243 = vadd.f32 %v5235, %v5239
    %v5244 = vadd.f32 %v5236, %v5240
    %v5245 = vadd.f32 %v5237, %v5241
    %v5246 = vmul.f32 %v26, 0.625
    %v5247 = vmul.f32 %v27, 0.625
    %v5248 = vmul.f32 %v28, 0.625
    %v5249 = vmul.f32 %v29, 0.625
    %5250 = vxpose.xlu0.b32.start [1/16] %v5242, 128
    %5251 = vxpose.xlu0.b32.cont [2/16] 0.0, 128
    %5252 = vxpose.xlu0.b32.cont [3/16] 0.0, 128
    %5253 = vxpose.xlu0.b32.cont [4/16] 0.0, 128
    %5254 = vxpose.xlu0.b32.cont [5/16] 0.0, 128
    %5255 = vxpose.xlu0.b32.cont [6/16] 0.0, 128
    %5256 = vxpose.xlu0.b32.cont [7/16] 0.0, 128
    %5257 = vxpose.xlu0.b32.cont [8/16] 0.0, 128
    %5258 = vxpose.xlu0.b32.cont [9/16] 0.0, 128
    %5259 = vxpose.xlu0.b32.cont [10/16] 0.0, 128
    %5260 = vxpose.xlu0.b32.cont [11/16] 0.0, 128
    %5261 = vxpose.xlu0.b32.cont [12/16] 0.0, 128
    %5262 = vxpose.xlu0.b32.cont [13/16] 0.0, 128
    %5263 = vxpose.xlu0.b32.cont [14/16] 0.0, 128
    %5264 = vxpose.xlu0.b32.cont [15/16] 0.0, 128
    %5265 = vxpose.xlu0.b32.end [16/16] 0.0, 128
    %v5266 = vpop.trf.xlu0
    %v5267 = vpop.trf.xlu0
    %v5268 = vpop.trf.xlu0
    %v5269 = vpop.trf.xlu0
    %v5270 = vpop.trf.xlu0
    %v5271 = vpop.trf.xlu0
    %v5272 = vpop.trf.xlu0
    %v5273 = vpop.trf.xlu0
    %v5274 = vpop.trf.xlu0
    %v5275 = vpop.trf.xlu0
    %v5276 = vpop.trf.xlu0
    %v5277 = vpop.trf.xlu0
    %v5278 = vpop.trf.xlu0
    %v5279 = vpop.trf.xlu0
    %v5280 = vpop.trf.xlu0
    %v5281 = vpop.trf.xlu0
    %5282 = vxpose.xlu0.b32.start [1/16] %v5243, 128
    %5283 = vxpose.xlu0.b32.cont [2/16] 0.0, 128
    %5284 = vxpose.xlu0.b32.cont [3/16] 0.0, 128
    %5285 = vxpose.xlu0.b32.cont [4/16] 0.0, 128
    %5286 = vxpose.xlu0.b32.cont [5/16] 0.0, 128
    %5287 = vxpose.xlu0.b32.cont [6/16] 0.0, 128
    %5288 = vxpose.xlu0.b32.cont [7/16] 0.0, 128
    %5289 = vxpose.xlu0.b32.cont [8/16] 0.0, 128
    %5290 = vxpose.xlu0.b32.cont [9/16] 0.0, 128
    %5291 = vxpose.xlu0.b32.cont [10/16] 0.0, 128
    %5292 = vxpose.xlu0.b32.cont [11/16] 0.0, 128
    %5293 = vxpose.xlu0.b32.cont [12/16] 0.0, 128
    %5294 = vxpose.xlu0.b32.cont [13/16] 0.0, 128
    %5295 = vxpose.xlu0.b32.cont [14/16] 0.0, 128
    %5296 = vxpose.xlu0.b32.cont [15/16] 0.0, 128
    %5297 = vxpose.xlu0.b32.end [16/16] 0.0, 128
    %v5298 = vpop.trf.xlu0
    %v5299 = vpop.trf.xlu0
    %v5300 = vpop.trf.xlu0
    %v5301 = vpop.trf.xlu0
    %v5302 = vpop.trf.xlu0
    %v5303 = vpop.trf.xlu0
    %v5304 = vpop.trf.xlu0
    %v5305 = vpop.trf.xlu0
    %v5306 = vpop.trf.xlu0
    %v5307 = vpop.trf.xlu0
    %v5308 = vpop.trf.xlu0
    %v5309 = vpop.trf.xlu0
    %v5310 = vpop.trf.xlu0
    %v5311 = vpop.trf.xlu0
    %v5312 = vpop.trf.xlu0
    %v5313 = vpop.trf.xlu0
    %5314 = vxpose.xlu0.b32.start [1/16] %v5244, 128
    %5315 = vxpose.xlu0.b32.cont [2/16] 0.0, 128
    %5316 = vxpose.xlu0.b32.cont [3/16] 0.0, 128
    %5317 = vxpose.xlu0.b32.cont [4/16] 0.0, 128
    %5318 = vxpose.xlu0.b32.cont [5/16] 0.0, 128
    %5319 = vxpose.xlu0.b32.cont [6/16] 0.0, 128
    %5320 = vxpose.xlu0.b32.cont [7/16] 0.0, 128
    %5321 = vxpose.xlu0.b32.cont [8/16] 0.0, 128
    %5322 = vxpose.xlu0.b32.cont [9/16] 0.0, 128
    %5323 = vxpose.xlu0.b32.cont [10/16] 0.0, 128
    %5324 = vxpose.xlu0.b32.cont [11/16] 0.0, 128
    %5325 = vxpose.xlu0.b32.cont [12/16] 0.0, 128
    %5326 = vxpose.xlu0.b32.cont [13/16] 0.0, 128
    %5327 = vxpose.xlu0.b32.cont [14/16] 0.0, 128
    %5328 = vxpose.xlu0.b32.cont [15/16] 0.0, 128
    %5329 = vxpose.xlu0.b32.end [16/16] 0.0, 128
    %v5330 = vpop.trf.xlu0
    %v5331 = vpop.trf.xlu0
    %v5332 = vpop.trf.xlu0
    %v5333 = vpop.trf.xlu0
    %v5334 = vpop.trf.xlu0
    %v5335 = vpop.trf.xlu0
    %v5336 = vpop.trf.xlu0
    %v5337 = vpop.trf.xlu0
    %v5338 = vpop.trf.xlu0
    %v5339 = vpop.trf.xlu0
    %v5340 = vpop.trf.xlu0
    %v5341 = vpop.trf.xlu0
    %v5342 = vpop.trf.xlu0
    %v5343 = vpop.trf.xlu0
    %v5344 = vpop.trf.xlu0
    %v5345 = vpop.trf.xlu0
    %5346 = vxpose.xlu0.b32.start [1/16] %v5245, 128
    %5347 = vxpose.xlu0.b32.cont [2/16] 0.0, 128
    %5348 = vxpose.xlu0.b32.cont [3/16] 0.0, 128
    %5349 = vxpose.xlu0.b32.cont [4/16] 0.0, 128
    %5350 = vxpose.xlu0.b32.cont [5/16] 0.0, 128
    %5351 = vxpose.xlu0.b32.cont [6/16] 0.0, 128
    %5352 = vxpose.xlu0.b32.cont [7/16] 0.0, 128
    %5353 = vxpose.xlu0.b32.cont [8/16] 0.0, 128
    %5354 = vxpose.xlu0.b32.cont [9/16] 0.0, 128
    %5355 = vxpose.xlu0.b32.cont [10/16] 0.0, 128
    %5356 = vxpose.xlu0.b32.cont [11/16] 0.0, 128
    %5357 = vxpose.xlu0.b32.cont [12/16] 0.0, 128
    %5358 = vxpose.xlu0.b32.cont [13/16] 0.0, 128
    %5359 = vxpose.xlu0.b32.cont [14/16] 0.0, 128
    %5360 = vxpose.xlu0.b32.cont [15/16] 0.0, 128
    %5361 = vxpose.xlu0.b32.end [16/16] 0.0, 128
    %v5362 = vpop.trf.xlu0
    %v5363 = vpop.trf.xlu0
    %v5364 = vpop.trf.xlu0
    %v5365 = vpop.trf.xlu0
    %v5366 = vpop.trf.xlu0
    %v5367 = vpop.trf.xlu0
    %v5368 = vpop.trf.xlu0
    %v5369 = vpop.trf.xlu0
    %v5370 = vpop.trf.xlu0
    %v5371 = vpop.trf.xlu0
    %v5372 = vpop.trf.xlu0
    %v5373 = vpop.trf.xlu0
    %v5374 = vpop.trf.xlu0
    %v5375 = vpop.trf.xlu0
    %v5376 = vpop.trf.xlu0
    %v5377 = vpop.trf.xlu0
    %v5379 = vsel %vm159, %v5266, 0
    %v5382 = vsel %vm159, %v5267, 0
    %v5385 = vsel %vm159, %v5268, 0
    %v5388 = vsel %vm159, %v5269, 0
    %v5391 = vsel %vm159, %v5270, 0
    %v5394 = vsel %vm159, %v5271, 0
    %v5397 = vsel %vm159, %v5272, 0
    %v5400 = vsel %vm159, %v5273, 0
    %v5403 = vsel %vm159, %v5274, 0
    %v5406 = vsel %vm159, %v5275, 0
    %v5409 = vsel %vm159, %v5276, 0
    %v5412 = vsel %vm159, %v5277, 0
    %v5415 = vsel %vm159, %v5278, 0
    %v5418 = vsel %vm159, %v5279, 0
    %v5421 = vsel %vm159, %v5280, 0
    %v5424 = vsel %vm159, %v5281, 0
    %v5427 = vsel %vm159, %v5298, 0
    %v5430 = vsel %vm159, %v5299, 0
    %v5433 = vsel %vm159, %v5300, 0
    %v5436 = vsel %vm159, %v5301, 0
    %v5439 = vsel %vm159, %v5302, 0
    %v5442 = vsel %vm159, %v5303, 0
    %v5445 = vsel %vm159, %v5304, 0
    %v5448 = vsel %vm159, %v5305, 0
    %v5451 = vsel %vm159, %v5306, 0
    %v5454 = vsel %vm159, %v5307, 0
    %v5457 = vsel %vm159, %v5308, 0
    %v5460 = vsel %vm159, %v5309, 0
    %v5463 = vsel %vm159, %v5310, 0
    %v5466 = vsel %vm159, %v5311, 0
    %v5469 = vsel %vm159, %v5312, 0
    %v5472 = vsel %vm159, %v5313, 0
    %v5475 = vsel %vm159, %v5330, 0
    %v5478 = vsel %vm159, %v5331, 0
    %v5481 = vsel %vm159, %v5332, 0
    %v5484 = vsel %vm159, %v5333, 0
    %v5487 = vsel %vm159, %v5334, 0
    %v5490 = vsel %vm159, %v5335, 0
    %v5493 = vsel %vm159, %v5336, 0
    %v5496 = vsel %vm159, %v5337, 0
    %v5499 = vsel %vm159, %v5338, 0
    %v5502 = vsel %vm159, %v5339, 0
    %v5505 = vsel %vm159, %v5340, 0
    %v5508 = vsel %vm159, %v5341, 0
    %v5511 = vsel %vm159, %v5342, 0
    %v5514 = vsel %vm159, %v5343, 0
    %v5517 = vsel %vm159, %v5344, 0
    %v5520 = vsel %vm159, %v5345, 0
    %v5523 = vsel %vm159, %v5362, 0
    %v5526 = vsel %vm159, %v5363, 0
    %v5529 = vsel %vm159, %v5364, 0
    %v5532 = vsel %vm159, %v5365, 0
    %v5535 = vsel %vm159, %v5366, 0
    %v5538 = vsel %vm159, %v5367, 0
    %v5541 = vsel %vm159, %v5368, 0
    %v5544 = vsel %vm159, %v5369, 0
    %v5547 = vsel %vm159, %v5370, 0
    %v5550 = vsel %vm159, %v5371, 0
    %v5553 = vsel %vm159, %v5372, 0
    %v5556 = vsel %vm159, %v5373, 0
    %v5559 = vsel %vm159, %v5374, 0
    %v5562 = vsel %vm159, %v5375, 0
    %v5565 = vsel %vm159, %v5376, 0
    %v5568 = vsel %vm159, %v5377, 0
    %5570 = vmatprep.subr.mxu0 0.0
    %5571 = vmatpush1.xpose.msra.mxu0 %v353
    %5572 = vmatprep.subr.mxu0 0.0
    %5573 = vmatpush1.xpose.msra.mxu0 %v356
    %5574 = vmatprep.subr.mxu0 0.0
    %5575 = vmatpush1.xpose.msra.mxu0 %v359
    %5576 = vmatprep.subr.mxu0 0.0
    %5577 = vmatpush1.xpose.msra.mxu0 %v362
    %5578 = vmatprep.subr.mxu0 0.0
    %5579 = vmatpush1.xpose.msra.mxu0 0.0
    %5580 = vmatprep.subr.mxu0 0.0
    %5581 = vmatpush1.xpose.msra.mxu0 0.0
    %5582 = vmatprep.subr.mxu0 0.0
    %5583 = vmatpush1.xpose.msra.mxu0 0.0
    %5584 = vmatprep.subr.mxu0 0.0
    %5585 = vmatpush1.xpose.msra.mxu0 0.0
    %5586 = vmatprep.subr.mxu0 0.0
    %5587 = vmatpush1.xpose.msra.mxu0 0.0
    %5588 = vmatprep.subr.mxu0 0.0
    %5589 = vmatpush1.xpose.msra.mxu0 0.0
    %5590 = vmatprep.subr.mxu0 0.0
    %5591 = vmatpush1.xpose.msra.mxu0 0.0
    %5592 = vmatprep.subr.mxu0 0.0
    %5593 = vmatpush1.xpose.msra.mxu0 0.0
    %5594 = vmatprep.subr.mxu0 0.0
    %5595 = vmatpush1.xpose.msra.mxu0 0.0
    %5596 = vmatprep.subr.mxu0 0.0
    %5597 = vmatpush1.xpose.msra.mxu0 0.0
    %5598 = vmatprep.subr.mxu0 0.0
    %5599 = vmatpush1.xpose.msra.mxu0 0.0
    %5600 = vmatprep.subr.mxu0 0.0
    %5601 = vmatpush1.xpose.msra.mxu0 0.0
    %5602 = vmatprep.subr.mxu0 0.0
    %5603 = vmatpush1.xpose.msra.mxu0 0.0
    %5604 = vmatprep.subr.mxu0 0.0
    %5605 = vmatpush1.xpose.msra.mxu0 0.0
    %5606 = vmatprep.subr.mxu0 0.0
    %5607 = vmatpush1.xpose.msra.mxu0 0.0
    %5608 = vmatprep.subr.mxu0 0.0
    %5609 = vmatpush1.xpose.msra.mxu0 0.0
    %5610 = vmatprep.subr.mxu0 0.0
    %5611 = vmatpush1.xpose.msra.mxu0 0.0
    %5612 = vmatprep.subr.mxu0 0.0
    %5613 = vmatpush1.xpose.msra.mxu0 0.0
    %5614 = vmatprep.subr.mxu0 0.0
    %5615 = vmatpush1.xpose.msra.mxu0 0.0
    %5616 = vmatprep.subr.mxu0 0.0
    %5617 = vmatpush1.xpose.msra.mxu0 0.0
    %5618 = vmatprep.subr.mxu0 0.0
    %5619 = vmatpush1.xpose.msra.mxu0 0.0
    %5620 = vmatprep.subr.mxu0 0.0
    %5621 = vmatpush1.xpose.msra.mxu0 0.0
    %5622 = vmatprep.subr.mxu0 0.0
    %5623 = vmatpush1.xpose.msra.mxu0 0.0
    %5624 = vmatprep.subr.mxu0 0.0
    %5625 = vmatpush1.xpose.msra.mxu0 0.0
    %5626 = vmatprep.subr.mxu0 0.0
    %5627 = vmatpush1.xpose.msra.mxu0 0.0
    %5628 = vmatprep.subr.mxu0 0.0
    %5629 = vmatpush1.xpose.msra.mxu0 0.0
    %5630 = vmatprep.subr.mxu0 0.0
    %5631 = vmatpush1.xpose.msra.mxu0 0.0
    %5632 = vmatprep.subr.mxu0 0.0
    %5633 = vmatpush1.xpose.msra.mxu0 0.0
    %5634 = vmatprep.mubr.f32.mxu0 0.0
    %5635 = vmatmul.mubr.f32.gmra.mrb[0].mxu0 %v5379
    %v5636 = vpop.f32.mrb[0].mxu0
    %v5637 = vadd.f32 0.0, %v5636
    %v5638 = vpop.f32.mrb[0].mxu0
    %5639 = vmatprep.mubr.f32.mxu0 0.0
    %5640 = vmatmul.mubr.f32.gmra.mrb[0].mxu0 %v5382
    %v5641 = vpop.f32.mrb[0].mxu0
    %v5642 = vadd.f32 0.0, %v5641
    %v5643 = vpop.f32.mrb[0].mxu0
    %5644 = vmatprep.mubr.f32.mxu0 0.0
    %5645 = vmatmul.mubr.f32.gmra.mrb[0].mxu0 %v5385
    %v5646 = vpop.f32.mrb[0].mxu0
    %v5647 = vadd.f32 0.0, %v5646
    %v5648 = vpop.f32.mrb[0].mxu0
    %5649 = vmatprep.mubr.f32.mxu0 0.0
    %5650 = vmatmul.mubr.f32.gmra.mrb[0].mxu0 %v5388
    %v5651 = vpop.f32.mrb[0].mxu0
    %v5652 = vadd.f32 0.0, %v5651
    %v5653 = vpop.f32.mrb[0].mxu0
    %5654 = vmatprep.mubr.f32.mxu0 0.0
    %5655 = vmatmul.mubr.f32.gmra.mrb[0].mxu0 %v5391
    %v5656 = vpop.f32.mrb[0].mxu0
    %v5657 = vadd.f32 0.0, %v5656
    %v5658 = vpop.f32.mrb[0].mxu0
    %5659 = vmatprep.mubr.f32.mxu0 0.0
    %5660 = vmatmul.mubr.f32.gmra.mrb[0].mxu0 %v5394
    %v5661 = vpop.f32.mrb[0].mxu0
    %v5662 = vadd.f32 0.0, %v5661
    %v5663 = vpop.f32.mrb[0].mxu0
    %5664 = vmatprep.mubr.f32.mxu0 0.0
    %5665 = vmatmul.mubr.f32.gmra.mrb[0].mxu0 %v5397
    %v5666 = vpop.f32.mrb[0].mxu0
    %v5667 = vadd.f32 0.0, %v5666
    %v5668 = vpop.f32.mrb[0].mxu0
    %5669 = vmatprep.mubr.f32.mxu0 0.0
    %5670 = vmatmul.mubr.f32.gmra.mrb[0].mxu0 %v5400
    %v5671 = vpop.f32.mrb[0].mxu0
    %v5672 = vadd.f32 0.0, %v5671
    %v5673 = vpop.f32.mrb[0].mxu0
    %5674 = vmatprep.mubr.f32.mxu0 0.0
    %5675 = vmatmul.mubr.f32.gmra.mrb[0].mxu0 %v5403
    %v5676 = vpop.f32.mrb[0].mxu0
    %v5677 = vadd.f32 0.0, %v5676
    %v5678 = vpop.f32.mrb[0].mxu0
    %5679 = vmatprep.mubr.f32.mxu0 0.0
    %5680 = vmatmul.mubr.f32.gmra.mrb[0].mxu0 %v5406
    %v5681 = vpop.f32.mrb[0].mxu0
    %v5682 = vadd.f32 0.0, %v5681
    %v5683 = vpop.f32.mrb[0].mxu0
    %5684 = vmatprep.mubr.f32.mxu0 0.0
    %5685 = vmatmul.mubr.f32.gmra.mrb[0].mxu0 %v5409
    %v5686 = vpop.f32.mrb[0].mxu0
    %v5687 = vadd.f32 0.0, %v5686
    %v5688 = vpop.f32.mrb[0].mxu0
    %5689 = vmatprep.mubr.f32.mxu0 0.0
    %5690 = vmatmul.mubr.f32.gmra.mrb[0].mxu0 %v5412
    %v5691 = vpop.f32.mrb[0].mxu0
    %v5692 = vadd.f32 0.0, %v5691
    %v5693 = vpop.f32.mrb[0].mxu0
    %5694 = vmatprep.mubr.f32.mxu0 0.0
    %5695 = vmatmul.mubr.f32.gmra.mrb[0].mxu0 %v5415
    %v5696 = vpop.f32.mrb[0].mxu0
    %v5697 = vadd.f32 0.0, %v5696
    %v5698 = vpop.f32.mrb[0].mxu0
    %5699 = vmatprep.mubr.f32.mxu0 0.0
    %5700 = vmatmul.mubr.f32.gmra.mrb[0].mxu0 %v5418
    %v5701 = vpop.f32.mrb[0].mxu0
    %v5702 = vadd.f32 0.0, %v5701
    %v5703 = vpop.f32.mrb[0].mxu0
    %5704 = vmatprep.mubr.f32.mxu0 0.0
    %5705 = vmatmul.mubr.f32.gmra.mrb[0].mxu0 %v5421
    %v5706 = vpop.f32.mrb[0].mxu0
    %v5707 = vadd.f32 0.0, %v5706
    %v5708 = vpop.f32.mrb[0].mxu0
    %5709 = vmatprep.mubr.f32.mxu0 0.0
    %5710 = vmatmul.mubr.f32.gmra.mrb[0].mxu0 %v5424
    %v5711 = vpop.f32.mrb[0].mxu0
    %v5712 = vadd.f32 0.0, %v5711
    %v5713 = vpop.f32.mrb[0].mxu0
    %5714 = vmatprep.mubr.f32.mxu0 0.0
    %5715 = vmatmul.mubr.f32.gmra.mrb[0].mxu0 %v5427
    %v5716 = vpop.f32.mrb[0].mxu0
    %v5717 = vadd.f32 0.0, %v5716
    %v5718 = vpop.f32.mrb[0].mxu0
    %5719 = vmatprep.mubr.f32.mxu0 0.0
    %5720 = vmatmul.mubr.f32.gmra.mrb[0].mxu0 %v5430
    %v5721 = vpop.f32.mrb[0].mxu0
    %v5722 = vadd.f32 0.0, %v5721
    %v5723 = vpop.f32.mrb[0].mxu0
    %5724 = vmatprep.mubr.f32.mxu0 0.0
    %5725 = vmatmul.mubr.f32.gmra.mrb[0].mxu0 %v5433
    %v5726 = vpop.f32.mrb[0].mxu0
    %v5727 = vadd.f32 0.0, %v5726
    %v5728 = vpop.f32.mrb[0].mxu0
    %5729 = vmatprep.mubr.f32.mxu0 0.0
    %5730 = vmatmul.mubr.f32.gmra.mrb[0].mxu0 %v5436
    %v5731 = vpop.f32.mrb[0].mxu0
    %v5732 = vadd.f32 0.0, %v5731
    %v5733 = vpop.f32.mrb[0].mxu0
    %5734 = vmatprep.mubr.f32.mxu0 0.0
    %5735 = vmatmul.mubr.f32.gmra.mrb[0].mxu0 %v5439
    %v5736 = vpop.f32.mrb[0].mxu0
    %v5737 = vadd.f32 0.0, %v5736
    %v5738 = vpop.f32.mrb[0].mxu0
    %5739 = vmatprep.mubr.f32.mxu0 0.0
    %5740 = vmatmul.mubr.f32.gmra.mrb[0].mxu0 %v5442
    %v5741 = vpop.f32.mrb[0].mxu0
    %v5742 = vadd.f32 0.0, %v5741
    %v5743 = vpop.f32.mrb[0].mxu0
    %5744 = vmatprep.mubr.f32.mxu0 0.0
    %5745 = vmatmul.mubr.f32.gmra.mrb[0].mxu0 %v5445
    %v5746 = vpop.f32.mrb[0].mxu0
    %v5747 = vadd.f32 0.0, %v5746
    %v5748 = vpop.f32.mrb[0].mxu0
    %5749 = vmatprep.mubr.f32.mxu0 0.0
    %5750 = vmatmul.mubr.f32.gmra.mrb[0].mxu0 %v5448
    %v5751 = vpop.f32.mrb[0].mxu0
    %v5752 = vadd.f32 0.0, %v5751
    %v5753 = vpop.f32.mrb[0].mxu0
    %5754 = vmatprep.mubr.f32.mxu0 0.0
    %5755 = vmatmul.mubr.f32.gmra.mrb[0].mxu0 %v5451
    %v5756 = vpop.f32.mrb[0].mxu0
    %v5757 = vadd.f32 0.0, %v5756
    %v5758 = vpop.f32.mrb[0].mxu0
    %5759 = vmatprep.mubr.f32.mxu0 0.0
    %5760 = vmatmul.mubr.f32.gmra.mrb[0].mxu0 %v5454
    %v5761 = vpop.f32.mrb[0].mxu0
    %v5762 = vadd.f32 0.0, %v5761
    %v5763 = vpop.f32.mrb[0].mxu0
    %5764 = vmatprep.mubr.f32.mxu0 0.0
    %5765 = vmatmul.mubr.f32.gmra.mrb[0].mxu0 %v5457
    %v5766 = vpop.f32.mrb[0].mxu0
    %v5767 = vadd.f32 0.0, %v5766
    %v5768 = vpop.f32.mrb[0].mxu0
    %5769 = vmatprep.mubr.f32.mxu0 0.0
    %5770 = vmatmul.mubr.f32.gmra.mrb[0].mxu0 %v5460
    %v5771 = vpop.f32.mrb[0].mxu0
    %v5772 = vadd.f32 0.0, %v5771
    %v5773 = vpop.f32.mrb[0].mxu0
    %5774 = vmatprep.mubr.f32.mxu0 0.0
    %5775 = vmatmul.mubr.f32.gmra.mrb[0].mxu0 %v5463
    %v5776 = vpop.f32.mrb[0].mxu0
    %v5777 = vadd.f32 0.0, %v5776
    %v5778 = vpop.f32.mrb[0].mxu0
    %5779 = vmatprep.mubr.f32.mxu0 0.0
    %5780 = vmatmul.mubr.f32.gmra.mrb[0].mxu0 %v5466
    %v5781 = vpop.f32.mrb[0].mxu0
    %v5782 = vadd.f32 0.0, %v5781
    %v5783 = vpop.f32.mrb[0].mxu0
    %5784 = vmatprep.mubr.f32.mxu0 0.0
    %5785 = vmatmul.mubr.f32.gmra.mrb[0].mxu0 %v5469
    %v5786 = vpop.f32.mrb[0].mxu0
    %v5787 = vadd.f32 0.0, %v5786
    %v5788 = vpop.f32.mrb[0].mxu0
    %5789 = vmatprep.mubr.f32.mxu0 0.0
    %5790 = vmatmul.mubr.f32.gmra.mrb[0].mxu0 %v5472
    %v5791 = vpop.f32.mrb[0].mxu0
    %v5792 = vadd.f32 0.0, %v5791
    %v5793 = vpop.f32.mrb[0].mxu0
    %5794 = vmatprep.mubr.f32.mxu0 0.0
    %5795 = vmatmul.mubr.f32.gmra.mrb[0].mxu0 %v5475
    %v5796 = vpop.f32.mrb[0].mxu0
    %v5797 = vadd.f32 0.0, %v5796
    %v5798 = vpop.f32.mrb[0].mxu0
    %5799 = vmatprep.mubr.f32.mxu0 0.0
    %5800 = vmatmul.mubr.f32.gmra.mrb[0].mxu0 %v5478
    %v5801 = vpop.f32.mrb[0].mxu0
    %v5802 = vadd.f32 0.0, %v5801
    %v5803 = vpop.f32.mrb[0].mxu0
    %5804 = vmatprep.mubr.f32.mxu0 0.0
    %5805 = vmatmul.mubr.f32.gmra.mrb[0].mxu0 %v5481
    %v5806 = vpop.f32.mrb[0].mxu0
    %v5807 = vadd.f32 0.0, %v5806
    %v5808 = vpop.f32.mrb[0].mxu0
    %5809 = vmatprep.mubr.f32.mxu0 0.0
    %5810 = vmatmul.mubr.f32.gmra.mrb[0].mxu0 %v5484
    %v5811 = vpop.f32.mrb[0].mxu0
    %v5812 = vadd.f32 0.0, %v5811
    %v5813 = vpop.f32.mrb[0].mxu0
    %5814 = vmatprep.mubr.f32.mxu0 0.0
    %5815 = vmatmul.mubr.f32.gmra.mrb[0].mxu0 %v5487
    %v5816 = vpop.f32.mrb[0].mxu0
    %v5817 = vadd.f32 0.0, %v5816
    %v5818 = vpop.f32.mrb[0].mxu0
    %5819 = vmatprep.mubr.f32.mxu0 0.0
    %5820 = vmatmul.mubr.f32.gmra.mrb[0].mxu0 %v5490
    %v5821 = vpop.f32.mrb[0].mxu0
    %v5822 = vadd.f32 0.0, %v5821
    %v5823 = vpop.f32.mrb[0].mxu0
    %5824 = vmatprep.mubr.f32.mxu0 0.0
    %5825 = vmatmul.mubr.f32.gmra.mrb[0].mxu0 %v5493
    %v5826 = vpop.f32.mrb[0].mxu0
    %v5827 = vadd.f32 0.0, %v5826
    %v5828 = vpop.f32.mrb[0].mxu0
    %5829 = vmatprep.mubr.f32.mxu0 0.0
    %5830 = vmatmul.mubr.f32.gmra.mrb[0].mxu0 %v5496
    %v5831 = vpop.f32.mrb[0].mxu0
    %v5832 = vadd.f32 0.0, %v5831
    %v5833 = vpop.f32.mrb[0].mxu0
    %5834 = vmatprep.mubr.f32.mxu0 0.0
    %5835 = vmatmul.mubr.f32.gmra.mrb[0].mxu0 %v5499
    %v5836 = vpop.f32.mrb[0].mxu0
    %v5837 = vadd.f32 0.0, %v5836
    %v5838 = vpop.f32.mrb[0].mxu0
    %5839 = vmatprep.mubr.f32.mxu0 0.0
    %5840 = vmatmul.mubr.f32.gmra.mrb[0].mxu0 %v5502
    %v5841 = vpop.f32.mrb[0].mxu0
    %v5842 = vadd.f32 0.0, %v5841
    %v5843 = vpop.f32.mrb[0].mxu0
    %5844 = vmatprep.mubr.f32.mxu0 0.0
    %5845 = vmatmul.mubr.f32.gmra.mrb[0].mxu0 %v5505
    %v5846 = vpop.f32.mrb[0].mxu0
    %v5847 = vadd.f32 0.0, %v5846
    %v5848 = vpop.f32.mrb[0].mxu0
    %5849 = vmatprep.mubr.f32.mxu0 0.0
    %5850 = vmatmul.mubr.f32.gmra.mrb[0].mxu0 %v5508
    %v5851 = vpop.f32.mrb[0].mxu0
    %v5852 = vadd.f32 0.0, %v5851
    %v5853 = vpop.f32.mrb[0].mxu0
    %5854 = vmatprep.mubr.f32.mxu0 0.0
    %5855 = vmatmul.mubr.f32.gmra.mrb[0].mxu0 %v5511
    %v5856 = vpop.f32.mrb[0].mxu0
    %v5857 = vadd.f32 0.0, %v5856
    %v5858 = vpop.f32.mrb[0].mxu0
    %5859 = vmatprep.mubr.f32.mxu0 0.0
    %5860 = vmatmul.mubr.f32.gmra.mrb[0].mxu0 %v5514
    %v5861 = vpop.f32.mrb[0].mxu0
    %v5862 = vadd.f32 0.0, %v5861
    %v5863 = vpop.f32.mrb[0].mxu0
    %5864 = vmatprep.mubr.f32.mxu0 0.0
    %5865 = vmatmul.mubr.f32.gmra.mrb[0].mxu0 %v5517
    %v5866 = vpop.f32.mrb[0].mxu0
    %v5867 = vadd.f32 0.0, %v5866
    %v5868 = vpop.f32.mrb[0].mxu0
    %5869 = vmatprep.mubr.f32.mxu0 0.0
    %5870 = vmatmul.mubr.f32.gmra.mrb[0].mxu0 %v5520
    %v5871 = vpop.f32.mrb[0].mxu0
    %v5872 = vadd.f32 0.0, %v5871
    %v5873 = vpop.f32.mrb[0].mxu0
    %5874 = vmatprep.mubr.f32.mxu0 0.0
    %5875 = vmatmul.mubr.f32.gmra.mrb[0].mxu0 %v5523
    %v5876 = vpop.f32.mrb[0].mxu0
    %v5877 = vadd.f32 0.0, %v5876
    %v5878 = vpop.f32.mrb[0].mxu0
    %5879 = vmatprep.mubr.f32.mxu0 0.0
    %5880 = vmatmul.mubr.f32.gmra.mrb[0].mxu0 %v5526
    %v5881 = vpop.f32.mrb[0].mxu0
    %v5882 = vadd.f32 0.0, %v5881
    %v5883 = vpop.f32.mrb[0].mxu0
    %5884 = vmatprep.mubr.f32.mxu0 0.0
    %5885 = vmatmul.mubr.f32.gmra.mrb[0].mxu0 %v5529
    %v5886 = vpop.f32.mrb[0].mxu0
    %v5887 = vadd.f32 0.0, %v5886
    %v5888 = vpop.f32.mrb[0].mxu0
    %5889 = vmatprep.mubr.f32.mxu0 0.0
    %5890 = vmatmul.mubr.f32.gmra.mrb[0].mxu0 %v5532
    %v5891 = vpop.f32.mrb[0].mxu0
    %v5892 = vadd.f32 0.0, %v5891
    %v5893 = vpop.f32.mrb[0].mxu0
    %5894 = vmatprep.mubr.f32.mxu0 0.0
    %5895 = vmatmul.mubr.f32.gmra.mrb[0].mxu0 %v5535
    %v5896 = vpop.f32.mrb[0].mxu0
    %v5897 = vadd.f32 0.0, %v5896
    %v5898 = vpop.f32.mrb[0].mxu0
    %5899 = vmatprep.mubr.f32.mxu0 0.0
    %5900 = vmatmul.mubr.f32.gmra.mrb[0].mxu0 %v5538
    %v5901 = vpop.f32.mrb[0].mxu0
    %v5902 = vadd.f32 0.0, %v5901
    %v5903 = vpop.f32.mrb[0].mxu0
    %5904 = vmatprep.mubr.f32.mxu0 0.0
    %5905 = vmatmul.mubr.f32.gmra.mrb[0].mxu0 %v5541
    %v5906 = vpop.f32.mrb[0].mxu0
    %v5907 = vadd.f32 0.0, %v5906
    %v5908 = vpop.f32.mrb[0].mxu0
    %5909 = vmatprep.mubr.f32.mxu0 0.0
    %5910 = vmatmul.mubr.f32.gmra.mrb[0].mxu0 %v5544
    %v5911 = vpop.f32.mrb[0].mxu0
    %v5912 = vadd.f32 0.0, %v5911
    %v5913 = vpop.f32.mrb[0].mxu0
    %5914 = vmatprep.mubr.f32.mxu0 0.0
    %5915 = vmatmul.mubr.f32.gmra.mrb[0].mxu0 %v5547
    %v5916 = vpop.f32.mrb[0].mxu0
    %v5917 = vadd.f32 0.0, %v5916
    %v5918 = vpop.f32.mrb[0].mxu0
    %5919 = vmatprep.mubr.f32.mxu0 0.0
    %5920 = vmatmul.mubr.f32.gmra.mrb[0].mxu0 %v5550
    %v5921 = vpop.f32.mrb[0].mxu0
    %v5922 = vadd.f32 0.0, %v5921
    %v5923 = vpop.f32.mrb[0].mxu0
    %5924 = vmatprep.mubr.f32.mxu0 0.0
    %5925 = vmatmul.mubr.f32.gmra.mrb[0].mxu0 %v5553
    %v5926 = vpop.f32.mrb[0].mxu0
    %v5927 = vadd.f32 0.0, %v5926
    %v5928 = vpop.f32.mrb[0].mxu0
    %5929 = vmatprep.mubr.f32.mxu0 0.0
    %5930 = vmatmul.mubr.f32.gmra.mrb[0].mxu0 %v5556
    %v5931 = vpop.f32.mrb[0].mxu0
    %v5932 = vadd.f32 0.0, %v5931
    %v5933 = vpop.f32.mrb[0].mxu0
    %5934 = vmatprep.mubr.f32.mxu0 0.0
    %5935 = vmatmul.mubr.f32.gmra.mrb[0].mxu0 %v5559
    %v5936 = vpop.f32.mrb[0].mxu0
    %v5937 = vadd.f32 0.0, %v5936
    %v5938 = vpop.f32.mrb[0].mxu0
    %5939 = vmatprep.mubr.f32.mxu0 0.0
    %5940 = vmatmul.mubr.f32.gmra.mrb[0].mxu0 %v5562
    %v5941 = vpop.f32.mrb[0].mxu0
    %v5942 = vadd.f32 0.0, %v5941
    %v5943 = vpop.f32.mrb[0].mxu0
    %5944 = vmatprep.mubr.f32.mxu0 0.0
    %5945 = vmatmul.mubr.f32.gmra.mrb[0].mxu0 %v5565
    %v5946 = vpop.f32.mrb[0].mxu0
    %v5947 = vadd.f32 0.0, %v5946
    %v5948 = vpop.f32.mrb[0].mxu0
    %5949 = vmatprep.mubr.f32.mxu0 0.0
    %5950 = vmatmul.mubr.f32.gmra.mrb[0].mxu0 %v5568
    %v5951 = vpop.f32.mrb[0].mxu0
    %v5952 = vadd.f32 0.0, %v5951
    %v5953 = vpop.f32.mrb[0].mxu0
    %5954 = vdwg.mxu0
    %5955 = vxpose.xlu0.b32.start [1/16] %v5637, 128
    %5956 = vxpose.xlu0.b32.cont [2/16] %v5642, 128
    %5957 = vxpose.xlu0.b32.cont [3/16] %v5647, 128
    %5958 = vxpose.xlu0.b32.cont [4/16] %v5652, 128
    %5959 = vxpose.xlu0.b32.cont [5/16] %v5657, 128
    %5960 = vxpose.xlu0.b32.cont [6/16] %v5662, 128
    %5961 = vxpose.xlu0.b32.cont [7/16] %v5667, 128
    %5962 = vxpose.xlu0.b32.cont [8/16] %v5672, 128
    %5963 = vxpose.xlu0.b32.cont [9/16] %v5677, 128
    %5964 = vxpose.xlu0.b32.cont [10/16] %v5682, 128
    %5965 = vxpose.xlu0.b32.cont [11/16] %v5687, 128
    %5966 = vxpose.xlu0.b32.cont [12/16] %v5692, 128
    %5967 = vxpose.xlu0.b32.cont [13/16] %v5697, 128
    %5968 = vxpose.xlu0.b32.cont [14/16] %v5702, 128
    %5969 = vxpose.xlu0.b32.cont [15/16] %v5707, 128
    %5970 = vxpose.xlu0.b32.end [16/16] %v5712, 128
    %v5971 = vpop.trf.xlu0
    %v5972 = vpop.trf.xlu0
    %v5973 = vpop.trf.xlu0
    %v5974 = vpop.trf.xlu0
    %v5975 = vpop.trf.xlu0
    %v5976 = vpop.trf.xlu0
    %v5977 = vpop.trf.xlu0
    %v5978 = vpop.trf.xlu0
    %v5979 = vpop.trf.xlu0
    %v5980 = vpop.trf.xlu0
    %v5981 = vpop.trf.xlu0
    %v5982 = vpop.trf.xlu0
    %v5983 = vpop.trf.xlu0
    %v5984 = vpop.trf.xlu0
    %v5985 = vpop.trf.xlu0
    %v5986 = vpop.trf.xlu0
    %5987 = vxpose.xlu0.b32.start [1/16] %v5717, 128
    %5988 = vxpose.xlu0.b32.cont [2/16] %v5722, 128
    %5989 = vxpose.xlu0.b32.cont [3/16] %v5727, 128
    %5990 = vxpose.xlu0.b32.cont [4/16] %v5732, 128
    %5991 = vxpose.xlu0.b32.cont [5/16] %v5737, 128
    %5992 = vxpose.xlu0.b32.cont [6/16] %v5742, 128
    %5993 = vxpose.xlu0.b32.cont [7/16] %v5747, 128
    %5994 = vxpose.xlu0.b32.cont [8/16] %v5752, 128
    %5995 = vxpose.xlu0.b32.cont [9/16] %v5757, 128
    %5996 = vxpose.xlu0.b32.cont [10/16] %v5762, 128
    %5997 = vxpose.xlu0.b32.cont [11/16] %v5767, 128
    %5998 = vxpose.xlu0.b32.cont [12/16] %v5772, 128
    %5999 = vxpose.xlu0.b32.cont [13/16] %v5777, 128
    %6000 = vxpose.xlu0.b32.cont [14/16] %v5782, 128
    %6001 = vxpose.xlu0.b32.cont [15/16] %v5787, 128
    %6002 = vxpose.xlu0.b32.end [16/16] %v5792, 128
    %v6003 = vpop.trf.xlu0
    %v6004 = vpop.trf.xlu0
    %v6005 = vpop.trf.xlu0
    %v6006 = vpop.trf.xlu0
    %v6007 = vpop.trf.xlu0
    %v6008 = vpop.trf.xlu0
    %v6009 = vpop.trf.xlu0
    %v6010 = vpop.trf.xlu0
    %v6011 = vpop.trf.xlu0
    %v6012 = vpop.trf.xlu0
    %v6013 = vpop.trf.xlu0
    %v6014 = vpop.trf.xlu0
    %v6015 = vpop.trf.xlu0
    %v6016 = vpop.trf.xlu0
    %v6017 = vpop.trf.xlu0
    %v6018 = vpop.trf.xlu0
    %6019 = vxpose.xlu0.b32.start [1/16] %v5797, 128
    %6020 = vxpose.xlu0.b32.cont [2/16] %v5802, 128
    %6021 = vxpose.xlu0.b32.cont [3/16] %v5807, 128
    %6022 = vxpose.xlu0.b32.cont [4/16] %v5812, 128
    %6023 = vxpose.xlu0.b32.cont [5/16] %v5817, 128
    %6024 = vxpose.xlu0.b32.cont [6/16] %v5822, 128
    %6025 = vxpose.xlu0.b32.cont [7/16] %v5827, 128
    %6026 = vxpose.xlu0.b32.cont [8/16] %v5832, 128
    %6027 = vxpose.xlu0.b32.cont [9/16] %v5837, 128
    %6028 = vxpose.xlu0.b32.cont [10/16] %v5842, 128
    %6029 = vxpose.xlu0.b32.cont [11/16] %v5847, 128
    %6030 = vxpose.xlu0.b32.cont [12/16] %v5852, 128
    %6031 = vxpose.xlu0.b32.cont [13/16] %v5857, 128
    %6032 = vxpose.xlu0.b32.cont [14/16] %v5862, 128
    %6033 = vxpose.xlu0.b32.cont [15/16] %v5867, 128
    %6034 = vxpose.xlu0.b32.end [16/16] %v5872, 128
    %v6035 = vpop.trf.xlu0
    %v6036 = vpop.trf.xlu0
    %v6037 = vpop.trf.xlu0
    %v6038 = vpop.trf.xlu0
    %v6039 = vpop.trf.xlu0
    %v6040 = vpop.trf.xlu0
    %v6041 = vpop.trf.xlu0
    %v6042 = vpop.trf.xlu0
    %v6043 = vpop.trf.xlu0
    %v6044 = vpop.trf.xlu0
    %v6045 = vpop.trf.xlu0
    %v6046 = vpop.trf.xlu0
    %v6047 = vpop.trf.xlu0
    %v6048 = vpop.trf.xlu0
    %v6049 = vpop.trf.xlu0
    %v6050 = vpop.trf.xlu0
    %6051 = vxpose.xlu0.b32.start [1/16] %v5877, 128
    %6052 = vxpose.xlu0.b32.cont [2/16] %v5882, 128
    %6053 = vxpose.xlu0.b32.cont [3/16] %v5887, 128
    %6054 = vxpose.xlu0.b32.cont [4/16] %v5892, 128
    %6055 = vxpose.xlu0.b32.cont [5/16] %v5897, 128
    %6056 = vxpose.xlu0.b32.cont [6/16] %v5902, 128
    %6057 = vxpose.xlu0.b32.cont [7/16] %v5907, 128
    %6058 = vxpose.xlu0.b32.cont [8/16] %v5912, 128
    %6059 = vxpose.xlu0.b32.cont [9/16] %v5917, 128
    %6060 = vxpose.xlu0.b32.cont [10/16] %v5922, 128
    %6061 = vxpose.xlu0.b32.cont [11/16] %v5927, 128
    %6062 = vxpose.xlu0.b32.cont [12/16] %v5932, 128
    %6063 = vxpose.xlu0.b32.cont [13/16] %v5937, 128
    %6064 = vxpose.xlu0.b32.cont [14/16] %v5942, 128
    %6065 = vxpose.xlu0.b32.cont [15/16] %v5947, 128
    %6066 = vxpose.xlu0.b32.end [16/16] %v5952, 128
    %v6067 = vpop.trf.xlu0
    %v6068 = vpop.trf.xlu0
    %v6069 = vpop.trf.xlu0
    %v6070 = vpop.trf.xlu0
    %v6071 = vpop.trf.xlu0
    %v6072 = vpop.trf.xlu0
    %v6073 = vpop.trf.xlu0
    %v6074 = vpop.trf.xlu0
    %v6075 = vpop.trf.xlu0
    %v6076 = vpop.trf.xlu0
    %v6077 = vpop.trf.xlu0
    %v6078 = vpop.trf.xlu0
    %v6079 = vpop.trf.xlu0
    %v6080 = vpop.trf.xlu0
    %v6081 = vpop.trf.xlu0
    %v6082 = vpop.trf.xlu0
    %6084 = vset.pattern.permute.xlu0 0
    %6085 = vperm.xlu0 %6084, %v5246
    %v6086 = vpop.permute.xlu0 %6085
    %6089 = vset.pattern.permute.xlu0 0
    %6090 = vperm.xlu0 %6089, %v5247
    %v6091 = vpop.permute.xlu0 %6090
    %6094 = vset.pattern.permute.xlu0 0
    %6095 = vperm.xlu0 %6094, %v5248
    %v6096 = vpop.permute.xlu0 %6095
    %6099 = vset.pattern.permute.xlu0 0
    %6100 = vperm.xlu0 %6099, %v5249
    %v6101 = vpop.permute.xlu0 %6100
    %v6103 = vadd.f32 %v5971, %v6086
    %v6104 = vadd.f32 %v6003, %v6086
    %v6105 = vadd.f32 %v5972, %v6091
    %v6106 = vadd.f32 %v6004, %v6091
    %v6107 = vadd.f32 %v5973, %v6096
    %v6108 = vadd.f32 %v6005, %v6096
    %v6109 = vadd.f32 %v5974, %v6101
    %v6110 = vadd.f32 %v6006, %v6101
    %v6111 = vadd.f32 %v6035, %v6086
    %v6112 = vadd.f32 %v6067, %v6086
    %v6113 = vadd.f32 %v6036, %v6091
    %v6114 = vadd.f32 %v6068, %v6091
    %v6115 = vadd.f32 %v6037, %v6096
    %v6116 = vadd.f32 %v6069, %v6096
    %v6117 = vadd.f32 %v6038, %v6101
    %v6118 = vadd.f32 %v6070, %v6101
    %v6119 = vtanh.pop %v6103
    %v6120 = vtanh.pop %v6104
    %v6121 = vtanh.pop %v6105
    %v6122 = vtanh.pop %v6106
    %v6123 = vtanh.pop %v6107
    %v6124 = vtanh.pop %v6108
    %v6125 = vtanh.pop %v6109
    %v6126 = vtanh.pop %v6110
    %v6127 = vtanh.pop %v6111
    %v6128 = vtanh.pop %v6112
    %v6129 = vtanh.pop %v6113
    %v6130 = vtanh.pop %v6114
    %v6131 = vtanh.pop %v6115
    %v6132 = vtanh.pop %v6116
    %v6133 = vtanh.pop %v6117
    %v6134 = vtanh.pop %v6118
    %6135 = vxpose.xlu0.b32.start [1/16] %v6119, 128
    %6136 = vxpose.xlu0.b32.cont [2/16] %v6121, 128
    %6137 = vxpose.xlu0.b32.cont [3/16] %v6123, 128
    %6138 = vxpose.xlu0.b32.cont [4/16] %v6125, 128
    %6139 = vxpose.xlu0.b32.cont [5/16] 0.0, 128
    %6140 = vxpose.xlu0.b32.cont [6/16] 0.0, 128
    %6141 = vxpose.xlu0.b32.cont [7/16] 0.0, 128
    %6142 = vxpose.xlu0.b32.cont [8/16] 0.0, 128
    %6143 = vxpose.xlu0.b32.cont [9/16] 0.0, 128
    %6144 = vxpose.xlu0.b32.cont [10/16] 0.0, 128
    %6145 = vxpose.xlu0.b32.cont [11/16] 0.0, 128
    %6146 = vxpose.xlu0.b32.cont [12/16] 0.0, 128
    %6147 = vxpose.xlu0.b32.cont [13/16] 0.0, 128
    %6148 = vxpose.xlu0.b32.cont [14/16] 0.0, 128
    %6149 = vxpose.xlu0.b32.cont [15/16] 0.0, 128
    %6150 = vxpose.xlu0.b32.end [16/16] 0.0, 128
    %v6151 = vpop.trf.xlu0
    %v6152 = vpop.trf.xlu0
    %v6153 = vpop.trf.xlu0
    %v6154 = vpop.trf.xlu0
    %v6155 = vpop.trf.xlu0
    %v6156 = vpop.trf.xlu0
    %v6157 = vpop.trf.xlu0
    %v6158 = vpop.trf.xlu0
    %v6159 = vpop.trf.xlu0
    %v6160 = vpop.trf.xlu0
    %v6161 = vpop.trf.xlu0
    %v6162 = vpop.trf.xlu0
    %v6163 = vpop.trf.xlu0
    %v6164 = vpop.trf.xlu0
    %v6165 = vpop.trf.xlu0
    %v6166 = vpop.trf.xlu0
    %6167 = vxpose.xlu0.b32.start [1/16] %v6120, 128
    %6168 = vxpose.xlu0.b32.cont [2/16] %v6122, 128
    %6169 = vxpose.xlu0.b32.cont [3/16] %v6124, 128
    %6170 = vxpose.xlu0.b32.cont [4/16] %v6126, 128
    %6171 = vxpose.xlu0.b32.cont [5/16] 0.0, 128
    %6172 = vxpose.xlu0.b32.cont [6/16] 0.0, 128
    %6173 = vxpose.xlu0.b32.cont [7/16] 0.0, 128
    %6174 = vxpose.xlu0.b32.cont [8/16] 0.0, 128
    %6175 = vxpose.xlu0.b32.cont [9/16] 0.0, 128
    %6176 = vxpose.xlu0.b32.cont [10/16] 0.0, 128
    %6177 = vxpose.xlu0.b32.cont [11/16] 0.0, 128
    %6178 = vxpose.xlu0.b32.cont [12/16] 0.0, 128
    %6179 = vxpose.xlu0.b32.cont [13/16] 0.0, 128
    %6180 = vxpose.xlu0.b32.cont [14/16] 0.0, 128
    %6181 = vxpose.xlu0.b32.cont [15/16] 0.0, 128
    %6182 = vxpose.xlu0.b32.end [16/16] 0.0, 128
    %v6183 = vpop.trf.xlu0
    %v6184 = vpop.trf.xlu0
    %v6185 = vpop.trf.xlu0
    %v6186 = vpop.trf.xlu0
    %v6187 = vpop.trf.xlu0
    %v6188 = vpop.trf.xlu0
    %v6189 = vpop.trf.xlu0
    %v6190 = vpop.trf.xlu0
    %v6191 = vpop.trf.xlu0
    %v6192 = vpop.trf.xlu0
    %v6193 = vpop.trf.xlu0
    %v6194 = vpop.trf.xlu0
    %v6195 = vpop.trf.xlu0
    %v6196 = vpop.trf.xlu0
    %v6197 = vpop.trf.xlu0
    %v6198 = vpop.trf.xlu0
    %6199 = vxpose.xlu0.b32.start [1/16] %v6127, 128
    %6200 = vxpose.xlu0.b32.cont [2/16] %v6129, 128
    %6201 = vxpose.xlu0.b32.cont [3/16] %v6131, 128
    %6202 = vxpose.xlu0.b32.cont [4/16] %v6133, 128
    %6203 = vxpose.xlu0.b32.cont [5/16] 0.0, 128
    %6204 = vxpose.xlu0.b32.cont [6/16] 0.0, 128
    %6205 = vxpose.xlu0.b32.cont [7/16] 0.0, 128
    %6206 = vxpose.xlu0.b32.cont [8/16] 0.0, 128
    %6207 = vxpose.xlu0.b32.cont [9/16] 0.0, 128
    %6208 = vxpose.xlu0.b32.cont [10/16] 0.0, 128
    %6209 = vxpose.xlu0.b32.cont [11/16] 0.0, 128
    %6210 = vxpose.xlu0.b32.cont [12/16] 0.0, 128
    %6211 = vxpose.xlu0.b32.cont [13/16] 0.0, 128
    %6212 = vxpose.xlu0.b32.cont [14/16] 0.0, 128
    %6213 = vxpose.xlu0.b32.cont [15/16] 0.0, 128
    %6214 = vxpose.xlu0.b32.end [16/16] 0.0, 128
    %v6215 = vpop.trf.xlu0
    %v6216 = vpop.trf.xlu0
    %v6217 = vpop.trf.xlu0
    %v6218 = vpop.trf.xlu0
    %v6219 = vpop.trf.xlu0
    %v6220 = vpop.trf.xlu0
    %v6221 = vpop.trf.xlu0
    %v6222 = vpop.trf.xlu0
    %v6223 = vpop.trf.xlu0
    %v6224 = vpop.trf.xlu0
    %v6225 = vpop.trf.xlu0
    %v6226 = vpop.trf.xlu0
    %v6227 = vpop.trf.xlu0
    %v6228 = vpop.trf.xlu0
    %v6229 = vpop.trf.xlu0
    %v6230 = vpop.trf.xlu0
    %6231 = vxpose.xlu0.b32.start [1/16] %v6128, 128
    %6232 = vxpose.xlu0.b32.cont [2/16] %v6130, 128
    %6233 = vxpose.xlu0.b32.cont [3/16] %v6132, 128
    %6234 = vxpose.xlu0.b32.cont [4/16] %v6134, 128
    %6235 = vxpose.xlu0.b32.cont [5/16] 0.0, 128
    %6236 = vxpose.xlu0.b32.cont [6/16] 0.0, 128
    %6237 = vxpose.xlu0.b32.cont [7/16] 0.0, 128
    %6238 = vxpose.xlu0.b32.cont [8/16] 0.0, 128
    %6239 = vxpose.xlu0.b32.cont [9/16] 0.0, 128
    %6240 = vxpose.xlu0.b32.cont [10/16] 0.0, 128
    %6241 = vxpose.xlu0.b32.cont [11/16] 0.0, 128
    %6242 = vxpose.xlu0.b32.cont [12/16] 0.0, 128
    %6243 = vxpose.xlu0.b32.cont [13/16] 0.0, 128
    %6244 = vxpose.xlu0.b32.cont [14/16] 0.0, 128
    %6245 = vxpose.xlu0.b32.cont [15/16] 0.0, 128
    %6246 = vxpose.xlu0.b32.end [16/16] 0.0, 128
    %v6247 = vpop.trf.xlu0
    %v6248 = vpop.trf.xlu0
    %v6249 = vpop.trf.xlu0
    %v6250 = vpop.trf.xlu0
    %v6251 = vpop.trf.xlu0
    %v6252 = vpop.trf.xlu0
    %v6253 = vpop.trf.xlu0
    %v6254 = vpop.trf.xlu0
    %v6255 = vpop.trf.xlu0
    %v6256 = vpop.trf.xlu0
    %v6257 = vpop.trf.xlu0
    %v6258 = vpop.trf.xlu0
    %v6259 = vpop.trf.xlu0
    %v6260 = vpop.trf.xlu0
    %v6261 = vpop.trf.xlu0
    %v6262 = vpop.trf.xlu0
    %v6264 = vsel %vm1057, %v6151, 0
    %v6267 = vsel %vm1057, %v6152, 0
    %v6270 = vsel %vm1057, %v6153, 0
    %v6273 = vsel %vm1057, %v6154, 0
    %v6276 = vsel %vm1057, %v6155, 0
    %v6279 = vsel %vm1057, %v6156, 0
    %v6282 = vsel %vm1057, %v6157, 0
    %v6285 = vsel %vm1057, %v6158, 0
    %v6288 = vsel %vm1057, %v6159, 0
    %v6291 = vsel %vm1057, %v6160, 0
    %v6294 = vsel %vm1057, %v6161, 0
    %v6297 = vsel %vm1057, %v6162, 0
    %v6300 = vsel %vm1057, %v6163, 0
    %v6303 = vsel %vm1057, %v6164, 0
    %v6306 = vsel %vm1057, %v6165, 0
    %v6309 = vsel %vm1057, %v6166, 0
    %v6312 = vsel %vm1057, %v6183, 0
    %v6315 = vsel %vm1057, %v6184, 0
    %v6318 = vsel %vm1057, %v6185, 0
    %v6321 = vsel %vm1057, %v6186, 0
    %v6324 = vsel %vm1057, %v6187, 0
    %v6327 = vsel %vm1057, %v6188, 0
    %v6330 = vsel %vm1057, %v6189, 0
    %v6333 = vsel %vm1057, %v6190, 0
    %v6336 = vsel %vm1057, %v6191, 0
    %v6339 = vsel %vm1057, %v6192, 0
    %v6342 = vsel %vm1057, %v6193, 0
    %v6345 = vsel %vm1057, %v6194, 0
    %v6348 = vsel %vm1057, %v6195, 0
    %v6351 = vsel %vm1057, %v6196, 0
    %v6354 = vsel %vm1057, %v6197, 0
    %v6357 = vsel %vm1057, %v6198, 0
    %v6360 = vsel %vm1057, %v6215, 0
    %v6363 = vsel %vm1057, %v6216, 0
    %v6366 = vsel %vm1057, %v6217, 0
    %v6369 = vsel %vm1057, %v6218, 0
    %v6372 = vsel %vm1057, %v6219, 0
    %v6375 = vsel %vm1057, %v6220, 0
    %v6378 = vsel %vm1057, %v6221, 0
    %v6381 = vsel %vm1057, %v6222, 0
    %v6384 = vsel %vm1057, %v6223, 0
    %v6387 = vsel %vm1057, %v6224, 0
    %v6390 = vsel %vm1057, %v6225, 0
    %v6393 = vsel %vm1057, %v6226, 0
    %v6396 = vsel %vm1057, %v6227, 0
    %v6399 = vsel %vm1057, %v6228, 0
    %v6402 = vsel %vm1057, %v6229, 0
    %v6405 = vsel %vm1057, %v6230, 0
    %v6408 = vsel %vm1057, %v6247, 0
    %v6411 = vsel %vm1057, %v6248, 0
    %v6414 = vsel %vm1057, %v6249, 0
    %v6417 = vsel %vm1057, %v6250, 0
    %v6420 = vsel %vm1057, %v6251, 0
    %v6423 = vsel %vm1057, %v6252, 0
    %v6426 = vsel %vm1057, %v6253, 0
    %v6429 = vsel %vm1057, %v6254, 0
    %v6432 = vsel %vm1057, %v6255, 0
    %v6435 = vsel %vm1057, %v6256, 0
    %v6438 = vsel %vm1057, %v6257, 0
    %v6441 = vsel %vm1057, %v6258, 0
    %v6444 = vsel %vm1057, %v6259, 0
    %v6447 = vsel %vm1057, %v6260, 0
    %v6450 = vsel %vm1057, %v6261, 0
    %v6453 = vsel %vm1057, %v6262, 0
    %6455 = vmatprep.subr.mxu0 0.0
    %6456 = vmatpush1.xpose.msra.mxu0 %v1251
    %6457 = vmatprep.subr.mxu0 0.0
    %6458 = vmatpush1.xpose.msra.mxu0 0.0
    %6459 = vmatprep.subr.mxu0 0.0
    %6460 = vmatpush1.xpose.msra.mxu0 0.0
    %6461 = vmatprep.subr.mxu0 0.0
    %6462 = vmatpush1.xpose.msra.mxu0 0.0
    %6463 = vmatprep.subr.mxu0 0.0
    %6464 = vmatpush1.xpose.msra.mxu0 0.0
    %6465 = vmatprep.subr.mxu0 0.0
    %6466 = vmatpush1.xpose.msra.mxu0 0.0
    %6467 = vmatprep.subr.mxu0 0.0
    %6468 = vmatpush1.xpose.msra.mxu0 0.0
    %6469 = vmatprep.subr.mxu0 0.0
    %6470 = vmatpush1.xpose.msra.mxu0 0.0
    %6471 = vmatprep.subr.mxu0 0.0
    %6472 = vmatpush1.xpose.msra.mxu0 0.0
    %6473 = vmatprep.subr.mxu0 0.0
    %6474 = vmatpush1.xpose.msra.mxu0 0.0
    %6475 = vmatprep.subr.mxu0 0.0
    %6476 = vmatpush1.xpose.msra.mxu0 0.0
    %6477 = vmatprep.subr.mxu0 0.0
    %6478 = vmatpush1.xpose.msra.mxu0 0.0
    %6479 = vmatprep.subr.mxu0 0.0
    %6480 = vmatpush1.xpose.msra.mxu0 0.0
    %6481 = vmatprep.subr.mxu0 0.0
    %6482 = vmatpush1.xpose.msra.mxu0 0.0
    %6483 = vmatprep.subr.mxu0 0.0
    %6484 = vmatpush1.xpose.msra.mxu0 0.0
    %6485 = vmatprep.subr.mxu0 0.0
    %6486 = vmatpush1.xpose.msra.mxu0 0.0
    %6487 = vmatprep.subr.mxu0 0.0
    %6488 = vmatpush1.xpose.msra.mxu0 0.0
    %6489 = vmatprep.subr.mxu0 0.0
    %6490 = vmatpush1.xpose.msra.mxu0 0.0
    %6491 = vmatprep.subr.mxu0 0.0
    %6492 = vmatpush1.xpose.msra.mxu0 0.0
    %6493 = vmatprep.subr.mxu0 0.0
    %6494 = vmatpush1.xpose.msra.mxu0 0.0
    %6495 = vmatprep.subr.mxu0 0.0
    %6496 = vmatpush1.xpose.msra.mxu0 0.0
    %6497 = vmatprep.subr.mxu0 0.0
    %6498 = vmatpush1.xpose.msra.mxu0 0.0
    %6499 = vmatprep.subr.mxu0 0.0
    %6500 = vmatpush1.xpose.msra.mxu0 0.0
    %6501 = vmatprep.subr.mxu0 0.0
    %6502 = vmatpush1.xpose.msra.mxu0 0.0
    %6503 = vmatprep.subr.mxu0 0.0
    %6504 = vmatpush1.xpose.msra.mxu0 0.0
    %6505 = vmatprep.subr.mxu0 0.0
    %6506 = vmatpush1.xpose.msra.mxu0 0.0
    %6507 = vmatprep.subr.mxu0 0.0
    %6508 = vmatpush1.xpose.msra.mxu0 0.0
    %6509 = vmatprep.subr.mxu0 0.0
    %6510 = vmatpush1.xpose.msra.mxu0 0.0
    %6511 = vmatprep.subr.mxu0 0.0
    %6512 = vmatpush1.xpose.msra.mxu0 0.0
    %6513 = vmatprep.subr.mxu0 0.0
    %6514 = vmatpush1.xpose.msra.mxu0 0.0
    %6515 = vmatprep.subr.mxu0 0.0
    %6516 = vmatpush1.xpose.msra.mxu0 0.0
    %6517 = vmatprep.subr.mxu0 0.0
    %6518 = vmatpush1.xpose.msra.mxu0 0.0
    %6519 = vmatprep.mubr.f32.mxu0 0.0
    %6520 = vmatmul.mubr.f32.gmra.mrb[0].mxu0 %v6264
    %v6521 = vpop.f32.mrb[0].mxu0
    %v6522 = vadd.f32 0.0, %v6521
    %v6523 = vpop.f32.mrb[0].mxu0
    %6524 = vmatprep.mubr.f32.mxu0 0.0
    %6525 = vmatmul.mubr.f32.gmra.mrb[0].mxu0 %v6267
    %v6526 = vpop.f32.mrb[0].mxu0
    %v6527 = vadd.f32 0.0, %v6526
    %v6528 = vpop.f32.mrb[0].mxu0
    %6529 = vmatprep.mubr.f32.mxu0 0.0
    %6530 = vmatmul.mubr.f32.gmra.mrb[0].mxu0 %v6270
    %v6531 = vpop.f32.mrb[0].mxu0
    %v6532 = vadd.f32 0.0, %v6531
    %v6533 = vpop.f32.mrb[0].mxu0
    %6534 = vmatprep.mubr.f32.mxu0 0.0
    %6535 = vmatmul.mubr.f32.gmra.mrb[0].mxu0 %v6273
    %v6536 = vpop.f32.mrb[0].mxu0
    %v6537 = vadd.f32 0.0, %v6536
    %v6538 = vpop.f32.mrb[0].mxu0
    %6539 = vmatprep.mubr.f32.mxu0 0.0
    %6540 = vmatmul.mubr.f32.gmra.mrb[0].mxu0 %v6276
    %v6541 = vpop.f32.mrb[0].mxu0
    %v6542 = vadd.f32 0.0, %v6541
    %v6543 = vpop.f32.mrb[0].mxu0
    %6544 = vmatprep.mubr.f32.mxu0 0.0
    %6545 = vmatmul.mubr.f32.gmra.mrb[0].mxu0 %v6279
    %v6546 = vpop.f32.mrb[0].mxu0
    %v6547 = vadd.f32 0.0, %v6546
    %v6548 = vpop.f32.mrb[0].mxu0
    %6549 = vmatprep.mubr.f32.mxu0 0.0
    %6550 = vmatmul.mubr.f32.gmra.mrb[0].mxu0 %v6282
    %v6551 = vpop.f32.mrb[0].mxu0
    %v6552 = vadd.f32 0.0, %v6551
    %v6553 = vpop.f32.mrb[0].mxu0
    %6554 = vmatprep.mubr.f32.mxu0 0.0
    %6555 = vmatmul.mubr.f32.gmra.mrb[0].mxu0 %v6285
    %v6556 = vpop.f32.mrb[0].mxu0
    %v6557 = vadd.f32 0.0, %v6556
    %v6558 = vpop.f32.mrb[0].mxu0
    %6559 = vmatprep.mubr.f32.mxu0 0.0
    %6560 = vmatmul.mubr.f32.gmra.mrb[0].mxu0 %v6288
    %v6561 = vpop.f32.mrb[0].mxu0
    %v6562 = vadd.f32 0.0, %v6561
    %v6563 = vpop.f32.mrb[0].mxu0
    %6564 = vmatprep.mubr.f32.mxu0 0.0
    %6565 = vmatmul.mubr.f32.gmra.mrb[0].mxu0 %v6291
    %v6566 = vpop.f32.mrb[0].mxu0
    %v6567 = vadd.f32 0.0, %v6566
    %v6568 = vpop.f32.mrb[0].mxu0
    %6569 = vmatprep.mubr.f32.mxu0 0.0
    %6570 = vmatmul.mubr.f32.gmra.mrb[0].mxu0 %v6294
    %v6571 = vpop.f32.mrb[0].mxu0
    %v6572 = vadd.f32 0.0, %v6571
    %v6573 = vpop.f32.mrb[0].mxu0
    %6574 = vmatprep.mubr.f32.mxu0 0.0
    %6575 = vmatmul.mubr.f32.gmra.mrb[0].mxu0 %v6297
    %v6576 = vpop.f32.mrb[0].mxu0
    %v6577 = vadd.f32 0.0, %v6576
    %v6578 = vpop.f32.mrb[0].mxu0
    %6579 = vmatprep.mubr.f32.mxu0 0.0
    %6580 = vmatmul.mubr.f32.gmra.mrb[0].mxu0 %v6300
    %v6581 = vpop.f32.mrb[0].mxu0
    %v6582 = vadd.f32 0.0, %v6581
    %v6583 = vpop.f32.mrb[0].mxu0
    %6584 = vmatprep.mubr.f32.mxu0 0.0
    %6585 = vmatmul.mubr.f32.gmra.mrb[0].mxu0 %v6303
    %v6586 = vpop.f32.mrb[0].mxu0
    %v6587 = vadd.f32 0.0, %v6586
    %v6588 = vpop.f32.mrb[0].mxu0
    %6589 = vmatprep.mubr.f32.mxu0 0.0
    %6590 = vmatmul.mubr.f32.gmra.mrb[0].mxu0 %v6306
    %v6591 = vpop.f32.mrb[0].mxu0
    %v6592 = vadd.f32 0.0, %v6591
    %v6593 = vpop.f32.mrb[0].mxu0
    %6594 = vmatprep.mubr.f32.mxu0 0.0
    %6595 = vmatmul.mubr.f32.gmra.mrb[0].mxu0 %v6309
    %v6596 = vpop.f32.mrb[0].mxu0
    %v6597 = vadd.f32 0.0, %v6596
    %v6598 = vpop.f32.mrb[0].mxu0
    %6599 = vmatprep.mubr.f32.mxu0 0.0
    %6600 = vmatmul.mubr.f32.gmra.mrb[0].mxu0 %v6312
    %v6601 = vpop.f32.mrb[0].mxu0
    %v6602 = vadd.f32 0.0, %v6601
    %v6603 = vpop.f32.mrb[0].mxu0
    %6604 = vmatprep.mubr.f32.mxu0 0.0
    %6605 = vmatmul.mubr.f32.gmra.mrb[0].mxu0 %v6315
    %v6606 = vpop.f32.mrb[0].mxu0
    %v6607 = vadd.f32 0.0, %v6606
    %v6608 = vpop.f32.mrb[0].mxu0
    %6609 = vmatprep.mubr.f32.mxu0 0.0
    %6610 = vmatmul.mubr.f32.gmra.mrb[0].mxu0 %v6318
    %v6611 = vpop.f32.mrb[0].mxu0
    %v6612 = vadd.f32 0.0, %v6611
    %v6613 = vpop.f32.mrb[0].mxu0
    %6614 = vmatprep.mubr.f32.mxu0 0.0
    %6615 = vmatmul.mubr.f32.gmra.mrb[0].mxu0 %v6321
    %v6616 = vpop.f32.mrb[0].mxu0
    %v6617 = vadd.f32 0.0, %v6616
    %v6618 = vpop.f32.mrb[0].mxu0
    %6619 = vmatprep.mubr.f32.mxu0 0.0
    %6620 = vmatmul.mubr.f32.gmra.mrb[0].mxu0 %v6324
    %v6621 = vpop.f32.mrb[0].mxu0
    %v6622 = vadd.f32 0.0, %v6621
    %v6623 = vpop.f32.mrb[0].mxu0
    %6624 = vmatprep.mubr.f32.mxu0 0.0
    %6625 = vmatmul.mubr.f32.gmra.mrb[0].mxu0 %v6327
    %v6626 = vpop.f32.mrb[0].mxu0
    %v6627 = vadd.f32 0.0, %v6626
    %v6628 = vpop.f32.mrb[0].mxu0
    %6629 = vmatprep.mubr.f32.mxu0 0.0
    %6630 = vmatmul.mubr.f32.gmra.mrb[0].mxu0 %v6330
    %v6631 = vpop.f32.mrb[0].mxu0
    %v6632 = vadd.f32 0.0, %v6631
    %v6633 = vpop.f32.mrb[0].mxu0
    %6634 = vmatprep.mubr.f32.mxu0 0.0
    %6635 = vmatmul.mubr.f32.gmra.mrb[0].mxu0 %v6333
    %v6636 = vpop.f32.mrb[0].mxu0
    %v6637 = vadd.f32 0.0, %v6636
    %v6638 = vpop.f32.mrb[0].mxu0
    %6639 = vmatprep.mubr.f32.mxu0 0.0
    %6640 = vmatmul.mubr.f32.gmra.mrb[0].mxu0 %v6336
    %v6641 = vpop.f32.mrb[0].mxu0
    %v6642 = vadd.f32 0.0, %v6641
    %v6643 = vpop.f32.mrb[0].mxu0
    %6644 = vmatprep.mubr.f32.mxu0 0.0
    %6645 = vmatmul.mubr.f32.gmra.mrb[0].mxu0 %v6339
    %v6646 = vpop.f32.mrb[0].mxu0
    %v6647 = vadd.f32 0.0, %v6646
    %v6648 = vpop.f32.mrb[0].mxu0
    %6649 = vmatprep.mubr.f32.mxu0 0.0
    %6650 = vmatmul.mubr.f32.gmra.mrb[0].mxu0 %v6342
    %v6651 = vpop.f32.mrb[0].mxu0
    %v6652 = vadd.f32 0.0, %v6651
    %v6653 = vpop.f32.mrb[0].mxu0
    %6654 = vmatprep.mubr.f32.mxu0 0.0
    %6655 = vmatmul.mubr.f32.gmra.mrb[0].mxu0 %v6345
    %v6656 = vpop.f32.mrb[0].mxu0
    %v6657 = vadd.f32 0.0, %v6656
    %v6658 = vpop.f32.mrb[0].mxu0
    %6659 = vmatprep.mubr.f32.mxu0 0.0
    %6660 = vmatmul.mubr.f32.gmra.mrb[0].mxu0 %v6348
    %v6661 = vpop.f32.mrb[0].mxu0
    %v6662 = vadd.f32 0.0, %v6661
    %v6663 = vpop.f32.mrb[0].mxu0
    %6664 = vmatprep.mubr.f32.mxu0 0.0
    %6665 = vmatmul.mubr.f32.gmra.mrb[0].mxu0 %v6351
    %v6666 = vpop.f32.mrb[0].mxu0
    %v6667 = vadd.f32 0.0, %v6666
    %v6668 = vpop.f32.mrb[0].mxu0
    %6669 = vmatprep.mubr.f32.mxu0 0.0
    %6670 = vmatmul.mubr.f32.gmra.mrb[0].mxu0 %v6354
    %v6671 = vpop.f32.mrb[0].mxu0
    %v6672 = vadd.f32 0.0, %v6671
    %v6673 = vpop.f32.mrb[0].mxu0
    %6674 = vmatprep.mubr.f32.mxu0 0.0
    %6675 = vmatmul.mubr.f32.gmra.mrb[0].mxu0 %v6357
    %v6676 = vpop.f32.mrb[0].mxu0
    %v6677 = vadd.f32 0.0, %v6676
    %v6678 = vpop.f32.mrb[0].mxu0
    %6679 = vmatprep.mubr.f32.mxu0 0.0
    %6680 = vmatmul.mubr.f32.gmra.mrb[0].mxu0 %v6360
    %v6681 = vpop.f32.mrb[0].mxu0
    %v6682 = vadd.f32 0.0, %v6681
    %v6683 = vpop.f32.mrb[0].mxu0
    %6684 = vmatprep.mubr.f32.mxu0 0.0
    %6685 = vmatmul.mubr.f32.gmra.mrb[0].mxu0 %v6363
    %v6686 = vpop.f32.mrb[0].mxu0
    %v6687 = vadd.f32 0.0, %v6686
    %v6688 = vpop.f32.mrb[0].mxu0
    %6689 = vmatprep.mubr.f32.mxu0 0.0
    %6690 = vmatmul.mubr.f32.gmra.mrb[0].mxu0 %v6366
    %v6691 = vpop.f32.mrb[0].mxu0
    %v6692 = vadd.f32 0.0, %v6691
    %v6693 = vpop.f32.mrb[0].mxu0
    %6694 = vmatprep.mubr.f32.mxu0 0.0
    %6695 = vmatmul.mubr.f32.gmra.mrb[0].mxu0 %v6369
    %v6696 = vpop.f32.mrb[0].mxu0
    %v6697 = vadd.f32 0.0, %v6696
    %v6698 = vpop.f32.mrb[0].mxu0
    %6699 = vmatprep.mubr.f32.mxu0 0.0
    %6700 = vmatmul.mubr.f32.gmra.mrb[0].mxu0 %v6372
    %v6701 = vpop.f32.mrb[0].mxu0
    %v6702 = vadd.f32 0.0, %v6701
    %v6703 = vpop.f32.mrb[0].mxu0
    %6704 = vmatprep.mubr.f32.mxu0 0.0
    %6705 = vmatmul.mubr.f32.gmra.mrb[0].mxu0 %v6375
    %v6706 = vpop.f32.mrb[0].mxu0
    %v6707 = vadd.f32 0.0, %v6706
    %v6708 = vpop.f32.mrb[0].mxu0
    %6709 = vmatprep.mubr.f32.mxu0 0.0
    %6710 = vmatmul.mubr.f32.gmra.mrb[0].mxu0 %v6378
    %v6711 = vpop.f32.mrb[0].mxu0
    %v6712 = vadd.f32 0.0, %v6711
    %v6713 = vpop.f32.mrb[0].mxu0
    %6714 = vmatprep.mubr.f32.mxu0 0.0
    %6715 = vmatmul.mubr.f32.gmra.mrb[0].mxu0 %v6381
    %v6716 = vpop.f32.mrb[0].mxu0
    %v6717 = vadd.f32 0.0, %v6716
    %v6718 = vpop.f32.mrb[0].mxu0
    %6719 = vmatprep.mubr.f32.mxu0 0.0
    %6720 = vmatmul.mubr.f32.gmra.mrb[0].mxu0 %v6384
    %v6721 = vpop.f32.mrb[0].mxu0
    %v6722 = vadd.f32 0.0, %v6721
    %v6723 = vpop.f32.mrb[0].mxu0
    %6724 = vmatprep.mubr.f32.mxu0 0.0
    %6725 = vmatmul.mubr.f32.gmra.mrb[0].mxu0 %v6387
    %v6726 = vpop.f32.mrb[0].mxu0
    %v6727 = vadd.f32 0.0, %v6726
    %v6728 = vpop.f32.mrb[0].mxu0
    %6729 = vmatprep.mubr.f32.mxu0 0.0
    %6730 = vmatmul.mubr.f32.gmra.mrb[0].mxu0 %v6390
    %v6731 = vpop.f32.mrb[0].mxu0
    %v6732 = vadd.f32 0.0, %v6731
    %v6733 = vpop.f32.mrb[0].mxu0
    %6734 = vmatprep.mubr.f32.mxu0 0.0
    %6735 = vmatmul.mubr.f32.gmra.mrb[0].mxu0 %v6393
    %v6736 = vpop.f32.mrb[0].mxu0
    %v6737 = vadd.f32 0.0, %v6736
    %v6738 = vpop.f32.mrb[0].mxu0
    %6739 = vmatprep.mubr.f32.mxu0 0.0
    %6740 = vmatmul.mubr.f32.gmra.mrb[0].mxu0 %v6396
    %v6741 = vpop.f32.mrb[0].mxu0
    %v6742 = vadd.f32 0.0, %v6741
    %v6743 = vpop.f32.mrb[0].mxu0
    %6744 = vmatprep.mubr.f32.mxu0 0.0
    %6745 = vmatmul.mubr.f32.gmra.mrb[0].mxu0 %v6399
    %v6746 = vpop.f32.mrb[0].mxu0
    %v6747 = vadd.f32 0.0, %v6746
    %v6748 = vpop.f32.mrb[0].mxu0
    %6749 = vmatprep.mubr.f32.mxu0 0.0
    %6750 = vmatmul.mubr.f32.gmra.mrb[0].mxu0 %v6402
    %v6751 = vpop.f32.mrb[0].mxu0
    %v6752 = vadd.f32 0.0, %v6751
    %v6753 = vpop.f32.mrb[0].mxu0
    %6754 = vmatprep.mubr.f32.mxu0 0.0
    %6755 = vmatmul.mubr.f32.gmra.mrb[0].mxu0 %v6405
    %v6756 = vpop.f32.mrb[0].mxu0
    %v6757 = vadd.f32 0.0, %v6756
    %v6758 = vpop.f32.mrb[0].mxu0
    %6759 = vmatprep.mubr.f32.mxu0 0.0
    %6760 = vmatmul.mubr.f32.gmra.mrb[0].mxu0 %v6408
    %v6761 = vpop.f32.mrb[0].mxu0
    %v6762 = vadd.f32 0.0, %v6761
    %v6763 = vpop.f32.mrb[0].mxu0
    %6764 = vmatprep.mubr.f32.mxu0 0.0
    %6765 = vmatmul.mubr.f32.gmra.mrb[0].mxu0 %v6411
    %v6766 = vpop.f32.mrb[0].mxu0
    %v6767 = vadd.f32 0.0, %v6766
    %v6768 = vpop.f32.mrb[0].mxu0
    %6769 = vmatprep.mubr.f32.mxu0 0.0
    %6770 = vmatmul.mubr.f32.gmra.mrb[0].mxu0 %v6414
    %v6771 = vpop.f32.mrb[0].mxu0
    %v6772 = vadd.f32 0.0, %v6771
    %v6773 = vpop.f32.mrb[0].mxu0
    %6774 = vmatprep.mubr.f32.mxu0 0.0
    %6775 = vmatmul.mubr.f32.gmra.mrb[0].mxu0 %v6417
    %v6776 = vpop.f32.mrb[0].mxu0
    %v6777 = vadd.f32 0.0, %v6776
    %v6778 = vpop.f32.mrb[0].mxu0
    %6779 = vmatprep.mubr.f32.mxu0 0.0
    %6780 = vmatmul.mubr.f32.gmra.mrb[0].mxu0 %v6420
    %v6781 = vpop.f32.mrb[0].mxu0
    %v6782 = vadd.f32 0.0, %v6781
    %v6783 = vpop.f32.mrb[0].mxu0
    %6784 = vmatprep.mubr.f32.mxu0 0.0
    %6785 = vmatmul.mubr.f32.gmra.mrb[0].mxu0 %v6423
    %v6786 = vpop.f32.mrb[0].mxu0
    %v6787 = vadd.f32 0.0, %v6786
    %v6788 = vpop.f32.mrb[0].mxu0
    %6789 = vmatprep.mubr.f32.mxu0 0.0
    %6790 = vmatmul.mubr.f32.gmra.mrb[0].mxu0 %v6426
    %v6791 = vpop.f32.mrb[0].mxu0
    %v6792 = vadd.f32 0.0, %v6791
    %v6793 = vpop.f32.mrb[0].mxu0
    %6794 = vmatprep.mubr.f32.mxu0 0.0
    %6795 = vmatmul.mubr.f32.gmra.mrb[0].mxu0 %v6429
    %v6796 = vpop.f32.mrb[0].mxu0
    %v6797 = vadd.f32 0.0, %v6796
    %v6798 = vpop.f32.mrb[0].mxu0
    %6799 = vmatprep.mubr.f32.mxu0 0.0
    %6800 = vmatmul.mubr.f32.gmra.mrb[0].mxu0 %v6432
    %v6801 = vpop.f32.mrb[0].mxu0
    %v6802 = vadd.f32 0.0, %v6801
    %v6803 = vpop.f32.mrb[0].mxu0
    %6804 = vmatprep.mubr.f32.mxu0 0.0
    %6805 = vmatmul.mubr.f32.gmra.mrb[0].mxu0 %v6435
    %v6806 = vpop.f32.mrb[0].mxu0
    %v6807 = vadd.f32 0.0, %v6806
    %v6808 = vpop.f32.mrb[0].mxu0
    %6809 = vmatprep.mubr.f32.mxu0 0.0
    %6810 = vmatmul.mubr.f32.gmra.mrb[0].mxu0 %v6438
    %v6811 = vpop.f32.mrb[0].mxu0
    %v6812 = vadd.f32 0.0, %v6811
    %v6813 = vpop.f32.mrb[0].mxu0
    %6814 = vmatprep.mubr.f32.mxu0 0.0
    %6815 = vmatmul.mubr.f32.gmra.mrb[0].mxu0 %v6441
    %v6816 = vpop.f32.mrb[0].mxu0
    %v6817 = vadd.f32 0.0, %v6816
    %v6818 = vpop.f32.mrb[0].mxu0
    %6819 = vmatprep.mubr.f32.mxu0 0.0
    %6820 = vmatmul.mubr.f32.gmra.mrb[0].mxu0 %v6444
    %v6821 = vpop.f32.mrb[0].mxu0
    %v6822 = vadd.f32 0.0, %v6821
    %v6823 = vpop.f32.mrb[0].mxu0
    %6824 = vmatprep.mubr.f32.mxu0 0.0
    %6825 = vmatmul.mubr.f32.gmra.mrb[0].mxu0 %v6447
    %v6826 = vpop.f32.mrb[0].mxu0
    %v6827 = vadd.f32 0.0, %v6826
    %v6828 = vpop.f32.mrb[0].mxu0
    %6829 = vmatprep.mubr.f32.mxu0 0.0
    %6830 = vmatmul.mubr.f32.gmra.mrb[0].mxu0 %v6450
    %v6831 = vpop.f32.mrb[0].mxu0
    %v6832 = vadd.f32 0.0, %v6831
    %v6833 = vpop.f32.mrb[0].mxu0
    %6834 = vmatprep.mubr.f32.mxu0 0.0
    %6835 = vmatmul.mubr.f32.gmra.mrb[0].mxu0 %v6453
    %v6836 = vpop.f32.mrb[0].mxu0
    %v6837 = vadd.f32 0.0, %v6836
    %v6838 = vpop.f32.mrb[0].mxu0
    %6839 = vdwg.mxu0
    %6840 = vxpose.xlu0.b32.start [1/16] %v6522, 128
    %6841 = vxpose.xlu0.b32.cont [2/16] %v6527, 128
    %6842 = vxpose.xlu0.b32.cont [3/16] %v6532, 128
    %6843 = vxpose.xlu0.b32.cont [4/16] %v6537, 128
    %6844 = vxpose.xlu0.b32.cont [5/16] %v6542, 128
    %6845 = vxpose.xlu0.b32.cont [6/16] %v6547, 128
    %6846 = vxpose.xlu0.b32.cont [7/16] %v6552, 128
    %6847 = vxpose.xlu0.b32.cont [8/16] %v6557, 128
    %6848 = vxpose.xlu0.b32.cont [9/16] %v6562, 128
    %6849 = vxpose.xlu0.b32.cont [10/16] %v6567, 128
    %6850 = vxpose.xlu0.b32.cont [11/16] %v6572, 128
    %6851 = vxpose.xlu0.b32.cont [12/16] %v6577, 128
    %6852 = vxpose.xlu0.b32.cont [13/16] %v6582, 128
    %6853 = vxpose.xlu0.b32.cont [14/16] %v6587, 128
    %6854 = vxpose.xlu0.b32.cont [15/16] %v6592, 128
    %6855 = vxpose.xlu0.b32.end [16/16] %v6597, 128
    %v6856 = vpop.trf.xlu0
    %v6857 = vpop.trf.xlu0
    %v6858 = vpop.trf.xlu0
    %v6859 = vpop.trf.xlu0
    %v6860 = vpop.trf.xlu0
    %v6861 = vpop.trf.xlu0
    %v6862 = vpop.trf.xlu0
    %v6863 = vpop.trf.xlu0
    %v6864 = vpop.trf.xlu0
    %v6865 = vpop.trf.xlu0
    %v6866 = vpop.trf.xlu0
    %v6867 = vpop.trf.xlu0
    %v6868 = vpop.trf.xlu0
    %v6869 = vpop.trf.xlu0
    %v6870 = vpop.trf.xlu0
    %v6871 = vpop.trf.xlu0
    %6872 = vxpose.xlu0.b32.start [1/16] %v6602, 128
    %6873 = vxpose.xlu0.b32.cont [2/16] %v6607, 128
    %6874 = vxpose.xlu0.b32.cont [3/16] %v6612, 128
    %6875 = vxpose.xlu0.b32.cont [4/16] %v6617, 128
    %6876 = vxpose.xlu0.b32.cont [5/16] %v6622, 128
    %6877 = vxpose.xlu0.b32.cont [6/16] %v6627, 128
    %6878 = vxpose.xlu0.b32.cont [7/16] %v6632, 128
    %6879 = vxpose.xlu0.b32.cont [8/16] %v6637, 128
    %6880 = vxpose.xlu0.b32.cont [9/16] %v6642, 128
    %6881 = vxpose.xlu0.b32.cont [10/16] %v6647, 128
    %6882 = vxpose.xlu0.b32.cont [11/16] %v6652, 128
    %6883 = vxpose.xlu0.b32.cont [12/16] %v6657, 128
    %6884 = vxpose.xlu0.b32.cont [13/16] %v6662, 128
    %6885 = vxpose.xlu0.b32.cont [14/16] %v6667, 128
    %6886 = vxpose.xlu0.b32.cont [15/16] %v6672, 128
    %6887 = vxpose.xlu0.b32.end [16/16] %v6677, 128
    %v6888 = vpop.trf.xlu0
    %v6889 = vpop.trf.xlu0
    %v6890 = vpop.trf.xlu0
    %v6891 = vpop.trf.xlu0
    %v6892 = vpop.trf.xlu0
    %v6893 = vpop.trf.xlu0
    %v6894 = vpop.trf.xlu0
    %v6895 = vpop.trf.xlu0
    %v6896 = vpop.trf.xlu0
    %v6897 = vpop.trf.xlu0
    %v6898 = vpop.trf.xlu0
    %v6899 = vpop.trf.xlu0
    %v6900 = vpop.trf.xlu0
    %v6901 = vpop.trf.xlu0
    %v6902 = vpop.trf.xlu0
    %v6903 = vpop.trf.xlu0
    %6904 = vxpose.xlu0.b32.start [1/16] %v6682, 128
    %6905 = vxpose.xlu0.b32.cont [2/16] %v6687, 128
    %6906 = vxpose.xlu0.b32.cont [3/16] %v6692, 128
    %6907 = vxpose.xlu0.b32.cont [4/16] %v6697, 128
    %6908 = vxpose.xlu0.b32.cont [5/16] %v6702, 128
    %6909 = vxpose.xlu0.b32.cont [6/16] %v6707, 128
    %6910 = vxpose.xlu0.b32.cont [7/16] %v6712, 128
    %6911 = vxpose.xlu0.b32.cont [8/16] %v6717, 128
    %6912 = vxpose.xlu0.b32.cont [9/16] %v6722, 128
    %6913 = vxpose.xlu0.b32.cont [10/16] %v6727, 128
    %6914 = vxpose.xlu0.b32.cont [11/16] %v6732, 128
    %6915 = vxpose.xlu0.b32.cont [12/16] %v6737, 128
    %6916 = vxpose.xlu0.b32.cont [13/16] %v6742, 128
    %6917 = vxpose.xlu0.b32.cont [14/16] %v6747, 128
    %6918 = vxpose.xlu0.b32.cont [15/16] %v6752, 128
    %6919 = vxpose.xlu0.b32.end [16/16] %v6757, 128
    %v6920 = vpop.trf.xlu0
    %v6921 = vpop.trf.xlu0
    %v6922 = vpop.trf.xlu0
    %v6923 = vpop.trf.xlu0
    %v6924 = vpop.trf.xlu0
    %v6925 = vpop.trf.xlu0
    %v6926 = vpop.trf.xlu0
    %v6927 = vpop.trf.xlu0
    %v6928 = vpop.trf.xlu0
    %v6929 = vpop.trf.xlu0
    %v6930 = vpop.trf.xlu0
    %v6931 = vpop.trf.xlu0
    %v6932 = vpop.trf.xlu0
    %v6933 = vpop.trf.xlu0
    %v6934 = vpop.trf.xlu0
    %v6935 = vpop.trf.xlu0
    %6936 = vxpose.xlu0.b32.start [1/16] %v6762, 128
    %6937 = vxpose.xlu0.b32.cont [2/16] %v6767, 128
    %6938 = vxpose.xlu0.b32.cont [3/16] %v6772, 128
    %6939 = vxpose.xlu0.b32.cont [4/16] %v6777, 128
    %6940 = vxpose.xlu0.b32.cont [5/16] %v6782, 128
    %6941 = vxpose.xlu0.b32.cont [6/16] %v6787, 128
    %6942 = vxpose.xlu0.b32.cont [7/16] %v6792, 128
    %6943 = vxpose.xlu0.b32.cont [8/16] %v6797, 128
    %6944 = vxpose.xlu0.b32.cont [9/16] %v6802, 128
    %6945 = vxpose.xlu0.b32.cont [10/16] %v6807, 128
    %6946 = vxpose.xlu0.b32.cont [11/16] %v6812, 128
    %6947 = vxpose.xlu0.b32.cont [12/16] %v6817, 128
    %6948 = vxpose.xlu0.b32.cont [13/16] %v6822, 128
    %6949 = vxpose.xlu0.b32.cont [14/16] %v6827, 128
    %6950 = vxpose.xlu0.b32.cont [15/16] %v6832, 128
    %6951 = vxpose.xlu0.b32.end [16/16] %v6837, 128
    %v6952 = vpop.trf.xlu0
    %v6953 = vpop.trf.xlu0
    %v6954 = vpop.trf.xlu0
    %v6955 = vpop.trf.xlu0
    %v6956 = vpop.trf.xlu0
    %v6957 = vpop.trf.xlu0
    %v6958 = vpop.trf.xlu0
    %v6959 = vpop.trf.xlu0
    %v6960 = vpop.trf.xlu0
    %v6961 = vpop.trf.xlu0
    %v6962 = vpop.trf.xlu0
    %v6963 = vpop.trf.xlu0
    %v6964 = vpop.trf.xlu0
    %v6965 = vpop.trf.xlu0
    %v6966 = vpop.trf.xlu0
    %v6967 = vpop.trf.xlu0
    %v6968 = vmul.f32 %v5242, 0.98078525
    %v6969 = vmul.f32 %v5243, 0.98078525
    %v6970 = vmul.f32 %v5244, 0.98078525
    %v6971 = vmul.f32 %v5245, 0.98078525
    %v6972 = vmul.f32 %v6856, -0.19509032
    %v6973 = vmul.f32 %v6888, -0.19509032
    %v6974 = vmul.f32 %v6920, -0.19509032
    %v6975 = vmul.f32 %v6952, -0.19509032
    %v6976 = vadd.f32 %v6968, %v6972
    %v6977 = vadd.f32 %v6969, %v6973
    %v6978 = vadd.f32 %v6970, %v6974
    %v6979 = vadd.f32 %v6971, %v6975
    %v6980 = vmul.f32 %v26, 0.5
    %v6981 = vmul.f32 %v27, 0.5
    %v6982 = vmul.f32 %v28, 0.5
    %v6983 = vmul.f32 %v29, 0.5
    %6984 = vxpose.xlu0.b32.start [1/16] %v6976, 128
    %6985 = vxpose.xlu0.b32.cont [2/16] 0.0, 128
    %6986 = vxpose.xlu0.b32.cont [3/16] 0.0, 128
    %6987 = vxpose.xlu0.b32.cont [4/16] 0.0, 128
    %6988 = vxpose.xlu0.b32.cont [5/16] 0.0, 128
    %6989 = vxpose.xlu0.b32.cont [6/16] 0.0, 128
    %6990 = vxpose.xlu0.b32.cont [7/16] 0.0, 128
    %6991 = vxpose.xlu0.b32.cont [8/16] 0.0, 128
    %6992 = vxpose.xlu0.b32.cont [9/16] 0.0, 128
    %6993 = vxpose.xlu0.b32.cont [10/16] 0.0, 128
    %6994 = vxpose.xlu0.b32.cont [11/16] 0.0, 128
    %6995 = vxpose.xlu0.b32.cont [12/16] 0.0, 128
    %6996 = vxpose.xlu0.b32.cont [13/16] 0.0, 128
    %6997 = vxpose.xlu0.b32.cont [14/16] 0.0, 128
    %6998 = vxpose.xlu0.b32.cont [15/16] 0.0, 128
    %6999 = vxpose.xlu0.b32.end [16/16] 0.0, 128
    %v7000 = vpop.trf.xlu0
    %v7001 = vpop.trf.xlu0
    %v7002 = vpop.trf.xlu0
    %v7003 = vpop.trf.xlu0
    %v7004 = vpop.trf.xlu0
    %v7005 = vpop.trf.xlu0
    %v7006 = vpop.trf.xlu0
    %v7007 = vpop.trf.xlu0
    %v7008 = vpop.trf.xlu0
    %v7009 = vpop.trf.xlu0
    %v7010 = vpop.trf.xlu0
    %v7011 = vpop.trf.xlu0
    %v7012 = vpop.trf.xlu0
    %v7013 = vpop.trf.xlu0
    %v7014 = vpop.trf.xlu0
    %v7015 = vpop.trf.xlu0
    %7016 = vxpose.xlu0.b32.start [1/16] %v6977, 128
    %7017 = vxpose.xlu0.b32.cont [2/16] 0.0, 128
    %7018 = vxpose.xlu0.b32.cont [3/16] 0.0, 128
    %7019 = vxpose.xlu0.b32.cont [4/16] 0.0, 128
    %7020 = vxpose.xlu0.b32.cont [5/16] 0.0, 128
    %7021 = vxpose.xlu0.b32.cont [6/16] 0.0, 128
    %7022 = vxpose.xlu0.b32.cont [7/16] 0.0, 128
    %7023 = vxpose.xlu0.b32.cont [8/16] 0.0, 128
    %7024 = vxpose.xlu0.b32.cont [9/16] 0.0, 128
    %7025 = vxpose.xlu0.b32.cont [10/16] 0.0, 128
    %7026 = vxpose.xlu0.b32.cont [11/16] 0.0, 128
    %7027 = vxpose.xlu0.b32.cont [12/16] 0.0, 128
    %7028 = vxpose.xlu0.b32.cont [13/16] 0.0, 128
    %7029 = vxpose.xlu0.b32.cont [14/16] 0.0, 128
    %7030 = vxpose.xlu0.b32.cont [15/16] 0.0, 128
    %7031 = vxpose.xlu0.b32.end [16/16] 0.0, 128
    %v7032 = vpop.trf.xlu0
    %v7033 = vpop.trf.xlu0
    %v7034 = vpop.trf.xlu0
    %v7035 = vpop.trf.xlu0
    %v7036 = vpop.trf.xlu0
    %v7037 = vpop.trf.xlu0
    %v7038 = vpop.trf.xlu0
    %v7039 = vpop.trf.xlu0
    %v7040 = vpop.trf.xlu0
    %v7041 = vpop.trf.xlu0
    %v7042 = vpop.trf.xlu0
    %v7043 = vpop.trf.xlu0
    %v7044 = vpop.trf.xlu0
    %v7045 = vpop.trf.xlu0
    %v7046 = vpop.trf.xlu0
    %v7047 = vpop.trf.xlu0
    %7048 = vxpose.xlu0.b32.start [1/16] %v6978, 128
    %7049 = vxpose.xlu0.b32.cont [2/16] 0.0, 128
    %7050 = vxpose.xlu0.b32.cont [3/16] 0.0, 128
    %7051 = vxpose.xlu0.b32.cont [4/16] 0.0, 128
    %7052 = vxpose.xlu0.b32.cont [5/16] 0.0, 128
    %7053 = vxpose.xlu0.b32.cont [6/16] 0.0, 128
    %7054 = vxpose.xlu0.b32.cont [7/16] 0.0, 128
    %7055 = vxpose.xlu0.b32.cont [8/16] 0.0, 128
    %7056 = vxpose.xlu0.b32.cont [9/16] 0.0, 128
    %7057 = vxpose.xlu0.b32.cont [10/16] 0.0, 128
    %7058 = vxpose.xlu0.b32.cont [11/16] 0.0, 128
    %7059 = vxpose.xlu0.b32.cont [12/16] 0.0, 128
    %7060 = vxpose.xlu0.b32.cont [13/16] 0.0, 128
    %7061 = vxpose.xlu0.b32.cont [14/16] 0.0, 128
    %7062 = vxpose.xlu0.b32.cont [15/16] 0.0, 128
    %7063 = vxpose.xlu0.b32.end [16/16] 0.0, 128
    %v7064 = vpop.trf.xlu0
    %v7065 = vpop.trf.xlu0
    %v7066 = vpop.trf.xlu0
    %v7067 = vpop.trf.xlu0
    %v7068 = vpop.trf.xlu0
    %v7069 = vpop.trf.xlu0
    %v7070 = vpop.trf.xlu0
    %v7071 = vpop.trf.xlu0
    %v7072 = vpop.trf.xlu0
    %v7073 = vpop.trf.xlu0
    %v7074 = vpop.trf.xlu0
    %v7075 = vpop.trf.xlu0
    %v7076 = vpop.trf.xlu0
    %v7077 = vpop.trf.xlu0
    %v7078 = vpop.trf.xlu0
    %v7079 = vpop.trf.xlu0
    %7080 = vxpose.xlu0.b32.start [1/16] %v6979, 128
    %7081 = vxpose.xlu0.b32.cont [2/16] 0.0, 128
    %7082 = vxpose.xlu0.b32.cont [3/16] 0.0, 128
    %7083 = vxpose.xlu0.b32.cont [4/16] 0.0, 128
    %7084 = vxpose.xlu0.b32.cont [5/16] 0.0, 128
    %7085 = vxpose.xlu0.b32.cont [6/16] 0.0, 128
    %7086 = vxpose.xlu0.b32.cont [7/16] 0.0, 128
    %7087 = vxpose.xlu0.b32.cont [8/16] 0.0, 128
    %7088 = vxpose.xlu0.b32.cont [9/16] 0.0, 128
    %7089 = vxpose.xlu0.b32.cont [10/16] 0.0, 128
    %7090 = vxpose.xlu0.b32.cont [11/16] 0.0, 128
    %7091 = vxpose.xlu0.b32.cont [12/16] 0.0, 128
    %7092 = vxpose.xlu0.b32.cont [13/16] 0.0, 128
    %7093 = vxpose.xlu0.b32.cont [14/16] 0.0, 128
    %7094 = vxpose.xlu0.b32.cont [15/16] 0.0, 128
    %7095 = vxpose.xlu0.b32.end [16/16] 0.0, 128
    %v7096 = vpop.trf.xlu0
    %v7097 = vpop.trf.xlu0
    %v7098 = vpop.trf.xlu0
    %v7099 = vpop.trf.xlu0
    %v7100 = vpop.trf.xlu0
    %v7101 = vpop.trf.xlu0
    %v7102 = vpop.trf.xlu0
    %v7103 = vpop.trf.xlu0
    %v7104 = vpop.trf.xlu0
    %v7105 = vpop.trf.xlu0
    %v7106 = vpop.trf.xlu0
    %v7107 = vpop.trf.xlu0
    %v7108 = vpop.trf.xlu0
    %v7109 = vpop.trf.xlu0
    %v7110 = vpop.trf.xlu0
    %v7111 = vpop.trf.xlu0
    %v7113 = vsel %vm159, %v7000, 0
    %v7116 = vsel %vm159, %v7001, 0
    %v7119 = vsel %vm159, %v7002, 0
    %v7122 = vsel %vm159, %v7003, 0
    %v7125 = vsel %vm159, %v7004, 0
    %v7128 = vsel %vm159, %v7005, 0
    %v7131 = vsel %vm159, %v7006, 0
    %v7134 = vsel %vm159, %v7007, 0
    %v7137 = vsel %vm159, %v7008, 0
    %v7140 = vsel %vm159, %v7009, 0
    %v7143 = vsel %vm159, %v7010, 0
    %v7146 = vsel %vm159, %v7011, 0
    %v7149 = vsel %vm159, %v7012, 0
    %v7152 = vsel %vm159, %v7013, 0
    %v7155 = vsel %vm159, %v7014, 0
    %v7158 = vsel %vm159, %v7015, 0
    %v7161 = vsel %vm159, %v7032, 0
    %v7164 = vsel %vm159, %v7033, 0
    %v7167 = vsel %vm159, %v7034, 0
    %v7170 = vsel %vm159, %v7035, 0
    %v7173 = vsel %vm159, %v7036, 0
    %v7176 = vsel %vm159, %v7037, 0
    %v7179 = vsel %vm159, %v7038, 0
    %v7182 = vsel %vm159, %v7039, 0
    %v7185 = vsel %vm159, %v7040, 0
    %v7188 = vsel %vm159, %v7041, 0
    %v7191 = vsel %vm159, %v7042, 0
    %v7194 = vsel %vm159, %v7043, 0
    %v7197 = vsel %vm159, %v7044, 0
    %v7200 = vsel %vm159, %v7045, 0
    %v7203 = vsel %vm159, %v7046, 0
    %v7206 = vsel %vm159, %v7047, 0
    %v7209 = vsel %vm159, %v7064, 0
    %v7212 = vsel %vm159, %v7065, 0
    %v7215 = vsel %vm159, %v7066, 0
    %v7218 = vsel %vm159, %v7067, 0
    %v7221 = vsel %vm159, %v7068, 0
    %v7224 = vsel %vm159, %v7069, 0
    %v7227 = vsel %vm159, %v7070, 0
    %v7230 = vsel %vm159, %v7071, 0
    %v7233 = vsel %vm159, %v7072, 0
    %v7236 = vsel %vm159, %v7073, 0
    %v7239 = vsel %vm159, %v7074, 0
    %v7242 = vsel %vm159, %v7075, 0
    %v7245 = vsel %vm159, %v7076, 0
    %v7248 = vsel %vm159, %v7077, 0
    %v7251 = vsel %vm159, %v7078, 0
    %v7254 = vsel %vm159, %v7079, 0
    %v7257 = vsel %vm159, %v7096, 0
    %v7260 = vsel %vm159, %v7097, 0
    %v7263 = vsel %vm159, %v7098, 0
    %v7266 = vsel %vm159, %v7099, 0
    %v7269 = vsel %vm159, %v7100, 0
    %v7272 = vsel %vm159, %v7101, 0
    %v7275 = vsel %vm159, %v7102, 0
    %v7278 = vsel %vm159, %v7103, 0
    %v7281 = vsel %vm159, %v7104, 0
    %v7284 = vsel %vm159, %v7105, 0
    %v7287 = vsel %vm159, %v7106, 0
    %v7290 = vsel %vm159, %v7107, 0
    %v7293 = vsel %vm159, %v7108, 0
    %v7296 = vsel %vm159, %v7109, 0
    %v7299 = vsel %vm159, %v7110, 0
    %v7302 = vsel %vm159, %v7111, 0
    %7304 = vmatprep.subr.mxu0 0.0
    %7305 = vmatpush1.xpose.msra.mxu0 %v353
    %7306 = vmatprep.subr.mxu0 0.0
    %7307 = vmatpush1.xpose.msra.mxu0 %v356
    %7308 = vmatprep.subr.mxu0 0.0
    %7309 = vmatpush1.xpose.msra.mxu0 %v359
    %7310 = vmatprep.subr.mxu0 0.0
    %7311 = vmatpush1.xpose.msra.mxu0 %v362
    %7312 = vmatprep.subr.mxu0 0.0
    %7313 = vmatpush1.xpose.msra.mxu0 0.0
    %7314 = vmatprep.subr.mxu0 0.0
    %7315 = vmatpush1.xpose.msra.mxu0 0.0
    %7316 = vmatprep.subr.mxu0 0.0
    %7317 = vmatpush1.xpose.msra.mxu0 0.0
    %7318 = vmatprep.subr.mxu0 0.0
    %7319 = vmatpush1.xpose.msra.mxu0 0.0
    %7320 = vmatprep.subr.mxu0 0.0
    %7321 = vmatpush1.xpose.msra.mxu0 0.0
    %7322 = vmatprep.subr.mxu0 0.0
    %7323 = vmatpush1.xpose.msra.mxu0 0.0
    %7324 = vmatprep.subr.mxu0 0.0
    %7325 = vmatpush1.xpose.msra.mxu0 0.0
    %7326 = vmatprep.subr.mxu0 0.0
    %7327 = vmatpush1.xpose.msra.mxu0 0.0
    %7328 = vmatprep.subr.mxu0 0.0
    %7329 = vmatpush1.xpose.msra.mxu0 0.0
    %7330 = vmatprep.subr.mxu0 0.0
    %7331 = vmatpush1.xpose.msra.mxu0 0.0
    %7332 = vmatprep.subr.mxu0 0.0
    %7333 = vmatpush1.xpose.msra.mxu0 0.0
    %7334 = vmatprep.subr.mxu0 0.0
    %7335 = vmatpush1.xpose.msra.mxu0 0.0
    %7336 = vmatprep.subr.mxu0 0.0
    %7337 = vmatpush1.xpose.msra.mxu0 0.0
    %7338 = vmatprep.subr.mxu0 0.0
    %7339 = vmatpush1.xpose.msra.mxu0 0.0
    %7340 = vmatprep.subr.mxu0 0.0
    %7341 = vmatpush1.xpose.msra.mxu0 0.0
    %7342 = vmatprep.subr.mxu0 0.0
    %7343 = vmatpush1.xpose.msra.mxu0 0.0
    %7344 = vmatprep.subr.mxu0 0.0
    %7345 = vmatpush1.xpose.msra.mxu0 0.0
    %7346 = vmatprep.subr.mxu0 0.0
    %7347 = vmatpush1.xpose.msra.mxu0 0.0
    %7348 = vmatprep.subr.mxu0 0.0
    %7349 = vmatpush1.xpose.msra.mxu0 0.0
    %7350 = vmatprep.subr.mxu0 0.0
    %7351 = vmatpush1.xpose.msra.mxu0 0.0
    %7352 = vmatprep.subr.mxu0 0.0
    %7353 = vmatpush1.xpose.msra.mxu0 0.0
    %7354 = vmatprep.subr.mxu0 0.0
    %7355 = vmatpush1.xpose.msra.mxu0 0.0
    %7356 = vmatprep.subr.mxu0 0.0
    %7357 = vmatpush1.xpose.msra.mxu0 0.0
    %7358 = vmatprep.subr.mxu0 0.0
    %7359 = vmatpush1.xpose.msra.mxu0 0.0
    %7360 = vmatprep.subr.mxu0 0.0
    %7361 = vmatpush1.xpose.msra.mxu0 0.0
    %7362 = vmatprep.subr.mxu0 0.0
    %7363 = vmatpush1.xpose.msra.mxu0 0.0
    %7364 = vmatprep.subr.mxu0 0.0
    %7365 = vmatpush1.xpose.msra.mxu0 0.0
    %7366 = vmatprep.subr.mxu0 0.0
    %7367 = vmatpush1.xpose.msra.mxu0 0.0
    %7368 = vmatprep.mubr.f32.mxu0 0.0
    %7369 = vmatmul.mubr.f32.gmra.mrb[0].mxu0 %v7113
    %v7370 = vpop.f32.mrb[0].mxu0
    %v7371 = vadd.f32 0.0, %v7370
    %v7372 = vpop.f32.mrb[0].mxu0
    %7373 = vmatprep.mubr.f32.mxu0 0.0
    %7374 = vmatmul.mubr.f32.gmra.mrb[0].mxu0 %v7116
    %v7375 = vpop.f32.mrb[0].mxu0
    %v7376 = vadd.f32 0.0, %v7375
    %v7377 = vpop.f32.mrb[0].mxu0
    %7378 = vmatprep.mubr.f32.mxu0 0.0
    %7379 = vmatmul.mubr.f32.gmra.mrb[0].mxu0 %v7119
    %v7380 = vpop.f32.mrb[0].mxu0
    %v7381 = vadd.f32 0.0, %v7380
    %v7382 = vpop.f32.mrb[0].mxu0
    %7383 = vmatprep.mubr.f32.mxu0 0.0
    %7384 = vmatmul.mubr.f32.gmra.mrb[0].mxu0 %v7122
    %v7385 = vpop.f32.mrb[0].mxu0
    %v7386 = vadd.f32 0.0, %v7385
    %v7387 = vpop.f32.mrb[0].mxu0
    %7388 = vmatprep.mubr.f32.mxu0 0.0
    %7389 = vmatmul.mubr.f32.gmra.mrb[0].mxu0 %v7125
    %v7390 = vpop.f32.mrb[0].mxu0
    %v7391 = vadd.f32 0.0, %v7390
    %v7392 = vpop.f32.mrb[0].mxu0
    %7393 = vmatprep.mubr.f32.mxu0 0.0
    %7394 = vmatmul.mubr.f32.gmra.mrb[0].mxu0 %v7128
    %v7395 = vpop.f32.mrb[0].mxu0
    %v7396 = vadd.f32 0.0, %v7395
    %v7397 = vpop.f32.mrb[0].mxu0
    %7398 = vmatprep.mubr.f32.mxu0 0.0
    %7399 = vmatmul.mubr.f32.gmra.mrb[0].mxu0 %v7131
    %v7400 = vpop.f32.mrb[0].mxu0
    %v7401 = vadd.f32 0.0, %v7400
    %v7402 = vpop.f32.mrb[0].mxu0
    %7403 = vmatprep.mubr.f32.mxu0 0.0
    %7404 = vmatmul.mubr.f32.gmra.mrb[0].mxu0 %v7134
    %v7405 = vpop.f32.mrb[0].mxu0
    %v7406 = vadd.f32 0.0, %v7405
    %v7407 = vpop.f32.mrb[0].mxu0
    %7408 = vmatprep.mubr.f32.mxu0 0.0
    %7409 = vmatmul.mubr.f32.gmra.mrb[0].mxu0 %v7137
    %v7410 = vpop.f32.mrb[0].mxu0
    %v7411 = vadd.f32 0.0, %v7410
    %v7412 = vpop.f32.mrb[0].mxu0
    %7413 = vmatprep.mubr.f32.mxu0 0.0
    %7414 = vmatmul.mubr.f32.gmra.mrb[0].mxu0 %v7140
    %v7415 = vpop.f32.mrb[0].mxu0
    %v7416 = vadd.f32 0.0, %v7415
    %v7417 = vpop.f32.mrb[0].mxu0
    %7418 = vmatprep.mubr.f32.mxu0 0.0
    %7419 = vmatmul.mubr.f32.gmra.mrb[0].mxu0 %v7143
    %v7420 = vpop.f32.mrb[0].mxu0
    %v7421 = vadd.f32 0.0, %v7420
    %v7422 = vpop.f32.mrb[0].mxu0
    %7423 = vmatprep.mubr.f32.mxu0 0.0
    %7424 = vmatmul.mubr.f32.gmra.mrb[0].mxu0 %v7146
    %v7425 = vpop.f32.mrb[0].mxu0
    %v7426 = vadd.f32 0.0, %v7425
    %v7427 = vpop.f32.mrb[0].mxu0
    %7428 = vmatprep.mubr.f32.mxu0 0.0
    %7429 = vmatmul.mubr.f32.gmra.mrb[0].mxu0 %v7149
    %v7430 = vpop.f32.mrb[0].mxu0
    %v7431 = vadd.f32 0.0, %v7430
    %v7432 = vpop.f32.mrb[0].mxu0
    %7433 = vmatprep.mubr.f32.mxu0 0.0
    %7434 = vmatmul.mubr.f32.gmra.mrb[0].mxu0 %v7152
    %v7435 = vpop.f32.mrb[0].mxu0
    %v7436 = vadd.f32 0.0, %v7435
    %v7437 = vpop.f32.mrb[0].mxu0
    %7438 = vmatprep.mubr.f32.mxu0 0.0
    %7439 = vmatmul.mubr.f32.gmra.mrb[0].mxu0 %v7155
    %v7440 = vpop.f32.mrb[0].mxu0
    %v7441 = vadd.f32 0.0, %v7440
    %v7442 = vpop.f32.mrb[0].mxu0
    %7443 = vmatprep.mubr.f32.mxu0 0.0
    %7444 = vmatmul.mubr.f32.gmra.mrb[0].mxu0 %v7158
    %v7445 = vpop.f32.mrb[0].mxu0
    %v7446 = vadd.f32 0.0, %v7445
    %v7447 = vpop.f32.mrb[0].mxu0
    %7448 = vmatprep.mubr.f32.mxu0 0.0
    %7449 = vmatmul.mubr.f32.gmra.mrb[0].mxu0 %v7161
    %v7450 = vpop.f32.mrb[0].mxu0
    %v7451 = vadd.f32 0.0, %v7450
    %v7452 = vpop.f32.mrb[0].mxu0
    %7453 = vmatprep.mubr.f32.mxu0 0.0
    %7454 = vmatmul.mubr.f32.gmra.mrb[0].mxu0 %v7164
    %v7455 = vpop.f32.mrb[0].mxu0
    %v7456 = vadd.f32 0.0, %v7455
    %v7457 = vpop.f32.mrb[0].mxu0
    %7458 = vmatprep.mubr.f32.mxu0 0.0
    %7459 = vmatmul.mubr.f32.gmra.mrb[0].mxu0 %v7167
    %v7460 = vpop.f32.mrb[0].mxu0
    %v7461 = vadd.f32 0.0, %v7460
    %v7462 = vpop.f32.mrb[0].mxu0
    %7463 = vmatprep.mubr.f32.mxu0 0.0
    %7464 = vmatmul.mubr.f32.gmra.mrb[0].mxu0 %v7170
    %v7465 = vpop.f32.mrb[0].mxu0
    %v7466 = vadd.f32 0.0, %v7465
    %v7467 = vpop.f32.mrb[0].mxu0
    %7468 = vmatprep.mubr.f32.mxu0 0.0
    %7469 = vmatmul.mubr.f32.gmra.mrb[0].mxu0 %v7173
    %v7470 = vpop.f32.mrb[0].mxu0
    %v7471 = vadd.f32 0.0, %v7470
    %v7472 = vpop.f32.mrb[0].mxu0
    %7473 = vmatprep.mubr.f32.mxu0 0.0
    %7474 = vmatmul.mubr.f32.gmra.mrb[0].mxu0 %v7176
    %v7475 = vpop.f32.mrb[0].mxu0
    %v7476 = vadd.f32 0.0, %v7475
    %v7477 = vpop.f32.mrb[0].mxu0
    %7478 = vmatprep.mubr.f32.mxu0 0.0
    %7479 = vmatmul.mubr.f32.gmra.mrb[0].mxu0 %v7179
    %v7480 = vpop.f32.mrb[0].mxu0
    %v7481 = vadd.f32 0.0, %v7480
    %v7482 = vpop.f32.mrb[0].mxu0
    %7483 = vmatprep.mubr.f32.mxu0 0.0
    %7484 = vmatmul.mubr.f32.gmra.mrb[0].mxu0 %v7182
    %v7485 = vpop.f32.mrb[0].mxu0
    %v7486 = vadd.f32 0.0, %v7485
    %v7487 = vpop.f32.mrb[0].mxu0
    %7488 = vmatprep.mubr.f32.mxu0 0.0
    %7489 = vmatmul.mubr.f32.gmra.mrb[0].mxu0 %v7185
    %v7490 = vpop.f32.mrb[0].mxu0
    %v7491 = vadd.f32 0.0, %v7490
    %v7492 = vpop.f32.mrb[0].mxu0
    %7493 = vmatprep.mubr.f32.mxu0 0.0
    %7494 = vmatmul.mubr.f32.gmra.mrb[0].mxu0 %v7188
    %v7495 = vpop.f32.mrb[0].mxu0
    %v7496 = vadd.f32 0.0, %v7495
    %v7497 = vpop.f32.mrb[0].mxu0
    %7498 = vmatprep.mubr.f32.mxu0 0.0
    %7499 = vmatmul.mubr.f32.gmra.mrb[0].mxu0 %v7191
    %v7500 = vpop.f32.mrb[0].mxu0
    %v7501 = vadd.f32 0.0, %v7500
    %v7502 = vpop.f32.mrb[0].mxu0
    %7503 = vmatprep.mubr.f32.mxu0 0.0
    %7504 = vmatmul.mubr.f32.gmra.mrb[0].mxu0 %v7194
    %v7505 = vpop.f32.mrb[0].mxu0
    %v7506 = vadd.f32 0.0, %v7505
    %v7507 = vpop.f32.mrb[0].mxu0
    %7508 = vmatprep.mubr.f32.mxu0 0.0
    %7509 = vmatmul.mubr.f32.gmra.mrb[0].mxu0 %v7197
    %v7510 = vpop.f32.mrb[0].mxu0
    %v7511 = vadd.f32 0.0, %v7510
    %v7512 = vpop.f32.mrb[0].mxu0
    %7513 = vmatprep.mubr.f32.mxu0 0.0
    %7514 = vmatmul.mubr.f32.gmra.mrb[0].mxu0 %v7200
    %v7515 = vpop.f32.mrb[0].mxu0
    %v7516 = vadd.f32 0.0, %v7515
    %v7517 = vpop.f32.mrb[0].mxu0
    %7518 = vmatprep.mubr.f32.mxu0 0.0
    %7519 = vmatmul.mubr.f32.gmra.mrb[0].mxu0 %v7203
    %v7520 = vpop.f32.mrb[0].mxu0
    %v7521 = vadd.f32 0.0, %v7520
    %v7522 = vpop.f32.mrb[0].mxu0
    %7523 = vmatprep.mubr.f32.mxu0 0.0
    %7524 = vmatmul.mubr.f32.gmra.mrb[0].mxu0 %v7206
    %v7525 = vpop.f32.mrb[0].mxu0
    %v7526 = vadd.f32 0.0, %v7525
    %v7527 = vpop.f32.mrb[0].mxu0
    %7528 = vmatprep.mubr.f32.mxu0 0.0
    %7529 = vmatmul.mubr.f32.gmra.mrb[0].mxu0 %v7209
    %v7530 = vpop.f32.mrb[0].mxu0
    %v7531 = vadd.f32 0.0, %v7530
    %v7532 = vpop.f32.mrb[0].mxu0
    %7533 = vmatprep.mubr.f32.mxu0 0.0
    %7534 = vmatmul.mubr.f32.gmra.mrb[0].mxu0 %v7212
    %v7535 = vpop.f32.mrb[0].mxu0
    %v7536 = vadd.f32 0.0, %v7535
    %v7537 = vpop.f32.mrb[0].mxu0
    %7538 = vmatprep.mubr.f32.mxu0 0.0
    %7539 = vmatmul.mubr.f32.gmra.mrb[0].mxu0 %v7215
    %v7540 = vpop.f32.mrb[0].mxu0
    %v7541 = vadd.f32 0.0, %v7540
    %v7542 = vpop.f32.mrb[0].mxu0
    %7543 = vmatprep.mubr.f32.mxu0 0.0
    %7544 = vmatmul.mubr.f32.gmra.mrb[0].mxu0 %v7218
    %v7545 = vpop.f32.mrb[0].mxu0
    %v7546 = vadd.f32 0.0, %v7545
    %v7547 = vpop.f32.mrb[0].mxu0
    %7548 = vmatprep.mubr.f32.mxu0 0.0
    %7549 = vmatmul.mubr.f32.gmra.mrb[0].mxu0 %v7221
    %v7550 = vpop.f32.mrb[0].mxu0
    %v7551 = vadd.f32 0.0, %v7550
    %v7552 = vpop.f32.mrb[0].mxu0
    %7553 = vmatprep.mubr.f32.mxu0 0.0
    %7554 = vmatmul.mubr.f32.gmra.mrb[0].mxu0 %v7224
    %v7555 = vpop.f32.mrb[0].mxu0
    %v7556 = vadd.f32 0.0, %v7555
    %v7557 = vpop.f32.mrb[0].mxu0
    %7558 = vmatprep.mubr.f32.mxu0 0.0
    %7559 = vmatmul.mubr.f32.gmra.mrb[0].mxu0 %v7227
    %v7560 = vpop.f32.mrb[0].mxu0
    %v7561 = vadd.f32 0.0, %v7560
    %v7562 = vpop.f32.mrb[0].mxu0
    %7563 = vmatprep.mubr.f32.mxu0 0.0
    %7564 = vmatmul.mubr.f32.gmra.mrb[0].mxu0 %v7230
    %v7565 = vpop.f32.mrb[0].mxu0
    %v7566 = vadd.f32 0.0, %v7565
    %v7567 = vpop.f32.mrb[0].mxu0
    %7568 = vmatprep.mubr.f32.mxu0 0.0
    %7569 = vmatmul.mubr.f32.gmra.mrb[0].mxu0 %v7233
    %v7570 = vpop.f32.mrb[0].mxu0
    %v7571 = vadd.f32 0.0, %v7570
    %v7572 = vpop.f32.mrb[0].mxu0
    %7573 = vmatprep.mubr.f32.mxu0 0.0
    %7574 = vmatmul.mubr.f32.gmra.mrb[0].mxu0 %v7236
    %v7575 = vpop.f32.mrb[0].mxu0
    %v7576 = vadd.f32 0.0, %v7575
    %v7577 = vpop.f32.mrb[0].mxu0
    %7578 = vmatprep.mubr.f32.mxu0 0.0
    %7579 = vmatmul.mubr.f32.gmra.mrb[0].mxu0 %v7239
    %v7580 = vpop.f32.mrb[0].mxu0
    %v7581 = vadd.f32 0.0, %v7580
    %v7582 = vpop.f32.mrb[0].mxu0
    %7583 = vmatprep.mubr.f32.mxu0 0.0
    %7584 = vmatmul.mubr.f32.gmra.mrb[0].mxu0 %v7242
    %v7585 = vpop.f32.mrb[0].mxu0
    %v7586 = vadd.f32 0.0, %v7585
    %v7587 = vpop.f32.mrb[0].mxu0
    %7588 = vmatprep.mubr.f32.mxu0 0.0
    %7589 = vmatmul.mubr.f32.gmra.mrb[0].mxu0 %v7245
    %v7590 = vpop.f32.mrb[0].mxu0
    %v7591 = vadd.f32 0.0, %v7590
    %v7592 = vpop.f32.mrb[0].mxu0
    %7593 = vmatprep.mubr.f32.mxu0 0.0
    %7594 = vmatmul.mubr.f32.gmra.mrb[0].mxu0 %v7248
    %v7595 = vpop.f32.mrb[0].mxu0
    %v7596 = vadd.f32 0.0, %v7595
    %v7597 = vpop.f32.mrb[0].mxu0
    %7598 = vmatprep.mubr.f32.mxu0 0.0
    %7599 = vmatmul.mubr.f32.gmra.mrb[0].mxu0 %v7251
    %v7600 = vpop.f32.mrb[0].mxu0
    %v7601 = vadd.f32 0.0, %v7600
    %v7602 = vpop.f32.mrb[0].mxu0
    %7603 = vmatprep.mubr.f32.mxu0 0.0
    %7604 = vmatmul.mubr.f32.gmra.mrb[0].mxu0 %v7254
    %v7605 = vpop.f32.mrb[0].mxu0
    %v7606 = vadd.f32 0.0, %v7605
    %v7607 = vpop.f32.mrb[0].mxu0
    %7608 = vmatprep.mubr.f32.mxu0 0.0
    %7609 = vmatmul.mubr.f32.gmra.mrb[0].mxu0 %v7257
    %v7610 = vpop.f32.mrb[0].mxu0
    %v7611 = vadd.f32 0.0, %v7610
    %v7612 = vpop.f32.mrb[0].mxu0
    %7613 = vmatprep.mubr.f32.mxu0 0.0
    %7614 = vmatmul.mubr.f32.gmra.mrb[0].mxu0 %v7260
    %v7615 = vpop.f32.mrb[0].mxu0
    %v7616 = vadd.f32 0.0, %v7615
    %v7617 = vpop.f32.mrb[0].mxu0
    %7618 = vmatprep.mubr.f32.mxu0 0.0
    %7619 = vmatmul.mubr.f32.gmra.mrb[0].mxu0 %v7263
    %v7620 = vpop.f32.mrb[0].mxu0
    %v7621 = vadd.f32 0.0, %v7620
    %v7622 = vpop.f32.mrb[0].mxu0
    %7623 = vmatprep.mubr.f32.mxu0 0.0
    %7624 = vmatmul.mubr.f32.gmra.mrb[0].mxu0 %v7266
    %v7625 = vpop.f32.mrb[0].mxu0
    %v7626 = vadd.f32 0.0, %v7625
    %v7627 = vpop.f32.mrb[0].mxu0
    %7628 = vmatprep.mubr.f32.mxu0 0.0
    %7629 = vmatmul.mubr.f32.gmra.mrb[0].mxu0 %v7269
    %v7630 = vpop.f32.mrb[0].mxu0
    %v7631 = vadd.f32 0.0, %v7630
    %v7632 = vpop.f32.mrb[0].mxu0
    %7633 = vmatprep.mubr.f32.mxu0 0.0
    %7634 = vmatmul.mubr.f32.gmra.mrb[0].mxu0 %v7272
    %v7635 = vpop.f32.mrb[0].mxu0
    %v7636 = vadd.f32 0.0, %v7635
    %v7637 = vpop.f32.mrb[0].mxu0
    %7638 = vmatprep.mubr.f32.mxu0 0.0
    %7639 = vmatmul.mubr.f32.gmra.mrb[0].mxu0 %v7275
    %v7640 = vpop.f32.mrb[0].mxu0
    %v7641 = vadd.f32 0.0, %v7640
    %v7642 = vpop.f32.mrb[0].mxu0
    %7643 = vmatprep.mubr.f32.mxu0 0.0
    %7644 = vmatmul.mubr.f32.gmra.mrb[0].mxu0 %v7278
    %v7645 = vpop.f32.mrb[0].mxu0
    %v7646 = vadd.f32 0.0, %v7645
    %v7647 = vpop.f32.mrb[0].mxu0
    %7648 = vmatprep.mubr.f32.mxu0 0.0
    %7649 = vmatmul.mubr.f32.gmra.mrb[0].mxu0 %v7281
    %v7650 = vpop.f32.mrb[0].mxu0
    %v7651 = vadd.f32 0.0, %v7650
    %v7652 = vpop.f32.mrb[0].mxu0
    %7653 = vmatprep.mubr.f32.mxu0 0.0
    %7654 = vmatmul.mubr.f32.gmra.mrb[0].mxu0 %v7284
    %v7655 = vpop.f32.mrb[0].mxu0
    %v7656 = vadd.f32 0.0, %v7655
    %v7657 = vpop.f32.mrb[0].mxu0
    %7658 = vmatprep.mubr.f32.mxu0 0.0
    %7659 = vmatmul.mubr.f32.gmra.mrb[0].mxu0 %v7287
    %v7660 = vpop.f32.mrb[0].mxu0
    %v7661 = vadd.f32 0.0, %v7660
    %v7662 = vpop.f32.mrb[0].mxu0
    %7663 = vmatprep.mubr.f32.mxu0 0.0
    %7664 = vmatmul.mubr.f32.gmra.mrb[0].mxu0 %v7290
    %v7665 = vpop.f32.mrb[0].mxu0
    %v7666 = vadd.f32 0.0, %v7665
    %v7667 = vpop.f32.mrb[0].mxu0
    %7668 = vmatprep.mubr.f32.mxu0 0.0
    %7669 = vmatmul.mubr.f32.gmra.mrb[0].mxu0 %v7293
    %v7670 = vpop.f32.mrb[0].mxu0
    %v7671 = vadd.f32 0.0, %v7670
    %v7672 = vpop.f32.mrb[0].mxu0
    %7673 = vmatprep.mubr.f32.mxu0 0.0
    %7674 = vmatmul.mubr.f32.gmra.mrb[0].mxu0 %v7296
    %v7675 = vpop.f32.mrb[0].mxu0
    %v7676 = vadd.f32 0.0, %v7675
    %v7677 = vpop.f32.mrb[0].mxu0
    %7678 = vmatprep.mubr.f32.mxu0 0.0
    %7679 = vmatmul.mubr.f32.gmra.mrb[0].mxu0 %v7299
    %v7680 = vpop.f32.mrb[0].mxu0
    %v7681 = vadd.f32 0.0, %v7680
    %v7682 = vpop.f32.mrb[0].mxu0
    %7683 = vmatprep.mubr.f32.mxu0 0.0
    %7684 = vmatmul.mubr.f32.gmra.mrb[0].mxu0 %v7302
    %v7685 = vpop.f32.mrb[0].mxu0
    %v7686 = vadd.f32 0.0, %v7685
    %v7687 = vpop.f32.mrb[0].mxu0
    %7688 = vdwg.mxu0
    %7689 = vxpose.xlu0.b32.start [1/16] %v7371, 128
    %7690 = vxpose.xlu0.b32.cont [2/16] %v7376, 128
    %7691 = vxpose.xlu0.b32.cont [3/16] %v7381, 128
    %7692 = vxpose.xlu0.b32.cont [4/16] %v7386, 128
    %7693 = vxpose.xlu0.b32.cont [5/16] %v7391, 128
    %7694 = vxpose.xlu0.b32.cont [6/16] %v7396, 128
    %7695 = vxpose.xlu0.b32.cont [7/16] %v7401, 128
    %7696 = vxpose.xlu0.b32.cont [8/16] %v7406, 128
    %7697 = vxpose.xlu0.b32.cont [9/16] %v7411, 128
    %7698 = vxpose.xlu0.b32.cont [10/16] %v7416, 128
    %7699 = vxpose.xlu0.b32.cont [11/16] %v7421, 128
    %7700 = vxpose.xlu0.b32.cont [12/16] %v7426, 128
    %7701 = vxpose.xlu0.b32.cont [13/16] %v7431, 128
    %7702 = vxpose.xlu0.b32.cont [14/16] %v7436, 128
    %7703 = vxpose.xlu0.b32.cont [15/16] %v7441, 128
    %7704 = vxpose.xlu0.b32.end [16/16] %v7446, 128
    %v7705 = vpop.trf.xlu0
    %v7706 = vpop.trf.xlu0
    %v7707 = vpop.trf.xlu0
    %v7708 = vpop.trf.xlu0
    %v7709 = vpop.trf.xlu0
    %v7710 = vpop.trf.xlu0
    %v7711 = vpop.trf.xlu0
    %v7712 = vpop.trf.xlu0
    %v7713 = vpop.trf.xlu0
    %v7714 = vpop.trf.xlu0
    %v7715 = vpop.trf.xlu0
    %v7716 = vpop.trf.xlu0
    %v7717 = vpop.trf.xlu0
    %v7718 = vpop.trf.xlu0
    %v7719 = vpop.trf.xlu0
    %v7720 = vpop.trf.xlu0
    %7721 = vxpose.xlu0.b32.start [1/16] %v7451, 128
    %7722 = vxpose.xlu0.b32.cont [2/16] %v7456, 128
    %7723 = vxpose.xlu0.b32.cont [3/16] %v7461, 128
    %7724 = vxpose.xlu0.b32.cont [4/16] %v7466, 128
    %7725 = vxpose.xlu0.b32.cont [5/16] %v7471, 128
    %7726 = vxpose.xlu0.b32.cont [6/16] %v7476, 128
    %7727 = vxpose.xlu0.b32.cont [7/16] %v7481, 128
    %7728 = vxpose.xlu0.b32.cont [8/16] %v7486, 128
    %7729 = vxpose.xlu0.b32.cont [9/16] %v7491, 128
    %7730 = vxpose.xlu0.b32.cont [10/16] %v7496, 128
    %7731 = vxpose.xlu0.b32.cont [11/16] %v7501, 128
    %7732 = vxpose.xlu0.b32.cont [12/16] %v7506, 128
    %7733 = vxpose.xlu0.b32.cont [13/16] %v7511, 128
    %7734 = vxpose.xlu0.b32.cont [14/16] %v7516, 128
    %7735 = vxpose.xlu0.b32.cont [15/16] %v7521, 128
    %7736 = vxpose.xlu0.b32.end [16/16] %v7526, 128
    %v7737 = vpop.trf.xlu0
    %v7738 = vpop.trf.xlu0
    %v7739 = vpop.trf.xlu0
    %v7740 = vpop.trf.xlu0
    %v7741 = vpop.trf.xlu0
    %v7742 = vpop.trf.xlu0
    %v7743 = vpop.trf.xlu0
    %v7744 = vpop.trf.xlu0
    %v7745 = vpop.trf.xlu0
    %v7746 = vpop.trf.xlu0
    %v7747 = vpop.trf.xlu0
    %v7748 = vpop.trf.xlu0
    %v7749 = vpop.trf.xlu0
    %v7750 = vpop.trf.xlu0
    %v7751 = vpop.trf.xlu0
    %v7752 = vpop.trf.xlu0
    %7753 = vxpose.xlu0.b32.start [1/16] %v7531, 128
    %7754 = vxpose.xlu0.b32.cont [2/16] %v7536, 128
    %7755 = vxpose.xlu0.b32.cont [3/16] %v7541, 128
    %7756 = vxpose.xlu0.b32.cont [4/16] %v7546, 128
    %7757 = vxpose.xlu0.b32.cont [5/16] %v7551, 128
    %7758 = vxpose.xlu0.b32.cont [6/16] %v7556, 128
    %7759 = vxpose.xlu0.b32.cont [7/16] %v7561, 128
    %7760 = vxpose.xlu0.b32.cont [8/16] %v7566, 128
    %7761 = vxpose.xlu0.b32.cont [9/16] %v7571, 128
    %7762 = vxpose.xlu0.b32.cont [10/16] %v7576, 128
    %7763 = vxpose.xlu0.b32.cont [11/16] %v7581, 128
    %7764 = vxpose.xlu0.b32.cont [12/16] %v7586, 128
    %7765 = vxpose.xlu0.b32.cont [13/16] %v7591, 128
    %7766 = vxpose.xlu0.b32.cont [14/16] %v7596, 128
    %7767 = vxpose.xlu0.b32.cont [15/16] %v7601, 128
    %7768 = vxpose.xlu0.b32.end [16/16] %v7606, 128
    %v7769 = vpop.trf.xlu0
    %v7770 = vpop.trf.xlu0
    %v7771 = vpop.trf.xlu0
    %v7772 = vpop.trf.xlu0
    %v7773 = vpop.trf.xlu0
    %v7774 = vpop.trf.xlu0
    %v7775 = vpop.trf.xlu0
    %v7776 = vpop.trf.xlu0
    %v7777 = vpop.trf.xlu0
    %v7778 = vpop.trf.xlu0
    %v7779 = vpop.trf.xlu0
    %v7780 = vpop.trf.xlu0
    %v7781 = vpop.trf.xlu0
    %v7782 = vpop.trf.xlu0
    %v7783 = vpop.trf.xlu0
    %v7784 = vpop.trf.xlu0
    %7785 = vxpose.xlu0.b32.start [1/16] %v7611, 128
    %7786 = vxpose.xlu0.b32.cont [2/16] %v7616, 128
    %7787 = vxpose.xlu0.b32.cont [3/16] %v7621, 128
    %7788 = vxpose.xlu0.b32.cont [4/16] %v7626, 128
    %7789 = vxpose.xlu0.b32.cont [5/16] %v7631, 128
    %7790 = vxpose.xlu0.b32.cont [6/16] %v7636, 128
    %7791 = vxpose.xlu0.b32.cont [7/16] %v7641, 128
    %7792 = vxpose.xlu0.b32.cont [8/16] %v7646, 128
    %7793 = vxpose.xlu0.b32.cont [9/16] %v7651, 128
    %7794 = vxpose.xlu0.b32.cont [10/16] %v7656, 128
    %7795 = vxpose.xlu0.b32.cont [11/16] %v7661, 128
    %7796 = vxpose.xlu0.b32.cont [12/16] %v7666, 128
    %7797 = vxpose.xlu0.b32.cont [13/16] %v7671, 128
    %7798 = vxpose.xlu0.b32.cont [14/16] %v7676, 128
    %7799 = vxpose.xlu0.b32.cont [15/16] %v7681, 128
    %7800 = vxpose.xlu0.b32.end [16/16] %v7686, 128
    %v7801 = vpop.trf.xlu0
    %v7802 = vpop.trf.xlu0
    %v7803 = vpop.trf.xlu0
    %v7804 = vpop.trf.xlu0
    %v7805 = vpop.trf.xlu0
    %v7806 = vpop.trf.xlu0
    %v7807 = vpop.trf.xlu0
    %v7808 = vpop.trf.xlu0
    %v7809 = vpop.trf.xlu0
    %v7810 = vpop.trf.xlu0
    %v7811 = vpop.trf.xlu0
    %v7812 = vpop.trf.xlu0
    %v7813 = vpop.trf.xlu0
    %v7814 = vpop.trf.xlu0
    %v7815 = vpop.trf.xlu0
    %v7816 = vpop.trf.xlu0
    %7818 = vset.pattern.permute.xlu0 0
    %7819 = vperm.xlu0 %7818, %v6980
    %v7820 = vpop.permute.xlu0 %7819
    %7823 = vset.pattern.permute.xlu0 0
    %7824 = vperm.xlu0 %7823, %v6981
    %v7825 = vpop.permute.xlu0 %7824
    %7828 = vset.pattern.permute.xlu0 0
    %7829 = vperm.xlu0 %7828, %v6982
    %v7830 = vpop.permute.xlu0 %7829
    %7833 = vset.pattern.permute.xlu0 0
    %7834 = vperm.xlu0 %7833, %v6983
    %v7835 = vpop.permute.xlu0 %7834
    %v7837 = vadd.f32 %v7705, %v7820
    %v7838 = vadd.f32 %v7737, %v7820
    %v7839 = vadd.f32 %v7706, %v7825
    %v7840 = vadd.f32 %v7738, %v7825
    %v7841 = vadd.f32 %v7707, %v7830
    %v7842 = vadd.f32 %v7739, %v7830
    %v7843 = vadd.f32 %v7708, %v7835
    %v7844 = vadd.f32 %v7740, %v7835
    %v7845 = vadd.f32 %v7769, %v7820
    %v7846 = vadd.f32 %v7801, %v7820
    %v7847 = vadd.f32 %v7770, %v7825
    %v7848 = vadd.f32 %v7802, %v7825
    %v7849 = vadd.f32 %v7771, %v7830
    %v7850 = vadd.f32 %v7803, %v7830
    %v7851 = vadd.f32 %v7772, %v7835
    %v7852 = vadd.f32 %v7804, %v7835
    %v7853 = vtanh.pop %v7837
    %v7854 = vtanh.pop %v7838
    %v7855 = vtanh.pop %v7839
    %v7856 = vtanh.pop %v7840
    %v7857 = vtanh.pop %v7841
    %v7858 = vtanh.pop %v7842
    %v7859 = vtanh.pop %v7843
    %v7860 = vtanh.pop %v7844
    %v7861 = vtanh.pop %v7845
    %v7862 = vtanh.pop %v7846
    %v7863 = vtanh.pop %v7847
    %v7864 = vtanh.pop %v7848
    %v7865 = vtanh.pop %v7849
    %v7866 = vtanh.pop %v7850
    %v7867 = vtanh.pop %v7851
    %v7868 = vtanh.pop %v7852
    %7869 = vxpose.xlu0.b32.start [1/16] %v7853, 128
    %7870 = vxpose.xlu0.b32.cont [2/16] %v7855, 128
    %7871 = vxpose.xlu0.b32.cont [3/16] %v7857, 128
    %7872 = vxpose.xlu0.b32.cont [4/16] %v7859, 128
    %7873 = vxpose.xlu0.b32.cont [5/16] 0.0, 128
    %7874 = vxpose.xlu0.b32.cont [6/16] 0.0, 128
    %7875 = vxpose.xlu0.b32.cont [7/16] 0.0, 128
    %7876 = vxpose.xlu0.b32.cont [8/16] 0.0, 128
    %7877 = vxpose.xlu0.b32.cont [9/16] 0.0, 128
    %7878 = vxpose.xlu0.b32.cont [10/16] 0.0, 128
    %7879 = vxpose.xlu0.b32.cont [11/16] 0.0, 128
    %7880 = vxpose.xlu0.b32.cont [12/16] 0.0, 128
    %7881 = vxpose.xlu0.b32.cont [13/16] 0.0, 128
    %7882 = vxpose.xlu0.b32.cont [14/16] 0.0, 128
    %7883 = vxpose.xlu0.b32.cont [15/16] 0.0, 128
    %7884 = vxpose.xlu0.b32.end [16/16] 0.0, 128
    %v7885 = vpop.trf.xlu0
    %v7886 = vpop.trf.xlu0
    %v7887 = vpop.trf.xlu0
    %v7888 = vpop.trf.xlu0
    %v7889 = vpop.trf.xlu0
    %v7890 = vpop.trf.xlu0
    %v7891 = vpop.trf.xlu0
    %v7892 = vpop.trf.xlu0
    %v7893 = vpop.trf.xlu0
    %v7894 = vpop.trf.xlu0
    %v7895 = vpop.trf.xlu0
    %v7896 = vpop.trf.xlu0
    %v7897 = vpop.trf.xlu0
    %v7898 = vpop.trf.xlu0
    %v7899 = vpop.trf.xlu0
    %v7900 = vpop.trf.xlu0
    %7901 = vxpose.xlu0.b32.start [1/16] %v7854, 128
    %7902 = vxpose.xlu0.b32.cont [2/16] %v7856, 128
    %7903 = vxpose.xlu0.b32.cont [3/16] %v7858, 128
    %7904 = vxpose.xlu0.b32.cont [4/16] %v7860, 128
    %7905 = vxpose.xlu0.b32.cont [5/16] 0.0, 128
    %7906 = vxpose.xlu0.b32.cont [6/16] 0.0, 128
    %7907 = vxpose.xlu0.b32.cont [7/16] 0.0, 128
    %7908 = vxpose.xlu0.b32.cont [8/16] 0.0, 128
    %7909 = vxpose.xlu0.b32.cont [9/16] 0.0, 128
    %7910 = vxpose.xlu0.b32.cont [10/16] 0.0, 128
    %7911 = vxpose.xlu0.b32.cont [11/16] 0.0, 128
    %7912 = vxpose.xlu0.b32.cont [12/16] 0.0, 128
    %7913 = vxpose.xlu0.b32.cont [13/16] 0.0, 128
    %7914 = vxpose.xlu0.b32.cont [14/16] 0.0, 128
    %7915 = vxpose.xlu0.b32.cont [15/16] 0.0, 128
    %7916 = vxpose.xlu0.b32.end [16/16] 0.0, 128
    %v7917 = vpop.trf.xlu0
    %v7918 = vpop.trf.xlu0
    %v7919 = vpop.trf.xlu0
    %v7920 = vpop.trf.xlu0
    %v7921 = vpop.trf.xlu0
    %v7922 = vpop.trf.xlu0
    %v7923 = vpop.trf.xlu0
    %v7924 = vpop.trf.xlu0
    %v7925 = vpop.trf.xlu0
    %v7926 = vpop.trf.xlu0
    %v7927 = vpop.trf.xlu0
    %v7928 = vpop.trf.xlu0
    %v7929 = vpop.trf.xlu0
    %v7930 = vpop.trf.xlu0
    %v7931 = vpop.trf.xlu0
    %v7932 = vpop.trf.xlu0
    %7933 = vxpose.xlu0.b32.start [1/16] %v7861, 128
    %7934 = vxpose.xlu0.b32.cont [2/16] %v7863, 128
    %7935 = vxpose.xlu0.b32.cont [3/16] %v7865, 128
    %7936 = vxpose.xlu0.b32.cont [4/16] %v7867, 128
    %7937 = vxpose.xlu0.b32.cont [5/16] 0.0, 128
    %7938 = vxpose.xlu0.b32.cont [6/16] 0.0, 128
    %7939 = vxpose.xlu0.b32.cont [7/16] 0.0, 128
    %7940 = vxpose.xlu0.b32.cont [8/16] 0.0, 128
    %7941 = vxpose.xlu0.b32.cont [9/16] 0.0, 128
    %7942 = vxpose.xlu0.b32.cont [10/16] 0.0, 128
    %7943 = vxpose.xlu0.b32.cont [11/16] 0.0, 128
    %7944 = vxpose.xlu0.b32.cont [12/16] 0.0, 128
    %7945 = vxpose.xlu0.b32.cont [13/16] 0.0, 128
    %7946 = vxpose.xlu0.b32.cont [14/16] 0.0, 128
    %7947 = vxpose.xlu0.b32.cont [15/16] 0.0, 128
    %7948 = vxpose.xlu0.b32.end [16/16] 0.0, 128
    %v7949 = vpop.trf.xlu0
    %v7950 = vpop.trf.xlu0
    %v7951 = vpop.trf.xlu0
    %v7952 = vpop.trf.xlu0
    %v7953 = vpop.trf.xlu0
    %v7954 = vpop.trf.xlu0
    %v7955 = vpop.trf.xlu0
    %v7956 = vpop.trf.xlu0
    %v7957 = vpop.trf.xlu0
    %v7958 = vpop.trf.xlu0
    %v7959 = vpop.trf.xlu0
    %v7960 = vpop.trf.xlu0
    %v7961 = vpop.trf.xlu0
    %v7962 = vpop.trf.xlu0
    %v7963 = vpop.trf.xlu0
    %v7964 = vpop.trf.xlu0
    %7965 = vxpose.xlu0.b32.start [1/16] %v7862, 128
    %7966 = vxpose.xlu0.b32.cont [2/16] %v7864, 128
    %7967 = vxpose.xlu0.b32.cont [3/16] %v7866, 128
    %7968 = vxpose.xlu0.b32.cont [4/16] %v7868, 128
    %7969 = vxpose.xlu0.b32.cont [5/16] 0.0, 128
    %7970 = vxpose.xlu0.b32.cont [6/16] 0.0, 128
    %7971 = vxpose.xlu0.b32.cont [7/16] 0.0, 128
    %7972 = vxpose.xlu0.b32.cont [8/16] 0.0, 128
    %7973 = vxpose.xlu0.b32.cont [9/16] 0.0, 128
    %7974 = vxpose.xlu0.b32.cont [10/16] 0.0, 128
    %7975 = vxpose.xlu0.b32.cont [11/16] 0.0, 128
    %7976 = vxpose.xlu0.b32.cont [12/16] 0.0, 128
    %7977 = vxpose.xlu0.b32.cont [13/16] 0.0, 128
    %7978 = vxpose.xlu0.b32.cont [14/16] 0.0, 128
    %7979 = vxpose.xlu0.b32.cont [15/16] 0.0, 128
    %7980 = vxpose.xlu0.b32.end [16/16] 0.0, 128
    %v7981 = vpop.trf.xlu0
    %v7982 = vpop.trf.xlu0
    %v7983 = vpop.trf.xlu0
    %v7984 = vpop.trf.xlu0
    %v7985 = vpop.trf.xlu0
    %v7986 = vpop.trf.xlu0
    %v7987 = vpop.trf.xlu0
    %v7988 = vpop.trf.xlu0
    %v7989 = vpop.trf.xlu0
    %v7990 = vpop.trf.xlu0
    %v7991 = vpop.trf.xlu0
    %v7992 = vpop.trf.xlu0
    %v7993 = vpop.trf.xlu0
    %v7994 = vpop.trf.xlu0
    %v7995 = vpop.trf.xlu0
    %v7996 = vpop.trf.xlu0
    %v7998 = vsel %vm1057, %v7885, 0
    %v8001 = vsel %vm1057, %v7886, 0
    %v8004 = vsel %vm1057, %v7887, 0
    %v8007 = vsel %vm1057, %v7888, 0
    %v8010 = vsel %vm1057, %v7889, 0
    %v8013 = vsel %vm1057, %v7890, 0
    %v8016 = vsel %vm1057, %v7891, 0
    %v8019 = vsel %vm1057, %v7892, 0
    %v8022 = vsel %vm1057, %v7893, 0
    %v8025 = vsel %vm1057, %v7894, 0
    %v8028 = vsel %vm1057, %v7895, 0
    %v8031 = vsel %vm1057, %v7896, 0
    %v8034 = vsel %vm1057, %v7897, 0
    %v8037 = vsel %vm1057, %v7898, 0
    %v8040 = vsel %vm1057, %v7899, 0
    %v8043 = vsel %vm1057, %v7900, 0
    %v8046 = vsel %vm1057, %v7917, 0
    %v8049 = vsel %vm1057, %v7918, 0
    %v8052 = vsel %vm1057, %v7919, 0
    %v8055 = vsel %vm1057, %v7920, 0
    %v8058 = vsel %vm1057, %v7921, 0
    %v8061 = vsel %vm1057, %v7922, 0
    %v8064 = vsel %vm1057, %v7923, 0
    %v8067 = vsel %vm1057, %v7924, 0
    %v8070 = vsel %vm1057, %v7925, 0
    %v8073 = vsel %vm1057, %v7926, 0
    %v8076 = vsel %vm1057, %v7927, 0
    %v8079 = vsel %vm1057, %v7928, 0
    %v8082 = vsel %vm1057, %v7929, 0
    %v8085 = vsel %vm1057, %v7930, 0
    %v8088 = vsel %vm1057, %v7931, 0
    %v8091 = vsel %vm1057, %v7932, 0
    %v8094 = vsel %vm1057, %v7949, 0
    %v8097 = vsel %vm1057, %v7950, 0
    %v8100 = vsel %vm1057, %v7951, 0
    %v8103 = vsel %vm1057, %v7952, 0
    %v8106 = vsel %vm1057, %v7953, 0
    %v8109 = vsel %vm1057, %v7954, 0
    %v8112 = vsel %vm1057, %v7955, 0
    %v8115 = vsel %vm1057, %v7956, 0
    %v8118 = vsel %vm1057, %v7957, 0
    %v8121 = vsel %vm1057, %v7958, 0
    %v8124 = vsel %vm1057, %v7959, 0
    %v8127 = vsel %vm1057, %v7960, 0
    %v8130 = vsel %vm1057, %v7961, 0
    %v8133 = vsel %vm1057, %v7962, 0
    %v8136 = vsel %vm1057, %v7963, 0
    %v8139 = vsel %vm1057, %v7964, 0
    %v8142 = vsel %vm1057, %v7981, 0
    %v8145 = vsel %vm1057, %v7982, 0
    %v8148 = vsel %vm1057, %v7983, 0
    %v8151 = vsel %vm1057, %v7984, 0
    %v8154 = vsel %vm1057, %v7985, 0
    %v8157 = vsel %vm1057, %v7986, 0
    %v8160 = vsel %vm1057, %v7987, 0
    %v8163 = vsel %vm1057, %v7988, 0
    %v8166 = vsel %vm1057, %v7989, 0
    %v8169 = vsel %vm1057, %v7990, 0
    %v8172 = vsel %vm1057, %v7991, 0
    %v8175 = vsel %vm1057, %v7992, 0
    %v8178 = vsel %vm1057, %v7993, 0
    %v8181 = vsel %vm1057, %v7994, 0
    %v8184 = vsel %vm1057, %v7995, 0
    %v8187 = vsel %vm1057, %v7996, 0
    %8189 = vmatprep.subr.mxu0 0.0
    %8190 = vmatpush1.xpose.msra.mxu0 %v1251
    %8191 = vmatprep.subr.mxu0 0.0
    %8192 = vmatpush1.xpose.msra.mxu0 0.0
    %8193 = vmatprep.subr.mxu0 0.0
    %8194 = vmatpush1.xpose.msra.mxu0 0.0
    %8195 = vmatprep.subr.mxu0 0.0
    %8196 = vmatpush1.xpose.msra.mxu0 0.0
    %8197 = vmatprep.subr.mxu0 0.0
    %8198 = vmatpush1.xpose.msra.mxu0 0.0
    %8199 = vmatprep.subr.mxu0 0.0
    %8200 = vmatpush1.xpose.msra.mxu0 0.0
    %8201 = vmatprep.subr.mxu0 0.0
    %8202 = vmatpush1.xpose.msra.mxu0 0.0
    %8203 = vmatprep.subr.mxu0 0.0
    %8204 = vmatpush1.xpose.msra.mxu0 0.0
    %8205 = vmatprep.subr.mxu0 0.0
    %8206 = vmatpush1.xpose.msra.mxu0 0.0
    %8207 = vmatprep.subr.mxu0 0.0
    %8208 = vmatpush1.xpose.msra.mxu0 0.0
    %8209 = vmatprep.subr.mxu0 0.0
    %8210 = vmatpush1.xpose.msra.mxu0 0.0
    %8211 = vmatprep.subr.mxu0 0.0
    %8212 = vmatpush1.xpose.msra.mxu0 0.0
    %8213 = vmatprep.subr.mxu0 0.0
    %8214 = vmatpush1.xpose.msra.mxu0 0.0
    %8215 = vmatprep.subr.mxu0 0.0
    %8216 = vmatpush1.xpose.msra.mxu0 0.0
    %8217 = vmatprep.subr.mxu0 0.0
    %8218 = vmatpush1.xpose.msra.mxu0 0.0
    %8219 = vmatprep.subr.mxu0 0.0
    %8220 = vmatpush1.xpose.msra.mxu0 0.0
    %8221 = vmatprep.subr.mxu0 0.0
    %8222 = vmatpush1.xpose.msra.mxu0 0.0
    %8223 = vmatprep.subr.mxu0 0.0
    %8224 = vmatpush1.xpose.msra.mxu0 0.0
    %8225 = vmatprep.subr.mxu0 0.0
    %8226 = vmatpush1.xpose.msra.mxu0 0.0
    %8227 = vmatprep.subr.mxu0 0.0
    %8228 = vmatpush1.xpose.msra.mxu0 0.0
    %8229 = vmatprep.subr.mxu0 0.0
    %8230 = vmatpush1.xpose.msra.mxu0 0.0
    %8231 = vmatprep.subr.mxu0 0.0
    %8232 = vmatpush1.xpose.msra.mxu0 0.0
    %8233 = vmatprep.subr.mxu0 0.0
    %8234 = vmatpush1.xpose.msra.mxu0 0.0
    %8235 = vmatprep.subr.mxu0 0.0
    %8236 = vmatpush1.xpose.msra.mxu0 0.0
    %8237 = vmatprep.subr.mxu0 0.0
    %8238 = vmatpush1.xpose.msra.mxu0 0.0
    %8239 = vmatprep.subr.mxu0 0.0
    %8240 = vmatpush1.xpose.msra.mxu0 0.0
    %8241 = vmatprep.subr.mxu0 0.0
    %8242 = vmatpush1.xpose.msra.mxu0 0.0
    %8243 = vmatprep.subr.mxu0 0.0
    %8244 = vmatpush1.xpose.msra.mxu0 0.0
    %8245 = vmatprep.subr.mxu0 0.0
    %8246 = vmatpush1.xpose.msra.mxu0 0.0
    %8247 = vmatprep.subr.mxu0 0.0
    %8248 = vmatpush1.xpose.msra.mxu0 0.0
    %8249 = vmatprep.subr.mxu0 0.0
    %8250 = vmatpush1.xpose.msra.mxu0 0.0
    %8251 = vmatprep.subr.mxu0 0.0
    %8252 = vmatpush1.xpose.msra.mxu0 0.0
    %8253 = vmatprep.mubr.f32.mxu0 0.0
    %8254 = vmatmul.mubr.f32.gmra.mrb[0].mxu0 %v7998
    %v8255 = vpop.f32.mrb[0].mxu0
    %v8256 = vadd.f32 0.0, %v8255
    %v8257 = vpop.f32.mrb[0].mxu0
    %8258 = vmatprep.mubr.f32.mxu0 0.0
    %8259 = vmatmul.mubr.f32.gmra.mrb[0].mxu0 %v8001
    %v8260 = vpop.f32.mrb[0].mxu0
    %v8261 = vadd.f32 0.0, %v8260
    %v8262 = vpop.f32.mrb[0].mxu0
    %8263 = vmatprep.mubr.f32.mxu0 0.0
    %8264 = vmatmul.mubr.f32.gmra.mrb[0].mxu0 %v8004
    %v8265 = vpop.f32.mrb[0].mxu0
    %v8266 = vadd.f32 0.0, %v8265
    %v8267 = vpop.f32.mrb[0].mxu0
    %8268 = vmatprep.mubr.f32.mxu0 0.0
    %8269 = vmatmul.mubr.f32.gmra.mrb[0].mxu0 %v8007
    %v8270 = vpop.f32.mrb[0].mxu0
    %v8271 = vadd.f32 0.0, %v8270
    %v8272 = vpop.f32.mrb[0].mxu0
    %8273 = vmatprep.mubr.f32.mxu0 0.0
    %8274 = vmatmul.mubr.f32.gmra.mrb[0].mxu0 %v8010
    %v8275 = vpop.f32.mrb[0].mxu0
    %v8276 = vadd.f32 0.0, %v8275
    %v8277 = vpop.f32.mrb[0].mxu0
    %8278 = vmatprep.mubr.f32.mxu0 0.0
    %8279 = vmatmul.mubr.f32.gmra.mrb[0].mxu0 %v8013
    %v8280 = vpop.f32.mrb[0].mxu0
    %v8281 = vadd.f32 0.0, %v8280
    %v8282 = vpop.f32.mrb[0].mxu0
    %8283 = vmatprep.mubr.f32.mxu0 0.0
    %8284 = vmatmul.mubr.f32.gmra.mrb[0].mxu0 %v8016
    %v8285 = vpop.f32.mrb[0].mxu0
    %v8286 = vadd.f32 0.0, %v8285
    %v8287 = vpop.f32.mrb[0].mxu0
    %8288 = vmatprep.mubr.f32.mxu0 0.0
    %8289 = vmatmul.mubr.f32.gmra.mrb[0].mxu0 %v8019
    %v8290 = vpop.f32.mrb[0].mxu0
    %v8291 = vadd.f32 0.0, %v8290
    %v8292 = vpop.f32.mrb[0].mxu0
    %8293 = vmatprep.mubr.f32.mxu0 0.0
    %8294 = vmatmul.mubr.f32.gmra.mrb[0].mxu0 %v8022
    %v8295 = vpop.f32.mrb[0].mxu0
    %v8296 = vadd.f32 0.0, %v8295
    %v8297 = vpop.f32.mrb[0].mxu0
    %8298 = vmatprep.mubr.f32.mxu0 0.0
    %8299 = vmatmul.mubr.f32.gmra.mrb[0].mxu0 %v8025
    %v8300 = vpop.f32.mrb[0].mxu0
    %v8301 = vadd.f32 0.0, %v8300
    %v8302 = vpop.f32.mrb[0].mxu0
    %8303 = vmatprep.mubr.f32.mxu0 0.0
    %8304 = vmatmul.mubr.f32.gmra.mrb[0].mxu0 %v8028
    %v8305 = vpop.f32.mrb[0].mxu0
    %v8306 = vadd.f32 0.0, %v8305
    %v8307 = vpop.f32.mrb[0].mxu0
    %8308 = vmatprep.mubr.f32.mxu0 0.0
    %8309 = vmatmul.mubr.f32.gmra.mrb[0].mxu0 %v8031
    %v8310 = vpop.f32.mrb[0].mxu0
    %v8311 = vadd.f32 0.0, %v8310
    %v8312 = vpop.f32.mrb[0].mxu0
    %8313 = vmatprep.mubr.f32.mxu0 0.0
    %8314 = vmatmul.mubr.f32.gmra.mrb[0].mxu0 %v8034
    %v8315 = vpop.f32.mrb[0].mxu0
    %v8316 = vadd.f32 0.0, %v8315
    %v8317 = vpop.f32.mrb[0].mxu0
    %8318 = vmatprep.mubr.f32.mxu0 0.0
    %8319 = vmatmul.mubr.f32.gmra.mrb[0].mxu0 %v8037
    %v8320 = vpop.f32.mrb[0].mxu0
    %v8321 = vadd.f32 0.0, %v8320
    %v8322 = vpop.f32.mrb[0].mxu0
    %8323 = vmatprep.mubr.f32.mxu0 0.0
    %8324 = vmatmul.mubr.f32.gmra.mrb[0].mxu0 %v8040
    %v8325 = vpop.f32.mrb[0].mxu0
    %v8326 = vadd.f32 0.0, %v8325
    %v8327 = vpop.f32.mrb[0].mxu0
    %8328 = vmatprep.mubr.f32.mxu0 0.0
    %8329 = vmatmul.mubr.f32.gmra.mrb[0].mxu0 %v8043
    %v8330 = vpop.f32.mrb[0].mxu0
    %v8331 = vadd.f32 0.0, %v8330
    %v8332 = vpop.f32.mrb[0].mxu0
    %8333 = vmatprep.mubr.f32.mxu0 0.0
    %8334 = vmatmul.mubr.f32.gmra.mrb[0].mxu0 %v8046
    %v8335 = vpop.f32.mrb[0].mxu0
    %v8336 = vadd.f32 0.0, %v8335
    %v8337 = vpop.f32.mrb[0].mxu0
    %8338 = vmatprep.mubr.f32.mxu0 0.0
    %8339 = vmatmul.mubr.f32.gmra.mrb[0].mxu0 %v8049
    %v8340 = vpop.f32.mrb[0].mxu0
    %v8341 = vadd.f32 0.0, %v8340
    %v8342 = vpop.f32.mrb[0].mxu0
    %8343 = vmatprep.mubr.f32.mxu0 0.0
    %8344 = vmatmul.mubr.f32.gmra.mrb[0].mxu0 %v8052
    %v8345 = vpop.f32.mrb[0].mxu0
    %v8346 = vadd.f32 0.0, %v8345
    %v8347 = vpop.f32.mrb[0].mxu0
    %8348 = vmatprep.mubr.f32.mxu0 0.0
    %8349 = vmatmul.mubr.f32.gmra.mrb[0].mxu0 %v8055
    %v8350 = vpop.f32.mrb[0].mxu0
    %v8351 = vadd.f32 0.0, %v8350
    %v8352 = vpop.f32.mrb[0].mxu0
    %8353 = vmatprep.mubr.f32.mxu0 0.0
    %8354 = vmatmul.mubr.f32.gmra.mrb[0].mxu0 %v8058
    %v8355 = vpop.f32.mrb[0].mxu0
    %v8356 = vadd.f32 0.0, %v8355
    %v8357 = vpop.f32.mrb[0].mxu0
    %8358 = vmatprep.mubr.f32.mxu0 0.0
    %8359 = vmatmul.mubr.f32.gmra.mrb[0].mxu0 %v8061
    %v8360 = vpop.f32.mrb[0].mxu0
    %v8361 = vadd.f32 0.0, %v8360
    %v8362 = vpop.f32.mrb[0].mxu0
    %8363 = vmatprep.mubr.f32.mxu0 0.0
    %8364 = vmatmul.mubr.f32.gmra.mrb[0].mxu0 %v8064
    %v8365 = vpop.f32.mrb[0].mxu0
    %v8366 = vadd.f32 0.0, %v8365
    %v8367 = vpop.f32.mrb[0].mxu0
    %8368 = vmatprep.mubr.f32.mxu0 0.0
    %8369 = vmatmul.mubr.f32.gmra.mrb[0].mxu0 %v8067
    %v8370 = vpop.f32.mrb[0].mxu0
    %v8371 = vadd.f32 0.0, %v8370
    %v8372 = vpop.f32.mrb[0].mxu0
    %8373 = vmatprep.mubr.f32.mxu0 0.0
    %8374 = vmatmul.mubr.f32.gmra.mrb[0].mxu0 %v8070
    %v8375 = vpop.f32.mrb[0].mxu0
    %v8376 = vadd.f32 0.0, %v8375
    %v8377 = vpop.f32.mrb[0].mxu0
    %8378 = vmatprep.mubr.f32.mxu0 0.0
    %8379 = vmatmul.mubr.f32.gmra.mrb[0].mxu0 %v8073
    %v8380 = vpop.f32.mrb[0].mxu0
    %v8381 = vadd.f32 0.0, %v8380
    %v8382 = vpop.f32.mrb[0].mxu0
    %8383 = vmatprep.mubr.f32.mxu0 0.0
    %8384 = vmatmul.mubr.f32.gmra.mrb[0].mxu0 %v8076
    %v8385 = vpop.f32.mrb[0].mxu0
    %v8386 = vadd.f32 0.0, %v8385
    %v8387 = vpop.f32.mrb[0].mxu0
    %8388 = vmatprep.mubr.f32.mxu0 0.0
    %8389 = vmatmul.mubr.f32.gmra.mrb[0].mxu0 %v8079
    %v8390 = vpop.f32.mrb[0].mxu0
    %v8391 = vadd.f32 0.0, %v8390
    %v8392 = vpop.f32.mrb[0].mxu0
    %8393 = vmatprep.mubr.f32.mxu0 0.0
    %8394 = vmatmul.mubr.f32.gmra.mrb[0].mxu0 %v8082
    %v8395 = vpop.f32.mrb[0].mxu0
    %v8396 = vadd.f32 0.0, %v8395
    %v8397 = vpop.f32.mrb[0].mxu0
    %8398 = vmatprep.mubr.f32.mxu0 0.0
    %8399 = vmatmul.mubr.f32.gmra.mrb[0].mxu0 %v8085
    %v8400 = vpop.f32.mrb[0].mxu0
    %v8401 = vadd.f32 0.0, %v8400
    %v8402 = vpop.f32.mrb[0].mxu0
    %8403 = vmatprep.mubr.f32.mxu0 0.0
    %8404 = vmatmul.mubr.f32.gmra.mrb[0].mxu0 %v8088
    %v8405 = vpop.f32.mrb[0].mxu0
    %v8406 = vadd.f32 0.0, %v8405
    %v8407 = vpop.f32.mrb[0].mxu0
    %8408 = vmatprep.mubr.f32.mxu0 0.0
    %8409 = vmatmul.mubr.f32.gmra.mrb[0].mxu0 %v8091
    %v8410 = vpop.f32.mrb[0].mxu0
    %v8411 = vadd.f32 0.0, %v8410
    %v8412 = vpop.f32.mrb[0].mxu0
    %8413 = vmatprep.mubr.f32.mxu0 0.0
    %8414 = vmatmul.mubr.f32.gmra.mrb[0].mxu0 %v8094
    %v8415 = vpop.f32.mrb[0].mxu0
    %v8416 = vadd.f32 0.0, %v8415
    %v8417 = vpop.f32.mrb[0].mxu0
    %8418 = vmatprep.mubr.f32.mxu0 0.0
    %8419 = vmatmul.mubr.f32.gmra.mrb[0].mxu0 %v8097
    %v8420 = vpop.f32.mrb[0].mxu0
    %v8421 = vadd.f32 0.0, %v8420
    %v8422 = vpop.f32.mrb[0].mxu0
    %8423 = vmatprep.mubr.f32.mxu0 0.0
    %8424 = vmatmul.mubr.f32.gmra.mrb[0].mxu0 %v8100
    %v8425 = vpop.f32.mrb[0].mxu0
    %v8426 = vadd.f32 0.0, %v8425
    %v8427 = vpop.f32.mrb[0].mxu0
    %8428 = vmatprep.mubr.f32.mxu0 0.0
    %8429 = vmatmul.mubr.f32.gmra.mrb[0].mxu0 %v8103
    %v8430 = vpop.f32.mrb[0].mxu0
    %v8431 = vadd.f32 0.0, %v8430
    %v8432 = vpop.f32.mrb[0].mxu0
    %8433 = vmatprep.mubr.f32.mxu0 0.0
    %8434 = vmatmul.mubr.f32.gmra.mrb[0].mxu0 %v8106
    %v8435 = vpop.f32.mrb[0].mxu0
    %v8436 = vadd.f32 0.0, %v8435
    %v8437 = vpop.f32.mrb[0].mxu0
    %8438 = vmatprep.mubr.f32.mxu0 0.0
    %8439 = vmatmul.mubr.f32.gmra.mrb[0].mxu0 %v8109
    %v8440 = vpop.f32.mrb[0].mxu0
    %v8441 = vadd.f32 0.0, %v8440
    %v8442 = vpop.f32.mrb[0].mxu0
    %8443 = vmatprep.mubr.f32.mxu0 0.0
    %8444 = vmatmul.mubr.f32.gmra.mrb[0].mxu0 %v8112
    %v8445 = vpop.f32.mrb[0].mxu0
    %v8446 = vadd.f32 0.0, %v8445
    %v8447 = vpop.f32.mrb[0].mxu0
    %8448 = vmatprep.mubr.f32.mxu0 0.0
    %8449 = vmatmul.mubr.f32.gmra.mrb[0].mxu0 %v8115
    %v8450 = vpop.f32.mrb[0].mxu0
    %v8451 = vadd.f32 0.0, %v8450
    %v8452 = vpop.f32.mrb[0].mxu0
    %8453 = vmatprep.mubr.f32.mxu0 0.0
    %8454 = vmatmul.mubr.f32.gmra.mrb[0].mxu0 %v8118
    %v8455 = vpop.f32.mrb[0].mxu0
    %v8456 = vadd.f32 0.0, %v8455
    %v8457 = vpop.f32.mrb[0].mxu0
    %8458 = vmatprep.mubr.f32.mxu0 0.0
    %8459 = vmatmul.mubr.f32.gmra.mrb[0].mxu0 %v8121
    %v8460 = vpop.f32.mrb[0].mxu0
    %v8461 = vadd.f32 0.0, %v8460
    %v8462 = vpop.f32.mrb[0].mxu0
    %8463 = vmatprep.mubr.f32.mxu0 0.0
    %8464 = vmatmul.mubr.f32.gmra.mrb[0].mxu0 %v8124
    %v8465 = vpop.f32.mrb[0].mxu0
    %v8466 = vadd.f32 0.0, %v8465
    %v8467 = vpop.f32.mrb[0].mxu0
    %8468 = vmatprep.mubr.f32.mxu0 0.0
    %8469 = vmatmul.mubr.f32.gmra.mrb[0].mxu0 %v8127
    %v8470 = vpop.f32.mrb[0].mxu0
    %v8471 = vadd.f32 0.0, %v8470
    %v8472 = vpop.f32.mrb[0].mxu0
    %8473 = vmatprep.mubr.f32.mxu0 0.0
    %8474 = vmatmul.mubr.f32.gmra.mrb[0].mxu0 %v8130
    %v8475 = vpop.f32.mrb[0].mxu0
    %v8476 = vadd.f32 0.0, %v8475
    %v8477 = vpop.f32.mrb[0].mxu0
    %8478 = vmatprep.mubr.f32.mxu0 0.0
    %8479 = vmatmul.mubr.f32.gmra.mrb[0].mxu0 %v8133
    %v8480 = vpop.f32.mrb[0].mxu0
    %v8481 = vadd.f32 0.0, %v8480
    %v8482 = vpop.f32.mrb[0].mxu0
    %8483 = vmatprep.mubr.f32.mxu0 0.0
    %8484 = vmatmul.mubr.f32.gmra.mrb[0].mxu0 %v8136
    %v8485 = vpop.f32.mrb[0].mxu0
    %v8486 = vadd.f32 0.0, %v8485
    %v8487 = vpop.f32.mrb[0].mxu0
    %8488 = vmatprep.mubr.f32.mxu0 0.0
    %8489 = vmatmul.mubr.f32.gmra.mrb[0].mxu0 %v8139
    %v8490 = vpop.f32.mrb[0].mxu0
    %v8491 = vadd.f32 0.0, %v8490
    %v8492 = vpop.f32.mrb[0].mxu0
    %8493 = vmatprep.mubr.f32.mxu0 0.0
    %8494 = vmatmul.mubr.f32.gmra.mrb[0].mxu0 %v8142
    %v8495 = vpop.f32.mrb[0].mxu0
    %v8496 = vadd.f32 0.0, %v8495
    %v8497 = vpop.f32.mrb[0].mxu0
    %8498 = vmatprep.mubr.f32.mxu0 0.0
    %8499 = vmatmul.mubr.f32.gmra.mrb[0].mxu0 %v8145
    %v8500 = vpop.f32.mrb[0].mxu0
    %v8501 = vadd.f32 0.0, %v8500
    %v8502 = vpop.f32.mrb[0].mxu0
    %8503 = vmatprep.mubr.f32.mxu0 0.0
    %8504 = vmatmul.mubr.f32.gmra.mrb[0].mxu0 %v8148
    %v8505 = vpop.f32.mrb[0].mxu0
    %v8506 = vadd.f32 0.0, %v8505
    %v8507 = vpop.f32.mrb[0].mxu0
    %8508 = vmatprep.mubr.f32.mxu0 0.0
    %8509 = vmatmul.mubr.f32.gmra.mrb[0].mxu0 %v8151
    %v8510 = vpop.f32.mrb[0].mxu0
    %v8511 = vadd.f32 0.0, %v8510
    %v8512 = vpop.f32.mrb[0].mxu0
    %8513 = vmatprep.mubr.f32.mxu0 0.0
    %8514 = vmatmul.mubr.f32.gmra.mrb[0].mxu0 %v8154
    %v8515 = vpop.f32.mrb[0].mxu0
    %v8516 = vadd.f32 0.0, %v8515
    %v8517 = vpop.f32.mrb[0].mxu0
    %8518 = vmatprep.mubr.f32.mxu0 0.0
    %8519 = vmatmul.mubr.f32.gmra.mrb[0].mxu0 %v8157
    %v8520 = vpop.f32.mrb[0].mxu0
    %v8521 = vadd.f32 0.0, %v8520
    %v8522 = vpop.f32.mrb[0].mxu0
    %8523 = vmatprep.mubr.f32.mxu0 0.0
    %8524 = vmatmul.mubr.f32.gmra.mrb[0].mxu0 %v8160
    %v8525 = vpop.f32.mrb[0].mxu0
    %v8526 = vadd.f32 0.0, %v8525
    %v8527 = vpop.f32.mrb[0].mxu0
    %8528 = vmatprep.mubr.f32.mxu0 0.0
    %8529 = vmatmul.mubr.f32.gmra.mrb[0].mxu0 %v8163
    %v8530 = vpop.f32.mrb[0].mxu0
    %v8531 = vadd.f32 0.0, %v8530
    %v8532 = vpop.f32.mrb[0].mxu0
    %8533 = vmatprep.mubr.f32.mxu0 0.0
    %8534 = vmatmul.mubr.f32.gmra.mrb[0].mxu0 %v8166
    %v8535 = vpop.f32.mrb[0].mxu0
    %v8536 = vadd.f32 0.0, %v8535
    %v8537 = vpop.f32.mrb[0].mxu0
    %8538 = vmatprep.mubr.f32.mxu0 0.0
    %8539 = vmatmul.mubr.f32.gmra.mrb[0].mxu0 %v8169
    %v8540 = vpop.f32.mrb[0].mxu0
    %v8541 = vadd.f32 0.0, %v8540
    %v8542 = vpop.f32.mrb[0].mxu0
    %8543 = vmatprep.mubr.f32.mxu0 0.0
    %8544 = vmatmul.mubr.f32.gmra.mrb[0].mxu0 %v8172
    %v8545 = vpop.f32.mrb[0].mxu0
    %v8546 = vadd.f32 0.0, %v8545
    %v8547 = vpop.f32.mrb[0].mxu0
    %8548 = vmatprep.mubr.f32.mxu0 0.0
    %8549 = vmatmul.mubr.f32.gmra.mrb[0].mxu0 %v8175
    %v8550 = vpop.f32.mrb[0].mxu0
    %v8551 = vadd.f32 0.0, %v8550
    %v8552 = vpop.f32.mrb[0].mxu0
    %8553 = vmatprep.mubr.f32.mxu0 0.0
    %8554 = vmatmul.mubr.f32.gmra.mrb[0].mxu0 %v8178
    %v8555 = vpop.f32.mrb[0].mxu0
    %v8556 = vadd.f32 0.0, %v8555
    %v8557 = vpop.f32.mrb[0].mxu0
    %8558 = vmatprep.mubr.f32.mxu0 0.0
    %8559 = vmatmul.mubr.f32.gmra.mrb[0].mxu0 %v8181
    %v8560 = vpop.f32.mrb[0].mxu0
    %v8561 = vadd.f32 0.0, %v8560
    %v8562 = vpop.f32.mrb[0].mxu0
    %8563 = vmatprep.mubr.f32.mxu0 0.0
    %8564 = vmatmul.mubr.f32.gmra.mrb[0].mxu0 %v8184
    %v8565 = vpop.f32.mrb[0].mxu0
    %v8566 = vadd.f32 0.0, %v8565
    %v8567 = vpop.f32.mrb[0].mxu0
    %8568 = vmatprep.mubr.f32.mxu0 0.0
    %8569 = vmatmul.mubr.f32.gmra.mrb[0].mxu0 %v8187
    %v8570 = vpop.f32.mrb[0].mxu0
    %v8571 = vadd.f32 0.0, %v8570
    %v8572 = vpop.f32.mrb[0].mxu0
    %8573 = vdwg.mxu0
    %8574 = vxpose.xlu0.b32.start [1/16] %v8256, 128
    %8575 = vxpose.xlu0.b32.cont [2/16] %v8261, 128
    %8576 = vxpose.xlu0.b32.cont [3/16] %v8266, 128
    %8577 = vxpose.xlu0.b32.cont [4/16] %v8271, 128
    %8578 = vxpose.xlu0.b32.cont [5/16] %v8276, 128
    %8579 = vxpose.xlu0.b32.cont [6/16] %v8281, 128
    %8580 = vxpose.xlu0.b32.cont [7/16] %v8286, 128
    %8581 = vxpose.xlu0.b32.cont [8/16] %v8291, 128
    %8582 = vxpose.xlu0.b32.cont [9/16] %v8296, 128
    %8583 = vxpose.xlu0.b32.cont [10/16] %v8301, 128
    %8584 = vxpose.xlu0.b32.cont [11/16] %v8306, 128
    %8585 = vxpose.xlu0.b32.cont [12/16] %v8311, 128
    %8586 = vxpose.xlu0.b32.cont [13/16] %v8316, 128
    %8587 = vxpose.xlu0.b32.cont [14/16] %v8321, 128
    %8588 = vxpose.xlu0.b32.cont [15/16] %v8326, 128
    %8589 = vxpose.xlu0.b32.end [16/16] %v8331, 128
    %v8590 = vpop.trf.xlu0
    %v8591 = vpop.trf.xlu0
    %v8592 = vpop.trf.xlu0
    %v8593 = vpop.trf.xlu0
    %v8594 = vpop.trf.xlu0
    %v8595 = vpop.trf.xlu0
    %v8596 = vpop.trf.xlu0
    %v8597 = vpop.trf.xlu0
    %v8598 = vpop.trf.xlu0
    %v8599 = vpop.trf.xlu0
    %v8600 = vpop.trf.xlu0
    %v8601 = vpop.trf.xlu0
    %v8602 = vpop.trf.xlu0
    %v8603 = vpop.trf.xlu0
    %v8604 = vpop.trf.xlu0
    %v8605 = vpop.trf.xlu0
    %8606 = vxpose.xlu0.b32.start [1/16] %v8336, 128
    %8607 = vxpose.xlu0.b32.cont [2/16] %v8341, 128
    %8608 = vxpose.xlu0.b32.cont [3/16] %v8346, 128
    %8609 = vxpose.xlu0.b32.cont [4/16] %v8351, 128
    %8610 = vxpose.xlu0.b32.cont [5/16] %v8356, 128
    %8611 = vxpose.xlu0.b32.cont [6/16] %v8361, 128
    %8612 = vxpose.xlu0.b32.cont [7/16] %v8366, 128
    %8613 = vxpose.xlu0.b32.cont [8/16] %v8371, 128
    %8614 = vxpose.xlu0.b32.cont [9/16] %v8376, 128
    %8615 = vxpose.xlu0.b32.cont [10/16] %v8381, 128
    %8616 = vxpose.xlu0.b32.cont [11/16] %v8386, 128
    %8617 = vxpose.xlu0.b32.cont [12/16] %v8391, 128
    %8618 = vxpose.xlu0.b32.cont [13/16] %v8396, 128
    %8619 = vxpose.xlu0.b32.cont [14/16] %v8401, 128
    %8620 = vxpose.xlu0.b32.cont [15/16] %v8406, 128
    %8621 = vxpose.xlu0.b32.end [16/16] %v8411, 128
    %v8622 = vpop.trf.xlu0
    %v8623 = vpop.trf.xlu0
    %v8624 = vpop.trf.xlu0
    %v8625 = vpop.trf.xlu0
    %v8626 = vpop.trf.xlu0
    %v8627 = vpop.trf.xlu0
    %v8628 = vpop.trf.xlu0
    %v8629 = vpop.trf.xlu0
    %v8630 = vpop.trf.xlu0
    %v8631 = vpop.trf.xlu0
    %v8632 = vpop.trf.xlu0
    %v8633 = vpop.trf.xlu0
    %v8634 = vpop.trf.xlu0
    %v8635 = vpop.trf.xlu0
    %v8636 = vpop.trf.xlu0
    %v8637 = vpop.trf.xlu0
    %8638 = vxpose.xlu0.b32.start [1/16] %v8416, 128
    %8639 = vxpose.xlu0.b32.cont [2/16] %v8421, 128
    %8640 = vxpose.xlu0.b32.cont [3/16] %v8426, 128
    %8641 = vxpose.xlu0.b32.cont [4/16] %v8431, 128
    %8642 = vxpose.xlu0.b32.cont [5/16] %v8436, 128
    %8643 = vxpose.xlu0.b32.cont [6/16] %v8441, 128
    %8644 = vxpose.xlu0.b32.cont [7/16] %v8446, 128
    %8645 = vxpose.xlu0.b32.cont [8/16] %v8451, 128
    %8646 = vxpose.xlu0.b32.cont [9/16] %v8456, 128
    %8647 = vxpose.xlu0.b32.cont [10/16] %v8461, 128
    %8648 = vxpose.xlu0.b32.cont [11/16] %v8466, 128
    %8649 = vxpose.xlu0.b32.cont [12/16] %v8471, 128
    %8650 = vxpose.xlu0.b32.cont [13/16] %v8476, 128
    %8651 = vxpose.xlu0.b32.cont [14/16] %v8481, 128
    %8652 = vxpose.xlu0.b32.cont [15/16] %v8486, 128
    %8653 = vxpose.xlu0.b32.end [16/16] %v8491, 128
    %v8654 = vpop.trf.xlu0
    %v8655 = vpop.trf.xlu0
    %v8656 = vpop.trf.xlu0
    %v8657 = vpop.trf.xlu0
    %v8658 = vpop.trf.xlu0
    %v8659 = vpop.trf.xlu0
    %v8660 = vpop.trf.xlu0
    %v8661 = vpop.trf.xlu0
    %v8662 = vpop.trf.xlu0
    %v8663 = vpop.trf.xlu0
    %v8664 = vpop.trf.xlu0
    %v8665 = vpop.trf.xlu0
    %v8666 = vpop.trf.xlu0
    %v8667 = vpop.trf.xlu0
    %v8668 = vpop.trf.xlu0
    %v8669 = vpop.trf.xlu0
    %8670 = vxpose.xlu0.b32.start [1/16] %v8496, 128
    %8671 = vxpose.xlu0.b32.cont [2/16] %v8501, 128
    %8672 = vxpose.xlu0.b32.cont [3/16] %v8506, 128
    %8673 = vxpose.xlu0.b32.cont [4/16] %v8511, 128
    %8674 = vxpose.xlu0.b32.cont [5/16] %v8516, 128
    %8675 = vxpose.xlu0.b32.cont [6/16] %v8521, 128
    %8676 = vxpose.xlu0.b32.cont [7/16] %v8526, 128
    %8677 = vxpose.xlu0.b32.cont [8/16] %v8531, 128
    %8678 = vxpose.xlu0.b32.cont [9/16] %v8536, 128
    %8679 = vxpose.xlu0.b32.cont [10/16] %v8541, 128
    %8680 = vxpose.xlu0.b32.cont [11/16] %v8546, 128
    %8681 = vxpose.xlu0.b32.cont [12/16] %v8551, 128
    %8682 = vxpose.xlu0.b32.cont [13/16] %v8556, 128
    %8683 = vxpose.xlu0.b32.cont [14/16] %v8561, 128
    %8684 = vxpose.xlu0.b32.cont [15/16] %v8566, 128
    %8685 = vxpose.xlu0.b32.end [16/16] %v8571, 128
    %v8686 = vpop.trf.xlu0
    %v8687 = vpop.trf.xlu0
    %v8688 = vpop.trf.xlu0
    %v8689 = vpop.trf.xlu0
    %v8690 = vpop.trf.xlu0
    %v8691 = vpop.trf.xlu0
    %v8692 = vpop.trf.xlu0
    %v8693 = vpop.trf.xlu0
    %v8694 = vpop.trf.xlu0
    %v8695 = vpop.trf.xlu0
    %v8696 = vpop.trf.xlu0
    %v8697 = vpop.trf.xlu0
    %v8698 = vpop.trf.xlu0
    %v8699 = vpop.trf.xlu0
    %v8700 = vpop.trf.xlu0
    %v8701 = vpop.trf.xlu0
    %v8702 = vmul.f32 %v6976, 0.98078525
    %v8703 = vmul.f32 %v6977, 0.98078525
    %v8704 = vmul.f32 %v6978, 0.98078525
    %v8705 = vmul.f32 %v6979, 0.98078525
    %v8706 = vmul.f32 %v8590, -0.19509032
    %v8707 = vmul.f32 %v8622, -0.19509032
    %v8708 = vmul.f32 %v8654, -0.19509032
    %v8709 = vmul.f32 %v8686, -0.19509032
    %v8710 = vadd.f32 %v8702, %v8706
    %v8711 = vadd.f32 %v8703, %v8707
    %v8712 = vadd.f32 %v8704, %v8708
    %v8713 = vadd.f32 %v8705, %v8709
    %v8714 = vmul.f32 %v26, 0.375
    %v8715 = vmul.f32 %v27, 0.375
    %v8716 = vmul.f32 %v28, 0.375
    %v8717 = vmul.f32 %v29, 0.375
    %8718 = vxpose.xlu0.b32.start [1/16] %v8710, 128
    %8719 = vxpose.xlu0.b32.cont [2/16] 0.0, 128
    %8720 = vxpose.xlu0.b32.cont [3/16] 0.0, 128
    %8721 = vxpose.xlu0.b32.cont [4/16] 0.0, 128
    %8722 = vxpose.xlu0.b32.cont [5/16] 0.0, 128
    %8723 = vxpose.xlu0.b32.cont [6/16] 0.0, 128
    %8724 = vxpose.xlu0.b32.cont [7/16] 0.0, 128
    %8725 = vxpose.xlu0.b32.cont [8/16] 0.0, 128
    %8726 = vxpose.xlu0.b32.cont [9/16] 0.0, 128
    %8727 = vxpose.xlu0.b32.cont [10/16] 0.0, 128
    %8728 = vxpose.xlu0.b32.cont [11/16] 0.0, 128
    %8729 = vxpose.xlu0.b32.cont [12/16] 0.0, 128
    %8730 = vxpose.xlu0.b32.cont [13/16] 0.0, 128
    %8731 = vxpose.xlu0.b32.cont [14/16] 0.0, 128
    %8732 = vxpose.xlu0.b32.cont [15/16] 0.0, 128
    %8733 = vxpose.xlu0.b32.end [16/16] 0.0, 128
    %v8734 = vpop.trf.xlu0
    %v8735 = vpop.trf.xlu0
    %v8736 = vpop.trf.xlu0
    %v8737 = vpop.trf.xlu0
    %v8738 = vpop.trf.xlu0
    %v8739 = vpop.trf.xlu0
    %v8740 = vpop.trf.xlu0
    %v8741 = vpop.trf.xlu0
    %v8742 = vpop.trf.xlu0
    %v8743 = vpop.trf.xlu0
    %v8744 = vpop.trf.xlu0
    %v8745 = vpop.trf.xlu0
    %v8746 = vpop.trf.xlu0
    %v8747 = vpop.trf.xlu0
    %v8748 = vpop.trf.xlu0
    %v8749 = vpop.trf.xlu0
    %8750 = vxpose.xlu0.b32.start [1/16] %v8711, 128
    %8751 = vxpose.xlu0.b32.cont [2/16] 0.0, 128
    %8752 = vxpose.xlu0.b32.cont [3/16] 0.0, 128
    %8753 = vxpose.xlu0.b32.cont [4/16] 0.0, 128
    %8754 = vxpose.xlu0.b32.cont [5/16] 0.0, 128
    %8755 = vxpose.xlu0.b32.cont [6/16] 0.0, 128
    %8756 = vxpose.xlu0.b32.cont [7/16] 0.0, 128
    %8757 = vxpose.xlu0.b32.cont [8/16] 0.0, 128
    %8758 = vxpose.xlu0.b32.cont [9/16] 0.0, 128
    %8759 = vxpose.xlu0.b32.cont [10/16] 0.0, 128
    %8760 = vxpose.xlu0.b32.cont [11/16] 0.0, 128
    %8761 = vxpose.xlu0.b32.cont [12/16] 0.0, 128
    %8762 = vxpose.xlu0.b32.cont [13/16] 0.0, 128
    %8763 = vxpose.xlu0.b32.cont [14/16] 0.0, 128
    %8764 = vxpose.xlu0.b32.cont [15/16] 0.0, 128
    %8765 = vxpose.xlu0.b32.end [16/16] 0.0, 128
    %v8766 = vpop.trf.xlu0
    %v8767 = vpop.trf.xlu0
    %v8768 = vpop.trf.xlu0
    %v8769 = vpop.trf.xlu0
    %v8770 = vpop.trf.xlu0
    %v8771 = vpop.trf.xlu0
    %v8772 = vpop.trf.xlu0
    %v8773 = vpop.trf.xlu0
    %v8774 = vpop.trf.xlu0
    %v8775 = vpop.trf.xlu0
    %v8776 = vpop.trf.xlu0
    %v8777 = vpop.trf.xlu0
    %v8778 = vpop.trf.xlu0
    %v8779 = vpop.trf.xlu0
    %v8780 = vpop.trf.xlu0
    %v8781 = vpop.trf.xlu0
    %8782 = vxpose.xlu0.b32.start [1/16] %v8712, 128
    %8783 = vxpose.xlu0.b32.cont [2/16] 0.0, 128
    %8784 = vxpose.xlu0.b32.cont [3/16] 0.0, 128
    %8785 = vxpose.xlu0.b32.cont [4/16] 0.0, 128
    %8786 = vxpose.xlu0.b32.cont [5/16] 0.0, 128
    %8787 = vxpose.xlu0.b32.cont [6/16] 0.0, 128
    %8788 = vxpose.xlu0.b32.cont [7/16] 0.0, 128
    %8789 = vxpose.xlu0.b32.cont [8/16] 0.0, 128
    %8790 = vxpose.xlu0.b32.cont [9/16] 0.0, 128
    %8791 = vxpose.xlu0.b32.cont [10/16] 0.0, 128
    %8792 = vxpose.xlu0.b32.cont [11/16] 0.0, 128
    %8793 = vxpose.xlu0.b32.cont [12/16] 0.0, 128
    %8794 = vxpose.xlu0.b32.cont [13/16] 0.0, 128
    %8795 = vxpose.xlu0.b32.cont [14/16] 0.0, 128
    %8796 = vxpose.xlu0.b32.cont [15/16] 0.0, 128
    %8797 = vxpose.xlu0.b32.end [16/16] 0.0, 128
    %v8798 = vpop.trf.xlu0
    %v8799 = vpop.trf.xlu0
    %v8800 = vpop.trf.xlu0
    %v8801 = vpop.trf.xlu0
    %v8802 = vpop.trf.xlu0
    %v8803 = vpop.trf.xlu0
    %v8804 = vpop.trf.xlu0
    %v8805 = vpop.trf.xlu0
    %v8806 = vpop.trf.xlu0
    %v8807 = vpop.trf.xlu0
    %v8808 = vpop.trf.xlu0
    %v8809 = vpop.trf.xlu0
    %v8810 = vpop.trf.xlu0
    %v8811 = vpop.trf.xlu0
    %v8812 = vpop.trf.xlu0
    %v8813 = vpop.trf.xlu0
    %8814 = vxpose.xlu0.b32.start [1/16] %v8713, 128
    %8815 = vxpose.xlu0.b32.cont [2/16] 0.0, 128
    %8816 = vxpose.xlu0.b32.cont [3/16] 0.0, 128
    %8817 = vxpose.xlu0.b32.cont [4/16] 0.0, 128
    %8818 = vxpose.xlu0.b32.cont [5/16] 0.0, 128
    %8819 = vxpose.xlu0.b32.cont [6/16] 0.0, 128
    %8820 = vxpose.xlu0.b32.cont [7/16] 0.0, 128
    %8821 = vxpose.xlu0.b32.cont [8/16] 0.0, 128
    %8822 = vxpose.xlu0.b32.cont [9/16] 0.0, 128
    %8823 = vxpose.xlu0.b32.cont [10/16] 0.0, 128
    %8824 = vxpose.xlu0.b32.cont [11/16] 0.0, 128
    %8825 = vxpose.xlu0.b32.cont [12/16] 0.0, 128
    %8826 = vxpose.xlu0.b32.cont [13/16] 0.0, 128
    %8827 = vxpose.xlu0.b32.cont [14/16] 0.0, 128
    %8828 = vxpose.xlu0.b32.cont [15/16] 0.0, 128
    %8829 = vxpose.xlu0.b32.end [16/16] 0.0, 128
    %v8830 = vpop.trf.xlu0
    %v8831 = vpop.trf.xlu0
    %v8832 = vpop.trf.xlu0
    %v8833 = vpop.trf.xlu0
    %v8834 = vpop.trf.xlu0
    %v8835 = vpop.trf.xlu0
    %v8836 = vpop.trf.xlu0
    %v8837 = vpop.trf.xlu0
    %v8838 = vpop.trf.xlu0
    %v8839 = vpop.trf.xlu0
    %v8840 = vpop.trf.xlu0
    %v8841 = vpop.trf.xlu0
    %v8842 = vpop.trf.xlu0
    %v8843 = vpop.trf.xlu0
    %v8844 = vpop.trf.xlu0
    %v8845 = vpop.trf.xlu0
    %v8847 = vsel %vm159, %v8734, 0
    %v8850 = vsel %vm159, %v8735, 0
    %v8853 = vsel %vm159, %v8736, 0
    %v8856 = vsel %vm159, %v8737, 0
    %v8859 = vsel %vm159, %v8738, 0
    %v8862 = vsel %vm159, %v8739, 0
    %v8865 = vsel %vm159, %v8740, 0
    %v8868 = vsel %vm159, %v8741, 0
    %v8871 = vsel %vm159, %v8742, 0
    %v8874 = vsel %vm159, %v8743, 0
    %v8877 = vsel %vm159, %v8744, 0
    %v8880 = vsel %vm159, %v8745, 0
    %v8883 = vsel %vm159, %v8746, 0
    %v8886 = vsel %vm159, %v8747, 0
    %v8889 = vsel %vm159, %v8748, 0
    %v8892 = vsel %vm159, %v8749, 0
    %v8895 = vsel %vm159, %v8766, 0
    %v8898 = vsel %vm159, %v8767, 0
    %v8901 = vsel %vm159, %v8768, 0
    %v8904 = vsel %vm159, %v8769, 0
    %v8907 = vsel %vm159, %v8770, 0
    %v8910 = vsel %vm159, %v8771, 0
    %v8913 = vsel %vm159, %v8772, 0
    %v8916 = vsel %vm159, %v8773, 0
    %v8919 = vsel %vm159, %v8774, 0
    %v8922 = vsel %vm159, %v8775, 0
    %v8925 = vsel %vm159, %v8776, 0
    %v8928 = vsel %vm159, %v8777, 0
    %v8931 = vsel %vm159, %v8778, 0
    %v8934 = vsel %vm159, %v8779, 0
    %v8937 = vsel %vm159, %v8780, 0
    %v8940 = vsel %vm159, %v8781, 0
    %v8943 = vsel %vm159, %v8798, 0
    %v8946 = vsel %vm159, %v8799, 0
    %v8949 = vsel %vm159, %v8800, 0
    %v8952 = vsel %vm159, %v8801, 0
    %v8955 = vsel %vm159, %v8802, 0
    %v8958 = vsel %vm159, %v8803, 0
    %v8961 = vsel %vm159, %v8804, 0
    %v8964 = vsel %vm159, %v8805, 0
    %v8967 = vsel %vm159, %v8806, 0
    %v8970 = vsel %vm159, %v8807, 0
    %v8973 = vsel %vm159, %v8808, 0
    %v8976 = vsel %vm159, %v8809, 0
    %v8979 = vsel %vm159, %v8810, 0
    %v8982 = vsel %vm159, %v8811, 0
    %v8985 = vsel %vm159, %v8812, 0
    %v8988 = vsel %vm159, %v8813, 0
    %v8991 = vsel %vm159, %v8830, 0
    %v8994 = vsel %vm159, %v8831, 0
    %v8997 = vsel %vm159, %v8832, 0
    %v9000 = vsel %vm159, %v8833, 0
    %v9003 = vsel %vm159, %v8834, 0
    %v9006 = vsel %vm159, %v8835, 0
    %v9009 = vsel %vm159, %v8836, 0
    %v9012 = vsel %vm159, %v8837, 0
    %v9015 = vsel %vm159, %v8838, 0
    %v9018 = vsel %vm159, %v8839, 0
    %v9021 = vsel %vm159, %v8840, 0
    %v9024 = vsel %vm159, %v8841, 0
    %v9027 = vsel %vm159, %v8842, 0
    %v9030 = vsel %vm159, %v8843, 0
    %v9033 = vsel %vm159, %v8844, 0
    %v9036 = vsel %vm159, %v8845, 0
    %9038 = vmatprep.subr.mxu0 0.0
    %9039 = vmatpush1.xpose.msra.mxu0 %v353
    %9040 = vmatprep.subr.mxu0 0.0
    %9041 = vmatpush1.xpose.msra.mxu0 %v356
    %9042 = vmatprep.subr.mxu0 0.0
    %9043 = vmatpush1.xpose.msra.mxu0 %v359
    %9044 = vmatprep.subr.mxu0 0.0
    %9045 = vmatpush1.xpose.msra.mxu0 %v362
    %9046 = vmatprep.subr.mxu0 0.0
    %9047 = vmatpush1.xpose.msra.mxu0 0.0
    %9048 = vmatprep.subr.mxu0 0.0
    %9049 = vmatpush1.xpose.msra.mxu0 0.0
    %9050 = vmatprep.subr.mxu0 0.0
    %9051 = vmatpush1.xpose.msra.mxu0 0.0
    %9052 = vmatprep.subr.mxu0 0.0
    %9053 = vmatpush1.xpose.msra.mxu0 0.0
    %9054 = vmatprep.subr.mxu0 0.0
    %9055 = vmatpush1.xpose.msra.mxu0 0.0
    %9056 = vmatprep.subr.mxu0 0.0
    %9057 = vmatpush1.xpose.msra.mxu0 0.0
    %9058 = vmatprep.subr.mxu0 0.0
    %9059 = vmatpush1.xpose.msra.mxu0 0.0
    %9060 = vmatprep.subr.mxu0 0.0
    %9061 = vmatpush1.xpose.msra.mxu0 0.0
    %9062 = vmatprep.subr.mxu0 0.0
    %9063 = vmatpush1.xpose.msra.mxu0 0.0
    %9064 = vmatprep.subr.mxu0 0.0
    %9065 = vmatpush1.xpose.msra.mxu0 0.0
    %9066 = vmatprep.subr.mxu0 0.0
    %9067 = vmatpush1.xpose.msra.mxu0 0.0
    %9068 = vmatprep.subr.mxu0 0.0
    %9069 = vmatpush1.xpose.msra.mxu0 0.0
    %9070 = vmatprep.subr.mxu0 0.0
    %9071 = vmatpush1.xpose.msra.mxu0 0.0
    %9072 = vmatprep.subr.mxu0 0.0
    %9073 = vmatpush1.xpose.msra.mxu0 0.0
    %9074 = vmatprep.subr.mxu0 0.0
    %9075 = vmatpush1.xpose.msra.mxu0 0.0
    %9076 = vmatprep.subr.mxu0 0.0
    %9077 = vmatpush1.xpose.msra.mxu0 0.0
    %9078 = vmatprep.subr.mxu0 0.0
    %9079 = vmatpush1.xpose.msra.mxu0 0.0
    %9080 = vmatprep.subr.mxu0 0.0
    %9081 = vmatpush1.xpose.msra.mxu0 0.0
    %9082 = vmatprep.subr.mxu0 0.0
    %9083 = vmatpush1.xpose.msra.mxu0 0.0
    %9084 = vmatprep.subr.mxu0 0.0
    %9085 = vmatpush1.xpose.msra.mxu0 0.0
    %9086 = vmatprep.subr.mxu0 0.0
    %9087 = vmatpush1.xpose.msra.mxu0 0.0
    %9088 = vmatprep.subr.mxu0 0.0
    %9089 = vmatpush1.xpose.msra.mxu0 0.0
    %9090 = vmatprep.subr.mxu0 0.0
    %9091 = vmatpush1.xpose.msra.mxu0 0.0
    %9092 = vmatprep.subr.mxu0 0.0
    %9093 = vmatpush1.xpose.msra.mxu0 0.0
    %9094 = vmatprep.subr.mxu0 0.0
    %9095 = vmatpush1.xpose.msra.mxu0 0.0
    %9096 = vmatprep.subr.mxu0 0.0
    %9097 = vmatpush1.xpose.msra.mxu0 0.0
    %9098 = vmatprep.subr.mxu0 0.0
    %9099 = vmatpush1.xpose.msra.mxu0 0.0
    %9100 = vmatprep.subr.mxu0 0.0
    %9101 = vmatpush1.xpose.msra.mxu0 0.0
    %9102 = vmatprep.mubr.f32.mxu0 0.0
    %9103 = vmatmul.mubr.f32.gmra.mrb[0].mxu0 %v8847
    %v9104 = vpop.f32.mrb[0].mxu0
    %v9105 = vadd.f32 0.0, %v9104
    %v9106 = vpop.f32.mrb[0].mxu0
    %9107 = vmatprep.mubr.f32.mxu0 0.0
    %9108 = vmatmul.mubr.f32.gmra.mrb[0].mxu0 %v8850
    %v9109 = vpop.f32.mrb[0].mxu0
    %v9110 = vadd.f32 0.0, %v9109
    %v9111 = vpop.f32.mrb[0].mxu0
    %9112 = vmatprep.mubr.f32.mxu0 0.0
    %9113 = vmatmul.mubr.f32.gmra.mrb[0].mxu0 %v8853
    %v9114 = vpop.f32.mrb[0].mxu0
    %v9115 = vadd.f32 0.0, %v9114
    %v9116 = vpop.f32.mrb[0].mxu0
    %9117 = vmatprep.mubr.f32.mxu0 0.0
    %9118 = vmatmul.mubr.f32.gmra.mrb[0].mxu0 %v8856
    %v9119 = vpop.f32.mrb[0].mxu0
    %v9120 = vadd.f32 0.0, %v9119
    %v9121 = vpop.f32.mrb[0].mxu0
    %9122 = vmatprep.mubr.f32.mxu0 0.0
    %9123 = vmatmul.mubr.f32.gmra.mrb[0].mxu0 %v8859
    %v9124 = vpop.f32.mrb[0].mxu0
    %v9125 = vadd.f32 0.0, %v9124
    %v9126 = vpop.f32.mrb[0].mxu0
    %9127 = vmatprep.mubr.f32.mxu0 0.0
    %9128 = vmatmul.mubr.f32.gmra.mrb[0].mxu0 %v8862
    %v9129 = vpop.f32.mrb[0].mxu0
    %v9130 = vadd.f32 0.0, %v9129
    %v9131 = vpop.f32.mrb[0].mxu0
    %9132 = vmatprep.mubr.f32.mxu0 0.0
    %9133 = vmatmul.mubr.f32.gmra.mrb[0].mxu0 %v8865
    %v9134 = vpop.f32.mrb[0].mxu0
    %v9135 = vadd.f32 0.0, %v9134
    %v9136 = vpop.f32.mrb[0].mxu0
    %9137 = vmatprep.mubr.f32.mxu0 0.0
    %9138 = vmatmul.mubr.f32.gmra.mrb[0].mxu0 %v8868
    %v9139 = vpop.f32.mrb[0].mxu0
    %v9140 = vadd.f32 0.0, %v9139
    %v9141 = vpop.f32.mrb[0].mxu0
    %9142 = vmatprep.mubr.f32.mxu0 0.0
    %9143 = vmatmul.mubr.f32.gmra.mrb[0].mxu0 %v8871
    %v9144 = vpop.f32.mrb[0].mxu0
    %v9145 = vadd.f32 0.0, %v9144
    %v9146 = vpop.f32.mrb[0].mxu0
    %9147 = vmatprep.mubr.f32.mxu0 0.0
    %9148 = vmatmul.mubr.f32.gmra.mrb[0].mxu0 %v8874
    %v9149 = vpop.f32.mrb[0].mxu0
    %v9150 = vadd.f32 0.0, %v9149
    %v9151 = vpop.f32.mrb[0].mxu0
    %9152 = vmatprep.mubr.f32.mxu0 0.0
    %9153 = vmatmul.mubr.f32.gmra.mrb[0].mxu0 %v8877
    %v9154 = vpop.f32.mrb[0].mxu0
    %v9155 = vadd.f32 0.0, %v9154
    %v9156 = vpop.f32.mrb[0].mxu0
    %9157 = vmatprep.mubr.f32.mxu0 0.0
    %9158 = vmatmul.mubr.f32.gmra.mrb[0].mxu0 %v8880
    %v9159 = vpop.f32.mrb[0].mxu0
    %v9160 = vadd.f32 0.0, %v9159
    %v9161 = vpop.f32.mrb[0].mxu0
    %9162 = vmatprep.mubr.f32.mxu0 0.0
    %9163 = vmatmul.mubr.f32.gmra.mrb[0].mxu0 %v8883
    %v9164 = vpop.f32.mrb[0].mxu0
    %v9165 = vadd.f32 0.0, %v9164
    %v9166 = vpop.f32.mrb[0].mxu0
    %9167 = vmatprep.mubr.f32.mxu0 0.0
    %9168 = vmatmul.mubr.f32.gmra.mrb[0].mxu0 %v8886
    %v9169 = vpop.f32.mrb[0].mxu0
    %v9170 = vadd.f32 0.0, %v9169
    %v9171 = vpop.f32.mrb[0].mxu0
    %9172 = vmatprep.mubr.f32.mxu0 0.0
    %9173 = vmatmul.mubr.f32.gmra.mrb[0].mxu0 %v8889
    %v9174 = vpop.f32.mrb[0].mxu0
    %v9175 = vadd.f32 0.0, %v9174
    %v9176 = vpop.f32.mrb[0].mxu0
    %9177 = vmatprep.mubr.f32.mxu0 0.0
    %9178 = vmatmul.mubr.f32.gmra.mrb[0].mxu0 %v8892
    %v9179 = vpop.f32.mrb[0].mxu0
    %v9180 = vadd.f32 0.0, %v9179
    %v9181 = vpop.f32.mrb[0].mxu0
    %9182 = vmatprep.mubr.f32.mxu0 0.0
    %9183 = vmatmul.mubr.f32.gmra.mrb[0].mxu0 %v8895
    %v9184 = vpop.f32.mrb[0].mxu0
    %v9185 = vadd.f32 0.0, %v9184
    %v9186 = vpop.f32.mrb[0].mxu0
    %9187 = vmatprep.mubr.f32.mxu0 0.0
    %9188 = vmatmul.mubr.f32.gmra.mrb[0].mxu0 %v8898
    %v9189 = vpop.f32.mrb[0].mxu0
    %v9190 = vadd.f32 0.0, %v9189
    %v9191 = vpop.f32.mrb[0].mxu0
    %9192 = vmatprep.mubr.f32.mxu0 0.0
    %9193 = vmatmul.mubr.f32.gmra.mrb[0].mxu0 %v8901
    %v9194 = vpop.f32.mrb[0].mxu0
    %v9195 = vadd.f32 0.0, %v9194
    %v9196 = vpop.f32.mrb[0].mxu0
    %9197 = vmatprep.mubr.f32.mxu0 0.0
    %9198 = vmatmul.mubr.f32.gmra.mrb[0].mxu0 %v8904
    %v9199 = vpop.f32.mrb[0].mxu0
    %v9200 = vadd.f32 0.0, %v9199
    %v9201 = vpop.f32.mrb[0].mxu0
    %9202 = vmatprep.mubr.f32.mxu0 0.0
    %9203 = vmatmul.mubr.f32.gmra.mrb[0].mxu0 %v8907
    %v9204 = vpop.f32.mrb[0].mxu0
    %v9205 = vadd.f32 0.0, %v9204
    %v9206 = vpop.f32.mrb[0].mxu0
    %9207 = vmatprep.mubr.f32.mxu0 0.0
    %9208 = vmatmul.mubr.f32.gmra.mrb[0].mxu0 %v8910
    %v9209 = vpop.f32.mrb[0].mxu0
    %v9210 = vadd.f32 0.0, %v9209
    %v9211 = vpop.f32.mrb[0].mxu0
    %9212 = vmatprep.mubr.f32.mxu0 0.0
    %9213 = vmatmul.mubr.f32.gmra.mrb[0].mxu0 %v8913
    %v9214 = vpop.f32.mrb[0].mxu0
    %v9215 = vadd.f32 0.0, %v9214
    %v9216 = vpop.f32.mrb[0].mxu0
    %9217 = vmatprep.mubr.f32.mxu0 0.0
    %9218 = vmatmul.mubr.f32.gmra.mrb[0].mxu0 %v8916
    %v9219 = vpop.f32.mrb[0].mxu0
    %v9220 = vadd.f32 0.0, %v9219
    %v9221 = vpop.f32.mrb[0].mxu0
    %9222 = vmatprep.mubr.f32.mxu0 0.0
    %9223 = vmatmul.mubr.f32.gmra.mrb[0].mxu0 %v8919
    %v9224 = vpop.f32.mrb[0].mxu0
    %v9225 = vadd.f32 0.0, %v9224
    %v9226 = vpop.f32.mrb[0].mxu0
    %9227 = vmatprep.mubr.f32.mxu0 0.0
    %9228 = vmatmul.mubr.f32.gmra.mrb[0].mxu0 %v8922
    %v9229 = vpop.f32.mrb[0].mxu0
    %v9230 = vadd.f32 0.0, %v9229
    %v9231 = vpop.f32.mrb[0].mxu0
    %9232 = vmatprep.mubr.f32.mxu0 0.0
    %9233 = vmatmul.mubr.f32.gmra.mrb[0].mxu0 %v8925
    %v9234 = vpop.f32.mrb[0].mxu0
    %v9235 = vadd.f32 0.0, %v9234
    %v9236 = vpop.f32.mrb[0].mxu0
    %9237 = vmatprep.mubr.f32.mxu0 0.0
    %9238 = vmatmul.mubr.f32.gmra.mrb[0].mxu0 %v8928
    %v9239 = vpop.f32.mrb[0].mxu0
    %v9240 = vadd.f32 0.0, %v9239
    %v9241 = vpop.f32.mrb[0].mxu0
    %9242 = vmatprep.mubr.f32.mxu0 0.0
    %9243 = vmatmul.mubr.f32.gmra.mrb[0].mxu0 %v8931
    %v9244 = vpop.f32.mrb[0].mxu0
    %v9245 = vadd.f32 0.0, %v9244
    %v9246 = vpop.f32.mrb[0].mxu0
    %9247 = vmatprep.mubr.f32.mxu0 0.0
    %9248 = vmatmul.mubr.f32.gmra.mrb[0].mxu0 %v8934
    %v9249 = vpop.f32.mrb[0].mxu0
    %v9250 = vadd.f32 0.0, %v9249
    %v9251 = vpop.f32.mrb[0].mxu0
    %9252 = vmatprep.mubr.f32.mxu0 0.0
    %9253 = vmatmul.mubr.f32.gmra.mrb[0].mxu0 %v8937
    %v9254 = vpop.f32.mrb[0].mxu0
    %v9255 = vadd.f32 0.0, %v9254
    %v9256 = vpop.f32.mrb[0].mxu0
    %9257 = vmatprep.mubr.f32.mxu0 0.0
    %9258 = vmatmul.mubr.f32.gmra.mrb[0].mxu0 %v8940
    %v9259 = vpop.f32.mrb[0].mxu0
    %v9260 = vadd.f32 0.0, %v9259
    %v9261 = vpop.f32.mrb[0].mxu0
    %9262 = vmatprep.mubr.f32.mxu0 0.0
    %9263 = vmatmul.mubr.f32.gmra.mrb[0].mxu0 %v8943
    %v9264 = vpop.f32.mrb[0].mxu0
    %v9265 = vadd.f32 0.0, %v9264
    %v9266 = vpop.f32.mrb[0].mxu0
    %9267 = vmatprep.mubr.f32.mxu0 0.0
    %9268 = vmatmul.mubr.f32.gmra.mrb[0].mxu0 %v8946
    %v9269 = vpop.f32.mrb[0].mxu0
    %v9270 = vadd.f32 0.0, %v9269
    %v9271 = vpop.f32.mrb[0].mxu0
    %9272 = vmatprep.mubr.f32.mxu0 0.0
    %9273 = vmatmul.mubr.f32.gmra.mrb[0].mxu0 %v8949
    %v9274 = vpop.f32.mrb[0].mxu0
    %v9275 = vadd.f32 0.0, %v9274
    %v9276 = vpop.f32.mrb[0].mxu0
    %9277 = vmatprep.mubr.f32.mxu0 0.0
    %9278 = vmatmul.mubr.f32.gmra.mrb[0].mxu0 %v8952
    %v9279 = vpop.f32.mrb[0].mxu0
    %v9280 = vadd.f32 0.0, %v9279
    %v9281 = vpop.f32.mrb[0].mxu0
    %9282 = vmatprep.mubr.f32.mxu0 0.0
    %9283 = vmatmul.mubr.f32.gmra.mrb[0].mxu0 %v8955
    %v9284 = vpop.f32.mrb[0].mxu0
    %v9285 = vadd.f32 0.0, %v9284
    %v9286 = vpop.f32.mrb[0].mxu0
    %9287 = vmatprep.mubr.f32.mxu0 0.0
    %9288 = vmatmul.mubr.f32.gmra.mrb[0].mxu0 %v8958
    %v9289 = vpop.f32.mrb[0].mxu0
    %v9290 = vadd.f32 0.0, %v9289
    %v9291 = vpop.f32.mrb[0].mxu0
    %9292 = vmatprep.mubr.f32.mxu0 0.0
    %9293 = vmatmul.mubr.f32.gmra.mrb[0].mxu0 %v8961
    %v9294 = vpop.f32.mrb[0].mxu0
    %v9295 = vadd.f32 0.0, %v9294
    %v9296 = vpop.f32.mrb[0].mxu0
    %9297 = vmatprep.mubr.f32.mxu0 0.0
    %9298 = vmatmul.mubr.f32.gmra.mrb[0].mxu0 %v8964
    %v9299 = vpop.f32.mrb[0].mxu0
    %v9300 = vadd.f32 0.0, %v9299
    %v9301 = vpop.f32.mrb[0].mxu0
    %9302 = vmatprep.mubr.f32.mxu0 0.0
    %9303 = vmatmul.mubr.f32.gmra.mrb[0].mxu0 %v8967
    %v9304 = vpop.f32.mrb[0].mxu0
    %v9305 = vadd.f32 0.0, %v9304
    %v9306 = vpop.f32.mrb[0].mxu0
    %9307 = vmatprep.mubr.f32.mxu0 0.0
    %9308 = vmatmul.mubr.f32.gmra.mrb[0].mxu0 %v8970
    %v9309 = vpop.f32.mrb[0].mxu0
    %v9310 = vadd.f32 0.0, %v9309
    %v9311 = vpop.f32.mrb[0].mxu0
    %9312 = vmatprep.mubr.f32.mxu0 0.0
    %9313 = vmatmul.mubr.f32.gmra.mrb[0].mxu0 %v8973
    %v9314 = vpop.f32.mrb[0].mxu0
    %v9315 = vadd.f32 0.0, %v9314
    %v9316 = vpop.f32.mrb[0].mxu0
    %9317 = vmatprep.mubr.f32.mxu0 0.0
    %9318 = vmatmul.mubr.f32.gmra.mrb[0].mxu0 %v8976
    %v9319 = vpop.f32.mrb[0].mxu0
    %v9320 = vadd.f32 0.0, %v9319
    %v9321 = vpop.f32.mrb[0].mxu0
    %9322 = vmatprep.mubr.f32.mxu0 0.0
    %9323 = vmatmul.mubr.f32.gmra.mrb[0].mxu0 %v8979
    %v9324 = vpop.f32.mrb[0].mxu0
    %v9325 = vadd.f32 0.0, %v9324
    %v9326 = vpop.f32.mrb[0].mxu0
    %9327 = vmatprep.mubr.f32.mxu0 0.0
    %9328 = vmatmul.mubr.f32.gmra.mrb[0].mxu0 %v8982
    %v9329 = vpop.f32.mrb[0].mxu0
    %v9330 = vadd.f32 0.0, %v9329
    %v9331 = vpop.f32.mrb[0].mxu0
    %9332 = vmatprep.mubr.f32.mxu0 0.0
    %9333 = vmatmul.mubr.f32.gmra.mrb[0].mxu0 %v8985
    %v9334 = vpop.f32.mrb[0].mxu0
    %v9335 = vadd.f32 0.0, %v9334
    %v9336 = vpop.f32.mrb[0].mxu0
    %9337 = vmatprep.mubr.f32.mxu0 0.0
    %9338 = vmatmul.mubr.f32.gmra.mrb[0].mxu0 %v8988
    %v9339 = vpop.f32.mrb[0].mxu0
    %v9340 = vadd.f32 0.0, %v9339
    %v9341 = vpop.f32.mrb[0].mxu0
    %9342 = vmatprep.mubr.f32.mxu0 0.0
    %9343 = vmatmul.mubr.f32.gmra.mrb[0].mxu0 %v8991
    %v9344 = vpop.f32.mrb[0].mxu0
    %v9345 = vadd.f32 0.0, %v9344
    %v9346 = vpop.f32.mrb[0].mxu0
    %9347 = vmatprep.mubr.f32.mxu0 0.0
    %9348 = vmatmul.mubr.f32.gmra.mrb[0].mxu0 %v8994
    %v9349 = vpop.f32.mrb[0].mxu0
    %v9350 = vadd.f32 0.0, %v9349
    %v9351 = vpop.f32.mrb[0].mxu0
    %9352 = vmatprep.mubr.f32.mxu0 0.0
    %9353 = vmatmul.mubr.f32.gmra.mrb[0].mxu0 %v8997
    %v9354 = vpop.f32.mrb[0].mxu0
    %v9355 = vadd.f32 0.0, %v9354
    %v9356 = vpop.f32.mrb[0].mxu0
    %9357 = vmatprep.mubr.f32.mxu0 0.0
    %9358 = vmatmul.mubr.f32.gmra.mrb[0].mxu0 %v9000
    %v9359 = vpop.f32.mrb[0].mxu0
    %v9360 = vadd.f32 0.0, %v9359
    %v9361 = vpop.f32.mrb[0].mxu0
    %9362 = vmatprep.mubr.f32.mxu0 0.0
    %9363 = vmatmul.mubr.f32.gmra.mrb[0].mxu0 %v9003
    %v9364 = vpop.f32.mrb[0].mxu0
    %v9365 = vadd.f32 0.0, %v9364
    %v9366 = vpop.f32.mrb[0].mxu0
    %9367 = vmatprep.mubr.f32.mxu0 0.0
    %9368 = vmatmul.mubr.f32.gmra.mrb[0].mxu0 %v9006
    %v9369 = vpop.f32.mrb[0].mxu0
    %v9370 = vadd.f32 0.0, %v9369
    %v9371 = vpop.f32.mrb[0].mxu0
    %9372 = vmatprep.mubr.f32.mxu0 0.0
    %9373 = vmatmul.mubr.f32.gmra.mrb[0].mxu0 %v9009
    %v9374 = vpop.f32.mrb[0].mxu0
    %v9375 = vadd.f32 0.0, %v9374
    %v9376 = vpop.f32.mrb[0].mxu0
    %9377 = vmatprep.mubr.f32.mxu0 0.0
    %9378 = vmatmul.mubr.f32.gmra.mrb[0].mxu0 %v9012
    %v9379 = vpop.f32.mrb[0].mxu0
    %v9380 = vadd.f32 0.0, %v9379
    %v9381 = vpop.f32.mrb[0].mxu0
    %9382 = vmatprep.mubr.f32.mxu0 0.0
    %9383 = vmatmul.mubr.f32.gmra.mrb[0].mxu0 %v9015
    %v9384 = vpop.f32.mrb[0].mxu0
    %v9385 = vadd.f32 0.0, %v9384
    %v9386 = vpop.f32.mrb[0].mxu0
    %9387 = vmatprep.mubr.f32.mxu0 0.0
    %9388 = vmatmul.mubr.f32.gmra.mrb[0].mxu0 %v9018
    %v9389 = vpop.f32.mrb[0].mxu0
    %v9390 = vadd.f32 0.0, %v9389
    %v9391 = vpop.f32.mrb[0].mxu0
    %9392 = vmatprep.mubr.f32.mxu0 0.0
    %9393 = vmatmul.mubr.f32.gmra.mrb[0].mxu0 %v9021
    %v9394 = vpop.f32.mrb[0].mxu0
    %v9395 = vadd.f32 0.0, %v9394
    %v9396 = vpop.f32.mrb[0].mxu0
    %9397 = vmatprep.mubr.f32.mxu0 0.0
    %9398 = vmatmul.mubr.f32.gmra.mrb[0].mxu0 %v9024
    %v9399 = vpop.f32.mrb[0].mxu0
    %v9400 = vadd.f32 0.0, %v9399
    %v9401 = vpop.f32.mrb[0].mxu0
    %9402 = vmatprep.mubr.f32.mxu0 0.0
    %9403 = vmatmul.mubr.f32.gmra.mrb[0].mxu0 %v9027
    %v9404 = vpop.f32.mrb[0].mxu0
    %v9405 = vadd.f32 0.0, %v9404
    %v9406 = vpop.f32.mrb[0].mxu0
    %9407 = vmatprep.mubr.f32.mxu0 0.0
    %9408 = vmatmul.mubr.f32.gmra.mrb[0].mxu0 %v9030
    %v9409 = vpop.f32.mrb[0].mxu0
    %v9410 = vadd.f32 0.0, %v9409
    %v9411 = vpop.f32.mrb[0].mxu0
    %9412 = vmatprep.mubr.f32.mxu0 0.0
    %9413 = vmatmul.mubr.f32.gmra.mrb[0].mxu0 %v9033
    %v9414 = vpop.f32.mrb[0].mxu0
    %v9415 = vadd.f32 0.0, %v9414
    %v9416 = vpop.f32.mrb[0].mxu0
    %9417 = vmatprep.mubr.f32.mxu0 0.0
    %9418 = vmatmul.mubr.f32.gmra.mrb[0].mxu0 %v9036
    %v9419 = vpop.f32.mrb[0].mxu0
    %v9420 = vadd.f32 0.0, %v9419
    %v9421 = vpop.f32.mrb[0].mxu0
    %9422 = vdwg.mxu0
    %9423 = vxpose.xlu0.b32.start [1/16] %v9105, 128
    %9424 = vxpose.xlu0.b32.cont [2/16] %v9110, 128
    %9425 = vxpose.xlu0.b32.cont [3/16] %v9115, 128
    %9426 = vxpose.xlu0.b32.cont [4/16] %v9120, 128
    %9427 = vxpose.xlu0.b32.cont [5/16] %v9125, 128
    %9428 = vxpose.xlu0.b32.cont [6/16] %v9130, 128
    %9429 = vxpose.xlu0.b32.cont [7/16] %v9135, 128
    %9430 = vxpose.xlu0.b32.cont [8/16] %v9140, 128
    %9431 = vxpose.xlu0.b32.cont [9/16] %v9145, 128
    %9432 = vxpose.xlu0.b32.cont [10/16] %v9150, 128
    %9433 = vxpose.xlu0.b32.cont [11/16] %v9155, 128
    %9434 = vxpose.xlu0.b32.cont [12/16] %v9160, 128
    %9435 = vxpose.xlu0.b32.cont [13/16] %v9165, 128
    %9436 = vxpose.xlu0.b32.cont [14/16] %v9170, 128
    %9437 = vxpose.xlu0.b32.cont [15/16] %v9175, 128
    %9438 = vxpose.xlu0.b32.end [16/16] %v9180, 128
    %v9439 = vpop.trf.xlu0
    %v9440 = vpop.trf.xlu0
    %v9441 = vpop.trf.xlu0
    %v9442 = vpop.trf.xlu0
    %v9443 = vpop.trf.xlu0
    %v9444 = vpop.trf.xlu0
    %v9445 = vpop.trf.xlu0
    %v9446 = vpop.trf.xlu0
    %v9447 = vpop.trf.xlu0
    %v9448 = vpop.trf.xlu0
    %v9449 = vpop.trf.xlu0
    %v9450 = vpop.trf.xlu0
    %v9451 = vpop.trf.xlu0
    %v9452 = vpop.trf.xlu0
    %v9453 = vpop.trf.xlu0
    %v9454 = vpop.trf.xlu0
    %9455 = vxpose.xlu0.b32.start [1/16] %v9185, 128
    %9456 = vxpose.xlu0.b32.cont [2/16] %v9190, 128
    %9457 = vxpose.xlu0.b32.cont [3/16] %v9195, 128
    %9458 = vxpose.xlu0.b32.cont [4/16] %v9200, 128
    %9459 = vxpose.xlu0.b32.cont [5/16] %v9205, 128
    %9460 = vxpose.xlu0.b32.cont [6/16] %v9210, 128
    %9461 = vxpose.xlu0.b32.cont [7/16] %v9215, 128
    %9462 = vxpose.xlu0.b32.cont [8/16] %v9220, 128
    %9463 = vxpose.xlu0.b32.cont [9/16] %v9225, 128
    %9464 = vxpose.xlu0.b32.cont [10/16] %v9230, 128
    %9465 = vxpose.xlu0.b32.cont [11/16] %v9235, 128
    %9466 = vxpose.xlu0.b32.cont [12/16] %v9240, 128
    %9467 = vxpose.xlu0.b32.cont [13/16] %v9245, 128
    %9468 = vxpose.xlu0.b32.cont [14/16] %v9250, 128
    %9469 = vxpose.xlu0.b32.cont [15/16] %v9255, 128
    %9470 = vxpose.xlu0.b32.end [16/16] %v9260, 128
    %v9471 = vpop.trf.xlu0
    %v9472 = vpop.trf.xlu0
    %v9473 = vpop.trf.xlu0
    %v9474 = vpop.trf.xlu0
    %v9475 = vpop.trf.xlu0
    %v9476 = vpop.trf.xlu0
    %v9477 = vpop.trf.xlu0
    %v9478 = vpop.trf.xlu0
    %v9479 = vpop.trf.xlu0
    %v9480 = vpop.trf.xlu0
    %v9481 = vpop.trf.xlu0
    %v9482 = vpop.trf.xlu0
    %v9483 = vpop.trf.xlu0
    %v9484 = vpop.trf.xlu0
    %v9485 = vpop.trf.xlu0
    %v9486 = vpop.trf.xlu0
    %9487 = vxpose.xlu0.b32.start [1/16] %v9265, 128
    %9488 = vxpose.xlu0.b32.cont [2/16] %v9270, 128
    %9489 = vxpose.xlu0.b32.cont [3/16] %v9275, 128
    %9490 = vxpose.xlu0.b32.cont [4/16] %v9280, 128
    %9491 = vxpose.xlu0.b32.cont [5/16] %v9285, 128
    %9492 = vxpose.xlu0.b32.cont [6/16] %v9290, 128
    %9493 = vxpose.xlu0.b32.cont [7/16] %v9295, 128
    %9494 = vxpose.xlu0.b32.cont [8/16] %v9300, 128
    %9495 = vxpose.xlu0.b32.cont [9/16] %v9305, 128
    %9496 = vxpose.xlu0.b32.cont [10/16] %v9310, 128
    %9497 = vxpose.xlu0.b32.cont [11/16] %v9315, 128
    %9498 = vxpose.xlu0.b32.cont [12/16] %v9320, 128
    %9499 = vxpose.xlu0.b32.cont [13/16] %v9325, 128
    %9500 = vxpose.xlu0.b32.cont [14/16] %v9330, 128
    %9501 = vxpose.xlu0.b32.cont [15/16] %v9335, 128
    %9502 = vxpose.xlu0.b32.end [16/16] %v9340, 128
    %v9503 = vpop.trf.xlu0
    %v9504 = vpop.trf.xlu0
    %v9505 = vpop.trf.xlu0
    %v9506 = vpop.trf.xlu0
    %v9507 = vpop.trf.xlu0
    %v9508 = vpop.trf.xlu0
    %v9509 = vpop.trf.xlu0
    %v9510 = vpop.trf.xlu0
    %v9511 = vpop.trf.xlu0
    %v9512 = vpop.trf.xlu0
    %v9513 = vpop.trf.xlu0
    %v9514 = vpop.trf.xlu0
    %v9515 = vpop.trf.xlu0
    %v9516 = vpop.trf.xlu0
    %v9517 = vpop.trf.xlu0
    %v9518 = vpop.trf.xlu0
    %9519 = vxpose.xlu0.b32.start [1/16] %v9345, 128
    %9520 = vxpose.xlu0.b32.cont [2/16] %v9350, 128
    %9521 = vxpose.xlu0.b32.cont [3/16] %v9355, 128
    %9522 = vxpose.xlu0.b32.cont [4/16] %v9360, 128
    %9523 = vxpose.xlu0.b32.cont [5/16] %v9365, 128
    %9524 = vxpose.xlu0.b32.cont [6/16] %v9370, 128
    %9525 = vxpose.xlu0.b32.cont [7/16] %v9375, 128
    %9526 = vxpose.xlu0.b32.cont [8/16] %v9380, 128
    %9527 = vxpose.xlu0.b32.cont [9/16] %v9385, 128
    %9528 = vxpose.xlu0.b32.cont [10/16] %v9390, 128
    %9529 = vxpose.xlu0.b32.cont [11/16] %v9395, 128
    %9530 = vxpose.xlu0.b32.cont [12/16] %v9400, 128
    %9531 = vxpose.xlu0.b32.cont [13/16] %v9405, 128
    %9532 = vxpose.xlu0.b32.cont [14/16] %v9410, 128
    %9533 = vxpose.xlu0.b32.cont [15/16] %v9415, 128
    %9534 = vxpose.xlu0.b32.end [16/16] %v9420, 128
    %v9535 = vpop.trf.xlu0
    %v9536 = vpop.trf.xlu0
    %v9537 = vpop.trf.xlu0
    %v9538 = vpop.trf.xlu0
    %v9539 = vpop.trf.xlu0
    %v9540 = vpop.trf.xlu0
    %v9541 = vpop.trf.xlu0
    %v9542 = vpop.trf.xlu0
    %v9543 = vpop.trf.xlu0
    %v9544 = vpop.trf.xlu0
    %v9545 = vpop.trf.xlu0
    %v9546 = vpop.trf.xlu0
    %v9547 = vpop.trf.xlu0
    %v9548 = vpop.trf.xlu0
    %v9549 = vpop.trf.xlu0
    %v9550 = vpop.trf.xlu0
    %9552 = vset.pattern.permute.xlu0 0
    %9553 = vperm.xlu0 %9552, %v8714
    %v9554 = vpop.permute.xlu0 %9553
    %9557 = vset.pattern.permute.xlu0 0
    %9558 = vperm.xlu0 %9557, %v8715
    %v9559 = vpop.permute.xlu0 %9558
    %9562 = vset.pattern.permute.xlu0 0
    %9563 = vperm.xlu0 %9562, %v8716
    %v9564 = vpop.permute.xlu0 %9563
    %9567 = vset.pattern.permute.xlu0 0
    %9568 = vperm.xlu0 %9567, %v8717
    %v9569 = vpop.permute.xlu0 %9568
    %v9571 = vadd.f32 %v9439, %v9554
    %v9572 = vadd.f32 %v9471, %v9554
    %v9573 = vadd.f32 %v9440, %v9559
    %v9574 = vadd.f32 %v9472, %v9559
    %v9575 = vadd.f32 %v9441, %v9564
    %v9576 = vadd.f32 %v9473, %v9564
    %v9577 = vadd.f32 %v9442, %v9569
    %v9578 = vadd.f32 %v9474, %v9569
    %v9579 = vadd.f32 %v9503, %v9554
    %v9580 = vadd.f32 %v9535, %v9554
    %v9581 = vadd.f32 %v9504, %v9559
    %v9582 = vadd.f32 %v9536, %v9559
    %v9583 = vadd.f32 %v9505, %v9564
    %v9584 = vadd.f32 %v9537, %v9564
    %v9585 = vadd.f32 %v9506, %v9569
    %v9586 = vadd.f32 %v9538, %v9569
    %v9587 = vtanh.pop %v9571
    %v9588 = vtanh.pop %v9572
    %v9589 = vtanh.pop %v9573
    %v9590 = vtanh.pop %v9574
    %v9591 = vtanh.pop %v9575
    %v9592 = vtanh.pop %v9576
    %v9593 = vtanh.pop %v9577
    %v9594 = vtanh.pop %v9578
    %v9595 = vtanh.pop %v9579
    %v9596 = vtanh.pop %v9580
    %v9597 = vtanh.pop %v9581
    %v9598 = vtanh.pop %v9582
    %v9599 = vtanh.pop %v9583
    %v9600 = vtanh.pop %v9584
    %v9601 = vtanh.pop %v9585
    %v9602 = vtanh.pop %v9586
    %9603 = vxpose.xlu0.b32.start [1/16] %v9587, 128
    %9604 = vxpose.xlu0.b32.cont [2/16] %v9589, 128
    %9605 = vxpose.xlu0.b32.cont [3/16] %v9591, 128
    %9606 = vxpose.xlu0.b32.cont [4/16] %v9593, 128
    %9607 = vxpose.xlu0.b32.cont [5/16] 0.0, 128
    %9608 = vxpose.xlu0.b32.cont [6/16] 0.0, 128
    %9609 = vxpose.xlu0.b32.cont [7/16] 0.0, 128
    %9610 = vxpose.xlu0.b32.cont [8/16] 0.0, 128
    %9611 = vxpose.xlu0.b32.cont [9/16] 0.0, 128
    %9612 = vxpose.xlu0.b32.cont [10/16] 0.0, 128
    %9613 = vxpose.xlu0.b32.cont [11/16] 0.0, 128
    %9614 = vxpose.xlu0.b32.cont [12/16] 0.0, 128
    %9615 = vxpose.xlu0.b32.cont [13/16] 0.0, 128
    %9616 = vxpose.xlu0.b32.cont [14/16] 0.0, 128
    %9617 = vxpose.xlu0.b32.cont [15/16] 0.0, 128
    %9618 = vxpose.xlu0.b32.end [16/16] 0.0, 128
    %v9619 = vpop.trf.xlu0
    %v9620 = vpop.trf.xlu0
    %v9621 = vpop.trf.xlu0
    %v9622 = vpop.trf.xlu0
    %v9623 = vpop.trf.xlu0
    %v9624 = vpop.trf.xlu0
    %v9625 = vpop.trf.xlu0
    %v9626 = vpop.trf.xlu0
    %v9627 = vpop.trf.xlu0
    %v9628 = vpop.trf.xlu0
    %v9629 = vpop.trf.xlu0
    %v9630 = vpop.trf.xlu0
    %v9631 = vpop.trf.xlu0
    %v9632 = vpop.trf.xlu0
    %v9633 = vpop.trf.xlu0
    %v9634 = vpop.trf.xlu0
    %9635 = vxpose.xlu0.b32.start [1/16] %v9588, 128
    %9636 = vxpose.xlu0.b32.cont [2/16] %v9590, 128
    %9637 = vxpose.xlu0.b32.cont [3/16] %v9592, 128
    %9638 = vxpose.xlu0.b32.cont [4/16] %v9594, 128
    %9639 = vxpose.xlu0.b32.cont [5/16] 0.0, 128
    %9640 = vxpose.xlu0.b32.cont [6/16] 0.0, 128
    %9641 = vxpose.xlu0.b32.cont [7/16] 0.0, 128
    %9642 = vxpose.xlu0.b32.cont [8/16] 0.0, 128
    %9643 = vxpose.xlu0.b32.cont [9/16] 0.0, 128
    %9644 = vxpose.xlu0.b32.cont [10/16] 0.0, 128
    %9645 = vxpose.xlu0.b32.cont [11/16] 0.0, 128
    %9646 = vxpose.xlu0.b32.cont [12/16] 0.0, 128
    %9647 = vxpose.xlu0.b32.cont [13/16] 0.0, 128
    %9648 = vxpose.xlu0.b32.cont [14/16] 0.0, 128
    %9649 = vxpose.xlu0.b32.cont [15/16] 0.0, 128
    %9650 = vxpose.xlu0.b32.end [16/16] 0.0, 128
    %v9651 = vpop.trf.xlu0
    %v9652 = vpop.trf.xlu0
    %v9653 = vpop.trf.xlu0
    %v9654 = vpop.trf.xlu0
    %v9655 = vpop.trf.xlu0
    %v9656 = vpop.trf.xlu0
    %v9657 = vpop.trf.xlu0
    %v9658 = vpop.trf.xlu0
    %v9659 = vpop.trf.xlu0
    %v9660 = vpop.trf.xlu0
    %v9661 = vpop.trf.xlu0
    %v9662 = vpop.trf.xlu0
    %v9663 = vpop.trf.xlu0
    %v9664 = vpop.trf.xlu0
    %v9665 = vpop.trf.xlu0
    %v9666 = vpop.trf.xlu0
    %9667 = vxpose.xlu0.b32.start [1/16] %v9595, 128
    %9668 = vxpose.xlu0.b32.cont [2/16] %v9597, 128
    %9669 = vxpose.xlu0.b32.cont [3/16] %v9599, 128
    %9670 = vxpose.xlu0.b32.cont [4/16] %v9601, 128
    %9671 = vxpose.xlu0.b32.cont [5/16] 0.0, 128
    %9672 = vxpose.xlu0.b32.cont [6/16] 0.0, 128
    %9673 = vxpose.xlu0.b32.cont [7/16] 0.0, 128
    %9674 = vxpose.xlu0.b32.cont [8/16] 0.0, 128
    %9675 = vxpose.xlu0.b32.cont [9/16] 0.0, 128
    %9676 = vxpose.xlu0.b32.cont [10/16] 0.0, 128
    %9677 = vxpose.xlu0.b32.cont [11/16] 0.0, 128
    %9678 = vxpose.xlu0.b32.cont [12/16] 0.0, 128
    %9679 = vxpose.xlu0.b32.cont [13/16] 0.0, 128
    %9680 = vxpose.xlu0.b32.cont [14/16] 0.0, 128
    %9681 = vxpose.xlu0.b32.cont [15/16] 0.0, 128
    %9682 = vxpose.xlu0.b32.end [16/16] 0.0, 128
    %v9683 = vpop.trf.xlu0
    %v9684 = vpop.trf.xlu0
    %v9685 = vpop.trf.xlu0
    %v9686 = vpop.trf.xlu0
    %v9687 = vpop.trf.xlu0
    %v9688 = vpop.trf.xlu0
    %v9689 = vpop.trf.xlu0
    %v9690 = vpop.trf.xlu0
    %v9691 = vpop.trf.xlu0
    %v9692 = vpop.trf.xlu0
    %v9693 = vpop.trf.xlu0
    %v9694 = vpop.trf.xlu0
    %v9695 = vpop.trf.xlu0
    %v9696 = vpop.trf.xlu0
    %v9697 = vpop.trf.xlu0
    %v9698 = vpop.trf.xlu0
    %9699 = vxpose.xlu0.b32.start [1/16] %v9596, 128
    %9700 = vxpose.xlu0.b32.cont [2/16] %v9598, 128
    %9701 = vxpose.xlu0.b32.cont [3/16] %v9600, 128
    %9702 = vxpose.xlu0.b32.cont [4/16] %v9602, 128
    %9703 = vxpose.xlu0.b32.cont [5/16] 0.0, 128
    %9704 = vxpose.xlu0.b32.cont [6/16] 0.0, 128
    %9705 = vxpose.xlu0.b32.cont [7/16] 0.0, 128
    %9706 = vxpose.xlu0.b32.cont [8/16] 0.0, 128
    %9707 = vxpose.xlu0.b32.cont [9/16] 0.0, 128
    %9708 = vxpose.xlu0.b32.cont [10/16] 0.0, 128
    %9709 = vxpose.xlu0.b32.cont [11/16] 0.0, 128
    %9710 = vxpose.xlu0.b32.cont [12/16] 0.0, 128
    %9711 = vxpose.xlu0.b32.cont [13/16] 0.0, 128
    %9712 = vxpose.xlu0.b32.cont [14/16] 0.0, 128
    %9713 = vxpose.xlu0.b32.cont [15/16] 0.0, 128
    %9714 = vxpose.xlu0.b32.end [16/16] 0.0, 128
    %v9715 = vpop.trf.xlu0
    %v9716 = vpop.trf.xlu0
    %v9717 = vpop.trf.xlu0
    %v9718 = vpop.trf.xlu0
    %v9719 = vpop.trf.xlu0
    %v9720 = vpop.trf.xlu0
    %v9721 = vpop.trf.xlu0
    %v9722 = vpop.trf.xlu0
    %v9723 = vpop.trf.xlu0
    %v9724 = vpop.trf.xlu0
    %v9725 = vpop.trf.xlu0
    %v9726 = vpop.trf.xlu0
    %v9727 = vpop.trf.xlu0
    %v9728 = vpop.trf.xlu0
    %v9729 = vpop.trf.xlu0
    %v9730 = vpop.trf.xlu0
    %v9732 = vsel %vm1057, %v9619, 0
    %v9735 = vsel %vm1057, %v9620, 0
    %v9738 = vsel %vm1057, %v9621, 0
    %v9741 = vsel %vm1057, %v9622, 0
    %v9744 = vsel %vm1057, %v9623, 0
    %v9747 = vsel %vm1057, %v9624, 0
    %v9750 = vsel %vm1057, %v9625, 0
    %v9753 = vsel %vm1057, %v9626, 0
    %v9756 = vsel %vm1057, %v9627, 0
    %v9759 = vsel %vm1057, %v9628, 0
    %v9762 = vsel %vm1057, %v9629, 0
    %v9765 = vsel %vm1057, %v9630, 0
    %v9768 = vsel %vm1057, %v9631, 0
    %v9771 = vsel %vm1057, %v9632, 0
    %v9774 = vsel %vm1057, %v9633, 0
    %v9777 = vsel %vm1057, %v9634, 0
    %v9780 = vsel %vm1057, %v9651, 0
    %v9783 = vsel %vm1057, %v9652, 0
    %v9786 = vsel %vm1057, %v9653, 0
    %v9789 = vsel %vm1057, %v9654, 0
    %v9792 = vsel %vm1057, %v9655, 0
    %v9795 = vsel %vm1057, %v9656, 0
    %v9798 = vsel %vm1057, %v9657, 0
    %v9801 = vsel %vm1057, %v9658, 0
    %v9804 = vsel %vm1057, %v9659, 0
    %v9807 = vsel %vm1057, %v9660, 0
    %v9810 = vsel %vm1057, %v9661, 0
    %v9813 = vsel %vm1057, %v9662, 0
    %v9816 = vsel %vm1057, %v9663, 0
    %v9819 = vsel %vm1057, %v9664, 0
    %v9822 = vsel %vm1057, %v9665, 0
    %v9825 = vsel %vm1057, %v9666, 0
    %v9828 = vsel %vm1057, %v9683, 0
    %v9831 = vsel %vm1057, %v9684, 0
    %v9834 = vsel %vm1057, %v9685, 0
    %v9837 = vsel %vm1057, %v9686, 0
    %v9840 = vsel %vm1057, %v9687, 0
    %v9843 = vsel %vm1057, %v9688, 0
    %v9846 = vsel %vm1057, %v9689, 0
    %v9849 = vsel %vm1057, %v9690, 0
    %v9852 = vsel %vm1057, %v9691, 0
    %v9855 = vsel %vm1057, %v9692, 0
    %v9858 = vsel %vm1057, %v9693, 0
    %v9861 = vsel %vm1057, %v9694, 0
    %v9864 = vsel %vm1057, %v9695, 0
    %v9867 = vsel %vm1057, %v9696, 0
    %v9870 = vsel %vm1057, %v9697, 0
    %v9873 = vsel %vm1057, %v9698, 0
    %v9876 = vsel %vm1057, %v9715, 0
    %v9879 = vsel %vm1057, %v9716, 0
    %v9882 = vsel %vm1057, %v9717, 0
    %v9885 = vsel %vm1057, %v9718, 0
    %v9888 = vsel %vm1057, %v9719, 0
    %v9891 = vsel %vm1057, %v9720, 0
    %v9894 = vsel %vm1057, %v9721, 0
    %v9897 = vsel %vm1057, %v9722, 0
    %v9900 = vsel %vm1057, %v9723, 0
    %v9903 = vsel %vm1057, %v9724, 0
    %v9906 = vsel %vm1057, %v9725, 0
    %v9909 = vsel %vm1057, %v9726, 0
    %v9912 = vsel %vm1057, %v9727, 0
    %v9915 = vsel %vm1057, %v9728, 0
    %v9918 = vsel %vm1057, %v9729, 0
    %v9921 = vsel %vm1057, %v9730, 0
    %9923 = vmatprep.subr.mxu0 0.0
    %9924 = vmatpush1.xpose.msra.mxu0 %v1251
    %9925 = vmatprep.subr.mxu0 0.0
    %9926 = vmatpush1.xpose.msra.mxu0 0.0
    %9927 = vmatprep.subr.mxu0 0.0
    %9928 = vmatpush1.xpose.msra.mxu0 0.0
    %9929 = vmatprep.subr.mxu0 0.0
    %9930 = vmatpush1.xpose.msra.mxu0 0.0
    %9931 = vmatprep.subr.mxu0 0.0
    %9932 = vmatpush1.xpose.msra.mxu0 0.0
    %9933 = vmatprep.subr.mxu0 0.0
    %9934 = vmatpush1.xpose.msra.mxu0 0.0
    %9935 = vmatprep.subr.mxu0 0.0
    %9936 = vmatpush1.xpose.msra.mxu0 0.0
    %9937 = vmatprep.subr.mxu0 0.0
    %9938 = vmatpush1.xpose.msra.mxu0 0.0
    %9939 = vmatprep.subr.mxu0 0.0
    %9940 = vmatpush1.xpose.msra.mxu0 0.0
    %9941 = vmatprep.subr.mxu0 0.0
    %9942 = vmatpush1.xpose.msra.mxu0 0.0
    %9943 = vmatprep.subr.mxu0 0.0
    %9944 = vmatpush1.xpose.msra.mxu0 0.0
    %9945 = vmatprep.subr.mxu0 0.0
    %9946 = vmatpush1.xpose.msra.mxu0 0.0
    %9947 = vmatprep.subr.mxu0 0.0
    %9948 = vmatpush1.xpose.msra.mxu0 0.0
    %9949 = vmatprep.subr.mxu0 0.0
    %9950 = vmatpush1.xpose.msra.mxu0 0.0
    %9951 = vmatprep.subr.mxu0 0.0
    %9952 = vmatpush1.xpose.msra.mxu0 0.0
    %9953 = vmatprep.subr.mxu0 0.0
    %9954 = vmatpush1.xpose.msra.mxu0 0.0
    %9955 = vmatprep.subr.mxu0 0.0
    %9956 = vmatpush1.xpose.msra.mxu0 0.0
    %9957 = vmatprep.subr.mxu0 0.0
    %9958 = vmatpush1.xpose.msra.mxu0 0.0
    %9959 = vmatprep.subr.mxu0 0.0
    %9960 = vmatpush1.xpose.msra.mxu0 0.0
    %9961 = vmatprep.subr.mxu0 0.0
    %9962 = vmatpush1.xpose.msra.mxu0 0.0
    %9963 = vmatprep.subr.mxu0 0.0
    %9964 = vmatpush1.xpose.msra.mxu0 0.0
    %9965 = vmatprep.subr.mxu0 0.0
    %9966 = vmatpush1.xpose.msra.mxu0 0.0
    %9967 = vmatprep.subr.mxu0 0.0
    %9968 = vmatpush1.xpose.msra.mxu0 0.0
    %9969 = vmatprep.subr.mxu0 0.0
    %9970 = vmatpush1.xpose.msra.mxu0 0.0
    %9971 = vmatprep.subr.mxu0 0.0
    %9972 = vmatpush1.xpose.msra.mxu0 0.0
    %9973 = vmatprep.subr.mxu0 0.0
    %9974 = vmatpush1.xpose.msra.mxu0 0.0
    %9975 = vmatprep.subr.mxu0 0.0
    %9976 = vmatpush1.xpose.msra.mxu0 0.0
    %9977 = vmatprep.subr.mxu0 0.0
    %9978 = vmatpush1.xpose.msra.mxu0 0.0
    %9979 = vmatprep.subr.mxu0 0.0
    %9980 = vmatpush1.xpose.msra.mxu0 0.0
    %9981 = vmatprep.subr.mxu0 0.0
    %9982 = vmatpush1.xpose.msra.mxu0 0.0
    %9983 = vmatprep.subr.mxu0 0.0
    %9984 = vmatpush1.xpose.msra.mxu0 0.0
    %9985 = vmatprep.subr.mxu0 0.0
    %9986 = vmatpush1.xpose.msra.mxu0 0.0
    %9987 = vmatprep.mubr.f32.mxu0 0.0
    %9988 = vmatmul.mubr.f32.gmra.mrb[0].mxu0 %v9732
    %v9989 = vpop.f32.mrb[0].mxu0
    %v9990 = vadd.f32 0.0, %v9989
    %v9991 = vpop.f32.mrb[0].mxu0
    %9992 = vmatprep.mubr.f32.mxu0 0.0
    %9993 = vmatmul.mubr.f32.gmra.mrb[0].mxu0 %v9735
    %v9994 = vpop.f32.mrb[0].mxu0
    %v9995 = vadd.f32 0.0, %v9994
    %v9996 = vpop.f32.mrb[0].mxu0
    %9997 = vmatprep.mubr.f32.mxu0 0.0
    %9998 = vmatmul.mubr.f32.gmra.mrb[0].mxu0 %v9738
    %v9999 = vpop.f32.mrb[0].mxu0
    %v10000 = vadd.f32 0.0, %v9999
    %v10001 = vpop.f32.mrb[0].mxu0
    %10002 = vmatprep.mubr.f32.mxu0 0.0
    %10003 = vmatmul.mubr.f32.gmra.mrb[0].mxu0 %v9741
    %v10004 = vpop.f32.mrb[0].mxu0
    %v10005 = vadd.f32 0.0, %v10004
    %v10006 = vpop.f32.mrb[0].mxu0
    %10007 = vmatprep.mubr.f32.mxu0 0.0
    %10008 = vmatmul.mubr.f32.gmra.mrb[0].mxu0 %v9744
    %v10009 = vpop.f32.mrb[0].mxu0
    %v10010 = vadd.f32 0.0, %v10009
    %v10011 = vpop.f32.mrb[0].mxu0
    %10012 = vmatprep.mubr.f32.mxu0 0.0
    %10013 = vmatmul.mubr.f32.gmra.mrb[0].mxu0 %v9747
    %v10014 = vpop.f32.mrb[0].mxu0
    %v10015 = vadd.f32 0.0, %v10014
    %v10016 = vpop.f32.mrb[0].mxu0
    %10017 = vmatprep.mubr.f32.mxu0 0.0
    %10018 = vmatmul.mubr.f32.gmra.mrb[0].mxu0 %v9750
    %v10019 = vpop.f32.mrb[0].mxu0
    %v10020 = vadd.f32 0.0, %v10019
    %v10021 = vpop.f32.mrb[0].mxu0
    %10022 = vmatprep.mubr.f32.mxu0 0.0
    %10023 = vmatmul.mubr.f32.gmra.mrb[0].mxu0 %v9753
    %v10024 = vpop.f32.mrb[0].mxu0
    %v10025 = vadd.f32 0.0, %v10024
    %v10026 = vpop.f32.mrb[0].mxu0
    %10027 = vmatprep.mubr.f32.mxu0 0.0
    %10028 = vmatmul.mubr.f32.gmra.mrb[0].mxu0 %v9756
    %v10029 = vpop.f32.mrb[0].mxu0
    %v10030 = vadd.f32 0.0, %v10029
    %v10031 = vpop.f32.mrb[0].mxu0
    %10032 = vmatprep.mubr.f32.mxu0 0.0
    %10033 = vmatmul.mubr.f32.gmra.mrb[0].mxu0 %v9759
    %v10034 = vpop.f32.mrb[0].mxu0
    %v10035 = vadd.f32 0.0, %v10034
    %v10036 = vpop.f32.mrb[0].mxu0
    %10037 = vmatprep.mubr.f32.mxu0 0.0
    %10038 = vmatmul.mubr.f32.gmra.mrb[0].mxu0 %v9762
    %v10039 = vpop.f32.mrb[0].mxu0
    %v10040 = vadd.f32 0.0, %v10039
    %v10041 = vpop.f32.mrb[0].mxu0
    %10042 = vmatprep.mubr.f32.mxu0 0.0
    %10043 = vmatmul.mubr.f32.gmra.mrb[0].mxu0 %v9765
    %v10044 = vpop.f32.mrb[0].mxu0
    %v10045 = vadd.f32 0.0, %v10044
    %v10046 = vpop.f32.mrb[0].mxu0
    %10047 = vmatprep.mubr.f32.mxu0 0.0
    %10048 = vmatmul.mubr.f32.gmra.mrb[0].mxu0 %v9768
    %v10049 = vpop.f32.mrb[0].mxu0
    %v10050 = vadd.f32 0.0, %v10049
    %v10051 = vpop.f32.mrb[0].mxu0
    %10052 = vmatprep.mubr.f32.mxu0 0.0
    %10053 = vmatmul.mubr.f32.gmra.mrb[0].mxu0 %v9771
    %v10054 = vpop.f32.mrb[0].mxu0
    %v10055 = vadd.f32 0.0, %v10054
    %v10056 = vpop.f32.mrb[0].mxu0
    %10057 = vmatprep.mubr.f32.mxu0 0.0
    %10058 = vmatmul.mubr.f32.gmra.mrb[0].mxu0 %v9774
    %v10059 = vpop.f32.mrb[0].mxu0
    %v10060 = vadd.f32 0.0, %v10059
    %v10061 = vpop.f32.mrb[0].mxu0
    %10062 = vmatprep.mubr.f32.mxu0 0.0
    %10063 = vmatmul.mubr.f32.gmra.mrb[0].mxu0 %v9777
    %v10064 = vpop.f32.mrb[0].mxu0
    %v10065 = vadd.f32 0.0, %v10064
    %v10066 = vpop.f32.mrb[0].mxu0
    %10067 = vmatprep.mubr.f32.mxu0 0.0
    %10068 = vmatmul.mubr.f32.gmra.mrb[0].mxu0 %v9780
    %v10069 = vpop.f32.mrb[0].mxu0
    %v10070 = vadd.f32 0.0, %v10069
    %v10071 = vpop.f32.mrb[0].mxu0
    %10072 = vmatprep.mubr.f32.mxu0 0.0
    %10073 = vmatmul.mubr.f32.gmra.mrb[0].mxu0 %v9783
    %v10074 = vpop.f32.mrb[0].mxu0
    %v10075 = vadd.f32 0.0, %v10074
    %v10076 = vpop.f32.mrb[0].mxu0
    %10077 = vmatprep.mubr.f32.mxu0 0.0
    %10078 = vmatmul.mubr.f32.gmra.mrb[0].mxu0 %v9786
    %v10079 = vpop.f32.mrb[0].mxu0
    %v10080 = vadd.f32 0.0, %v10079
    %v10081 = vpop.f32.mrb[0].mxu0
    %10082 = vmatprep.mubr.f32.mxu0 0.0
    %10083 = vmatmul.mubr.f32.gmra.mrb[0].mxu0 %v9789
    %v10084 = vpop.f32.mrb[0].mxu0
    %v10085 = vadd.f32 0.0, %v10084
    %v10086 = vpop.f32.mrb[0].mxu0
    %10087 = vmatprep.mubr.f32.mxu0 0.0
    %10088 = vmatmul.mubr.f32.gmra.mrb[0].mxu0 %v9792
    %v10089 = vpop.f32.mrb[0].mxu0
    %v10090 = vadd.f32 0.0, %v10089
    %v10091 = vpop.f32.mrb[0].mxu0
    %10092 = vmatprep.mubr.f32.mxu0 0.0
    %10093 = vmatmul.mubr.f32.gmra.mrb[0].mxu0 %v9795
    %v10094 = vpop.f32.mrb[0].mxu0
    %v10095 = vadd.f32 0.0, %v10094
    %v10096 = vpop.f32.mrb[0].mxu0
    %10097 = vmatprep.mubr.f32.mxu0 0.0
    %10098 = vmatmul.mubr.f32.gmra.mrb[0].mxu0 %v9798
    %v10099 = vpop.f32.mrb[0].mxu0
    %v10100 = vadd.f32 0.0, %v10099
    %v10101 = vpop.f32.mrb[0].mxu0
    %10102 = vmatprep.mubr.f32.mxu0 0.0
    %10103 = vmatmul.mubr.f32.gmra.mrb[0].mxu0 %v9801
    %v10104 = vpop.f32.mrb[0].mxu0
    %v10105 = vadd.f32 0.0, %v10104
    %v10106 = vpop.f32.mrb[0].mxu0
    %10107 = vmatprep.mubr.f32.mxu0 0.0
    %10108 = vmatmul.mubr.f32.gmra.mrb[0].mxu0 %v9804
    %v10109 = vpop.f32.mrb[0].mxu0
    %v10110 = vadd.f32 0.0, %v10109
    %v10111 = vpop.f32.mrb[0].mxu0
    %10112 = vmatprep.mubr.f32.mxu0 0.0
    %10113 = vmatmul.mubr.f32.gmra.mrb[0].mxu0 %v9807
    %v10114 = vpop.f32.mrb[0].mxu0
    %v10115 = vadd.f32 0.0, %v10114
    %v10116 = vpop.f32.mrb[0].mxu0
    %10117 = vmatprep.mubr.f32.mxu0 0.0
    %10118 = vmatmul.mubr.f32.gmra.mrb[0].mxu0 %v9810
    %v10119 = vpop.f32.mrb[0].mxu0
    %v10120 = vadd.f32 0.0, %v10119
    %v10121 = vpop.f32.mrb[0].mxu0
    %10122 = vmatprep.mubr.f32.mxu0 0.0
    %10123 = vmatmul.mubr.f32.gmra.mrb[0].mxu0 %v9813
    %v10124 = vpop.f32.mrb[0].mxu0
    %v10125 = vadd.f32 0.0, %v10124
    %v10126 = vpop.f32.mrb[0].mxu0
    %10127 = vmatprep.mubr.f32.mxu0 0.0
    %10128 = vmatmul.mubr.f32.gmra.mrb[0].mxu0 %v9816
    %v10129 = vpop.f32.mrb[0].mxu0
    %v10130 = vadd.f32 0.0, %v10129
    %v10131 = vpop.f32.mrb[0].mxu0
    %10132 = vmatprep.mubr.f32.mxu0 0.0
    %10133 = vmatmul.mubr.f32.gmra.mrb[0].mxu0 %v9819
    %v10134 = vpop.f32.mrb[0].mxu0
    %v10135 = vadd.f32 0.0, %v10134
    %v10136 = vpop.f32.mrb[0].mxu0
    %10137 = vmatprep.mubr.f32.mxu0 0.0
    %10138 = vmatmul.mubr.f32.gmra.mrb[0].mxu0 %v9822
    %v10139 = vpop.f32.mrb[0].mxu0
    %v10140 = vadd.f32 0.0, %v10139
    %v10141 = vpop.f32.mrb[0].mxu0
    %10142 = vmatprep.mubr.f32.mxu0 0.0
    %10143 = vmatmul.mubr.f32.gmra.mrb[0].mxu0 %v9825
    %v10144 = vpop.f32.mrb[0].mxu0
    %v10145 = vadd.f32 0.0, %v10144
    %v10146 = vpop.f32.mrb[0].mxu0
    %10147 = vmatprep.mubr.f32.mxu0 0.0
    %10148 = vmatmul.mubr.f32.gmra.mrb[0].mxu0 %v9828
    %v10149 = vpop.f32.mrb[0].mxu0
    %v10150 = vadd.f32 0.0, %v10149
    %v10151 = vpop.f32.mrb[0].mxu0
    %10152 = vmatprep.mubr.f32.mxu0 0.0
    %10153 = vmatmul.mubr.f32.gmra.mrb[0].mxu0 %v9831
    %v10154 = vpop.f32.mrb[0].mxu0
    %v10155 = vadd.f32 0.0, %v10154
    %v10156 = vpop.f32.mrb[0].mxu0
    %10157 = vmatprep.mubr.f32.mxu0 0.0
    %10158 = vmatmul.mubr.f32.gmra.mrb[0].mxu0 %v9834
    %v10159 = vpop.f32.mrb[0].mxu0
    %v10160 = vadd.f32 0.0, %v10159
    %v10161 = vpop.f32.mrb[0].mxu0
    %10162 = vmatprep.mubr.f32.mxu0 0.0
    %10163 = vmatmul.mubr.f32.gmra.mrb[0].mxu0 %v9837
    %v10164 = vpop.f32.mrb[0].mxu0
    %v10165 = vadd.f32 0.0, %v10164
    %v10166 = vpop.f32.mrb[0].mxu0
    %10167 = vmatprep.mubr.f32.mxu0 0.0
    %10168 = vmatmul.mubr.f32.gmra.mrb[0].mxu0 %v9840
    %v10169 = vpop.f32.mrb[0].mxu0
    %v10170 = vadd.f32 0.0, %v10169
    %v10171 = vpop.f32.mrb[0].mxu0
    %10172 = vmatprep.mubr.f32.mxu0 0.0
    %10173 = vmatmul.mubr.f32.gmra.mrb[0].mxu0 %v9843
    %v10174 = vpop.f32.mrb[0].mxu0
    %v10175 = vadd.f32 0.0, %v10174
    %v10176 = vpop.f32.mrb[0].mxu0
    %10177 = vmatprep.mubr.f32.mxu0 0.0
    %10178 = vmatmul.mubr.f32.gmra.mrb[0].mxu0 %v9846
    %v10179 = vpop.f32.mrb[0].mxu0
    %v10180 = vadd.f32 0.0, %v10179
    %v10181 = vpop.f32.mrb[0].mxu0
    %10182 = vmatprep.mubr.f32.mxu0 0.0
    %10183 = vmatmul.mubr.f32.gmra.mrb[0].mxu0 %v9849
    %v10184 = vpop.f32.mrb[0].mxu0
    %v10185 = vadd.f32 0.0, %v10184
    %v10186 = vpop.f32.mrb[0].mxu0
    %10187 = vmatprep.mubr.f32.mxu0 0.0
    %10188 = vmatmul.mubr.f32.gmra.mrb[0].mxu0 %v9852
    %v10189 = vpop.f32.mrb[0].mxu0
    %v10190 = vadd.f32 0.0, %v10189
    %v10191 = vpop.f32.mrb[0].mxu0
    %10192 = vmatprep.mubr.f32.mxu0 0.0
    %10193 = vmatmul.mubr.f32.gmra.mrb[0].mxu0 %v9855
    %v10194 = vpop.f32.mrb[0].mxu0
    %v10195 = vadd.f32 0.0, %v10194
    %v10196 = vpop.f32.mrb[0].mxu0
    %10197 = vmatprep.mubr.f32.mxu0 0.0
    %10198 = vmatmul.mubr.f32.gmra.mrb[0].mxu0 %v9858
    %v10199 = vpop.f32.mrb[0].mxu0
    %v10200 = vadd.f32 0.0, %v10199
    %v10201 = vpop.f32.mrb[0].mxu0
    %10202 = vmatprep.mubr.f32.mxu0 0.0
    %10203 = vmatmul.mubr.f32.gmra.mrb[0].mxu0 %v9861
    %v10204 = vpop.f32.mrb[0].mxu0
    %v10205 = vadd.f32 0.0, %v10204
    %v10206 = vpop.f32.mrb[0].mxu0
    %10207 = vmatprep.mubr.f32.mxu0 0.0
    %10208 = vmatmul.mubr.f32.gmra.mrb[0].mxu0 %v9864
    %v10209 = vpop.f32.mrb[0].mxu0
    %v10210 = vadd.f32 0.0, %v10209
    %v10211 = vpop.f32.mrb[0].mxu0
    %10212 = vmatprep.mubr.f32.mxu0 0.0
    %10213 = vmatmul.mubr.f32.gmra.mrb[0].mxu0 %v9867
    %v10214 = vpop.f32.mrb[0].mxu0
    %v10215 = vadd.f32 0.0, %v10214
    %v10216 = vpop.f32.mrb[0].mxu0
    %10217 = vmatprep.mubr.f32.mxu0 0.0
    %10218 = vmatmul.mubr.f32.gmra.mrb[0].mxu0 %v9870
    %v10219 = vpop.f32.mrb[0].mxu0
    %v10220 = vadd.f32 0.0, %v10219
    %v10221 = vpop.f32.mrb[0].mxu0
    %10222 = vmatprep.mubr.f32.mxu0 0.0
    %10223 = vmatmul.mubr.f32.gmra.mrb[0].mxu0 %v9873
    %v10224 = vpop.f32.mrb[0].mxu0
    %v10225 = vadd.f32 0.0, %v10224
    %v10226 = vpop.f32.mrb[0].mxu0
    %10227 = vmatprep.mubr.f32.mxu0 0.0
    %10228 = vmatmul.mubr.f32.gmra.mrb[0].mxu0 %v9876
    %v10229 = vpop.f32.mrb[0].mxu0
    %v10230 = vadd.f32 0.0, %v10229
    %v10231 = vpop.f32.mrb[0].mxu0
    %10232 = vmatprep.mubr.f32.mxu0 0.0
    %10233 = vmatmul.mubr.f32.gmra.mrb[0].mxu0 %v9879
    %v10234 = vpop.f32.mrb[0].mxu0
    %v10235 = vadd.f32 0.0, %v10234
    %v10236 = vpop.f32.mrb[0].mxu0
    %10237 = vmatprep.mubr.f32.mxu0 0.0
    %10238 = vmatmul.mubr.f32.gmra.mrb[0].mxu0 %v9882
    %v10239 = vpop.f32.mrb[0].mxu0
    %v10240 = vadd.f32 0.0, %v10239
    %v10241 = vpop.f32.mrb[0].mxu0
    %10242 = vmatprep.mubr.f32.mxu0 0.0
    %10243 = vmatmul.mubr.f32.gmra.mrb[0].mxu0 %v9885
    %v10244 = vpop.f32.mrb[0].mxu0
    %v10245 = vadd.f32 0.0, %v10244
    %v10246 = vpop.f32.mrb[0].mxu0
    %10247 = vmatprep.mubr.f32.mxu0 0.0
    %10248 = vmatmul.mubr.f32.gmra.mrb[0].mxu0 %v9888
    %v10249 = vpop.f32.mrb[0].mxu0
    %v10250 = vadd.f32 0.0, %v10249
    %v10251 = vpop.f32.mrb[0].mxu0
    %10252 = vmatprep.mubr.f32.mxu0 0.0
    %10253 = vmatmul.mubr.f32.gmra.mrb[0].mxu0 %v9891
    %v10254 = vpop.f32.mrb[0].mxu0
    %v10255 = vadd.f32 0.0, %v10254
    %v10256 = vpop.f32.mrb[0].mxu0
    %10257 = vmatprep.mubr.f32.mxu0 0.0
    %10258 = vmatmul.mubr.f32.gmra.mrb[0].mxu0 %v9894
    %v10259 = vpop.f32.mrb[0].mxu0
    %v10260 = vadd.f32 0.0, %v10259
    %v10261 = vpop.f32.mrb[0].mxu0
    %10262 = vmatprep.mubr.f32.mxu0 0.0
    %10263 = vmatmul.mubr.f32.gmra.mrb[0].mxu0 %v9897
    %v10264 = vpop.f32.mrb[0].mxu0
    %v10265 = vadd.f32 0.0, %v10264
    %v10266 = vpop.f32.mrb[0].mxu0
    %10267 = vmatprep.mubr.f32.mxu0 0.0
    %10268 = vmatmul.mubr.f32.gmra.mrb[0].mxu0 %v9900
    %v10269 = vpop.f32.mrb[0].mxu0
    %v10270 = vadd.f32 0.0, %v10269
    %v10271 = vpop.f32.mrb[0].mxu0
    %10272 = vmatprep.mubr.f32.mxu0 0.0
    %10273 = vmatmul.mubr.f32.gmra.mrb[0].mxu0 %v9903
    %v10274 = vpop.f32.mrb[0].mxu0
    %v10275 = vadd.f32 0.0, %v10274
    %v10276 = vpop.f32.mrb[0].mxu0
    %10277 = vmatprep.mubr.f32.mxu0 0.0
    %10278 = vmatmul.mubr.f32.gmra.mrb[0].mxu0 %v9906
    %v10279 = vpop.f32.mrb[0].mxu0
    %v10280 = vadd.f32 0.0, %v10279
    %v10281 = vpop.f32.mrb[0].mxu0
    %10282 = vmatprep.mubr.f32.mxu0 0.0
    %10283 = vmatmul.mubr.f32.gmra.mrb[0].mxu0 %v9909
    %v10284 = vpop.f32.mrb[0].mxu0
    %v10285 = vadd.f32 0.0, %v10284
    %v10286 = vpop.f32.mrb[0].mxu0
    %10287 = vmatprep.mubr.f32.mxu0 0.0
    %10288 = vmatmul.mubr.f32.gmra.mrb[0].mxu0 %v9912
    %v10289 = vpop.f32.mrb[0].mxu0
    %v10290 = vadd.f32 0.0, %v10289
    %v10291 = vpop.f32.mrb[0].mxu0
    %10292 = vmatprep.mubr.f32.mxu0 0.0
    %10293 = vmatmul.mubr.f32.gmra.mrb[0].mxu0 %v9915
    %v10294 = vpop.f32.mrb[0].mxu0
    %v10295 = vadd.f32 0.0, %v10294
    %v10296 = vpop.f32.mrb[0].mxu0
    %10297 = vmatprep.mubr.f32.mxu0 0.0
    %10298 = vmatmul.mubr.f32.gmra.mrb[0].mxu0 %v9918
    %v10299 = vpop.f32.mrb[0].mxu0
    %v10300 = vadd.f32 0.0, %v10299
    %v10301 = vpop.f32.mrb[0].mxu0
    %10302 = vmatprep.mubr.f32.mxu0 0.0
    %10303 = vmatmul.mubr.f32.gmra.mrb[0].mxu0 %v9921
    %v10304 = vpop.f32.mrb[0].mxu0
    %v10305 = vadd.f32 0.0, %v10304
    %v10306 = vpop.f32.mrb[0].mxu0
    %10307 = vdwg.mxu0
    %10308 = vxpose.xlu0.b32.start [1/16] %v9990, 128
    %10309 = vxpose.xlu0.b32.cont [2/16] %v9995, 128
    %10310 = vxpose.xlu0.b32.cont [3/16] %v10000, 128
    %10311 = vxpose.xlu0.b32.cont [4/16] %v10005, 128
    %10312 = vxpose.xlu0.b32.cont [5/16] %v10010, 128
    %10313 = vxpose.xlu0.b32.cont [6/16] %v10015, 128
    %10314 = vxpose.xlu0.b32.cont [7/16] %v10020, 128
    %10315 = vxpose.xlu0.b32.cont [8/16] %v10025, 128
    %10316 = vxpose.xlu0.b32.cont [9/16] %v10030, 128
    %10317 = vxpose.xlu0.b32.cont [10/16] %v10035, 128
    %10318 = vxpose.xlu0.b32.cont [11/16] %v10040, 128
    %10319 = vxpose.xlu0.b32.cont [12/16] %v10045, 128
    %10320 = vxpose.xlu0.b32.cont [13/16] %v10050, 128
    %10321 = vxpose.xlu0.b32.cont [14/16] %v10055, 128
    %10322 = vxpose.xlu0.b32.cont [15/16] %v10060, 128
    %10323 = vxpose.xlu0.b32.end [16/16] %v10065, 128
    %v10324 = vpop.trf.xlu0
    %v10325 = vpop.trf.xlu0
    %v10326 = vpop.trf.xlu0
    %v10327 = vpop.trf.xlu0
    %v10328 = vpop.trf.xlu0
    %v10329 = vpop.trf.xlu0
    %v10330 = vpop.trf.xlu0
    %v10331 = vpop.trf.xlu0
    %v10332 = vpop.trf.xlu0
    %v10333 = vpop.trf.xlu0
    %v10334 = vpop.trf.xlu0
    %v10335 = vpop.trf.xlu0
    %v10336 = vpop.trf.xlu0
    %v10337 = vpop.trf.xlu0
    %v10338 = vpop.trf.xlu0
    %v10339 = vpop.trf.xlu0
    %10340 = vxpose.xlu0.b32.start [1/16] %v10070, 128
    %10341 = vxpose.xlu0.b32.cont [2/16] %v10075, 128
    %10342 = vxpose.xlu0.b32.cont [3/16] %v10080, 128
    %10343 = vxpose.xlu0.b32.cont [4/16] %v10085, 128
    %10344 = vxpose.xlu0.b32.cont [5/16] %v10090, 128
    %10345 = vxpose.xlu0.b32.cont [6/16] %v10095, 128
    %10346 = vxpose.xlu0.b32.cont [7/16] %v10100, 128
    %10347 = vxpose.xlu0.b32.cont [8/16] %v10105, 128
    %10348 = vxpose.xlu0.b32.cont [9/16] %v10110, 128
    %10349 = vxpose.xlu0.b32.cont [10/16] %v10115, 128
    %10350 = vxpose.xlu0.b32.cont [11/16] %v10120, 128
    %10351 = vxpose.xlu0.b32.cont [12/16] %v10125, 128
    %10352 = vxpose.xlu0.b32.cont [13/16] %v10130, 128
    %10353 = vxpose.xlu0.b32.cont [14/16] %v10135, 128
    %10354 = vxpose.xlu0.b32.cont [15/16] %v10140, 128
    %10355 = vxpose.xlu0.b32.end [16/16] %v10145, 128
    %v10356 = vpop.trf.xlu0
    %v10357 = vpop.trf.xlu0
    %v10358 = vpop.trf.xlu0
    %v10359 = vpop.trf.xlu0
    %v10360 = vpop.trf.xlu0
    %v10361 = vpop.trf.xlu0
    %v10362 = vpop.trf.xlu0
    %v10363 = vpop.trf.xlu0
    %v10364 = vpop.trf.xlu0
    %v10365 = vpop.trf.xlu0
    %v10366 = vpop.trf.xlu0
    %v10367 = vpop.trf.xlu0
    %v10368 = vpop.trf.xlu0
    %v10369 = vpop.trf.xlu0
    %v10370 = vpop.trf.xlu0
    %v10371 = vpop.trf.xlu0
    %10372 = vxpose.xlu0.b32.start [1/16] %v10150, 128
    %10373 = vxpose.xlu0.b32.cont [2/16] %v10155, 128
    %10374 = vxpose.xlu0.b32.cont [3/16] %v10160, 128
    %10375 = vxpose.xlu0.b32.cont [4/16] %v10165, 128
    %10376 = vxpose.xlu0.b32.cont [5/16] %v10170, 128
    %10377 = vxpose.xlu0.b32.cont [6/16] %v10175, 128
    %10378 = vxpose.xlu0.b32.cont [7/16] %v10180, 128
    %10379 = vxpose.xlu0.b32.cont [8/16] %v10185, 128
    %10380 = vxpose.xlu0.b32.cont [9/16] %v10190, 128
    %10381 = vxpose.xlu0.b32.cont [10/16] %v10195, 128
    %10382 = vxpose.xlu0.b32.cont [11/16] %v10200, 128
    %10383 = vxpose.xlu0.b32.cont [12/16] %v10205, 128
    %10384 = vxpose.xlu0.b32.cont [13/16] %v10210, 128
    %10385 = vxpose.xlu0.b32.cont [14/16] %v10215, 128
    %10386 = vxpose.xlu0.b32.cont [15/16] %v10220, 128
    %10387 = vxpose.xlu0.b32.end [16/16] %v10225, 128
    %v10388 = vpop.trf.xlu0
    %v10389 = vpop.trf.xlu0
    %v10390 = vpop.trf.xlu0
    %v10391 = vpop.trf.xlu0
    %v10392 = vpop.trf.xlu0
    %v10393 = vpop.trf.xlu0
    %v10394 = vpop.trf.xlu0
    %v10395 = vpop.trf.xlu0
    %v10396 = vpop.trf.xlu0
    %v10397 = vpop.trf.xlu0
    %v10398 = vpop.trf.xlu0
    %v10399 = vpop.trf.xlu0
    %v10400 = vpop.trf.xlu0
    %v10401 = vpop.trf.xlu0
    %v10402 = vpop.trf.xlu0
    %v10403 = vpop.trf.xlu0
    %10404 = vxpose.xlu0.b32.start [1/16] %v10230, 128
    %10405 = vxpose.xlu0.b32.cont [2/16] %v10235, 128
    %10406 = vxpose.xlu0.b32.cont [3/16] %v10240, 128
    %10407 = vxpose.xlu0.b32.cont [4/16] %v10245, 128
    %10408 = vxpose.xlu0.b32.cont [5/16] %v10250, 128
    %10409 = vxpose.xlu0.b32.cont [6/16] %v10255, 128
    %10410 = vxpose.xlu0.b32.cont [7/16] %v10260, 128
    %10411 = vxpose.xlu0.b32.cont [8/16] %v10265, 128
    %10412 = vxpose.xlu0.b32.cont [9/16] %v10270, 128
    %10413 = vxpose.xlu0.b32.cont [10/16] %v10275, 128
    %10414 = vxpose.xlu0.b32.cont [11/16] %v10280, 128
    %10415 = vxpose.xlu0.b32.cont [12/16] %v10285, 128
    %10416 = vxpose.xlu0.b32.cont [13/16] %v10290, 128
    %10417 = vxpose.xlu0.b32.cont [14/16] %v10295, 128
    %10418 = vxpose.xlu0.b32.cont [15/16] %v10300, 128
    %10419 = vxpose.xlu0.b32.end [16/16] %v10305, 128
    %v10420 = vpop.trf.xlu0
    %v10421 = vpop.trf.xlu0
    %v10422 = vpop.trf.xlu0
    %v10423 = vpop.trf.xlu0
    %v10424 = vpop.trf.xlu0
    %v10425 = vpop.trf.xlu0
    %v10426 = vpop.trf.xlu0
    %v10427 = vpop.trf.xlu0
    %v10428 = vpop.trf.xlu0
    %v10429 = vpop.trf.xlu0
    %v10430 = vpop.trf.xlu0
    %v10431 = vpop.trf.xlu0
    %v10432 = vpop.trf.xlu0
    %v10433 = vpop.trf.xlu0
    %v10434 = vpop.trf.xlu0
    %v10435 = vpop.trf.xlu0
    %v10436 = vmul.f32 %v8710, 0.98078525
    %v10437 = vmul.f32 %v8711, 0.98078525
    %v10438 = vmul.f32 %v8712, 0.98078525
    %v10439 = vmul.f32 %v8713, 0.98078525
    %v10440 = vmul.f32 %v10324, -0.19509032
    %v10441 = vmul.f32 %v10356, -0.19509032
    %v10442 = vmul.f32 %v10388, -0.19509032
    %v10443 = vmul.f32 %v10420, -0.19509032
    %v10444 = vadd.f32 %v10436, %v10440
    %v10445 = vadd.f32 %v10437, %v10441
    %v10446 = vadd.f32 %v10438, %v10442
    %v10447 = vadd.f32 %v10439, %v10443
    %v10448 = vmul.f32 %v26, 0.25
    %v10449 = vmul.f32 %v27, 0.25
    %v10450 = vmul.f32 %v28, 0.25
    %v10451 = vmul.f32 %v29, 0.25
    %10452 = vxpose.xlu0.b32.start [1/16] %v10444, 128
    %10453 = vxpose.xlu0.b32.cont [2/16] 0.0, 128
    %10454 = vxpose.xlu0.b32.cont [3/16] 0.0, 128
    %10455 = vxpose.xlu0.b32.cont [4/16] 0.0, 128
    %10456 = vxpose.xlu0.b32.cont [5/16] 0.0, 128
    %10457 = vxpose.xlu0.b32.cont [6/16] 0.0, 128
    %10458 = vxpose.xlu0.b32.cont [7/16] 0.0, 128
    %10459 = vxpose.xlu0.b32.cont [8/16] 0.0, 128
    %10460 = vxpose.xlu0.b32.cont [9/16] 0.0, 128
    %10461 = vxpose.xlu0.b32.cont [10/16] 0.0, 128
    %10462 = vxpose.xlu0.b32.cont [11/16] 0.0, 128
    %10463 = vxpose.xlu0.b32.cont [12/16] 0.0, 128
    %10464 = vxpose.xlu0.b32.cont [13/16] 0.0, 128
    %10465 = vxpose.xlu0.b32.cont [14/16] 0.0, 128
    %10466 = vxpose.xlu0.b32.cont [15/16] 0.0, 128
    %10467 = vxpose.xlu0.b32.end [16/16] 0.0, 128
    %v10468 = vpop.trf.xlu0
    %v10469 = vpop.trf.xlu0
    %v10470 = vpop.trf.xlu0
    %v10471 = vpop.trf.xlu0
    %v10472 = vpop.trf.xlu0
    %v10473 = vpop.trf.xlu0
    %v10474 = vpop.trf.xlu0
    %v10475 = vpop.trf.xlu0
    %v10476 = vpop.trf.xlu0
    %v10477 = vpop.trf.xlu0
    %v10478 = vpop.trf.xlu0
    %v10479 = vpop.trf.xlu0
    %v10480 = vpop.trf.xlu0
    %v10481 = vpop.trf.xlu0
    %v10482 = vpop.trf.xlu0
    %v10483 = vpop.trf.xlu0
    %10484 = vxpose.xlu0.b32.start [1/16] %v10445, 128
    %10485 = vxpose.xlu0.b32.cont [2/16] 0.0, 128
    %10486 = vxpose.xlu0.b32.cont [3/16] 0.0, 128
    %10487 = vxpose.xlu0.b32.cont [4/16] 0.0, 128
    %10488 = vxpose.xlu0.b32.cont [5/16] 0.0, 128
    %10489 = vxpose.xlu0.b32.cont [6/16] 0.0, 128
    %10490 = vxpose.xlu0.b32.cont [7/16] 0.0, 128
    %10491 = vxpose.xlu0.b32.cont [8/16] 0.0, 128
    %10492 = vxpose.xlu0.b32.cont [9/16] 0.0, 128
    %10493 = vxpose.xlu0.b32.cont [10/16] 0.0, 128
    %10494 = vxpose.xlu0.b32.cont [11/16] 0.0, 128
    %10495 = vxpose.xlu0.b32.cont [12/16] 0.0, 128
    %10496 = vxpose.xlu0.b32.cont [13/16] 0.0, 128
    %10497 = vxpose.xlu0.b32.cont [14/16] 0.0, 128
    %10498 = vxpose.xlu0.b32.cont [15/16] 0.0, 128
    %10499 = vxpose.xlu0.b32.end [16/16] 0.0, 128
    %v10500 = vpop.trf.xlu0
    %v10501 = vpop.trf.xlu0
    %v10502 = vpop.trf.xlu0
    %v10503 = vpop.trf.xlu0
    %v10504 = vpop.trf.xlu0
    %v10505 = vpop.trf.xlu0
    %v10506 = vpop.trf.xlu0
    %v10507 = vpop.trf.xlu0
    %v10508 = vpop.trf.xlu0
    %v10509 = vpop.trf.xlu0
    %v10510 = vpop.trf.xlu0
    %v10511 = vpop.trf.xlu0
    %v10512 = vpop.trf.xlu0
    %v10513 = vpop.trf.xlu0
    %v10514 = vpop.trf.xlu0
    %v10515 = vpop.trf.xlu0
    %10516 = vxpose.xlu0.b32.start [1/16] %v10446, 128
    %10517 = vxpose.xlu0.b32.cont [2/16] 0.0, 128
    %10518 = vxpose.xlu0.b32.cont [3/16] 0.0, 128
    %10519 = vxpose.xlu0.b32.cont [4/16] 0.0, 128
    %10520 = vxpose.xlu0.b32.cont [5/16] 0.0, 128
    %10521 = vxpose.xlu0.b32.cont [6/16] 0.0, 128
    %10522 = vxpose.xlu0.b32.cont [7/16] 0.0, 128
    %10523 = vxpose.xlu0.b32.cont [8/16] 0.0, 128
    %10524 = vxpose.xlu0.b32.cont [9/16] 0.0, 128
    %10525 = vxpose.xlu0.b32.cont [10/16] 0.0, 128
    %10526 = vxpose.xlu0.b32.cont [11/16] 0.0, 128
    %10527 = vxpose.xlu0.b32.cont [12/16] 0.0, 128
    %10528 = vxpose.xlu0.b32.cont [13/16] 0.0, 128
    %10529 = vxpose.xlu0.b32.cont [14/16] 0.0, 128
    %10530 = vxpose.xlu0.b32.cont [15/16] 0.0, 128
    %10531 = vxpose.xlu0.b32.end [16/16] 0.0, 128
    %v10532 = vpop.trf.xlu0
    %v10533 = vpop.trf.xlu0
    %v10534 = vpop.trf.xlu0
    %v10535 = vpop.trf.xlu0
    %v10536 = vpop.trf.xlu0
    %v10537 = vpop.trf.xlu0
    %v10538 = vpop.trf.xlu0
    %v10539 = vpop.trf.xlu0
    %v10540 = vpop.trf.xlu0
    %v10541 = vpop.trf.xlu0
    %v10542 = vpop.trf.xlu0
    %v10543 = vpop.trf.xlu0
    %v10544 = vpop.trf.xlu0
    %v10545 = vpop.trf.xlu0
    %v10546 = vpop.trf.xlu0
    %v10547 = vpop.trf.xlu0
    %10548 = vxpose.xlu0.b32.start [1/16] %v10447, 128
    %10549 = vxpose.xlu0.b32.cont [2/16] 0.0, 128
    %10550 = vxpose.xlu0.b32.cont [3/16] 0.0, 128
    %10551 = vxpose.xlu0.b32.cont [4/16] 0.0, 128
    %10552 = vxpose.xlu0.b32.cont [5/16] 0.0, 128
    %10553 = vxpose.xlu0.b32.cont [6/16] 0.0, 128
    %10554 = vxpose.xlu0.b32.cont [7/16] 0.0, 128
    %10555 = vxpose.xlu0.b32.cont [8/16] 0.0, 128
    %10556 = vxpose.xlu0.b32.cont [9/16] 0.0, 128
    %10557 = vxpose.xlu0.b32.cont [10/16] 0.0, 128
    %10558 = vxpose.xlu0.b32.cont [11/16] 0.0, 128
    %10559 = vxpose.xlu0.b32.cont [12/16] 0.0, 128
    %10560 = vxpose.xlu0.b32.cont [13/16] 0.0, 128
    %10561 = vxpose.xlu0.b32.cont [14/16] 0.0, 128
    %10562 = vxpose.xlu0.b32.cont [15/16] 0.0, 128
    %10563 = vxpose.xlu0.b32.end [16/16] 0.0, 128
    %v10564 = vpop.trf.xlu0
    %v10565 = vpop.trf.xlu0
    %v10566 = vpop.trf.xlu0
    %v10567 = vpop.trf.xlu0
    %v10568 = vpop.trf.xlu0
    %v10569 = vpop.trf.xlu0
    %v10570 = vpop.trf.xlu0
    %v10571 = vpop.trf.xlu0
    %v10572 = vpop.trf.xlu0
    %v10573 = vpop.trf.xlu0
    %v10574 = vpop.trf.xlu0
    %v10575 = vpop.trf.xlu0
    %v10576 = vpop.trf.xlu0
    %v10577 = vpop.trf.xlu0
    %v10578 = vpop.trf.xlu0
    %v10579 = vpop.trf.xlu0
    %v10581 = vsel %vm159, %v10468, 0
    %v10584 = vsel %vm159, %v10469, 0
    %v10587 = vsel %vm159, %v10470, 0
    %v10590 = vsel %vm159, %v10471, 0
    %v10593 = vsel %vm159, %v10472, 0
    %v10596 = vsel %vm159, %v10473, 0
    %v10599 = vsel %vm159, %v10474, 0
    %v10602 = vsel %vm159, %v10475, 0
    %v10605 = vsel %vm159, %v10476, 0
    %v10608 = vsel %vm159, %v10477, 0
    %v10611 = vsel %vm159, %v10478, 0
    %v10614 = vsel %vm159, %v10479, 0
    %v10617 = vsel %vm159, %v10480, 0
    %v10620 = vsel %vm159, %v10481, 0
    %v10623 = vsel %vm159, %v10482, 0
    %v10626 = vsel %vm159, %v10483, 0
    %v10629 = vsel %vm159, %v10500, 0
    %v10632 = vsel %vm159, %v10501, 0
    %v10635 = vsel %vm159, %v10502, 0
    %v10638 = vsel %vm159, %v10503, 0
    %v10641 = vsel %vm159, %v10504, 0
    %v10644 = vsel %vm159, %v10505, 0
    %v10647 = vsel %vm159, %v10506, 0
    %v10650 = vsel %vm159, %v10507, 0
    %v10653 = vsel %vm159, %v10508, 0
    %v10656 = vsel %vm159, %v10509, 0
    %v10659 = vsel %vm159, %v10510, 0
    %v10662 = vsel %vm159, %v10511, 0
    %v10665 = vsel %vm159, %v10512, 0
    %v10668 = vsel %vm159, %v10513, 0
    %v10671 = vsel %vm159, %v10514, 0
    %v10674 = vsel %vm159, %v10515, 0
    %v10677 = vsel %vm159, %v10532, 0
    %v10680 = vsel %vm159, %v10533, 0
    %v10683 = vsel %vm159, %v10534, 0
    %v10686 = vsel %vm159, %v10535, 0
    %v10689 = vsel %vm159, %v10536, 0
    %v10692 = vsel %vm159, %v10537, 0
    %v10695 = vsel %vm159, %v10538, 0
    %v10698 = vsel %vm159, %v10539, 0
    %v10701 = vsel %vm159, %v10540, 0
    %v10704 = vsel %vm159, %v10541, 0
    %v10707 = vsel %vm159, %v10542, 0
    %v10710 = vsel %vm159, %v10543, 0
    %v10713 = vsel %vm159, %v10544, 0
    %v10716 = vsel %vm159, %v10545, 0
    %v10719 = vsel %vm159, %v10546, 0
    %v10722 = vsel %vm159, %v10547, 0
    %v10725 = vsel %vm159, %v10564, 0
    %v10728 = vsel %vm159, %v10565, 0
    %v10731 = vsel %vm159, %v10566, 0
    %v10734 = vsel %vm159, %v10567, 0
    %v10737 = vsel %vm159, %v10568, 0
    %v10740 = vsel %vm159, %v10569, 0
    %v10743 = vsel %vm159, %v10570, 0
    %v10746 = vsel %vm159, %v10571, 0
    %v10749 = vsel %vm159, %v10572, 0
    %v10752 = vsel %vm159, %v10573, 0
    %v10755 = vsel %vm159, %v10574, 0
    %v10758 = vsel %vm159, %v10575, 0
    %v10761 = vsel %vm159, %v10576, 0
    %v10764 = vsel %vm159, %v10577, 0
    %v10767 = vsel %vm159, %v10578, 0
    %v10770 = vsel %vm159, %v10579, 0
    %10772 = vmatprep.subr.mxu0 0.0
    %10773 = vmatpush1.xpose.msra.mxu0 %v353
    %10774 = vmatprep.subr.mxu0 0.0
    %10775 = vmatpush1.xpose.msra.mxu0 %v356
    %10776 = vmatprep.subr.mxu0 0.0
    %10777 = vmatpush1.xpose.msra.mxu0 %v359
    %10778 = vmatprep.subr.mxu0 0.0
    %10779 = vmatpush1.xpose.msra.mxu0 %v362
    %10780 = vmatprep.subr.mxu0 0.0
    %10781 = vmatpush1.xpose.msra.mxu0 0.0
    %10782 = vmatprep.subr.mxu0 0.0
    %10783 = vmatpush1.xpose.msra.mxu0 0.0
    %10784 = vmatprep.subr.mxu0 0.0
    %10785 = vmatpush1.xpose.msra.mxu0 0.0
    %10786 = vmatprep.subr.mxu0 0.0
    %10787 = vmatpush1.xpose.msra.mxu0 0.0
    %10788 = vmatprep.subr.mxu0 0.0
    %10789 = vmatpush1.xpose.msra.mxu0 0.0
    %10790 = vmatprep.subr.mxu0 0.0
    %10791 = vmatpush1.xpose.msra.mxu0 0.0
    %10792 = vmatprep.subr.mxu0 0.0
    %10793 = vmatpush1.xpose.msra.mxu0 0.0
    %10794 = vmatprep.subr.mxu0 0.0
    %10795 = vmatpush1.xpose.msra.mxu0 0.0
    %10796 = vmatprep.subr.mxu0 0.0
    %10797 = vmatpush1.xpose.msra.mxu0 0.0
    %10798 = vmatprep.subr.mxu0 0.0
    %10799 = vmatpush1.xpose.msra.mxu0 0.0
    %10800 = vmatprep.subr.mxu0 0.0
    %10801 = vmatpush1.xpose.msra.mxu0 0.0
    %10802 = vmatprep.subr.mxu0 0.0
    %10803 = vmatpush1.xpose.msra.mxu0 0.0
    %10804 = vmatprep.subr.mxu0 0.0
    %10805 = vmatpush1.xpose.msra.mxu0 0.0
    %10806 = vmatprep.subr.mxu0 0.0
    %10807 = vmatpush1.xpose.msra.mxu0 0.0
    %10808 = vmatprep.subr.mxu0 0.0
    %10809 = vmatpush1.xpose.msra.mxu0 0.0
    %10810 = vmatprep.subr.mxu0 0.0
    %10811 = vmatpush1.xpose.msra.mxu0 0.0
    %10812 = vmatprep.subr.mxu0 0.0
    %10813 = vmatpush1.xpose.msra.mxu0 0.0
    %10814 = vmatprep.subr.mxu0 0.0
    %10815 = vmatpush1.xpose.msra.mxu0 0.0
    %10816 = vmatprep.subr.mxu0 0.0
    %10817 = vmatpush1.xpose.msra.mxu0 0.0
    %10818 = vmatprep.subr.mxu0 0.0
    %10819 = vmatpush1.xpose.msra.mxu0 0.0
    %10820 = vmatprep.subr.mxu0 0.0
    %10821 = vmatpush1.xpose.msra.mxu0 0.0
    %10822 = vmatprep.subr.mxu0 0.0
    %10823 = vmatpush1.xpose.msra.mxu0 0.0
    %10824 = vmatprep.subr.mxu0 0.0
    %10825 = vmatpush1.xpose.msra.mxu0 0.0
    %10826 = vmatprep.subr.mxu0 0.0
    %10827 = vmatpush1.xpose.msra.mxu0 0.0
    %10828 = vmatprep.subr.mxu0 0.0
    %10829 = vmatpush1.xpose.msra.mxu0 0.0
    %10830 = vmatprep.subr.mxu0 0.0
    %10831 = vmatpush1.xpose.msra.mxu0 0.0
    %10832 = vmatprep.subr.mxu0 0.0
    %10833 = vmatpush1.xpose.msra.mxu0 0.0
    %10834 = vmatprep.subr.mxu0 0.0
    %10835 = vmatpush1.xpose.msra.mxu0 0.0
    %10836 = vmatprep.mubr.f32.mxu0 0.0
    %10837 = vmatmul.mubr.f32.gmra.mrb[0].mxu0 %v10581
    %v10838 = vpop.f32.mrb[0].mxu0
    %v10839 = vadd.f32 0.0, %v10838
    %v10840 = vpop.f32.mrb[0].mxu0
    %10841 = vmatprep.mubr.f32.mxu0 0.0
    %10842 = vmatmul.mubr.f32.gmra.mrb[0].mxu0 %v10584
    %v10843 = vpop.f32.mrb[0].mxu0
    %v10844 = vadd.f32 0.0, %v10843
    %v10845 = vpop.f32.mrb[0].mxu0
    %10846 = vmatprep.mubr.f32.mxu0 0.0
    %10847 = vmatmul.mubr.f32.gmra.mrb[0].mxu0 %v10587
    %v10848 = vpop.f32.mrb[0].mxu0
    %v10849 = vadd.f32 0.0, %v10848
    %v10850 = vpop.f32.mrb[0].mxu0
    %10851 = vmatprep.mubr.f32.mxu0 0.0
    %10852 = vmatmul.mubr.f32.gmra.mrb[0].mxu0 %v10590
    %v10853 = vpop.f32.mrb[0].mxu0
    %v10854 = vadd.f32 0.0, %v10853
    %v10855 = vpop.f32.mrb[0].mxu0
    %10856 = vmatprep.mubr.f32.mxu0 0.0
    %10857 = vmatmul.mubr.f32.gmra.mrb[0].mxu0 %v10593
    %v10858 = vpop.f32.mrb[0].mxu0
    %v10859 = vadd.f32 0.0, %v10858
    %v10860 = vpop.f32.mrb[0].mxu0
    %10861 = vmatprep.mubr.f32.mxu0 0.0
    %10862 = vmatmul.mubr.f32.gmra.mrb[0].mxu0 %v10596
    %v10863 = vpop.f32.mrb[0].mxu0
    %v10864 = vadd.f32 0.0, %v10863
    %v10865 = vpop.f32.mrb[0].mxu0
    %10866 = vmatprep.mubr.f32.mxu0 0.0
    %10867 = vmatmul.mubr.f32.gmra.mrb[0].mxu0 %v10599
    %v10868 = vpop.f32.mrb[0].mxu0
    %v10869 = vadd.f32 0.0, %v10868
    %v10870 = vpop.f32.mrb[0].mxu0
    %10871 = vmatprep.mubr.f32.mxu0 0.0
    %10872 = vmatmul.mubr.f32.gmra.mrb[0].mxu0 %v10602
    %v10873 = vpop.f32.mrb[0].mxu0
    %v10874 = vadd.f32 0.0, %v10873
    %v10875 = vpop.f32.mrb[0].mxu0
    %10876 = vmatprep.mubr.f32.mxu0 0.0
    %10877 = vmatmul.mubr.f32.gmra.mrb[0].mxu0 %v10605
    %v10878 = vpop.f32.mrb[0].mxu0
    %v10879 = vadd.f32 0.0, %v10878
    %v10880 = vpop.f32.mrb[0].mxu0
    %10881 = vmatprep.mubr.f32.mxu0 0.0
    %10882 = vmatmul.mubr.f32.gmra.mrb[0].mxu0 %v10608
    %v10883 = vpop.f32.mrb[0].mxu0
    %v10884 = vadd.f32 0.0, %v10883
    %v10885 = vpop.f32.mrb[0].mxu0
    %10886 = vmatprep.mubr.f32.mxu0 0.0
    %10887 = vmatmul.mubr.f32.gmra.mrb[0].mxu0 %v10611
    %v10888 = vpop.f32.mrb[0].mxu0
    %v10889 = vadd.f32 0.0, %v10888
    %v10890 = vpop.f32.mrb[0].mxu0
    %10891 = vmatprep.mubr.f32.mxu0 0.0
    %10892 = vmatmul.mubr.f32.gmra.mrb[0].mxu0 %v10614
    %v10893 = vpop.f32.mrb[0].mxu0
    %v10894 = vadd.f32 0.0, %v10893
    %v10895 = vpop.f32.mrb[0].mxu0
    %10896 = vmatprep.mubr.f32.mxu0 0.0
    %10897 = vmatmul.mubr.f32.gmra.mrb[0].mxu0 %v10617
    %v10898 = vpop.f32.mrb[0].mxu0
    %v10899 = vadd.f32 0.0, %v10898
    %v10900 = vpop.f32.mrb[0].mxu0
    %10901 = vmatprep.mubr.f32.mxu0 0.0
    %10902 = vmatmul.mubr.f32.gmra.mrb[0].mxu0 %v10620
    %v10903 = vpop.f32.mrb[0].mxu0
    %v10904 = vadd.f32 0.0, %v10903
    %v10905 = vpop.f32.mrb[0].mxu0
    %10906 = vmatprep.mubr.f32.mxu0 0.0
    %10907 = vmatmul.mubr.f32.gmra.mrb[0].mxu0 %v10623
    %v10908 = vpop.f32.mrb[0].mxu0
    %v10909 = vadd.f32 0.0, %v10908
    %v10910 = vpop.f32.mrb[0].mxu0
    %10911 = vmatprep.mubr.f32.mxu0 0.0
    %10912 = vmatmul.mubr.f32.gmra.mrb[0].mxu0 %v10626
    %v10913 = vpop.f32.mrb[0].mxu0
    %v10914 = vadd.f32 0.0, %v10913
    %v10915 = vpop.f32.mrb[0].mxu0
    %10916 = vmatprep.mubr.f32.mxu0 0.0
    %10917 = vmatmul.mubr.f32.gmra.mrb[0].mxu0 %v10629
    %v10918 = vpop.f32.mrb[0].mxu0
    %v10919 = vadd.f32 0.0, %v10918
    %v10920 = vpop.f32.mrb[0].mxu0
    %10921 = vmatprep.mubr.f32.mxu0 0.0
    %10922 = vmatmul.mubr.f32.gmra.mrb[0].mxu0 %v10632
    %v10923 = vpop.f32.mrb[0].mxu0
    %v10924 = vadd.f32 0.0, %v10923
    %v10925 = vpop.f32.mrb[0].mxu0
    %10926 = vmatprep.mubr.f32.mxu0 0.0
    %10927 = vmatmul.mubr.f32.gmra.mrb[0].mxu0 %v10635
    %v10928 = vpop.f32.mrb[0].mxu0
    %v10929 = vadd.f32 0.0, %v10928
    %v10930 = vpop.f32.mrb[0].mxu0
    %10931 = vmatprep.mubr.f32.mxu0 0.0
    %10932 = vmatmul.mubr.f32.gmra.mrb[0].mxu0 %v10638
    %v10933 = vpop.f32.mrb[0].mxu0
    %v10934 = vadd.f32 0.0, %v10933
    %v10935 = vpop.f32.mrb[0].mxu0
    %10936 = vmatprep.mubr.f32.mxu0 0.0
    %10937 = vmatmul.mubr.f32.gmra.mrb[0].mxu0 %v10641
    %v10938 = vpop.f32.mrb[0].mxu0
    %v10939 = vadd.f32 0.0, %v10938
    %v10940 = vpop.f32.mrb[0].mxu0
    %10941 = vmatprep.mubr.f32.mxu0 0.0
    %10942 = vmatmul.mubr.f32.gmra.mrb[0].mxu0 %v10644
    %v10943 = vpop.f32.mrb[0].mxu0
    %v10944 = vadd.f32 0.0, %v10943
    %v10945 = vpop.f32.mrb[0].mxu0
    %10946 = vmatprep.mubr.f32.mxu0 0.0
    %10947 = vmatmul.mubr.f32.gmra.mrb[0].mxu0 %v10647
    %v10948 = vpop.f32.mrb[0].mxu0
    %v10949 = vadd.f32 0.0, %v10948
    %v10950 = vpop.f32.mrb[0].mxu0
    %10951 = vmatprep.mubr.f32.mxu0 0.0
    %10952 = vmatmul.mubr.f32.gmra.mrb[0].mxu0 %v10650
    %v10953 = vpop.f32.mrb[0].mxu0
    %v10954 = vadd.f32 0.0, %v10953
    %v10955 = vpop.f32.mrb[0].mxu0
    %10956 = vmatprep.mubr.f32.mxu0 0.0
    %10957 = vmatmul.mubr.f32.gmra.mrb[0].mxu0 %v10653
    %v10958 = vpop.f32.mrb[0].mxu0
    %v10959 = vadd.f32 0.0, %v10958
    %v10960 = vpop.f32.mrb[0].mxu0
    %10961 = vmatprep.mubr.f32.mxu0 0.0
    %10962 = vmatmul.mubr.f32.gmra.mrb[0].mxu0 %v10656
    %v10963 = vpop.f32.mrb[0].mxu0
    %v10964 = vadd.f32 0.0, %v10963
    %v10965 = vpop.f32.mrb[0].mxu0
    %10966 = vmatprep.mubr.f32.mxu0 0.0
    %10967 = vmatmul.mubr.f32.gmra.mrb[0].mxu0 %v10659
    %v10968 = vpop.f32.mrb[0].mxu0
    %v10969 = vadd.f32 0.0, %v10968
    %v10970 = vpop.f32.mrb[0].mxu0
    %10971 = vmatprep.mubr.f32.mxu0 0.0
    %10972 = vmatmul.mubr.f32.gmra.mrb[0].mxu0 %v10662
    %v10973 = vpop.f32.mrb[0].mxu0
    %v10974 = vadd.f32 0.0, %v10973
    %v10975 = vpop.f32.mrb[0].mxu0
    %10976 = vmatprep.mubr.f32.mxu0 0.0
    %10977 = vmatmul.mubr.f32.gmra.mrb[0].mxu0 %v10665
    %v10978 = vpop.f32.mrb[0].mxu0
    %v10979 = vadd.f32 0.0, %v10978
    %v10980 = vpop.f32.mrb[0].mxu0
    %10981 = vmatprep.mubr.f32.mxu0 0.0
    %10982 = vmatmul.mubr.f32.gmra.mrb[0].mxu0 %v10668
    %v10983 = vpop.f32.mrb[0].mxu0
    %v10984 = vadd.f32 0.0, %v10983
    %v10985 = vpop.f32.mrb[0].mxu0
    %10986 = vmatprep.mubr.f32.mxu0 0.0
    %10987 = vmatmul.mubr.f32.gmra.mrb[0].mxu0 %v10671
    %v10988 = vpop.f32.mrb[0].mxu0
    %v10989 = vadd.f32 0.0, %v10988
    %v10990 = vpop.f32.mrb[0].mxu0
    %10991 = vmatprep.mubr.f32.mxu0 0.0
    %10992 = vmatmul.mubr.f32.gmra.mrb[0].mxu0 %v10674
    %v10993 = vpop.f32.mrb[0].mxu0
    %v10994 = vadd.f32 0.0, %v10993
    %v10995 = vpop.f32.mrb[0].mxu0
    %10996 = vmatprep.mubr.f32.mxu0 0.0
    %10997 = vmatmul.mubr.f32.gmra.mrb[0].mxu0 %v10677
    %v10998 = vpop.f32.mrb[0].mxu0
    %v10999 = vadd.f32 0.0, %v10998
    %v11000 = vpop.f32.mrb[0].mxu0
    %11001 = vmatprep.mubr.f32.mxu0 0.0
    %11002 = vmatmul.mubr.f32.gmra.mrb[0].mxu0 %v10680
    %v11003 = vpop.f32.mrb[0].mxu0
    %v11004 = vadd.f32 0.0, %v11003
    %v11005 = vpop.f32.mrb[0].mxu0
    %11006 = vmatprep.mubr.f32.mxu0 0.0
    %11007 = vmatmul.mubr.f32.gmra.mrb[0].mxu0 %v10683
    %v11008 = vpop.f32.mrb[0].mxu0
    %v11009 = vadd.f32 0.0, %v11008
    %v11010 = vpop.f32.mrb[0].mxu0
    %11011 = vmatprep.mubr.f32.mxu0 0.0
    %11012 = vmatmul.mubr.f32.gmra.mrb[0].mxu0 %v10686
    %v11013 = vpop.f32.mrb[0].mxu0
    %v11014 = vadd.f32 0.0, %v11013
    %v11015 = vpop.f32.mrb[0].mxu0
    %11016 = vmatprep.mubr.f32.mxu0 0.0
    %11017 = vmatmul.mubr.f32.gmra.mrb[0].mxu0 %v10689
    %v11018 = vpop.f32.mrb[0].mxu0
    %v11019 = vadd.f32 0.0, %v11018
    %v11020 = vpop.f32.mrb[0].mxu0
    %11021 = vmatprep.mubr.f32.mxu0 0.0
    %11022 = vmatmul.mubr.f32.gmra.mrb[0].mxu0 %v10692
    %v11023 = vpop.f32.mrb[0].mxu0
    %v11024 = vadd.f32 0.0, %v11023
    %v11025 = vpop.f32.mrb[0].mxu0
    %11026 = vmatprep.mubr.f32.mxu0 0.0
    %11027 = vmatmul.mubr.f32.gmra.mrb[0].mxu0 %v10695
    %v11028 = vpop.f32.mrb[0].mxu0
    %v11029 = vadd.f32 0.0, %v11028
    %v11030 = vpop.f32.mrb[0].mxu0
    %11031 = vmatprep.mubr.f32.mxu0 0.0
    %11032 = vmatmul.mubr.f32.gmra.mrb[0].mxu0 %v10698
    %v11033 = vpop.f32.mrb[0].mxu0
    %v11034 = vadd.f32 0.0, %v11033
    %v11035 = vpop.f32.mrb[0].mxu0
    %11036 = vmatprep.mubr.f32.mxu0 0.0
    %11037 = vmatmul.mubr.f32.gmra.mrb[0].mxu0 %v10701
    %v11038 = vpop.f32.mrb[0].mxu0
    %v11039 = vadd.f32 0.0, %v11038
    %v11040 = vpop.f32.mrb[0].mxu0
    %11041 = vmatprep.mubr.f32.mxu0 0.0
    %11042 = vmatmul.mubr.f32.gmra.mrb[0].mxu0 %v10704
    %v11043 = vpop.f32.mrb[0].mxu0
    %v11044 = vadd.f32 0.0, %v11043
    %v11045 = vpop.f32.mrb[0].mxu0
    %11046 = vmatprep.mubr.f32.mxu0 0.0
    %11047 = vmatmul.mubr.f32.gmra.mrb[0].mxu0 %v10707
    %v11048 = vpop.f32.mrb[0].mxu0
    %v11049 = vadd.f32 0.0, %v11048
    %v11050 = vpop.f32.mrb[0].mxu0
    %11051 = vmatprep.mubr.f32.mxu0 0.0
    %11052 = vmatmul.mubr.f32.gmra.mrb[0].mxu0 %v10710
    %v11053 = vpop.f32.mrb[0].mxu0
    %v11054 = vadd.f32 0.0, %v11053
    %v11055 = vpop.f32.mrb[0].mxu0
    %11056 = vmatprep.mubr.f32.mxu0 0.0
    %11057 = vmatmul.mubr.f32.gmra.mrb[0].mxu0 %v10713
    %v11058 = vpop.f32.mrb[0].mxu0
    %v11059 = vadd.f32 0.0, %v11058
    %v11060 = vpop.f32.mrb[0].mxu0
    %11061 = vmatprep.mubr.f32.mxu0 0.0
    %11062 = vmatmul.mubr.f32.gmra.mrb[0].mxu0 %v10716
    %v11063 = vpop.f32.mrb[0].mxu0
    %v11064 = vadd.f32 0.0, %v11063
    %v11065 = vpop.f32.mrb[0].mxu0
    %11066 = vmatprep.mubr.f32.mxu0 0.0
    %11067 = vmatmul.mubr.f32.gmra.mrb[0].mxu0 %v10719
    %v11068 = vpop.f32.mrb[0].mxu0
    %v11069 = vadd.f32 0.0, %v11068
    %v11070 = vpop.f32.mrb[0].mxu0
    %11071 = vmatprep.mubr.f32.mxu0 0.0
    %11072 = vmatmul.mubr.f32.gmra.mrb[0].mxu0 %v10722
    %v11073 = vpop.f32.mrb[0].mxu0
    %v11074 = vadd.f32 0.0, %v11073
    %v11075 = vpop.f32.mrb[0].mxu0
    %11076 = vmatprep.mubr.f32.mxu0 0.0
    %11077 = vmatmul.mubr.f32.gmra.mrb[0].mxu0 %v10725
    %v11078 = vpop.f32.mrb[0].mxu0
    %v11079 = vadd.f32 0.0, %v11078
    %v11080 = vpop.f32.mrb[0].mxu0
    %11081 = vmatprep.mubr.f32.mxu0 0.0
    %11082 = vmatmul.mubr.f32.gmra.mrb[0].mxu0 %v10728
    %v11083 = vpop.f32.mrb[0].mxu0
    %v11084 = vadd.f32 0.0, %v11083
    %v11085 = vpop.f32.mrb[0].mxu0
    %11086 = vmatprep.mubr.f32.mxu0 0.0
    %11087 = vmatmul.mubr.f32.gmra.mrb[0].mxu0 %v10731
    %v11088 = vpop.f32.mrb[0].mxu0
    %v11089 = vadd.f32 0.0, %v11088
    %v11090 = vpop.f32.mrb[0].mxu0
    %11091 = vmatprep.mubr.f32.mxu0 0.0
    %11092 = vmatmul.mubr.f32.gmra.mrb[0].mxu0 %v10734
    %v11093 = vpop.f32.mrb[0].mxu0
    %v11094 = vadd.f32 0.0, %v11093
    %v11095 = vpop.f32.mrb[0].mxu0
    %11096 = vmatprep.mubr.f32.mxu0 0.0
    %11097 = vmatmul.mubr.f32.gmra.mrb[0].mxu0 %v10737
    %v11098 = vpop.f32.mrb[0].mxu0
    %v11099 = vadd.f32 0.0, %v11098
    %v11100 = vpop.f32.mrb[0].mxu0
    %11101 = vmatprep.mubr.f32.mxu0 0.0
    %11102 = vmatmul.mubr.f32.gmra.mrb[0].mxu0 %v10740
    %v11103 = vpop.f32.mrb[0].mxu0
    %v11104 = vadd.f32 0.0, %v11103
    %v11105 = vpop.f32.mrb[0].mxu0
    %11106 = vmatprep.mubr.f32.mxu0 0.0
    %11107 = vmatmul.mubr.f32.gmra.mrb[0].mxu0 %v10743
    %v11108 = vpop.f32.mrb[0].mxu0
    %v11109 = vadd.f32 0.0, %v11108
    %v11110 = vpop.f32.mrb[0].mxu0
    %11111 = vmatprep.mubr.f32.mxu0 0.0
    %11112 = vmatmul.mubr.f32.gmra.mrb[0].mxu0 %v10746
    %v11113 = vpop.f32.mrb[0].mxu0
    %v11114 = vadd.f32 0.0, %v11113
    %v11115 = vpop.f32.mrb[0].mxu0
    %11116 = vmatprep.mubr.f32.mxu0 0.0
    %11117 = vmatmul.mubr.f32.gmra.mrb[0].mxu0 %v10749
    %v11118 = vpop.f32.mrb[0].mxu0
    %v11119 = vadd.f32 0.0, %v11118
    %v11120 = vpop.f32.mrb[0].mxu0
    %11121 = vmatprep.mubr.f32.mxu0 0.0
    %11122 = vmatmul.mubr.f32.gmra.mrb[0].mxu0 %v10752
    %v11123 = vpop.f32.mrb[0].mxu0
    %v11124 = vadd.f32 0.0, %v11123
    %v11125 = vpop.f32.mrb[0].mxu0
    %11126 = vmatprep.mubr.f32.mxu0 0.0
    %11127 = vmatmul.mubr.f32.gmra.mrb[0].mxu0 %v10755
    %v11128 = vpop.f32.mrb[0].mxu0
    %v11129 = vadd.f32 0.0, %v11128
    %v11130 = vpop.f32.mrb[0].mxu0
    %11131 = vmatprep.mubr.f32.mxu0 0.0
    %11132 = vmatmul.mubr.f32.gmra.mrb[0].mxu0 %v10758
    %v11133 = vpop.f32.mrb[0].mxu0
    %v11134 = vadd.f32 0.0, %v11133
    %v11135 = vpop.f32.mrb[0].mxu0
    %11136 = vmatprep.mubr.f32.mxu0 0.0
    %11137 = vmatmul.mubr.f32.gmra.mrb[0].mxu0 %v10761
    %v11138 = vpop.f32.mrb[0].mxu0
    %v11139 = vadd.f32 0.0, %v11138
    %v11140 = vpop.f32.mrb[0].mxu0
    %11141 = vmatprep.mubr.f32.mxu0 0.0
    %11142 = vmatmul.mubr.f32.gmra.mrb[0].mxu0 %v10764
    %v11143 = vpop.f32.mrb[0].mxu0
    %v11144 = vadd.f32 0.0, %v11143
    %v11145 = vpop.f32.mrb[0].mxu0
    %11146 = vmatprep.mubr.f32.mxu0 0.0
    %11147 = vmatmul.mubr.f32.gmra.mrb[0].mxu0 %v10767
    %v11148 = vpop.f32.mrb[0].mxu0
    %v11149 = vadd.f32 0.0, %v11148
    %v11150 = vpop.f32.mrb[0].mxu0
    %11151 = vmatprep.mubr.f32.mxu0 0.0
    %11152 = vmatmul.mubr.f32.gmra.mrb[0].mxu0 %v10770
    %v11153 = vpop.f32.mrb[0].mxu0
    %v11154 = vadd.f32 0.0, %v11153
    %v11155 = vpop.f32.mrb[0].mxu0
    %11156 = vdwg.mxu0
    %11157 = vxpose.xlu0.b32.start [1/16] %v10839, 128
    %11158 = vxpose.xlu0.b32.cont [2/16] %v10844, 128
    %11159 = vxpose.xlu0.b32.cont [3/16] %v10849, 128
    %11160 = vxpose.xlu0.b32.cont [4/16] %v10854, 128
    %11161 = vxpose.xlu0.b32.cont [5/16] %v10859, 128
    %11162 = vxpose.xlu0.b32.cont [6/16] %v10864, 128
    %11163 = vxpose.xlu0.b32.cont [7/16] %v10869, 128
    %11164 = vxpose.xlu0.b32.cont [8/16] %v10874, 128
    %11165 = vxpose.xlu0.b32.cont [9/16] %v10879, 128
    %11166 = vxpose.xlu0.b32.cont [10/16] %v10884, 128
    %11167 = vxpose.xlu0.b32.cont [11/16] %v10889, 128
    %11168 = vxpose.xlu0.b32.cont [12/16] %v10894, 128
    %11169 = vxpose.xlu0.b32.cont [13/16] %v10899, 128
    %11170 = vxpose.xlu0.b32.cont [14/16] %v10904, 128
    %11171 = vxpose.xlu0.b32.cont [15/16] %v10909, 128
    %11172 = vxpose.xlu0.b32.end [16/16] %v10914, 128
    %v11173 = vpop.trf.xlu0
    %v11174 = vpop.trf.xlu0
    %v11175 = vpop.trf.xlu0
    %v11176 = vpop.trf.xlu0
    %v11177 = vpop.trf.xlu0
    %v11178 = vpop.trf.xlu0
    %v11179 = vpop.trf.xlu0
    %v11180 = vpop.trf.xlu0
    %v11181 = vpop.trf.xlu0
    %v11182 = vpop.trf.xlu0
    %v11183 = vpop.trf.xlu0
    %v11184 = vpop.trf.xlu0
    %v11185 = vpop.trf.xlu0
    %v11186 = vpop.trf.xlu0
    %v11187 = vpop.trf.xlu0
    %v11188 = vpop.trf.xlu0
    %11189 = vxpose.xlu0.b32.start [1/16] %v10919, 128
    %11190 = vxpose.xlu0.b32.cont [2/16] %v10924, 128
    %11191 = vxpose.xlu0.b32.cont [3/16] %v10929, 128
    %11192 = vxpose.xlu0.b32.cont [4/16] %v10934, 128
    %11193 = vxpose.xlu0.b32.cont [5/16] %v10939, 128
    %11194 = vxpose.xlu0.b32.cont [6/16] %v10944, 128
    %11195 = vxpose.xlu0.b32.cont [7/16] %v10949, 128
    %11196 = vxpose.xlu0.b32.cont [8/16] %v10954, 128
    %11197 = vxpose.xlu0.b32.cont [9/16] %v10959, 128
    %11198 = vxpose.xlu0.b32.cont [10/16] %v10964, 128
    %11199 = vxpose.xlu0.b32.cont [11/16] %v10969, 128
    %11200 = vxpose.xlu0.b32.cont [12/16] %v10974, 128
    %11201 = vxpose.xlu0.b32.cont [13/16] %v10979, 128
    %11202 = vxpose.xlu0.b32.cont [14/16] %v10984, 128
    %11203 = vxpose.xlu0.b32.cont [15/16] %v10989, 128
    %11204 = vxpose.xlu0.b32.end [16/16] %v10994, 128
    %v11205 = vpop.trf.xlu0
    %v11206 = vpop.trf.xlu0
    %v11207 = vpop.trf.xlu0
    %v11208 = vpop.trf.xlu0
    %v11209 = vpop.trf.xlu0
    %v11210 = vpop.trf.xlu0
    %v11211 = vpop.trf.xlu0
    %v11212 = vpop.trf.xlu0
    %v11213 = vpop.trf.xlu0
    %v11214 = vpop.trf.xlu0
    %v11215 = vpop.trf.xlu0
    %v11216 = vpop.trf.xlu0
    %v11217 = vpop.trf.xlu0
    %v11218 = vpop.trf.xlu0
    %v11219 = vpop.trf.xlu0
    %v11220 = vpop.trf.xlu0
    %11221 = vxpose.xlu0.b32.start [1/16] %v10999, 128
    %11222 = vxpose.xlu0.b32.cont [2/16] %v11004, 128
    %11223 = vxpose.xlu0.b32.cont [3/16] %v11009, 128
    %11224 = vxpose.xlu0.b32.cont [4/16] %v11014, 128
    %11225 = vxpose.xlu0.b32.cont [5/16] %v11019, 128
    %11226 = vxpose.xlu0.b32.cont [6/16] %v11024, 128
    %11227 = vxpose.xlu0.b32.cont [7/16] %v11029, 128
    %11228 = vxpose.xlu0.b32.cont [8/16] %v11034, 128
    %11229 = vxpose.xlu0.b32.cont [9/16] %v11039, 128
    %11230 = vxpose.xlu0.b32.cont [10/16] %v11044, 128
    %11231 = vxpose.xlu0.b32.cont [11/16] %v11049, 128
    %11232 = vxpose.xlu0.b32.cont [12/16] %v11054, 128
    %11233 = vxpose.xlu0.b32.cont [13/16] %v11059, 128
    %11234 = vxpose.xlu0.b32.cont [14/16] %v11064, 128
    %11235 = vxpose.xlu0.b32.cont [15/16] %v11069, 128
    %11236 = vxpose.xlu0.b32.end [16/16] %v11074, 128
    %v11237 = vpop.trf.xlu0
    %v11238 = vpop.trf.xlu0
    %v11239 = vpop.trf.xlu0
    %v11240 = vpop.trf.xlu0
    %v11241 = vpop.trf.xlu0
    %v11242 = vpop.trf.xlu0
    %v11243 = vpop.trf.xlu0
    %v11244 = vpop.trf.xlu0
    %v11245 = vpop.trf.xlu0
    %v11246 = vpop.trf.xlu0
    %v11247 = vpop.trf.xlu0
    %v11248 = vpop.trf.xlu0
    %v11249 = vpop.trf.xlu0
    %v11250 = vpop.trf.xlu0
    %v11251 = vpop.trf.xlu0
    %v11252 = vpop.trf.xlu0
    %11253 = vxpose.xlu0.b32.start [1/16] %v11079, 128
    %11254 = vxpose.xlu0.b32.cont [2/16] %v11084, 128
    %11255 = vxpose.xlu0.b32.cont [3/16] %v11089, 128
    %11256 = vxpose.xlu0.b32.cont [4/16] %v11094, 128
    %11257 = vxpose.xlu0.b32.cont [5/16] %v11099, 128
    %11258 = vxpose.xlu0.b32.cont [6/16] %v11104, 128
    %11259 = vxpose.xlu0.b32.cont [7/16] %v11109, 128
    %11260 = vxpose.xlu0.b32.cont [8/16] %v11114, 128
    %11261 = vxpose.xlu0.b32.cont [9/16] %v11119, 128
    %11262 = vxpose.xlu0.b32.cont [10/16] %v11124, 128
    %11263 = vxpose.xlu0.b32.cont [11/16] %v11129, 128
    %11264 = vxpose.xlu0.b32.cont [12/16] %v11134, 128
    %11265 = vxpose.xlu0.b32.cont [13/16] %v11139, 128
    %11266 = vxpose.xlu0.b32.cont [14/16] %v11144, 128
    %11267 = vxpose.xlu0.b32.cont [15/16] %v11149, 128
    %11268 = vxpose.xlu0.b32.end [16/16] %v11154, 128
    %v11269 = vpop.trf.xlu0
    %v11270 = vpop.trf.xlu0
    %v11271 = vpop.trf.xlu0
    %v11272 = vpop.trf.xlu0
    %v11273 = vpop.trf.xlu0
    %v11274 = vpop.trf.xlu0
    %v11275 = vpop.trf.xlu0
    %v11276 = vpop.trf.xlu0
    %v11277 = vpop.trf.xlu0
    %v11278 = vpop.trf.xlu0
    %v11279 = vpop.trf.xlu0
    %v11280 = vpop.trf.xlu0
    %v11281 = vpop.trf.xlu0
    %v11282 = vpop.trf.xlu0
    %v11283 = vpop.trf.xlu0
    %v11284 = vpop.trf.xlu0
    %11286 = vset.pattern.permute.xlu0 0
    %11287 = vperm.xlu0 %11286, %v10448
    %v11288 = vpop.permute.xlu0 %11287
    %11291 = vset.pattern.permute.xlu0 0
    %11292 = vperm.xlu0 %11291, %v10449
    %v11293 = vpop.permute.xlu0 %11292
    %11296 = vset.pattern.permute.xlu0 0
    %11297 = vperm.xlu0 %11296, %v10450
    %v11298 = vpop.permute.xlu0 %11297
    %11301 = vset.pattern.permute.xlu0 0
    %11302 = vperm.xlu0 %11301, %v10451
    %v11303 = vpop.permute.xlu0 %11302
    %v11305 = vadd.f32 %v11173, %v11288
    %v11306 = vadd.f32 %v11205, %v11288
    %v11307 = vadd.f32 %v11174, %v11293
    %v11308 = vadd.f32 %v11206, %v11293
    %v11309 = vadd.f32 %v11175, %v11298
    %v11310 = vadd.f32 %v11207, %v11298
    %v11311 = vadd.f32 %v11176, %v11303
    %v11312 = vadd.f32 %v11208, %v11303
    %v11313 = vadd.f32 %v11237, %v11288
    %v11314 = vadd.f32 %v11269, %v11288
    %v11315 = vadd.f32 %v11238, %v11293
    %v11316 = vadd.f32 %v11270, %v11293
    %v11317 = vadd.f32 %v11239, %v11298
    %v11318 = vadd.f32 %v11271, %v11298
    %v11319 = vadd.f32 %v11240, %v11303
    %v11320 = vadd.f32 %v11272, %v11303
    %v11321 = vtanh.pop %v11305
    %v11322 = vtanh.pop %v11306
    %v11323 = vtanh.pop %v11307
    %v11324 = vtanh.pop %v11308
    %v11325 = vtanh.pop %v11309
    %v11326 = vtanh.pop %v11310
    %v11327 = vtanh.pop %v11311
    %v11328 = vtanh.pop %v11312
    %v11329 = vtanh.pop %v11313
    %v11330 = vtanh.pop %v11314
    %v11331 = vtanh.pop %v11315
    %v11332 = vtanh.pop %v11316
    %v11333 = vtanh.pop %v11317
    %v11334 = vtanh.pop %v11318
    %v11335 = vtanh.pop %v11319
    %v11336 = vtanh.pop %v11320
    %11337 = vxpose.xlu0.b32.start [1/16] %v11321, 128
    %11338 = vxpose.xlu0.b32.cont [2/16] %v11323, 128
    %11339 = vxpose.xlu0.b32.cont [3/16] %v11325, 128
    %11340 = vxpose.xlu0.b32.cont [4/16] %v11327, 128
    %11341 = vxpose.xlu0.b32.cont [5/16] 0.0, 128
    %11342 = vxpose.xlu0.b32.cont [6/16] 0.0, 128
    %11343 = vxpose.xlu0.b32.cont [7/16] 0.0, 128
    %11344 = vxpose.xlu0.b32.cont [8/16] 0.0, 128
    %11345 = vxpose.xlu0.b32.cont [9/16] 0.0, 128
    %11346 = vxpose.xlu0.b32.cont [10/16] 0.0, 128
    %11347 = vxpose.xlu0.b32.cont [11/16] 0.0, 128
    %11348 = vxpose.xlu0.b32.cont [12/16] 0.0, 128
    %11349 = vxpose.xlu0.b32.cont [13/16] 0.0, 128
    %11350 = vxpose.xlu0.b32.cont [14/16] 0.0, 128
    %11351 = vxpose.xlu0.b32.cont [15/16] 0.0, 128
    %11352 = vxpose.xlu0.b32.end [16/16] 0.0, 128
    %v11353 = vpop.trf.xlu0
    %v11354 = vpop.trf.xlu0
    %v11355 = vpop.trf.xlu0
    %v11356 = vpop.trf.xlu0
    %v11357 = vpop.trf.xlu0
    %v11358 = vpop.trf.xlu0
    %v11359 = vpop.trf.xlu0
    %v11360 = vpop.trf.xlu0
    %v11361 = vpop.trf.xlu0
    %v11362 = vpop.trf.xlu0
    %v11363 = vpop.trf.xlu0
    %v11364 = vpop.trf.xlu0
    %v11365 = vpop.trf.xlu0
    %v11366 = vpop.trf.xlu0
    %v11367 = vpop.trf.xlu0
    %v11368 = vpop.trf.xlu0
    %11369 = vxpose.xlu0.b32.start [1/16] %v11322, 128
    %11370 = vxpose.xlu0.b32.cont [2/16] %v11324, 128
    %11371 = vxpose.xlu0.b32.cont [3/16] %v11326, 128
    %11372 = vxpose.xlu0.b32.cont [4/16] %v11328, 128
    %11373 = vxpose.xlu0.b32.cont [5/16] 0.0, 128
    %11374 = vxpose.xlu0.b32.cont [6/16] 0.0, 128
    %11375 = vxpose.xlu0.b32.cont [7/16] 0.0, 128
    %11376 = vxpose.xlu0.b32.cont [8/16] 0.0, 128
    %11377 = vxpose.xlu0.b32.cont [9/16] 0.0, 128
    %11378 = vxpose.xlu0.b32.cont [10/16] 0.0, 128
    %11379 = vxpose.xlu0.b32.cont [11/16] 0.0, 128
    %11380 = vxpose.xlu0.b32.cont [12/16] 0.0, 128
    %11381 = vxpose.xlu0.b32.cont [13/16] 0.0, 128
    %11382 = vxpose.xlu0.b32.cont [14/16] 0.0, 128
    %11383 = vxpose.xlu0.b32.cont [15/16] 0.0, 128
    %11384 = vxpose.xlu0.b32.end [16/16] 0.0, 128
    %v11385 = vpop.trf.xlu0
    %v11386 = vpop.trf.xlu0
    %v11387 = vpop.trf.xlu0
    %v11388 = vpop.trf.xlu0
    %v11389 = vpop.trf.xlu0
    %v11390 = vpop.trf.xlu0
    %v11391 = vpop.trf.xlu0
    %v11392 = vpop.trf.xlu0
    %v11393 = vpop.trf.xlu0
    %v11394 = vpop.trf.xlu0
    %v11395 = vpop.trf.xlu0
    %v11396 = vpop.trf.xlu0
    %v11397 = vpop.trf.xlu0
    %v11398 = vpop.trf.xlu0
    %v11399 = vpop.trf.xlu0
    %v11400 = vpop.trf.xlu0
    %11401 = vxpose.xlu0.b32.start [1/16] %v11329, 128
    %11402 = vxpose.xlu0.b32.cont [2/16] %v11331, 128
    %11403 = vxpose.xlu0.b32.cont [3/16] %v11333, 128
    %11404 = vxpose.xlu0.b32.cont [4/16] %v11335, 128
    %11405 = vxpose.xlu0.b32.cont [5/16] 0.0, 128
    %11406 = vxpose.xlu0.b32.cont [6/16] 0.0, 128
    %11407 = vxpose.xlu0.b32.cont [7/16] 0.0, 128
    %11408 = vxpose.xlu0.b32.cont [8/16] 0.0, 128
    %11409 = vxpose.xlu0.b32.cont [9/16] 0.0, 128
    %11410 = vxpose.xlu0.b32.cont [10/16] 0.0, 128
    %11411 = vxpose.xlu0.b32.cont [11/16] 0.0, 128
    %11412 = vxpose.xlu0.b32.cont [12/16] 0.0, 128
    %11413 = vxpose.xlu0.b32.cont [13/16] 0.0, 128
    %11414 = vxpose.xlu0.b32.cont [14/16] 0.0, 128
    %11415 = vxpose.xlu0.b32.cont [15/16] 0.0, 128
    %11416 = vxpose.xlu0.b32.end [16/16] 0.0, 128
    %v11417 = vpop.trf.xlu0
    %v11418 = vpop.trf.xlu0
    %v11419 = vpop.trf.xlu0
    %v11420 = vpop.trf.xlu0
    %v11421 = vpop.trf.xlu0
    %v11422 = vpop.trf.xlu0
    %v11423 = vpop.trf.xlu0
    %v11424 = vpop.trf.xlu0
    %v11425 = vpop.trf.xlu0
    %v11426 = vpop.trf.xlu0
    %v11427 = vpop.trf.xlu0
    %v11428 = vpop.trf.xlu0
    %v11429 = vpop.trf.xlu0
    %v11430 = vpop.trf.xlu0
    %v11431 = vpop.trf.xlu0
    %v11432 = vpop.trf.xlu0
    %11433 = vxpose.xlu0.b32.start [1/16] %v11330, 128
    %11434 = vxpose.xlu0.b32.cont [2/16] %v11332, 128
    %11435 = vxpose.xlu0.b32.cont [3/16] %v11334, 128
    %11436 = vxpose.xlu0.b32.cont [4/16] %v11336, 128
    %11437 = vxpose.xlu0.b32.cont [5/16] 0.0, 128
    %11438 = vxpose.xlu0.b32.cont [6/16] 0.0, 128
    %11439 = vxpose.xlu0.b32.cont [7/16] 0.0, 128
    %11440 = vxpose.xlu0.b32.cont [8/16] 0.0, 128
    %11441 = vxpose.xlu0.b32.cont [9/16] 0.0, 128
    %11442 = vxpose.xlu0.b32.cont [10/16] 0.0, 128
    %11443 = vxpose.xlu0.b32.cont [11/16] 0.0, 128
    %11444 = vxpose.xlu0.b32.cont [12/16] 0.0, 128
    %11445 = vxpose.xlu0.b32.cont [13/16] 0.0, 128
    %11446 = vxpose.xlu0.b32.cont [14/16] 0.0, 128
    %11447 = vxpose.xlu0.b32.cont [15/16] 0.0, 128
    %11448 = vxpose.xlu0.b32.end [16/16] 0.0, 128
    %v11449 = vpop.trf.xlu0
    %v11450 = vpop.trf.xlu0
    %v11451 = vpop.trf.xlu0
    %v11452 = vpop.trf.xlu0
    %v11453 = vpop.trf.xlu0
    %v11454 = vpop.trf.xlu0
    %v11455 = vpop.trf.xlu0
    %v11456 = vpop.trf.xlu0
    %v11457 = vpop.trf.xlu0
    %v11458 = vpop.trf.xlu0
    %v11459 = vpop.trf.xlu0
    %v11460 = vpop.trf.xlu0
    %v11461 = vpop.trf.xlu0
    %v11462 = vpop.trf.xlu0
    %v11463 = vpop.trf.xlu0
    %v11464 = vpop.trf.xlu0
    %v11466 = vsel %vm1057, %v11353, 0
    %v11469 = vsel %vm1057, %v11354, 0
    %v11472 = vsel %vm1057, %v11355, 0
    %v11475 = vsel %vm1057, %v11356, 0
    %v11478 = vsel %vm1057, %v11357, 0
    %v11481 = vsel %vm1057, %v11358, 0
    %v11484 = vsel %vm1057, %v11359, 0
    %v11487 = vsel %vm1057, %v11360, 0
    %v11490 = vsel %vm1057, %v11361, 0
    %v11493 = vsel %vm1057, %v11362, 0
    %v11496 = vsel %vm1057, %v11363, 0
    %v11499 = vsel %vm1057, %v11364, 0
    %v11502 = vsel %vm1057, %v11365, 0
    %v11505 = vsel %vm1057, %v11366, 0
    %v11508 = vsel %vm1057, %v11367, 0
    %v11511 = vsel %vm1057, %v11368, 0
    %v11514 = vsel %vm1057, %v11385, 0
    %v11517 = vsel %vm1057, %v11386, 0
    %v11520 = vsel %vm1057, %v11387, 0
    %v11523 = vsel %vm1057, %v11388, 0
    %v11526 = vsel %vm1057, %v11389, 0
    %v11529 = vsel %vm1057, %v11390, 0
    %v11532 = vsel %vm1057, %v11391, 0
    %v11535 = vsel %vm1057, %v11392, 0
    %v11538 = vsel %vm1057, %v11393, 0
    %v11541 = vsel %vm1057, %v11394, 0
    %v11544 = vsel %vm1057, %v11395, 0
    %v11547 = vsel %vm1057, %v11396, 0
    %v11550 = vsel %vm1057, %v11397, 0
    %v11553 = vsel %vm1057, %v11398, 0
    %v11556 = vsel %vm1057, %v11399, 0
    %v11559 = vsel %vm1057, %v11400, 0
    %v11562 = vsel %vm1057, %v11417, 0
    %v11565 = vsel %vm1057, %v11418, 0
    %v11568 = vsel %vm1057, %v11419, 0
    %v11571 = vsel %vm1057, %v11420, 0
    %v11574 = vsel %vm1057, %v11421, 0
    %v11577 = vsel %vm1057, %v11422, 0
    %v11580 = vsel %vm1057, %v11423, 0
    %v11583 = vsel %vm1057, %v11424, 0
    %v11586 = vsel %vm1057, %v11425, 0
    %v11589 = vsel %vm1057, %v11426, 0
    %v11592 = vsel %vm1057, %v11427, 0
    %v11595 = vsel %vm1057, %v11428, 0
    %v11598 = vsel %vm1057, %v11429, 0
    %v11601 = vsel %vm1057, %v11430, 0
    %v11604 = vsel %vm1057, %v11431, 0
    %v11607 = vsel %vm1057, %v11432, 0
    %v11610 = vsel %vm1057, %v11449, 0
    %v11613 = vsel %vm1057, %v11450, 0
    %v11616 = vsel %vm1057, %v11451, 0
    %v11619 = vsel %vm1057, %v11452, 0
    %v11622 = vsel %vm1057, %v11453, 0
    %v11625 = vsel %vm1057, %v11454, 0
    %v11628 = vsel %vm1057, %v11455, 0
    %v11631 = vsel %vm1057, %v11456, 0
    %v11634 = vsel %vm1057, %v11457, 0
    %v11637 = vsel %vm1057, %v11458, 0
    %v11640 = vsel %vm1057, %v11459, 0
    %v11643 = vsel %vm1057, %v11460, 0
    %v11646 = vsel %vm1057, %v11461, 0
    %v11649 = vsel %vm1057, %v11462, 0
    %v11652 = vsel %vm1057, %v11463, 0
    %v11655 = vsel %vm1057, %v11464, 0
    %11657 = vmatprep.subr.mxu0 0.0
    %11658 = vmatpush1.xpose.msra.mxu0 %v1251
    %11659 = vmatprep.subr.mxu0 0.0
    %11660 = vmatpush1.xpose.msra.mxu0 0.0
    %11661 = vmatprep.subr.mxu0 0.0
    %11662 = vmatpush1.xpose.msra.mxu0 0.0
    %11663 = vmatprep.subr.mxu0 0.0
    %11664 = vmatpush1.xpose.msra.mxu0 0.0
    %11665 = vmatprep.subr.mxu0 0.0
    %11666 = vmatpush1.xpose.msra.mxu0 0.0
    %11667 = vmatprep.subr.mxu0 0.0
    %11668 = vmatpush1.xpose.msra.mxu0 0.0
    %11669 = vmatprep.subr.mxu0 0.0
    %11670 = vmatpush1.xpose.msra.mxu0 0.0
    %11671 = vmatprep.subr.mxu0 0.0
    %11672 = vmatpush1.xpose.msra.mxu0 0.0
    %11673 = vmatprep.subr.mxu0 0.0
    %11674 = vmatpush1.xpose.msra.mxu0 0.0
    %11675 = vmatprep.subr.mxu0 0.0
    %11676 = vmatpush1.xpose.msra.mxu0 0.0
    %11677 = vmatprep.subr.mxu0 0.0
    %11678 = vmatpush1.xpose.msra.mxu0 0.0
    %11679 = vmatprep.subr.mxu0 0.0
    %11680 = vmatpush1.xpose.msra.mxu0 0.0
    %11681 = vmatprep.subr.mxu0 0.0
    %11682 = vmatpush1.xpose.msra.mxu0 0.0
    %11683 = vmatprep.subr.mxu0 0.0
    %11684 = vmatpush1.xpose.msra.mxu0 0.0
    %11685 = vmatprep.subr.mxu0 0.0
    %11686 = vmatpush1.xpose.msra.mxu0 0.0
    %11687 = vmatprep.subr.mxu0 0.0
    %11688 = vmatpush1.xpose.msra.mxu0 0.0
    %11689 = vmatprep.subr.mxu0 0.0
    %11690 = vmatpush1.xpose.msra.mxu0 0.0
    %11691 = vmatprep.subr.mxu0 0.0
    %11692 = vmatpush1.xpose.msra.mxu0 0.0
    %11693 = vmatprep.subr.mxu0 0.0
    %11694 = vmatpush1.xpose.msra.mxu0 0.0
    %11695 = vmatprep.subr.mxu0 0.0
    %11696 = vmatpush1.xpose.msra.mxu0 0.0
    %11697 = vmatprep.subr.mxu0 0.0
    %11698 = vmatpush1.xpose.msra.mxu0 0.0
    %11699 = vmatprep.subr.mxu0 0.0
    %11700 = vmatpush1.xpose.msra.mxu0 0.0
    %11701 = vmatprep.subr.mxu0 0.0
    %11702 = vmatpush1.xpose.msra.mxu0 0.0
    %11703 = vmatprep.subr.mxu0 0.0
    %11704 = vmatpush1.xpose.msra.mxu0 0.0
    %11705 = vmatprep.subr.mxu0 0.0
    %11706 = vmatpush1.xpose.msra.mxu0 0.0
    %11707 = vmatprep.subr.mxu0 0.0
    %11708 = vmatpush1.xpose.msra.mxu0 0.0
    %11709 = vmatprep.subr.mxu0 0.0
    %11710 = vmatpush1.xpose.msra.mxu0 0.0
    %11711 = vmatprep.subr.mxu0 0.0
    %11712 = vmatpush1.xpose.msra.mxu0 0.0
    %11713 = vmatprep.subr.mxu0 0.0
    %11714 = vmatpush1.xpose.msra.mxu0 0.0
    %11715 = vmatprep.subr.mxu0 0.0
    %11716 = vmatpush1.xpose.msra.mxu0 0.0
    %11717 = vmatprep.subr.mxu0 0.0
    %11718 = vmatpush1.xpose.msra.mxu0 0.0
    %11719 = vmatprep.subr.mxu0 0.0
    %11720 = vmatpush1.xpose.msra.mxu0 0.0
    %11721 = vmatprep.mubr.f32.mxu0 0.0
    %11722 = vmatmul.mubr.f32.gmra.mrb[0].mxu0 %v11466
    %v11723 = vpop.f32.mrb[0].mxu0
    %v11724 = vadd.f32 0.0, %v11723
    %v11725 = vpop.f32.mrb[0].mxu0
    %11726 = vmatprep.mubr.f32.mxu0 0.0
    %11727 = vmatmul.mubr.f32.gmra.mrb[0].mxu0 %v11469
    %v11728 = vpop.f32.mrb[0].mxu0
    %v11729 = vadd.f32 0.0, %v11728
    %v11730 = vpop.f32.mrb[0].mxu0
    %11731 = vmatprep.mubr.f32.mxu0 0.0
    %11732 = vmatmul.mubr.f32.gmra.mrb[0].mxu0 %v11472
    %v11733 = vpop.f32.mrb[0].mxu0
    %v11734 = vadd.f32 0.0, %v11733
    %v11735 = vpop.f32.mrb[0].mxu0
    %11736 = vmatprep.mubr.f32.mxu0 0.0
    %11737 = vmatmul.mubr.f32.gmra.mrb[0].mxu0 %v11475
    %v11738 = vpop.f32.mrb[0].mxu0
    %v11739 = vadd.f32 0.0, %v11738
    %v11740 = vpop.f32.mrb[0].mxu0
    %11741 = vmatprep.mubr.f32.mxu0 0.0
    %11742 = vmatmul.mubr.f32.gmra.mrb[0].mxu0 %v11478
    %v11743 = vpop.f32.mrb[0].mxu0
    %v11744 = vadd.f32 0.0, %v11743
    %v11745 = vpop.f32.mrb[0].mxu0
    %11746 = vmatprep.mubr.f32.mxu0 0.0
    %11747 = vmatmul.mubr.f32.gmra.mrb[0].mxu0 %v11481
    %v11748 = vpop.f32.mrb[0].mxu0
    %v11749 = vadd.f32 0.0, %v11748
    %v11750 = vpop.f32.mrb[0].mxu0
    %11751 = vmatprep.mubr.f32.mxu0 0.0
    %11752 = vmatmul.mubr.f32.gmra.mrb[0].mxu0 %v11484
    %v11753 = vpop.f32.mrb[0].mxu0
    %v11754 = vadd.f32 0.0, %v11753
    %v11755 = vpop.f32.mrb[0].mxu0
    %11756 = vmatprep.mubr.f32.mxu0 0.0
    %11757 = vmatmul.mubr.f32.gmra.mrb[0].mxu0 %v11487
    %v11758 = vpop.f32.mrb[0].mxu0
    %v11759 = vadd.f32 0.0, %v11758
    %v11760 = vpop.f32.mrb[0].mxu0
    %11761 = vmatprep.mubr.f32.mxu0 0.0
    %11762 = vmatmul.mubr.f32.gmra.mrb[0].mxu0 %v11490
    %v11763 = vpop.f32.mrb[0].mxu0
    %v11764 = vadd.f32 0.0, %v11763
    %v11765 = vpop.f32.mrb[0].mxu0
    %11766 = vmatprep.mubr.f32.mxu0 0.0
    %11767 = vmatmul.mubr.f32.gmra.mrb[0].mxu0 %v11493
    %v11768 = vpop.f32.mrb[0].mxu0
    %v11769 = vadd.f32 0.0, %v11768
    %v11770 = vpop.f32.mrb[0].mxu0
    %11771 = vmatprep.mubr.f32.mxu0 0.0
    %11772 = vmatmul.mubr.f32.gmra.mrb[0].mxu0 %v11496
    %v11773 = vpop.f32.mrb[0].mxu0
    %v11774 = vadd.f32 0.0, %v11773
    %v11775 = vpop.f32.mrb[0].mxu0
    %11776 = vmatprep.mubr.f32.mxu0 0.0
    %11777 = vmatmul.mubr.f32.gmra.mrb[0].mxu0 %v11499
    %v11778 = vpop.f32.mrb[0].mxu0
    %v11779 = vadd.f32 0.0, %v11778
    %v11780 = vpop.f32.mrb[0].mxu0
    %11781 = vmatprep.mubr.f32.mxu0 0.0
    %11782 = vmatmul.mubr.f32.gmra.mrb[0].mxu0 %v11502
    %v11783 = vpop.f32.mrb[0].mxu0
    %v11784 = vadd.f32 0.0, %v11783
    %v11785 = vpop.f32.mrb[0].mxu0
    %11786 = vmatprep.mubr.f32.mxu0 0.0
    %11787 = vmatmul.mubr.f32.gmra.mrb[0].mxu0 %v11505
    %v11788 = vpop.f32.mrb[0].mxu0
    %v11789 = vadd.f32 0.0, %v11788
    %v11790 = vpop.f32.mrb[0].mxu0
    %11791 = vmatprep.mubr.f32.mxu0 0.0
    %11792 = vmatmul.mubr.f32.gmra.mrb[0].mxu0 %v11508
    %v11793 = vpop.f32.mrb[0].mxu0
    %v11794 = vadd.f32 0.0, %v11793
    %v11795 = vpop.f32.mrb[0].mxu0
    %11796 = vmatprep.mubr.f32.mxu0 0.0
    %11797 = vmatmul.mubr.f32.gmra.mrb[0].mxu0 %v11511
    %v11798 = vpop.f32.mrb[0].mxu0
    %v11799 = vadd.f32 0.0, %v11798
    %v11800 = vpop.f32.mrb[0].mxu0
    %11801 = vmatprep.mubr.f32.mxu0 0.0
    %11802 = vmatmul.mubr.f32.gmra.mrb[0].mxu0 %v11514
    %v11803 = vpop.f32.mrb[0].mxu0
    %v11804 = vadd.f32 0.0, %v11803
    %v11805 = vpop.f32.mrb[0].mxu0
    %11806 = vmatprep.mubr.f32.mxu0 0.0
    %11807 = vmatmul.mubr.f32.gmra.mrb[0].mxu0 %v11517
    %v11808 = vpop.f32.mrb[0].mxu0
    %v11809 = vadd.f32 0.0, %v11808
    %v11810 = vpop.f32.mrb[0].mxu0
    %11811 = vmatprep.mubr.f32.mxu0 0.0
    %11812 = vmatmul.mubr.f32.gmra.mrb[0].mxu0 %v11520
    %v11813 = vpop.f32.mrb[0].mxu0
    %v11814 = vadd.f32 0.0, %v11813
    %v11815 = vpop.f32.mrb[0].mxu0
    %11816 = vmatprep.mubr.f32.mxu0 0.0
    %11817 = vmatmul.mubr.f32.gmra.mrb[0].mxu0 %v11523
    %v11818 = vpop.f32.mrb[0].mxu0
    %v11819 = vadd.f32 0.0, %v11818
    %v11820 = vpop.f32.mrb[0].mxu0
    %11821 = vmatprep.mubr.f32.mxu0 0.0
    %11822 = vmatmul.mubr.f32.gmra.mrb[0].mxu0 %v11526
    %v11823 = vpop.f32.mrb[0].mxu0
    %v11824 = vadd.f32 0.0, %v11823
    %v11825 = vpop.f32.mrb[0].mxu0
    %11826 = vmatprep.mubr.f32.mxu0 0.0
    %11827 = vmatmul.mubr.f32.gmra.mrb[0].mxu0 %v11529
    %v11828 = vpop.f32.mrb[0].mxu0
    %v11829 = vadd.f32 0.0, %v11828
    %v11830 = vpop.f32.mrb[0].mxu0
    %11831 = vmatprep.mubr.f32.mxu0 0.0
    %11832 = vmatmul.mubr.f32.gmra.mrb[0].mxu0 %v11532
    %v11833 = vpop.f32.mrb[0].mxu0
    %v11834 = vadd.f32 0.0, %v11833
    %v11835 = vpop.f32.mrb[0].mxu0
    %11836 = vmatprep.mubr.f32.mxu0 0.0
    %11837 = vmatmul.mubr.f32.gmra.mrb[0].mxu0 %v11535
    %v11838 = vpop.f32.mrb[0].mxu0
    %v11839 = vadd.f32 0.0, %v11838
    %v11840 = vpop.f32.mrb[0].mxu0
    %11841 = vmatprep.mubr.f32.mxu0 0.0
    %11842 = vmatmul.mubr.f32.gmra.mrb[0].mxu0 %v11538
    %v11843 = vpop.f32.mrb[0].mxu0
    %v11844 = vadd.f32 0.0, %v11843
    %v11845 = vpop.f32.mrb[0].mxu0
    %11846 = vmatprep.mubr.f32.mxu0 0.0
    %11847 = vmatmul.mubr.f32.gmra.mrb[0].mxu0 %v11541
    %v11848 = vpop.f32.mrb[0].mxu0
    %v11849 = vadd.f32 0.0, %v11848
    %v11850 = vpop.f32.mrb[0].mxu0
    %11851 = vmatprep.mubr.f32.mxu0 0.0
    %11852 = vmatmul.mubr.f32.gmra.mrb[0].mxu0 %v11544
    %v11853 = vpop.f32.mrb[0].mxu0
    %v11854 = vadd.f32 0.0, %v11853
    %v11855 = vpop.f32.mrb[0].mxu0
    %11856 = vmatprep.mubr.f32.mxu0 0.0
    %11857 = vmatmul.mubr.f32.gmra.mrb[0].mxu0 %v11547
    %v11858 = vpop.f32.mrb[0].mxu0
    %v11859 = vadd.f32 0.0, %v11858
    %v11860 = vpop.f32.mrb[0].mxu0
    %11861 = vmatprep.mubr.f32.mxu0 0.0
    %11862 = vmatmul.mubr.f32.gmra.mrb[0].mxu0 %v11550
    %v11863 = vpop.f32.mrb[0].mxu0
    %v11864 = vadd.f32 0.0, %v11863
    %v11865 = vpop.f32.mrb[0].mxu0
    %11866 = vmatprep.mubr.f32.mxu0 0.0
    %11867 = vmatmul.mubr.f32.gmra.mrb[0].mxu0 %v11553
    %v11868 = vpop.f32.mrb[0].mxu0
    %v11869 = vadd.f32 0.0, %v11868
    %v11870 = vpop.f32.mrb[0].mxu0
    %11871 = vmatprep.mubr.f32.mxu0 0.0
    %11872 = vmatmul.mubr.f32.gmra.mrb[0].mxu0 %v11556
    %v11873 = vpop.f32.mrb[0].mxu0
    %v11874 = vadd.f32 0.0, %v11873
    %v11875 = vpop.f32.mrb[0].mxu0
    %11876 = vmatprep.mubr.f32.mxu0 0.0
    %11877 = vmatmul.mubr.f32.gmra.mrb[0].mxu0 %v11559
    %v11878 = vpop.f32.mrb[0].mxu0
    %v11879 = vadd.f32 0.0, %v11878
    %v11880 = vpop.f32.mrb[0].mxu0
    %11881 = vmatprep.mubr.f32.mxu0 0.0
    %11882 = vmatmul.mubr.f32.gmra.mrb[0].mxu0 %v11562
    %v11883 = vpop.f32.mrb[0].mxu0
    %v11884 = vadd.f32 0.0, %v11883
    %v11885 = vpop.f32.mrb[0].mxu0
    %11886 = vmatprep.mubr.f32.mxu0 0.0
    %11887 = vmatmul.mubr.f32.gmra.mrb[0].mxu0 %v11565
    %v11888 = vpop.f32.mrb[0].mxu0
    %v11889 = vadd.f32 0.0, %v11888
    %v11890 = vpop.f32.mrb[0].mxu0
    %11891 = vmatprep.mubr.f32.mxu0 0.0
    %11892 = vmatmul.mubr.f32.gmra.mrb[0].mxu0 %v11568
    %v11893 = vpop.f32.mrb[0].mxu0
    %v11894 = vadd.f32 0.0, %v11893
    %v11895 = vpop.f32.mrb[0].mxu0
    %11896 = vmatprep.mubr.f32.mxu0 0.0
    %11897 = vmatmul.mubr.f32.gmra.mrb[0].mxu0 %v11571
    %v11898 = vpop.f32.mrb[0].mxu0
    %v11899 = vadd.f32 0.0, %v11898
    %v11900 = vpop.f32.mrb[0].mxu0
    %11901 = vmatprep.mubr.f32.mxu0 0.0
    %11902 = vmatmul.mubr.f32.gmra.mrb[0].mxu0 %v11574
    %v11903 = vpop.f32.mrb[0].mxu0
    %v11904 = vadd.f32 0.0, %v11903
    %v11905 = vpop.f32.mrb[0].mxu0
    %11906 = vmatprep.mubr.f32.mxu0 0.0
    %11907 = vmatmul.mubr.f32.gmra.mrb[0].mxu0 %v11577
    %v11908 = vpop.f32.mrb[0].mxu0
    %v11909 = vadd.f32 0.0, %v11908
    %v11910 = vpop.f32.mrb[0].mxu0
    %11911 = vmatprep.mubr.f32.mxu0 0.0
    %11912 = vmatmul.mubr.f32.gmra.mrb[0].mxu0 %v11580
    %v11913 = vpop.f32.mrb[0].mxu0
    %v11914 = vadd.f32 0.0, %v11913
    %v11915 = vpop.f32.mrb[0].mxu0
    %11916 = vmatprep.mubr.f32.mxu0 0.0
    %11917 = vmatmul.mubr.f32.gmra.mrb[0].mxu0 %v11583
    %v11918 = vpop.f32.mrb[0].mxu0
    %v11919 = vadd.f32 0.0, %v11918
    %v11920 = vpop.f32.mrb[0].mxu0
    %11921 = vmatprep.mubr.f32.mxu0 0.0
    %11922 = vmatmul.mubr.f32.gmra.mrb[0].mxu0 %v11586
    %v11923 = vpop.f32.mrb[0].mxu0
    %v11924 = vadd.f32 0.0, %v11923
    %v11925 = vpop.f32.mrb[0].mxu0
    %11926 = vmatprep.mubr.f32.mxu0 0.0
    %11927 = vmatmul.mubr.f32.gmra.mrb[0].mxu0 %v11589
    %v11928 = vpop.f32.mrb[0].mxu0
    %v11929 = vadd.f32 0.0, %v11928
    %v11930 = vpop.f32.mrb[0].mxu0
    %11931 = vmatprep.mubr.f32.mxu0 0.0
    %11932 = vmatmul.mubr.f32.gmra.mrb[0].mxu0 %v11592
    %v11933 = vpop.f32.mrb[0].mxu0
    %v11934 = vadd.f32 0.0, %v11933
    %v11935 = vpop.f32.mrb[0].mxu0
    %11936 = vmatprep.mubr.f32.mxu0 0.0
    %11937 = vmatmul.mubr.f32.gmra.mrb[0].mxu0 %v11595
    %v11938 = vpop.f32.mrb[0].mxu0
    %v11939 = vadd.f32 0.0, %v11938
    %v11940 = vpop.f32.mrb[0].mxu0
    %11941 = vmatprep.mubr.f32.mxu0 0.0
    %11942 = vmatmul.mubr.f32.gmra.mrb[0].mxu0 %v11598
    %v11943 = vpop.f32.mrb[0].mxu0
    %v11944 = vadd.f32 0.0, %v11943
    %v11945 = vpop.f32.mrb[0].mxu0
    %11946 = vmatprep.mubr.f32.mxu0 0.0
    %11947 = vmatmul.mubr.f32.gmra.mrb[0].mxu0 %v11601
    %v11948 = vpop.f32.mrb[0].mxu0
    %v11949 = vadd.f32 0.0, %v11948
    %v11950 = vpop.f32.mrb[0].mxu0
    %11951 = vmatprep.mubr.f32.mxu0 0.0
    %11952 = vmatmul.mubr.f32.gmra.mrb[0].mxu0 %v11604
    %v11953 = vpop.f32.mrb[0].mxu0
    %v11954 = vadd.f32 0.0, %v11953
    %v11955 = vpop.f32.mrb[0].mxu0
    %11956 = vmatprep.mubr.f32.mxu0 0.0
    %11957 = vmatmul.mubr.f32.gmra.mrb[0].mxu0 %v11607
    %v11958 = vpop.f32.mrb[0].mxu0
    %v11959 = vadd.f32 0.0, %v11958
    %v11960 = vpop.f32.mrb[0].mxu0
    %11961 = vmatprep.mubr.f32.mxu0 0.0
    %11962 = vmatmul.mubr.f32.gmra.mrb[0].mxu0 %v11610
    %v11963 = vpop.f32.mrb[0].mxu0
    %v11964 = vadd.f32 0.0, %v11963
    %v11965 = vpop.f32.mrb[0].mxu0
    %11966 = vmatprep.mubr.f32.mxu0 0.0
    %11967 = vmatmul.mubr.f32.gmra.mrb[0].mxu0 %v11613
    %v11968 = vpop.f32.mrb[0].mxu0
    %v11969 = vadd.f32 0.0, %v11968
    %v11970 = vpop.f32.mrb[0].mxu0
    %11971 = vmatprep.mubr.f32.mxu0 0.0
    %11972 = vmatmul.mubr.f32.gmra.mrb[0].mxu0 %v11616
    %v11973 = vpop.f32.mrb[0].mxu0
    %v11974 = vadd.f32 0.0, %v11973
    %v11975 = vpop.f32.mrb[0].mxu0
    %11976 = vmatprep.mubr.f32.mxu0 0.0
    %11977 = vmatmul.mubr.f32.gmra.mrb[0].mxu0 %v11619
    %v11978 = vpop.f32.mrb[0].mxu0
    %v11979 = vadd.f32 0.0, %v11978
    %v11980 = vpop.f32.mrb[0].mxu0
    %11981 = vmatprep.mubr.f32.mxu0 0.0
    %11982 = vmatmul.mubr.f32.gmra.mrb[0].mxu0 %v11622
    %v11983 = vpop.f32.mrb[0].mxu0
    %v11984 = vadd.f32 0.0, %v11983
    %v11985 = vpop.f32.mrb[0].mxu0
    %11986 = vmatprep.mubr.f32.mxu0 0.0
    %11987 = vmatmul.mubr.f32.gmra.mrb[0].mxu0 %v11625
    %v11988 = vpop.f32.mrb[0].mxu0
    %v11989 = vadd.f32 0.0, %v11988
    %v11990 = vpop.f32.mrb[0].mxu0
    %11991 = vmatprep.mubr.f32.mxu0 0.0
    %11992 = vmatmul.mubr.f32.gmra.mrb[0].mxu0 %v11628
    %v11993 = vpop.f32.mrb[0].mxu0
    %v11994 = vadd.f32 0.0, %v11993
    %v11995 = vpop.f32.mrb[0].mxu0
    %11996 = vmatprep.mubr.f32.mxu0 0.0
    %11997 = vmatmul.mubr.f32.gmra.mrb[0].mxu0 %v11631
    %v11998 = vpop.f32.mrb[0].mxu0
    %v11999 = vadd.f32 0.0, %v11998
    %v12000 = vpop.f32.mrb[0].mxu0
    %12001 = vmatprep.mubr.f32.mxu0 0.0
    %12002 = vmatmul.mubr.f32.gmra.mrb[0].mxu0 %v11634
    %v12003 = vpop.f32.mrb[0].mxu0
    %v12004 = vadd.f32 0.0, %v12003
    %v12005 = vpop.f32.mrb[0].mxu0
    %12006 = vmatprep.mubr.f32.mxu0 0.0
    %12007 = vmatmul.mubr.f32.gmra.mrb[0].mxu0 %v11637
    %v12008 = vpop.f32.mrb[0].mxu0
    %v12009 = vadd.f32 0.0, %v12008
    %v12010 = vpop.f32.mrb[0].mxu0
    %12011 = vmatprep.mubr.f32.mxu0 0.0
    %12012 = vmatmul.mubr.f32.gmra.mrb[0].mxu0 %v11640
    %v12013 = vpop.f32.mrb[0].mxu0
    %v12014 = vadd.f32 0.0, %v12013
    %v12015 = vpop.f32.mrb[0].mxu0
    %12016 = vmatprep.mubr.f32.mxu0 0.0
    %12017 = vmatmul.mubr.f32.gmra.mrb[0].mxu0 %v11643
    %v12018 = vpop.f32.mrb[0].mxu0
    %v12019 = vadd.f32 0.0, %v12018
    %v12020 = vpop.f32.mrb[0].mxu0
    %12021 = vmatprep.mubr.f32.mxu0 0.0
    %12022 = vmatmul.mubr.f32.gmra.mrb[0].mxu0 %v11646
    %v12023 = vpop.f32.mrb[0].mxu0
    %v12024 = vadd.f32 0.0, %v12023
    %v12025 = vpop.f32.mrb[0].mxu0
    %12026 = vmatprep.mubr.f32.mxu0 0.0
    %12027 = vmatmul.mubr.f32.gmra.mrb[0].mxu0 %v11649
    %v12028 = vpop.f32.mrb[0].mxu0
    %v12029 = vadd.f32 0.0, %v12028
    %v12030 = vpop.f32.mrb[0].mxu0
    %12031 = vmatprep.mubr.f32.mxu0 0.0
    %12032 = vmatmul.mubr.f32.gmra.mrb[0].mxu0 %v11652
    %v12033 = vpop.f32.mrb[0].mxu0
    %v12034 = vadd.f32 0.0, %v12033
    %v12035 = vpop.f32.mrb[0].mxu0
    %12036 = vmatprep.mubr.f32.mxu0 0.0
    %12037 = vmatmul.mubr.f32.gmra.mrb[0].mxu0 %v11655
    %v12038 = vpop.f32.mrb[0].mxu0
    %v12039 = vadd.f32 0.0, %v12038
    %v12040 = vpop.f32.mrb[0].mxu0
    %12041 = vdwg.mxu0
    %12042 = vxpose.xlu0.b32.start [1/16] %v11724, 128
    %12043 = vxpose.xlu0.b32.cont [2/16] %v11729, 128
    %12044 = vxpose.xlu0.b32.cont [3/16] %v11734, 128
    %12045 = vxpose.xlu0.b32.cont [4/16] %v11739, 128
    %12046 = vxpose.xlu0.b32.cont [5/16] %v11744, 128
    %12047 = vxpose.xlu0.b32.cont [6/16] %v11749, 128
    %12048 = vxpose.xlu0.b32.cont [7/16] %v11754, 128
    %12049 = vxpose.xlu0.b32.cont [8/16] %v11759, 128
    %12050 = vxpose.xlu0.b32.cont [9/16] %v11764, 128
    %12051 = vxpose.xlu0.b32.cont [10/16] %v11769, 128
    %12052 = vxpose.xlu0.b32.cont [11/16] %v11774, 128
    %12053 = vxpose.xlu0.b32.cont [12/16] %v11779, 128
    %12054 = vxpose.xlu0.b32.cont [13/16] %v11784, 128
    %12055 = vxpose.xlu0.b32.cont [14/16] %v11789, 128
    %12056 = vxpose.xlu0.b32.cont [15/16] %v11794, 128
    %12057 = vxpose.xlu0.b32.end [16/16] %v11799, 128
    %v12058 = vpop.trf.xlu0
    %v12059 = vpop.trf.xlu0
    %v12060 = vpop.trf.xlu0
    %v12061 = vpop.trf.xlu0
    %v12062 = vpop.trf.xlu0
    %v12063 = vpop.trf.xlu0
    %v12064 = vpop.trf.xlu0
    %v12065 = vpop.trf.xlu0
    %v12066 = vpop.trf.xlu0
    %v12067 = vpop.trf.xlu0
    %v12068 = vpop.trf.xlu0
    %v12069 = vpop.trf.xlu0
    %v12070 = vpop.trf.xlu0
    %v12071 = vpop.trf.xlu0
    %v12072 = vpop.trf.xlu0
    %v12073 = vpop.trf.xlu0
    %12074 = vxpose.xlu0.b32.start [1/16] %v11804, 128
    %12075 = vxpose.xlu0.b32.cont [2/16] %v11809, 128
    %12076 = vxpose.xlu0.b32.cont [3/16] %v11814, 128
    %12077 = vxpose.xlu0.b32.cont [4/16] %v11819, 128
    %12078 = vxpose.xlu0.b32.cont [5/16] %v11824, 128
    %12079 = vxpose.xlu0.b32.cont [6/16] %v11829, 128
    %12080 = vxpose.xlu0.b32.cont [7/16] %v11834, 128
    %12081 = vxpose.xlu0.b32.cont [8/16] %v11839, 128
    %12082 = vxpose.xlu0.b32.cont [9/16] %v11844, 128
    %12083 = vxpose.xlu0.b32.cont [10/16] %v11849, 128
    %12084 = vxpose.xlu0.b32.cont [11/16] %v11854, 128
    %12085 = vxpose.xlu0.b32.cont [12/16] %v11859, 128
    %12086 = vxpose.xlu0.b32.cont [13/16] %v11864, 128
    %12087 = vxpose.xlu0.b32.cont [14/16] %v11869, 128
    %12088 = vxpose.xlu0.b32.cont [15/16] %v11874, 128
    %12089 = vxpose.xlu0.b32.end [16/16] %v11879, 128
    %v12090 = vpop.trf.xlu0
    %v12091 = vpop.trf.xlu0
    %v12092 = vpop.trf.xlu0
    %v12093 = vpop.trf.xlu0
    %v12094 = vpop.trf.xlu0
    %v12095 = vpop.trf.xlu0
    %v12096 = vpop.trf.xlu0
    %v12097 = vpop.trf.xlu0
    %v12098 = vpop.trf.xlu0
    %v12099 = vpop.trf.xlu0
    %v12100 = vpop.trf.xlu0
    %v12101 = vpop.trf.xlu0
    %v12102 = vpop.trf.xlu0
    %v12103 = vpop.trf.xlu0
    %v12104 = vpop.trf.xlu0
    %v12105 = vpop.trf.xlu0
    %12106 = vxpose.xlu0.b32.start [1/16] %v11884, 128
    %12107 = vxpose.xlu0.b32.cont [2/16] %v11889, 128
    %12108 = vxpose.xlu0.b32.cont [3/16] %v11894, 128
    %12109 = vxpose.xlu0.b32.cont [4/16] %v11899, 128
    %12110 = vxpose.xlu0.b32.cont [5/16] %v11904, 128
    %12111 = vxpose.xlu0.b32.cont [6/16] %v11909, 128
    %12112 = vxpose.xlu0.b32.cont [7/16] %v11914, 128
    %12113 = vxpose.xlu0.b32.cont [8/16] %v11919, 128
    %12114 = vxpose.xlu0.b32.cont [9/16] %v11924, 128
    %12115 = vxpose.xlu0.b32.cont [10/16] %v11929, 128
    %12116 = vxpose.xlu0.b32.cont [11/16] %v11934, 128
    %12117 = vxpose.xlu0.b32.cont [12/16] %v11939, 128
    %12118 = vxpose.xlu0.b32.cont [13/16] %v11944, 128
    %12119 = vxpose.xlu0.b32.cont [14/16] %v11949, 128
    %12120 = vxpose.xlu0.b32.cont [15/16] %v11954, 128
    %12121 = vxpose.xlu0.b32.end [16/16] %v11959, 128
    %v12122 = vpop.trf.xlu0
    %v12123 = vpop.trf.xlu0
    %v12124 = vpop.trf.xlu0
    %v12125 = vpop.trf.xlu0
    %v12126 = vpop.trf.xlu0
    %v12127 = vpop.trf.xlu0
    %v12128 = vpop.trf.xlu0
    %v12129 = vpop.trf.xlu0
    %v12130 = vpop.trf.xlu0
    %v12131 = vpop.trf.xlu0
    %v12132 = vpop.trf.xlu0
    %v12133 = vpop.trf.xlu0
    %v12134 = vpop.trf.xlu0
    %v12135 = vpop.trf.xlu0
    %v12136 = vpop.trf.xlu0
    %v12137 = vpop.trf.xlu0
    %12138 = vxpose.xlu0.b32.start [1/16] %v11964, 128
    %12139 = vxpose.xlu0.b32.cont [2/16] %v11969, 128
    %12140 = vxpose.xlu0.b32.cont [3/16] %v11974, 128
    %12141 = vxpose.xlu0.b32.cont [4/16] %v11979, 128
    %12142 = vxpose.xlu0.b32.cont [5/16] %v11984, 128
    %12143 = vxpose.xlu0.b32.cont [6/16] %v11989, 128
    %12144 = vxpose.xlu0.b32.cont [7/16] %v11994, 128
    %12145 = vxpose.xlu0.b32.cont [8/16] %v11999, 128
    %12146 = vxpose.xlu0.b32.cont [9/16] %v12004, 128
    %12147 = vxpose.xlu0.b32.cont [10/16] %v12009, 128
    %12148 = vxpose.xlu0.b32.cont [11/16] %v12014, 128
    %12149 = vxpose.xlu0.b32.cont [12/16] %v12019, 128
    %12150 = vxpose.xlu0.b32.cont [13/16] %v12024, 128
    %12151 = vxpose.xlu0.b32.cont [14/16] %v12029, 128
    %12152 = vxpose.xlu0.b32.cont [15/16] %v12034, 128
    %12153 = vxpose.xlu0.b32.end [16/16] %v12039, 128
    %v12154 = vpop.trf.xlu0
    %v12155 = vpop.trf.xlu0
    %v12156 = vpop.trf.xlu0
    %v12157 = vpop.trf.xlu0
    %v12158 = vpop.trf.xlu0
    %v12159 = vpop.trf.xlu0
    %v12160 = vpop.trf.xlu0
    %v12161 = vpop.trf.xlu0
    %v12162 = vpop.trf.xlu0
    %v12163 = vpop.trf.xlu0
    %v12164 = vpop.trf.xlu0
    %v12165 = vpop.trf.xlu0
    %v12166 = vpop.trf.xlu0
    %v12167 = vpop.trf.xlu0
    %v12168 = vpop.trf.xlu0
    %v12169 = vpop.trf.xlu0
    %v12170 = vmul.f32 %v10444, 0.98078525
    %v12171 = vmul.f32 %v10445, 0.98078525
    %v12172 = vmul.f32 %v10446, 0.98078525
    %v12173 = vmul.f32 %v10447, 0.98078525
    %v12174 = vmul.f32 %v12058, -0.19509032
    %v12175 = vmul.f32 %v12090, -0.19509032
    %v12176 = vmul.f32 %v12122, -0.19509032
    %v12177 = vmul.f32 %v12154, -0.19509032
    %v12178 = vadd.f32 %v12170, %v12174
    %v12179 = vadd.f32 %v12171, %v12175
    %v12180 = vadd.f32 %v12172, %v12176
    %v12181 = vadd.f32 %v12173, %v12177
    %v12182 = vmul.f32 %v26, 0.125
    %v12183 = vmul.f32 %v27, 0.125
    %v12184 = vmul.f32 %v28, 0.125
    %v12185 = vmul.f32 %v29, 0.125
    %12186 = vxpose.xlu0.b32.start [1/16] %v12178, 128
    %12187 = vxpose.xlu0.b32.cont [2/16] 0.0, 128
    %12188 = vxpose.xlu0.b32.cont [3/16] 0.0, 128
    %12189 = vxpose.xlu0.b32.cont [4/16] 0.0, 128
    %12190 = vxpose.xlu0.b32.cont [5/16] 0.0, 128
    %12191 = vxpose.xlu0.b32.cont [6/16] 0.0, 128
    %12192 = vxpose.xlu0.b32.cont [7/16] 0.0, 128
    %12193 = vxpose.xlu0.b32.cont [8/16] 0.0, 128
    %12194 = vxpose.xlu0.b32.cont [9/16] 0.0, 128
    %12195 = vxpose.xlu0.b32.cont [10/16] 0.0, 128
    %12196 = vxpose.xlu0.b32.cont [11/16] 0.0, 128
    %12197 = vxpose.xlu0.b32.cont [12/16] 0.0, 128
    %12198 = vxpose.xlu0.b32.cont [13/16] 0.0, 128
    %12199 = vxpose.xlu0.b32.cont [14/16] 0.0, 128
    %12200 = vxpose.xlu0.b32.cont [15/16] 0.0, 128
    %12201 = vxpose.xlu0.b32.end [16/16] 0.0, 128
    %v12202 = vpop.trf.xlu0
    %v12203 = vpop.trf.xlu0
    %v12204 = vpop.trf.xlu0
    %v12205 = vpop.trf.xlu0
    %v12206 = vpop.trf.xlu0
    %v12207 = vpop.trf.xlu0
    %v12208 = vpop.trf.xlu0
    %v12209 = vpop.trf.xlu0
    %v12210 = vpop.trf.xlu0
    %v12211 = vpop.trf.xlu0
    %v12212 = vpop.trf.xlu0
    %v12213 = vpop.trf.xlu0
    %v12214 = vpop.trf.xlu0
    %v12215 = vpop.trf.xlu0
    %v12216 = vpop.trf.xlu0
    %v12217 = vpop.trf.xlu0
    %12218 = vxpose.xlu0.b32.start [1/16] %v12179, 128
    %12219 = vxpose.xlu0.b32.cont [2/16] 0.0, 128
    %12220 = vxpose.xlu0.b32.cont [3/16] 0.0, 128
    %12221 = vxpose.xlu0.b32.cont [4/16] 0.0, 128
    %12222 = vxpose.xlu0.b32.cont [5/16] 0.0, 128
    %12223 = vxpose.xlu0.b32.cont [6/16] 0.0, 128
    %12224 = vxpose.xlu0.b32.cont [7/16] 0.0, 128
    %12225 = vxpose.xlu0.b32.cont [8/16] 0.0, 128
    %12226 = vxpose.xlu0.b32.cont [9/16] 0.0, 128
    %12227 = vxpose.xlu0.b32.cont [10/16] 0.0, 128
    %12228 = vxpose.xlu0.b32.cont [11/16] 0.0, 128
    %12229 = vxpose.xlu0.b32.cont [12/16] 0.0, 128
    %12230 = vxpose.xlu0.b32.cont [13/16] 0.0, 128
    %12231 = vxpose.xlu0.b32.cont [14/16] 0.0, 128
    %12232 = vxpose.xlu0.b32.cont [15/16] 0.0, 128
    %12233 = vxpose.xlu0.b32.end [16/16] 0.0, 128
    %v12234 = vpop.trf.xlu0
    %v12235 = vpop.trf.xlu0
    %v12236 = vpop.trf.xlu0
    %v12237 = vpop.trf.xlu0
    %v12238 = vpop.trf.xlu0
    %v12239 = vpop.trf.xlu0
    %v12240 = vpop.trf.xlu0
    %v12241 = vpop.trf.xlu0
    %v12242 = vpop.trf.xlu0
    %v12243 = vpop.trf.xlu0
    %v12244 = vpop.trf.xlu0
    %v12245 = vpop.trf.xlu0
    %v12246 = vpop.trf.xlu0
    %v12247 = vpop.trf.xlu0
    %v12248 = vpop.trf.xlu0
    %v12249 = vpop.trf.xlu0
    %12250 = vxpose.xlu0.b32.start [1/16] %v12180, 128
    %12251 = vxpose.xlu0.b32.cont [2/16] 0.0, 128
    %12252 = vxpose.xlu0.b32.cont [3/16] 0.0, 128
    %12253 = vxpose.xlu0.b32.cont [4/16] 0.0, 128
    %12254 = vxpose.xlu0.b32.cont [5/16] 0.0, 128
    %12255 = vxpose.xlu0.b32.cont [6/16] 0.0, 128
    %12256 = vxpose.xlu0.b32.cont [7/16] 0.0, 128
    %12257 = vxpose.xlu0.b32.cont [8/16] 0.0, 128
    %12258 = vxpose.xlu0.b32.cont [9/16] 0.0, 128
    %12259 = vxpose.xlu0.b32.cont [10/16] 0.0, 128
    %12260 = vxpose.xlu0.b32.cont [11/16] 0.0, 128
    %12261 = vxpose.xlu0.b32.cont [12/16] 0.0, 128
    %12262 = vxpose.xlu0.b32.cont [13/16] 0.0, 128
    %12263 = vxpose.xlu0.b32.cont [14/16] 0.0, 128
    %12264 = vxpose.xlu0.b32.cont [15/16] 0.0, 128
    %12265 = vxpose.xlu0.b32.end [16/16] 0.0, 128
    %v12266 = vpop.trf.xlu0
    %v12267 = vpop.trf.xlu0
    %v12268 = vpop.trf.xlu0
    %v12269 = vpop.trf.xlu0
    %v12270 = vpop.trf.xlu0
    %v12271 = vpop.trf.xlu0
    %v12272 = vpop.trf.xlu0
    %v12273 = vpop.trf.xlu0
    %v12274 = vpop.trf.xlu0
    %v12275 = vpop.trf.xlu0
    %v12276 = vpop.trf.xlu0
    %v12277 = vpop.trf.xlu0
    %v12278 = vpop.trf.xlu0
    %v12279 = vpop.trf.xlu0
    %v12280 = vpop.trf.xlu0
    %v12281 = vpop.trf.xlu0
    %12282 = vxpose.xlu0.b32.start [1/16] %v12181, 128
    %12283 = vxpose.xlu0.b32.cont [2/16] 0.0, 128
    %12284 = vxpose.xlu0.b32.cont [3/16] 0.0, 128
    %12285 = vxpose.xlu0.b32.cont [4/16] 0.0, 128
    %12286 = vxpose.xlu0.b32.cont [5/16] 0.0, 128
    %12287 = vxpose.xlu0.b32.cont [6/16] 0.0, 128
    %12288 = vxpose.xlu0.b32.cont [7/16] 0.0, 128
    %12289 = vxpose.xlu0.b32.cont [8/16] 0.0, 128
    %12290 = vxpose.xlu0.b32.cont [9/16] 0.0, 128
    %12291 = vxpose.xlu0.b32.cont [10/16] 0.0, 128
    %12292 = vxpose.xlu0.b32.cont [11/16] 0.0, 128
    %12293 = vxpose.xlu0.b32.cont [12/16] 0.0, 128
    %12294 = vxpose.xlu0.b32.cont [13/16] 0.0, 128
    %12295 = vxpose.xlu0.b32.cont [14/16] 0.0, 128
    %12296 = vxpose.xlu0.b32.cont [15/16] 0.0, 128
    %12297 = vxpose.xlu0.b32.end [16/16] 0.0, 128
    %v12298 = vpop.trf.xlu0
    %v12299 = vpop.trf.xlu0
    %v12300 = vpop.trf.xlu0
    %v12301 = vpop.trf.xlu0
    %v12302 = vpop.trf.xlu0
    %v12303 = vpop.trf.xlu0
    %v12304 = vpop.trf.xlu0
    %v12305 = vpop.trf.xlu0
    %v12306 = vpop.trf.xlu0
    %v12307 = vpop.trf.xlu0
    %v12308 = vpop.trf.xlu0
    %v12309 = vpop.trf.xlu0
    %v12310 = vpop.trf.xlu0
    %v12311 = vpop.trf.xlu0
    %v12312 = vpop.trf.xlu0
    %v12313 = vpop.trf.xlu0
    %v12315 = vsel %vm159, %v12202, 0
    %v12318 = vsel %vm159, %v12203, 0
    %v12321 = vsel %vm159, %v12204, 0
    %v12324 = vsel %vm159, %v12205, 0
    %v12327 = vsel %vm159, %v12206, 0
    %v12330 = vsel %vm159, %v12207, 0
    %v12333 = vsel %vm159, %v12208, 0
    %v12336 = vsel %vm159, %v12209, 0
    %v12339 = vsel %vm159, %v12210, 0
    %v12342 = vsel %vm159, %v12211, 0
    %v12345 = vsel %vm159, %v12212, 0
    %v12348 = vsel %vm159, %v12213, 0
    %v12351 = vsel %vm159, %v12214, 0
    %v12354 = vsel %vm159, %v12215, 0
    %v12357 = vsel %vm159, %v12216, 0
    %v12360 = vsel %vm159, %v12217, 0
    %v12363 = vsel %vm159, %v12234, 0
    %v12366 = vsel %vm159, %v12235, 0
    %v12369 = vsel %vm159, %v12236, 0
    %v12372 = vsel %vm159, %v12237, 0
    %v12375 = vsel %vm159, %v12238, 0
    %v12378 = vsel %vm159, %v12239, 0
    %v12381 = vsel %vm159, %v12240, 0
    %v12384 = vsel %vm159, %v12241, 0
    %v12387 = vsel %vm159, %v12242, 0
    %v12390 = vsel %vm159, %v12243, 0
    %v12393 = vsel %vm159, %v12244, 0
    %v12396 = vsel %vm159, %v12245, 0
    %v12399 = vsel %vm159, %v12246, 0
    %v12402 = vsel %vm159, %v12247, 0
    %v12405 = vsel %vm159, %v12248, 0
    %v12408 = vsel %vm159, %v12249, 0
    %v12411 = vsel %vm159, %v12266, 0
    %v12414 = vsel %vm159, %v12267, 0
    %v12417 = vsel %vm159, %v12268, 0
    %v12420 = vsel %vm159, %v12269, 0
    %v12423 = vsel %vm159, %v12270, 0
    %v12426 = vsel %vm159, %v12271, 0
    %v12429 = vsel %vm159, %v12272, 0
    %v12432 = vsel %vm159, %v12273, 0
    %v12435 = vsel %vm159, %v12274, 0
    %v12438 = vsel %vm159, %v12275, 0
    %v12441 = vsel %vm159, %v12276, 0
    %v12444 = vsel %vm159, %v12277, 0
    %v12447 = vsel %vm159, %v12278, 0
    %v12450 = vsel %vm159, %v12279, 0
    %v12453 = vsel %vm159, %v12280, 0
    %v12456 = vsel %vm159, %v12281, 0
    %v12459 = vsel %vm159, %v12298, 0
    %v12462 = vsel %vm159, %v12299, 0
    %v12465 = vsel %vm159, %v12300, 0
    %v12468 = vsel %vm159, %v12301, 0
    %v12471 = vsel %vm159, %v12302, 0
    %v12474 = vsel %vm159, %v12303, 0
    %v12477 = vsel %vm159, %v12304, 0
    %v12480 = vsel %vm159, %v12305, 0
    %v12483 = vsel %vm159, %v12306, 0
    %v12486 = vsel %vm159, %v12307, 0
    %v12489 = vsel %vm159, %v12308, 0
    %v12492 = vsel %vm159, %v12309, 0
    %v12495 = vsel %vm159, %v12310, 0
    %v12498 = vsel %vm159, %v12311, 0
    %v12501 = vsel %vm159, %v12312, 0
    %v12504 = vsel %vm159, %v12313, 0
    %12506 = vmatprep.subr.mxu0 0.0
    %12507 = vmatpush1.xpose.msra.mxu0 %v353
    %12508 = vmatprep.subr.mxu0 0.0
    %12509 = vmatpush1.xpose.msra.mxu0 %v356
    %12510 = vmatprep.subr.mxu0 0.0
    %12511 = vmatpush1.xpose.msra.mxu0 %v359
    %12512 = vmatprep.subr.mxu0 0.0
    %12513 = vmatpush1.xpose.msra.mxu0 %v362
    %12514 = vmatprep.subr.mxu0 0.0
    %12515 = vmatpush1.xpose.msra.mxu0 0.0
    %12516 = vmatprep.subr.mxu0 0.0
    %12517 = vmatpush1.xpose.msra.mxu0 0.0
    %12518 = vmatprep.subr.mxu0 0.0
    %12519 = vmatpush1.xpose.msra.mxu0 0.0
    %12520 = vmatprep.subr.mxu0 0.0
    %12521 = vmatpush1.xpose.msra.mxu0 0.0
    %12522 = vmatprep.subr.mxu0 0.0
    %12523 = vmatpush1.xpose.msra.mxu0 0.0
    %12524 = vmatprep.subr.mxu0 0.0
    %12525 = vmatpush1.xpose.msra.mxu0 0.0
    %12526 = vmatprep.subr.mxu0 0.0
    %12527 = vmatpush1.xpose.msra.mxu0 0.0
    %12528 = vmatprep.subr.mxu0 0.0
    %12529 = vmatpush1.xpose.msra.mxu0 0.0
    %12530 = vmatprep.subr.mxu0 0.0
    %12531 = vmatpush1.xpose.msra.mxu0 0.0
    %12532 = vmatprep.subr.mxu0 0.0
    %12533 = vmatpush1.xpose.msra.mxu0 0.0
    %12534 = vmatprep.subr.mxu0 0.0
    %12535 = vmatpush1.xpose.msra.mxu0 0.0
    %12536 = vmatprep.subr.mxu0 0.0
    %12537 = vmatpush1.xpose.msra.mxu0 0.0
    %12538 = vmatprep.subr.mxu0 0.0
    %12539 = vmatpush1.xpose.msra.mxu0 0.0
    %12540 = vmatprep.subr.mxu0 0.0
    %12541 = vmatpush1.xpose.msra.mxu0 0.0
    %12542 = vmatprep.subr.mxu0 0.0
    %12543 = vmatpush1.xpose.msra.mxu0 0.0
    %12544 = vmatprep.subr.mxu0 0.0
    %12545 = vmatpush1.xpose.msra.mxu0 0.0
    %12546 = vmatprep.subr.mxu0 0.0
    %12547 = vmatpush1.xpose.msra.mxu0 0.0
    %12548 = vmatprep.subr.mxu0 0.0
    %12549 = vmatpush1.xpose.msra.mxu0 0.0
    %12550 = vmatprep.subr.mxu0 0.0
    %12551 = vmatpush1.xpose.msra.mxu0 0.0
    %12552 = vmatprep.subr.mxu0 0.0
    %12553 = vmatpush1.xpose.msra.mxu0 0.0
    %12554 = vmatprep.subr.mxu0 0.0
    %12555 = vmatpush1.xpose.msra.mxu0 0.0
    %12556 = vmatprep.subr.mxu0 0.0
    %12557 = vmatpush1.xpose.msra.mxu0 0.0
    %12558 = vmatprep.subr.mxu0 0.0
    %12559 = vmatpush1.xpose.msra.mxu0 0.0
    %12560 = vmatprep.subr.mxu0 0.0
    %12561 = vmatpush1.xpose.msra.mxu0 0.0
    %12562 = vmatprep.subr.mxu0 0.0
    %12563 = vmatpush1.xpose.msra.mxu0 0.0
    %12564 = vmatprep.subr.mxu0 0.0
    %12565 = vmatpush1.xpose.msra.mxu0 0.0
    %12566 = vmatprep.subr.mxu0 0.0
    %12567 = vmatpush1.xpose.msra.mxu0 0.0
    %12568 = vmatprep.subr.mxu0 0.0
    %12569 = vmatpush1.xpose.msra.mxu0 0.0
    %12570 = vmatprep.mubr.f32.mxu0 0.0
    %12571 = vmatmul.mubr.f32.gmra.mrb[0].mxu0 %v12315
    %v12572 = vpop.f32.mrb[0].mxu0
    %v12573 = vadd.f32 0.0, %v12572
    %v12574 = vpop.f32.mrb[0].mxu0
    %12575 = vmatprep.mubr.f32.mxu0 0.0
    %12576 = vmatmul.mubr.f32.gmra.mrb[0].mxu0 %v12318
    %v12577 = vpop.f32.mrb[0].mxu0
    %v12578 = vadd.f32 0.0, %v12577
    %v12579 = vpop.f32.mrb[0].mxu0
    %12580 = vmatprep.mubr.f32.mxu0 0.0
    %12581 = vmatmul.mubr.f32.gmra.mrb[0].mxu0 %v12321
    %v12582 = vpop.f32.mrb[0].mxu0
    %v12583 = vadd.f32 0.0, %v12582
    %v12584 = vpop.f32.mrb[0].mxu0
    %12585 = vmatprep.mubr.f32.mxu0 0.0
    %12586 = vmatmul.mubr.f32.gmra.mrb[0].mxu0 %v12324
    %v12587 = vpop.f32.mrb[0].mxu0
    %v12588 = vadd.f32 0.0, %v12587
    %v12589 = vpop.f32.mrb[0].mxu0
    %12590 = vmatprep.mubr.f32.mxu0 0.0
    %12591 = vmatmul.mubr.f32.gmra.mrb[0].mxu0 %v12327
    %v12592 = vpop.f32.mrb[0].mxu0
    %v12593 = vadd.f32 0.0, %v12592
    %v12594 = vpop.f32.mrb[0].mxu0
    %12595 = vmatprep.mubr.f32.mxu0 0.0
    %12596 = vmatmul.mubr.f32.gmra.mrb[0].mxu0 %v12330
    %v12597 = vpop.f32.mrb[0].mxu0
    %v12598 = vadd.f32 0.0, %v12597
    %v12599 = vpop.f32.mrb[0].mxu0
    %12600 = vmatprep.mubr.f32.mxu0 0.0
    %12601 = vmatmul.mubr.f32.gmra.mrb[0].mxu0 %v12333
    %v12602 = vpop.f32.mrb[0].mxu0
    %v12603 = vadd.f32 0.0, %v12602
    %v12604 = vpop.f32.mrb[0].mxu0
    %12605 = vmatprep.mubr.f32.mxu0 0.0
    %12606 = vmatmul.mubr.f32.gmra.mrb[0].mxu0 %v12336
    %v12607 = vpop.f32.mrb[0].mxu0
    %v12608 = vadd.f32 0.0, %v12607
    %v12609 = vpop.f32.mrb[0].mxu0
    %12610 = vmatprep.mubr.f32.mxu0 0.0
    %12611 = vmatmul.mubr.f32.gmra.mrb[0].mxu0 %v12339
    %v12612 = vpop.f32.mrb[0].mxu0
    %v12613 = vadd.f32 0.0, %v12612
    %v12614 = vpop.f32.mrb[0].mxu0
    %12615 = vmatprep.mubr.f32.mxu0 0.0
    %12616 = vmatmul.mubr.f32.gmra.mrb[0].mxu0 %v12342
    %v12617 = vpop.f32.mrb[0].mxu0
    %v12618 = vadd.f32 0.0, %v12617
    %v12619 = vpop.f32.mrb[0].mxu0
    %12620 = vmatprep.mubr.f32.mxu0 0.0
    %12621 = vmatmul.mubr.f32.gmra.mrb[0].mxu0 %v12345
    %v12622 = vpop.f32.mrb[0].mxu0
    %v12623 = vadd.f32 0.0, %v12622
    %v12624 = vpop.f32.mrb[0].mxu0
    %12625 = vmatprep.mubr.f32.mxu0 0.0
    %12626 = vmatmul.mubr.f32.gmra.mrb[0].mxu0 %v12348
    %v12627 = vpop.f32.mrb[0].mxu0
    %v12628 = vadd.f32 0.0, %v12627
    %v12629 = vpop.f32.mrb[0].mxu0
    %12630 = vmatprep.mubr.f32.mxu0 0.0
    %12631 = vmatmul.mubr.f32.gmra.mrb[0].mxu0 %v12351
    %v12632 = vpop.f32.mrb[0].mxu0
    %v12633 = vadd.f32 0.0, %v12632
    %v12634 = vpop.f32.mrb[0].mxu0
    %12635 = vmatprep.mubr.f32.mxu0 0.0
    %12636 = vmatmul.mubr.f32.gmra.mrb[0].mxu0 %v12354
    %v12637 = vpop.f32.mrb[0].mxu0
    %v12638 = vadd.f32 0.0, %v12637
    %v12639 = vpop.f32.mrb[0].mxu0
    %12640 = vmatprep.mubr.f32.mxu0 0.0
    %12641 = vmatmul.mubr.f32.gmra.mrb[0].mxu0 %v12357
    %v12642 = vpop.f32.mrb[0].mxu0
    %v12643 = vadd.f32 0.0, %v12642
    %v12644 = vpop.f32.mrb[0].mxu0
    %12645 = vmatprep.mubr.f32.mxu0 0.0
    %12646 = vmatmul.mubr.f32.gmra.mrb[0].mxu0 %v12360
    %v12647 = vpop.f32.mrb[0].mxu0
    %v12648 = vadd.f32 0.0, %v12647
    %v12649 = vpop.f32.mrb[0].mxu0
    %12650 = vmatprep.mubr.f32.mxu0 0.0
    %12651 = vmatmul.mubr.f32.gmra.mrb[0].mxu0 %v12363
    %v12652 = vpop.f32.mrb[0].mxu0
    %v12653 = vadd.f32 0.0, %v12652
    %v12654 = vpop.f32.mrb[0].mxu0
    %12655 = vmatprep.mubr.f32.mxu0 0.0
    %12656 = vmatmul.mubr.f32.gmra.mrb[0].mxu0 %v12366
    %v12657 = vpop.f32.mrb[0].mxu0
    %v12658 = vadd.f32 0.0, %v12657
    %v12659 = vpop.f32.mrb[0].mxu0
    %12660 = vmatprep.mubr.f32.mxu0 0.0
    %12661 = vmatmul.mubr.f32.gmra.mrb[0].mxu0 %v12369
    %v12662 = vpop.f32.mrb[0].mxu0
    %v12663 = vadd.f32 0.0, %v12662
    %v12664 = vpop.f32.mrb[0].mxu0
    %12665 = vmatprep.mubr.f32.mxu0 0.0
    %12666 = vmatmul.mubr.f32.gmra.mrb[0].mxu0 %v12372
    %v12667 = vpop.f32.mrb[0].mxu0
    %v12668 = vadd.f32 0.0, %v12667
    %v12669 = vpop.f32.mrb[0].mxu0
    %12670 = vmatprep.mubr.f32.mxu0 0.0
    %12671 = vmatmul.mubr.f32.gmra.mrb[0].mxu0 %v12375
    %v12672 = vpop.f32.mrb[0].mxu0
    %v12673 = vadd.f32 0.0, %v12672
    %v12674 = vpop.f32.mrb[0].mxu0
    %12675 = vmatprep.mubr.f32.mxu0 0.0
    %12676 = vmatmul.mubr.f32.gmra.mrb[0].mxu0 %v12378
    %v12677 = vpop.f32.mrb[0].mxu0
    %v12678 = vadd.f32 0.0, %v12677
    %v12679 = vpop.f32.mrb[0].mxu0
    %12680 = vmatprep.mubr.f32.mxu0 0.0
    %12681 = vmatmul.mubr.f32.gmra.mrb[0].mxu0 %v12381
    %v12682 = vpop.f32.mrb[0].mxu0
    %v12683 = vadd.f32 0.0, %v12682
    %v12684 = vpop.f32.mrb[0].mxu0
    %12685 = vmatprep.mubr.f32.mxu0 0.0
    %12686 = vmatmul.mubr.f32.gmra.mrb[0].mxu0 %v12384
    %v12687 = vpop.f32.mrb[0].mxu0
    %v12688 = vadd.f32 0.0, %v12687
    %v12689 = vpop.f32.mrb[0].mxu0
    %12690 = vmatprep.mubr.f32.mxu0 0.0
    %12691 = vmatmul.mubr.f32.gmra.mrb[0].mxu0 %v12387
    %v12692 = vpop.f32.mrb[0].mxu0
    %v12693 = vadd.f32 0.0, %v12692
    %v12694 = vpop.f32.mrb[0].mxu0
    %12695 = vmatprep.mubr.f32.mxu0 0.0
    %12696 = vmatmul.mubr.f32.gmra.mrb[0].mxu0 %v12390
    %v12697 = vpop.f32.mrb[0].mxu0
    %v12698 = vadd.f32 0.0, %v12697
    %v12699 = vpop.f32.mrb[0].mxu0
    %12700 = vmatprep.mubr.f32.mxu0 0.0
    %12701 = vmatmul.mubr.f32.gmra.mrb[0].mxu0 %v12393
    %v12702 = vpop.f32.mrb[0].mxu0
    %v12703 = vadd.f32 0.0, %v12702
    %v12704 = vpop.f32.mrb[0].mxu0
    %12705 = vmatprep.mubr.f32.mxu0 0.0
    %12706 = vmatmul.mubr.f32.gmra.mrb[0].mxu0 %v12396
    %v12707 = vpop.f32.mrb[0].mxu0
    %v12708 = vadd.f32 0.0, %v12707
    %v12709 = vpop.f32.mrb[0].mxu0
    %12710 = vmatprep.mubr.f32.mxu0 0.0
    %12711 = vmatmul.mubr.f32.gmra.mrb[0].mxu0 %v12399
    %v12712 = vpop.f32.mrb[0].mxu0
    %v12713 = vadd.f32 0.0, %v12712
    %v12714 = vpop.f32.mrb[0].mxu0
    %12715 = vmatprep.mubr.f32.mxu0 0.0
    %12716 = vmatmul.mubr.f32.gmra.mrb[0].mxu0 %v12402
    %v12717 = vpop.f32.mrb[0].mxu0
    %v12718 = vadd.f32 0.0, %v12717
    %v12719 = vpop.f32.mrb[0].mxu0
    %12720 = vmatprep.mubr.f32.mxu0 0.0
    %12721 = vmatmul.mubr.f32.gmra.mrb[0].mxu0 %v12405
    %v12722 = vpop.f32.mrb[0].mxu0
    %v12723 = vadd.f32 0.0, %v12722
    %v12724 = vpop.f32.mrb[0].mxu0
    %12725 = vmatprep.mubr.f32.mxu0 0.0
    %12726 = vmatmul.mubr.f32.gmra.mrb[0].mxu0 %v12408
    %v12727 = vpop.f32.mrb[0].mxu0
    %v12728 = vadd.f32 0.0, %v12727
    %v12729 = vpop.f32.mrb[0].mxu0
    %12730 = vmatprep.mubr.f32.mxu0 0.0
    %12731 = vmatmul.mubr.f32.gmra.mrb[0].mxu0 %v12411
    %v12732 = vpop.f32.mrb[0].mxu0
    %v12733 = vadd.f32 0.0, %v12732
    %v12734 = vpop.f32.mrb[0].mxu0
    %12735 = vmatprep.mubr.f32.mxu0 0.0
    %12736 = vmatmul.mubr.f32.gmra.mrb[0].mxu0 %v12414
    %v12737 = vpop.f32.mrb[0].mxu0
    %v12738 = vadd.f32 0.0, %v12737
    %v12739 = vpop.f32.mrb[0].mxu0
    %12740 = vmatprep.mubr.f32.mxu0 0.0
    %12741 = vmatmul.mubr.f32.gmra.mrb[0].mxu0 %v12417
    %v12742 = vpop.f32.mrb[0].mxu0
    %v12743 = vadd.f32 0.0, %v12742
    %v12744 = vpop.f32.mrb[0].mxu0
    %12745 = vmatprep.mubr.f32.mxu0 0.0
    %12746 = vmatmul.mubr.f32.gmra.mrb[0].mxu0 %v12420
    %v12747 = vpop.f32.mrb[0].mxu0
    %v12748 = vadd.f32 0.0, %v12747
    %v12749 = vpop.f32.mrb[0].mxu0
    %12750 = vmatprep.mubr.f32.mxu0 0.0
    %12751 = vmatmul.mubr.f32.gmra.mrb[0].mxu0 %v12423
    %v12752 = vpop.f32.mrb[0].mxu0
    %v12753 = vadd.f32 0.0, %v12752
    %v12754 = vpop.f32.mrb[0].mxu0
    %12755 = vmatprep.mubr.f32.mxu0 0.0
    %12756 = vmatmul.mubr.f32.gmra.mrb[0].mxu0 %v12426
    %v12757 = vpop.f32.mrb[0].mxu0
    %v12758 = vadd.f32 0.0, %v12757
    %v12759 = vpop.f32.mrb[0].mxu0
    %12760 = vmatprep.mubr.f32.mxu0 0.0
    %12761 = vmatmul.mubr.f32.gmra.mrb[0].mxu0 %v12429
    %v12762 = vpop.f32.mrb[0].mxu0
    %v12763 = vadd.f32 0.0, %v12762
    %v12764 = vpop.f32.mrb[0].mxu0
    %12765 = vmatprep.mubr.f32.mxu0 0.0
    %12766 = vmatmul.mubr.f32.gmra.mrb[0].mxu0 %v12432
    %v12767 = vpop.f32.mrb[0].mxu0
    %v12768 = vadd.f32 0.0, %v12767
    %v12769 = vpop.f32.mrb[0].mxu0
    %12770 = vmatprep.mubr.f32.mxu0 0.0
    %12771 = vmatmul.mubr.f32.gmra.mrb[0].mxu0 %v12435
    %v12772 = vpop.f32.mrb[0].mxu0
    %v12773 = vadd.f32 0.0, %v12772
    %v12774 = vpop.f32.mrb[0].mxu0
    %12775 = vmatprep.mubr.f32.mxu0 0.0
    %12776 = vmatmul.mubr.f32.gmra.mrb[0].mxu0 %v12438
    %v12777 = vpop.f32.mrb[0].mxu0
    %v12778 = vadd.f32 0.0, %v12777
    %v12779 = vpop.f32.mrb[0].mxu0
    %12780 = vmatprep.mubr.f32.mxu0 0.0
    %12781 = vmatmul.mubr.f32.gmra.mrb[0].mxu0 %v12441
    %v12782 = vpop.f32.mrb[0].mxu0
    %v12783 = vadd.f32 0.0, %v12782
    %v12784 = vpop.f32.mrb[0].mxu0
    %12785 = vmatprep.mubr.f32.mxu0 0.0
    %12786 = vmatmul.mubr.f32.gmra.mrb[0].mxu0 %v12444
    %v12787 = vpop.f32.mrb[0].mxu0
    %v12788 = vadd.f32 0.0, %v12787
    %v12789 = vpop.f32.mrb[0].mxu0
    %12790 = vmatprep.mubr.f32.mxu0 0.0
    %12791 = vmatmul.mubr.f32.gmra.mrb[0].mxu0 %v12447
    %v12792 = vpop.f32.mrb[0].mxu0
    %v12793 = vadd.f32 0.0, %v12792
    %v12794 = vpop.f32.mrb[0].mxu0
    %12795 = vmatprep.mubr.f32.mxu0 0.0
    %12796 = vmatmul.mubr.f32.gmra.mrb[0].mxu0 %v12450
    %v12797 = vpop.f32.mrb[0].mxu0
    %v12798 = vadd.f32 0.0, %v12797
    %v12799 = vpop.f32.mrb[0].mxu0
    %12800 = vmatprep.mubr.f32.mxu0 0.0
    %12801 = vmatmul.mubr.f32.gmra.mrb[0].mxu0 %v12453
    %v12802 = vpop.f32.mrb[0].mxu0
    %v12803 = vadd.f32 0.0, %v12802
    %v12804 = vpop.f32.mrb[0].mxu0
    %12805 = vmatprep.mubr.f32.mxu0 0.0
    %12806 = vmatmul.mubr.f32.gmra.mrb[0].mxu0 %v12456
    %v12807 = vpop.f32.mrb[0].mxu0
    %v12808 = vadd.f32 0.0, %v12807
    %v12809 = vpop.f32.mrb[0].mxu0
    %12810 = vmatprep.mubr.f32.mxu0 0.0
    %12811 = vmatmul.mubr.f32.gmra.mrb[0].mxu0 %v12459
    %v12812 = vpop.f32.mrb[0].mxu0
    %v12813 = vadd.f32 0.0, %v12812
    %v12814 = vpop.f32.mrb[0].mxu0
    %12815 = vmatprep.mubr.f32.mxu0 0.0
    %12816 = vmatmul.mubr.f32.gmra.mrb[0].mxu0 %v12462
    %v12817 = vpop.f32.mrb[0].mxu0
    %v12818 = vadd.f32 0.0, %v12817
    %v12819 = vpop.f32.mrb[0].mxu0
    %12820 = vmatprep.mubr.f32.mxu0 0.0
    %12821 = vmatmul.mubr.f32.gmra.mrb[0].mxu0 %v12465
    %v12822 = vpop.f32.mrb[0].mxu0
    %v12823 = vadd.f32 0.0, %v12822
    %v12824 = vpop.f32.mrb[0].mxu0
    %12825 = vmatprep.mubr.f32.mxu0 0.0
    %12826 = vmatmul.mubr.f32.gmra.mrb[0].mxu0 %v12468
    %v12827 = vpop.f32.mrb[0].mxu0
    %v12828 = vadd.f32 0.0, %v12827
    %v12829 = vpop.f32.mrb[0].mxu0
    %12830 = vmatprep.mubr.f32.mxu0 0.0
    %12831 = vmatmul.mubr.f32.gmra.mrb[0].mxu0 %v12471
    %v12832 = vpop.f32.mrb[0].mxu0
    %v12833 = vadd.f32 0.0, %v12832
    %v12834 = vpop.f32.mrb[0].mxu0
    %12835 = vmatprep.mubr.f32.mxu0 0.0
    %12836 = vmatmul.mubr.f32.gmra.mrb[0].mxu0 %v12474
    %v12837 = vpop.f32.mrb[0].mxu0
    %v12838 = vadd.f32 0.0, %v12837
    %v12839 = vpop.f32.mrb[0].mxu0
    %12840 = vmatprep.mubr.f32.mxu0 0.0
    %12841 = vmatmul.mubr.f32.gmra.mrb[0].mxu0 %v12477
    %v12842 = vpop.f32.mrb[0].mxu0
    %v12843 = vadd.f32 0.0, %v12842
    %v12844 = vpop.f32.mrb[0].mxu0
    %12845 = vmatprep.mubr.f32.mxu0 0.0
    %12846 = vmatmul.mubr.f32.gmra.mrb[0].mxu0 %v12480
    %v12847 = vpop.f32.mrb[0].mxu0
    %v12848 = vadd.f32 0.0, %v12847
    %v12849 = vpop.f32.mrb[0].mxu0
    %12850 = vmatprep.mubr.f32.mxu0 0.0
    %12851 = vmatmul.mubr.f32.gmra.mrb[0].mxu0 %v12483
    %v12852 = vpop.f32.mrb[0].mxu0
    %v12853 = vadd.f32 0.0, %v12852
    %v12854 = vpop.f32.mrb[0].mxu0
    %12855 = vmatprep.mubr.f32.mxu0 0.0
    %12856 = vmatmul.mubr.f32.gmra.mrb[0].mxu0 %v12486
    %v12857 = vpop.f32.mrb[0].mxu0
    %v12858 = vadd.f32 0.0, %v12857
    %v12859 = vpop.f32.mrb[0].mxu0
    %12860 = vmatprep.mubr.f32.mxu0 0.0
    %12861 = vmatmul.mubr.f32.gmra.mrb[0].mxu0 %v12489
    %v12862 = vpop.f32.mrb[0].mxu0
    %v12863 = vadd.f32 0.0, %v12862
    %v12864 = vpop.f32.mrb[0].mxu0
    %12865 = vmatprep.mubr.f32.mxu0 0.0
    %12866 = vmatmul.mubr.f32.gmra.mrb[0].mxu0 %v12492
    %v12867 = vpop.f32.mrb[0].mxu0
    %v12868 = vadd.f32 0.0, %v12867
    %v12869 = vpop.f32.mrb[0].mxu0
    %12870 = vmatprep.mubr.f32.mxu0 0.0
    %12871 = vmatmul.mubr.f32.gmra.mrb[0].mxu0 %v12495
    %v12872 = vpop.f32.mrb[0].mxu0
    %v12873 = vadd.f32 0.0, %v12872
    %v12874 = vpop.f32.mrb[0].mxu0
    %12875 = vmatprep.mubr.f32.mxu0 0.0
    %12876 = vmatmul.mubr.f32.gmra.mrb[0].mxu0 %v12498
    %v12877 = vpop.f32.mrb[0].mxu0
    %v12878 = vadd.f32 0.0, %v12877
    %v12879 = vpop.f32.mrb[0].mxu0
    %12880 = vmatprep.mubr.f32.mxu0 0.0
    %12881 = vmatmul.mubr.f32.gmra.mrb[0].mxu0 %v12501
    %v12882 = vpop.f32.mrb[0].mxu0
    %v12883 = vadd.f32 0.0, %v12882
    %v12884 = vpop.f32.mrb[0].mxu0
    %12885 = vmatprep.mubr.f32.mxu0 0.0
    %12886 = vmatmul.mubr.f32.gmra.mrb[0].mxu0 %v12504
    %v12887 = vpop.f32.mrb[0].mxu0
    %v12888 = vadd.f32 0.0, %v12887
    %v12889 = vpop.f32.mrb[0].mxu0
    %12890 = vdwg.mxu0
    %12891 = vxpose.xlu0.b32.start [1/16] %v12573, 128
    %12892 = vxpose.xlu0.b32.cont [2/16] %v12578, 128
    %12893 = vxpose.xlu0.b32.cont [3/16] %v12583, 128
    %12894 = vxpose.xlu0.b32.cont [4/16] %v12588, 128
    %12895 = vxpose.xlu0.b32.cont [5/16] %v12593, 128
    %12896 = vxpose.xlu0.b32.cont [6/16] %v12598, 128
    %12897 = vxpose.xlu0.b32.cont [7/16] %v12603, 128
    %12898 = vxpose.xlu0.b32.cont [8/16] %v12608, 128
    %12899 = vxpose.xlu0.b32.cont [9/16] %v12613, 128
    %12900 = vxpose.xlu0.b32.cont [10/16] %v12618, 128
    %12901 = vxpose.xlu0.b32.cont [11/16] %v12623, 128
    %12902 = vxpose.xlu0.b32.cont [12/16] %v12628, 128
    %12903 = vxpose.xlu0.b32.cont [13/16] %v12633, 128
    %12904 = vxpose.xlu0.b32.cont [14/16] %v12638, 128
    %12905 = vxpose.xlu0.b32.cont [15/16] %v12643, 128
    %12906 = vxpose.xlu0.b32.end [16/16] %v12648, 128
    %v12907 = vpop.trf.xlu0
    %v12908 = vpop.trf.xlu0
    %v12909 = vpop.trf.xlu0
    %v12910 = vpop.trf.xlu0
    %v12911 = vpop.trf.xlu0
    %v12912 = vpop.trf.xlu0
    %v12913 = vpop.trf.xlu0
    %v12914 = vpop.trf.xlu0
    %v12915 = vpop.trf.xlu0
    %v12916 = vpop.trf.xlu0
    %v12917 = vpop.trf.xlu0
    %v12918 = vpop.trf.xlu0
    %v12919 = vpop.trf.xlu0
    %v12920 = vpop.trf.xlu0
    %v12921 = vpop.trf.xlu0
    %v12922 = vpop.trf.xlu0
    %12923 = vxpose.xlu0.b32.start [1/16] %v12653, 128
    %12924 = vxpose.xlu0.b32.cont [2/16] %v12658, 128
    %12925 = vxpose.xlu0.b32.cont [3/16] %v12663, 128
    %12926 = vxpose.xlu0.b32.cont [4/16] %v12668, 128
    %12927 = vxpose.xlu0.b32.cont [5/16] %v12673, 128
    %12928 = vxpose.xlu0.b32.cont [6/16] %v12678, 128
    %12929 = vxpose.xlu0.b32.cont [7/16] %v12683, 128
    %12930 = vxpose.xlu0.b32.cont [8/16] %v12688, 128
    %12931 = vxpose.xlu0.b32.cont [9/16] %v12693, 128
    %12932 = vxpose.xlu0.b32.cont [10/16] %v12698, 128
    %12933 = vxpose.xlu0.b32.cont [11/16] %v12703, 128
    %12934 = vxpose.xlu0.b32.cont [12/16] %v12708, 128
    %12935 = vxpose.xlu0.b32.cont [13/16] %v12713, 128
    %12936 = vxpose.xlu0.b32.cont [14/16] %v12718, 128
    %12937 = vxpose.xlu0.b32.cont [15/16] %v12723, 128
    %12938 = vxpose.xlu0.b32.end [16/16] %v12728, 128
    %v12939 = vpop.trf.xlu0
    %v12940 = vpop.trf.xlu0
    %v12941 = vpop.trf.xlu0
    %v12942 = vpop.trf.xlu0
    %v12943 = vpop.trf.xlu0
    %v12944 = vpop.trf.xlu0
    %v12945 = vpop.trf.xlu0
    %v12946 = vpop.trf.xlu0
    %v12947 = vpop.trf.xlu0
    %v12948 = vpop.trf.xlu0
    %v12949 = vpop.trf.xlu0
    %v12950 = vpop.trf.xlu0
    %v12951 = vpop.trf.xlu0
    %v12952 = vpop.trf.xlu0
    %v12953 = vpop.trf.xlu0
    %v12954 = vpop.trf.xlu0
    %12955 = vxpose.xlu0.b32.start [1/16] %v12733, 128
    %12956 = vxpose.xlu0.b32.cont [2/16] %v12738, 128
    %12957 = vxpose.xlu0.b32.cont [3/16] %v12743, 128
    %12958 = vxpose.xlu0.b32.cont [4/16] %v12748, 128
    %12959 = vxpose.xlu0.b32.cont [5/16] %v12753, 128
    %12960 = vxpose.xlu0.b32.cont [6/16] %v12758, 128
    %12961 = vxpose.xlu0.b32.cont [7/16] %v12763, 128
    %12962 = vxpose.xlu0.b32.cont [8/16] %v12768, 128
    %12963 = vxpose.xlu0.b32.cont [9/16] %v12773, 128
    %12964 = vxpose.xlu0.b32.cont [10/16] %v12778, 128
    %12965 = vxpose.xlu0.b32.cont [11/16] %v12783, 128
    %12966 = vxpose.xlu0.b32.cont [12/16] %v12788, 128
    %12967 = vxpose.xlu0.b32.cont [13/16] %v12793, 128
    %12968 = vxpose.xlu0.b32.cont [14/16] %v12798, 128
    %12969 = vxpose.xlu0.b32.cont [15/16] %v12803, 128
    %12970 = vxpose.xlu0.b32.end [16/16] %v12808, 128
    %v12971 = vpop.trf.xlu0
    %v12972 = vpop.trf.xlu0
    %v12973 = vpop.trf.xlu0
    %v12974 = vpop.trf.xlu0
    %v12975 = vpop.trf.xlu0
    %v12976 = vpop.trf.xlu0
    %v12977 = vpop.trf.xlu0
    %v12978 = vpop.trf.xlu0
    %v12979 = vpop.trf.xlu0
    %v12980 = vpop.trf.xlu0
    %v12981 = vpop.trf.xlu0
    %v12982 = vpop.trf.xlu0
    %v12983 = vpop.trf.xlu0
    %v12984 = vpop.trf.xlu0
    %v12985 = vpop.trf.xlu0
    %v12986 = vpop.trf.xlu0
    %12987 = vxpose.xlu0.b32.start [1/16] %v12813, 128
    %12988 = vxpose.xlu0.b32.cont [2/16] %v12818, 128
    %12989 = vxpose.xlu0.b32.cont [3/16] %v12823, 128
    %12990 = vxpose.xlu0.b32.cont [4/16] %v12828, 128
    %12991 = vxpose.xlu0.b32.cont [5/16] %v12833, 128
    %12992 = vxpose.xlu0.b32.cont [6/16] %v12838, 128
    %12993 = vxpose.xlu0.b32.cont [7/16] %v12843, 128
    %12994 = vxpose.xlu0.b32.cont [8/16] %v12848, 128
    %12995 = vxpose.xlu0.b32.cont [9/16] %v12853, 128
    %12996 = vxpose.xlu0.b32.cont [10/16] %v12858, 128
    %12997 = vxpose.xlu0.b32.cont [11/16] %v12863, 128
    %12998 = vxpose.xlu0.b32.cont [12/16] %v12868, 128
    %12999 = vxpose.xlu0.b32.cont [13/16] %v12873, 128
    %13000 = vxpose.xlu0.b32.cont [14/16] %v12878, 128
    %13001 = vxpose.xlu0.b32.cont [15/16] %v12883, 128
    %13002 = vxpose.xlu0.b32.end [16/16] %v12888, 128
    %v13003 = vpop.trf.xlu0
    %v13004 = vpop.trf.xlu0
    %v13005 = vpop.trf.xlu0
    %v13006 = vpop.trf.xlu0
    %v13007 = vpop.trf.xlu0
    %v13008 = vpop.trf.xlu0
    %v13009 = vpop.trf.xlu0
    %v13010 = vpop.trf.xlu0
    %v13011 = vpop.trf.xlu0
    %v13012 = vpop.trf.xlu0
    %v13013 = vpop.trf.xlu0
    %v13014 = vpop.trf.xlu0
    %v13015 = vpop.trf.xlu0
    %v13016 = vpop.trf.xlu0
    %v13017 = vpop.trf.xlu0
    %v13018 = vpop.trf.xlu0
    %13020 = vset.pattern.permute.xlu0 0
    %13021 = vperm.xlu0 %13020, %v12182
    %v13022 = vpop.permute.xlu0 %13021
    %13025 = vset.pattern.permute.xlu0 0
    %13026 = vperm.xlu0 %13025, %v12183
    %v13027 = vpop.permute.xlu0 %13026
    %13030 = vset.pattern.permute.xlu0 0
    %13031 = vperm.xlu0 %13030, %v12184
    %v13032 = vpop.permute.xlu0 %13031
    %13035 = vset.pattern.permute.xlu0 0
    %13036 = vperm.xlu0 %13035, %v12185
    %v13037 = vpop.permute.xlu0 %13036
    %v13039 = vadd.f32 %v12907, %v13022
    %v13040 = vadd.f32 %v12939, %v13022
    %v13041 = vadd.f32 %v12908, %v13027
    %v13042 = vadd.f32 %v12940, %v13027
    %v13043 = vadd.f32 %v12909, %v13032
    %v13044 = vadd.f32 %v12941, %v13032
    %v13045 = vadd.f32 %v12910, %v13037
    %v13046 = vadd.f32 %v12942, %v13037
    %v13047 = vadd.f32 %v12971, %v13022
    %v13048 = vadd.f32 %v13003, %v13022
    %v13049 = vadd.f32 %v12972, %v13027
    %v13050 = vadd.f32 %v13004, %v13027
    %v13051 = vadd.f32 %v12973, %v13032
    %v13052 = vadd.f32 %v13005, %v13032
    %v13053 = vadd.f32 %v12974, %v13037
    %v13054 = vadd.f32 %v13006, %v13037
    %v13055 = vtanh.pop %v13039
    %v13056 = vtanh.pop %v13040
    %v13057 = vtanh.pop %v13041
    %v13058 = vtanh.pop %v13042
    %v13059 = vtanh.pop %v13043
    %v13060 = vtanh.pop %v13044
    %v13061 = vtanh.pop %v13045
    %v13062 = vtanh.pop %v13046
    %v13063 = vtanh.pop %v13047
    %v13064 = vtanh.pop %v13048
    %v13065 = vtanh.pop %v13049
    %v13066 = vtanh.pop %v13050
    %v13067 = vtanh.pop %v13051
    %v13068 = vtanh.pop %v13052
    %v13069 = vtanh.pop %v13053
    %v13070 = vtanh.pop %v13054
    %13071 = vxpose.xlu0.b32.start [1/16] %v13055, 128
    %13072 = vxpose.xlu0.b32.cont [2/16] %v13057, 128
    %13073 = vxpose.xlu0.b32.cont [3/16] %v13059, 128
    %13074 = vxpose.xlu0.b32.cont [4/16] %v13061, 128
    %13075 = vxpose.xlu0.b32.cont [5/16] 0.0, 128
    %13076 = vxpose.xlu0.b32.cont [6/16] 0.0, 128
    %13077 = vxpose.xlu0.b32.cont [7/16] 0.0, 128
    %13078 = vxpose.xlu0.b32.cont [8/16] 0.0, 128
    %13079 = vxpose.xlu0.b32.cont [9/16] 0.0, 128
    %13080 = vxpose.xlu0.b32.cont [10/16] 0.0, 128
    %13081 = vxpose.xlu0.b32.cont [11/16] 0.0, 128
    %13082 = vxpose.xlu0.b32.cont [12/16] 0.0, 128
    %13083 = vxpose.xlu0.b32.cont [13/16] 0.0, 128
    %13084 = vxpose.xlu0.b32.cont [14/16] 0.0, 128
    %13085 = vxpose.xlu0.b32.cont [15/16] 0.0, 128
    %13086 = vxpose.xlu0.b32.end [16/16] 0.0, 128
    %v13087 = vpop.trf.xlu0
    %v13088 = vpop.trf.xlu0
    %v13089 = vpop.trf.xlu0
    %v13090 = vpop.trf.xlu0
    %v13091 = vpop.trf.xlu0
    %v13092 = vpop.trf.xlu0
    %v13093 = vpop.trf.xlu0
    %v13094 = vpop.trf.xlu0
    %v13095 = vpop.trf.xlu0
    %v13096 = vpop.trf.xlu0
    %v13097 = vpop.trf.xlu0
    %v13098 = vpop.trf.xlu0
    %v13099 = vpop.trf.xlu0
    %v13100 = vpop.trf.xlu0
    %v13101 = vpop.trf.xlu0
    %v13102 = vpop.trf.xlu0
    %13103 = vxpose.xlu0.b32.start [1/16] %v13056, 128
    %13104 = vxpose.xlu0.b32.cont [2/16] %v13058, 128
    %13105 = vxpose.xlu0.b32.cont [3/16] %v13060, 128
    %13106 = vxpose.xlu0.b32.cont [4/16] %v13062, 128
    %13107 = vxpose.xlu0.b32.cont [5/16] 0.0, 128
    %13108 = vxpose.xlu0.b32.cont [6/16] 0.0, 128
    %13109 = vxpose.xlu0.b32.cont [7/16] 0.0, 128
    %13110 = vxpose.xlu0.b32.cont [8/16] 0.0, 128
    %13111 = vxpose.xlu0.b32.cont [9/16] 0.0, 128
    %13112 = vxpose.xlu0.b32.cont [10/16] 0.0, 128
    %13113 = vxpose.xlu0.b32.cont [11/16] 0.0, 128
    %13114 = vxpose.xlu0.b32.cont [12/16] 0.0, 128
    %13115 = vxpose.xlu0.b32.cont [13/16] 0.0, 128
    %13116 = vxpose.xlu0.b32.cont [14/16] 0.0, 128
    %13117 = vxpose.xlu0.b32.cont [15/16] 0.0, 128
    %13118 = vxpose.xlu0.b32.end [16/16] 0.0, 128
    %v13119 = vpop.trf.xlu0
    %v13120 = vpop.trf.xlu0
    %v13121 = vpop.trf.xlu0
    %v13122 = vpop.trf.xlu0
    %v13123 = vpop.trf.xlu0
    %v13124 = vpop.trf.xlu0
    %v13125 = vpop.trf.xlu0
    %v13126 = vpop.trf.xlu0
    %v13127 = vpop.trf.xlu0
    %v13128 = vpop.trf.xlu0
    %v13129 = vpop.trf.xlu0
    %v13130 = vpop.trf.xlu0
    %v13131 = vpop.trf.xlu0
    %v13132 = vpop.trf.xlu0
    %v13133 = vpop.trf.xlu0
    %v13134 = vpop.trf.xlu0
    %13135 = vxpose.xlu0.b32.start [1/16] %v13063, 128
    %13136 = vxpose.xlu0.b32.cont [2/16] %v13065, 128
    %13137 = vxpose.xlu0.b32.cont [3/16] %v13067, 128
    %13138 = vxpose.xlu0.b32.cont [4/16] %v13069, 128
    %13139 = vxpose.xlu0.b32.cont [5/16] 0.0, 128
    %13140 = vxpose.xlu0.b32.cont [6/16] 0.0, 128
    %13141 = vxpose.xlu0.b32.cont [7/16] 0.0, 128
    %13142 = vxpose.xlu0.b32.cont [8/16] 0.0, 128
    %13143 = vxpose.xlu0.b32.cont [9/16] 0.0, 128
    %13144 = vxpose.xlu0.b32.cont [10/16] 0.0, 128
    %13145 = vxpose.xlu0.b32.cont [11/16] 0.0, 128
    %13146 = vxpose.xlu0.b32.cont [12/16] 0.0, 128
    %13147 = vxpose.xlu0.b32.cont [13/16] 0.0, 128
    %13148 = vxpose.xlu0.b32.cont [14/16] 0.0, 128
    %13149 = vxpose.xlu0.b32.cont [15/16] 0.0, 128
    %13150 = vxpose.xlu0.b32.end [16/16] 0.0, 128
    %v13151 = vpop.trf.xlu0
    %v13152 = vpop.trf.xlu0
    %v13153 = vpop.trf.xlu0
    %v13154 = vpop.trf.xlu0
    %v13155 = vpop.trf.xlu0
    %v13156 = vpop.trf.xlu0
    %v13157 = vpop.trf.xlu0
    %v13158 = vpop.trf.xlu0
    %v13159 = vpop.trf.xlu0
    %v13160 = vpop.trf.xlu0
    %v13161 = vpop.trf.xlu0
    %v13162 = vpop.trf.xlu0
    %v13163 = vpop.trf.xlu0
    %v13164 = vpop.trf.xlu0
    %v13165 = vpop.trf.xlu0
    %v13166 = vpop.trf.xlu0
    %13167 = vxpose.xlu0.b32.start [1/16] %v13064, 128
    %13168 = vxpose.xlu0.b32.cont [2/16] %v13066, 128
    %13169 = vxpose.xlu0.b32.cont [3/16] %v13068, 128
    %13170 = vxpose.xlu0.b32.cont [4/16] %v13070, 128
    %13171 = vxpose.xlu0.b32.cont [5/16] 0.0, 128
    %13172 = vxpose.xlu0.b32.cont [6/16] 0.0, 128
    %13173 = vxpose.xlu0.b32.cont [7/16] 0.0, 128
    %13174 = vxpose.xlu0.b32.cont [8/16] 0.0, 128
    %13175 = vxpose.xlu0.b32.cont [9/16] 0.0, 128
    %13176 = vxpose.xlu0.b32.cont [10/16] 0.0, 128
    %13177 = vxpose.xlu0.b32.cont [11/16] 0.0, 128
    %13178 = vxpose.xlu0.b32.cont [12/16] 0.0, 128
    %13179 = vxpose.xlu0.b32.cont [13/16] 0.0, 128
    %13180 = vxpose.xlu0.b32.cont [14/16] 0.0, 128
    %13181 = vxpose.xlu0.b32.cont [15/16] 0.0, 128
    %13182 = vxpose.xlu0.b32.end [16/16] 0.0, 128
    %v13183 = vpop.trf.xlu0
    %v13184 = vpop.trf.xlu0
    %v13185 = vpop.trf.xlu0
    %v13186 = vpop.trf.xlu0
    %v13187 = vpop.trf.xlu0
    %v13188 = vpop.trf.xlu0
    %v13189 = vpop.trf.xlu0
    %v13190 = vpop.trf.xlu0
    %v13191 = vpop.trf.xlu0
    %v13192 = vpop.trf.xlu0
    %v13193 = vpop.trf.xlu0
    %v13194 = vpop.trf.xlu0
    %v13195 = vpop.trf.xlu0
    %v13196 = vpop.trf.xlu0
    %v13197 = vpop.trf.xlu0
    %v13198 = vpop.trf.xlu0
    %v13200 = vsel %vm1057, %v13087, 0
    %v13203 = vsel %vm1057, %v13088, 0
    %v13206 = vsel %vm1057, %v13089, 0
    %v13209 = vsel %vm1057, %v13090, 0
    %v13212 = vsel %vm1057, %v13091, 0
    %v13215 = vsel %vm1057, %v13092, 0
    %v13218 = vsel %vm1057, %v13093, 0
    %v13221 = vsel %vm1057, %v13094, 0
    %v13224 = vsel %vm1057, %v13095, 0
    %v13227 = vsel %vm1057, %v13096, 0
    %v13230 = vsel %vm1057, %v13097, 0
    %v13233 = vsel %vm1057, %v13098, 0
    %v13236 = vsel %vm1057, %v13099, 0
    %v13239 = vsel %vm1057, %v13100, 0
    %v13242 = vsel %vm1057, %v13101, 0
    %v13245 = vsel %vm1057, %v13102, 0
    %v13248 = vsel %vm1057, %v13119, 0
    %v13251 = vsel %vm1057, %v13120, 0
    %v13254 = vsel %vm1057, %v13121, 0
    %v13257 = vsel %vm1057, %v13122, 0
    %v13260 = vsel %vm1057, %v13123, 0
    %v13263 = vsel %vm1057, %v13124, 0
    %v13266 = vsel %vm1057, %v13125, 0
    %v13269 = vsel %vm1057, %v13126, 0
    %v13272 = vsel %vm1057, %v13127, 0
    %v13275 = vsel %vm1057, %v13128, 0
    %v13278 = vsel %vm1057, %v13129, 0
    %v13281 = vsel %vm1057, %v13130, 0
    %v13284 = vsel %vm1057, %v13131, 0
    %v13287 = vsel %vm1057, %v13132, 0
    %v13290 = vsel %vm1057, %v13133, 0
    %v13293 = vsel %vm1057, %v13134, 0
    %v13296 = vsel %vm1057, %v13151, 0
    %v13299 = vsel %vm1057, %v13152, 0
    %v13302 = vsel %vm1057, %v13153, 0
    %v13305 = vsel %vm1057, %v13154, 0
    %v13308 = vsel %vm1057, %v13155, 0
    %v13311 = vsel %vm1057, %v13156, 0
    %v13314 = vsel %vm1057, %v13157, 0
    %v13317 = vsel %vm1057, %v13158, 0
    %v13320 = vsel %vm1057, %v13159, 0
    %v13323 = vsel %vm1057, %v13160, 0
    %v13326 = vsel %vm1057, %v13161, 0
    %v13329 = vsel %vm1057, %v13162, 0
    %v13332 = vsel %vm1057, %v13163, 0
    %v13335 = vsel %vm1057, %v13164, 0
    %v13338 = vsel %vm1057, %v13165, 0
    %v13341 = vsel %vm1057, %v13166, 0
    %v13344 = vsel %vm1057, %v13183, 0
    %v13347 = vsel %vm1057, %v13184, 0
    %v13350 = vsel %vm1057, %v13185, 0
    %v13353 = vsel %vm1057, %v13186, 0
    %v13356 = vsel %vm1057, %v13187, 0
    %v13359 = vsel %vm1057, %v13188, 0
    %v13362 = vsel %vm1057, %v13189, 0
    %v13365 = vsel %vm1057, %v13190, 0
    %v13368 = vsel %vm1057, %v13191, 0
    %v13371 = vsel %vm1057, %v13192, 0
    %v13374 = vsel %vm1057, %v13193, 0
    %v13377 = vsel %vm1057, %v13194, 0
    %v13380 = vsel %vm1057, %v13195, 0
    %v13383 = vsel %vm1057, %v13196, 0
    %v13386 = vsel %vm1057, %v13197, 0
    %v13389 = vsel %vm1057, %v13198, 0
    %13391 = vmatprep.subr.mxu0 0.0
    %13392 = vmatpush1.xpose.msra.mxu0 %v1251
    %13393 = vmatprep.subr.mxu0 0.0
    %13394 = vmatpush1.xpose.msra.mxu0 0.0
    %13395 = vmatprep.subr.mxu0 0.0
    %13396 = vmatpush1.xpose.msra.mxu0 0.0
    %13397 = vmatprep.subr.mxu0 0.0
    %13398 = vmatpush1.xpose.msra.mxu0 0.0
    %13399 = vmatprep.subr.mxu0 0.0
    %13400 = vmatpush1.xpose.msra.mxu0 0.0
    %13401 = vmatprep.subr.mxu0 0.0
    %13402 = vmatpush1.xpose.msra.mxu0 0.0
    %13403 = vmatprep.subr.mxu0 0.0
    %13404 = vmatpush1.xpose.msra.mxu0 0.0
    %13405 = vmatprep.subr.mxu0 0.0
    %13406 = vmatpush1.xpose.msra.mxu0 0.0
    %13407 = vmatprep.subr.mxu0 0.0
    %13408 = vmatpush1.xpose.msra.mxu0 0.0
    %13409 = vmatprep.subr.mxu0 0.0
    %13410 = vmatpush1.xpose.msra.mxu0 0.0
    %13411 = vmatprep.subr.mxu0 0.0
    %13412 = vmatpush1.xpose.msra.mxu0 0.0
    %13413 = vmatprep.subr.mxu0 0.0
    %13414 = vmatpush1.xpose.msra.mxu0 0.0
    %13415 = vmatprep.subr.mxu0 0.0
    %13416 = vmatpush1.xpose.msra.mxu0 0.0
    %13417 = vmatprep.subr.mxu0 0.0
    %13418 = vmatpush1.xpose.msra.mxu0 0.0
    %13419 = vmatprep.subr.mxu0 0.0
    %13420 = vmatpush1.xpose.msra.mxu0 0.0
    %13421 = vmatprep.subr.mxu0 0.0
    %13422 = vmatpush1.xpose.msra.mxu0 0.0
    %13423 = vmatprep.subr.mxu0 0.0
    %13424 = vmatpush1.xpose.msra.mxu0 0.0
    %13425 = vmatprep.subr.mxu0 0.0
    %13426 = vmatpush1.xpose.msra.mxu0 0.0
    %13427 = vmatprep.subr.mxu0 0.0
    %13428 = vmatpush1.xpose.msra.mxu0 0.0
    %13429 = vmatprep.subr.mxu0 0.0
    %13430 = vmatpush1.xpose.msra.mxu0 0.0
    %13431 = vmatprep.subr.mxu0 0.0
    %13432 = vmatpush1.xpose.msra.mxu0 0.0
    %13433 = vmatprep.subr.mxu0 0.0
    %13434 = vmatpush1.xpose.msra.mxu0 0.0
    %13435 = vmatprep.subr.mxu0 0.0
    %13436 = vmatpush1.xpose.msra.mxu0 0.0
    %13437 = vmatprep.subr.mxu0 0.0
    %13438 = vmatpush1.xpose.msra.mxu0 0.0
    %13439 = vmatprep.subr.mxu0 0.0
    %13440 = vmatpush1.xpose.msra.mxu0 0.0
    %13441 = vmatprep.subr.mxu0 0.0
    %13442 = vmatpush1.xpose.msra.mxu0 0.0
    %13443 = vmatprep.subr.mxu0 0.0
    %13444 = vmatpush1.xpose.msra.mxu0 0.0
    %13445 = vmatprep.subr.mxu0 0.0
    %13446 = vmatpush1.xpose.msra.mxu0 0.0
    %13447 = vmatprep.subr.mxu0 0.0
    %13448 = vmatpush1.xpose.msra.mxu0 0.0
    %13449 = vmatprep.subr.mxu0 0.0
    %13450 = vmatpush1.xpose.msra.mxu0 0.0
    %13451 = vmatprep.subr.mxu0 0.0
    %13452 = vmatpush1.xpose.msra.mxu0 0.0
    %13453 = vmatprep.subr.mxu0 0.0
    %13454 = vmatpush1.xpose.msra.mxu0 0.0
    %13455 = vmatprep.mubr.f32.mxu0 0.0
    %13456 = vmatmul.mubr.f32.gmra.mrb[0].mxu0 %v13200
    %v13457 = vpop.f32.mrb[0].mxu0
    %v13458 = vadd.f32 0.0, %v13457
    %v13459 = vpop.f32.mrb[0].mxu0
    %13460 = vmatprep.mubr.f32.mxu0 0.0
    %13461 = vmatmul.mubr.f32.gmra.mrb[0].mxu0 %v13203
    %v13462 = vpop.f32.mrb[0].mxu0
    %v13463 = vadd.f32 0.0, %v13462
    %v13464 = vpop.f32.mrb[0].mxu0
    %13465 = vmatprep.mubr.f32.mxu0 0.0
    %13466 = vmatmul.mubr.f32.gmra.mrb[0].mxu0 %v13206
    %v13467 = vpop.f32.mrb[0].mxu0
    %v13468 = vadd.f32 0.0, %v13467
    %v13469 = vpop.f32.mrb[0].mxu0
    %13470 = vmatprep.mubr.f32.mxu0 0.0
    %13471 = vmatmul.mubr.f32.gmra.mrb[0].mxu0 %v13209
    %v13472 = vpop.f32.mrb[0].mxu0
    %v13473 = vadd.f32 0.0, %v13472
    %v13474 = vpop.f32.mrb[0].mxu0
    %13475 = vmatprep.mubr.f32.mxu0 0.0
    %13476 = vmatmul.mubr.f32.gmra.mrb[0].mxu0 %v13212
    %v13477 = vpop.f32.mrb[0].mxu0
    %v13478 = vadd.f32 0.0, %v13477
    %v13479 = vpop.f32.mrb[0].mxu0
    %13480 = vmatprep.mubr.f32.mxu0 0.0
    %13481 = vmatmul.mubr.f32.gmra.mrb[0].mxu0 %v13215
    %v13482 = vpop.f32.mrb[0].mxu0
    %v13483 = vadd.f32 0.0, %v13482
    %v13484 = vpop.f32.mrb[0].mxu0
    %13485 = vmatprep.mubr.f32.mxu0 0.0
    %13486 = vmatmul.mubr.f32.gmra.mrb[0].mxu0 %v13218
    %v13487 = vpop.f32.mrb[0].mxu0
    %v13488 = vadd.f32 0.0, %v13487
    %v13489 = vpop.f32.mrb[0].mxu0
    %13490 = vmatprep.mubr.f32.mxu0 0.0
    %13491 = vmatmul.mubr.f32.gmra.mrb[0].mxu0 %v13221
    %v13492 = vpop.f32.mrb[0].mxu0
    %v13493 = vadd.f32 0.0, %v13492
    %v13494 = vpop.f32.mrb[0].mxu0
    %13495 = vmatprep.mubr.f32.mxu0 0.0
    %13496 = vmatmul.mubr.f32.gmra.mrb[0].mxu0 %v13224
    %v13497 = vpop.f32.mrb[0].mxu0
    %v13498 = vadd.f32 0.0, %v13497
    %v13499 = vpop.f32.mrb[0].mxu0
    %13500 = vmatprep.mubr.f32.mxu0 0.0
    %13501 = vmatmul.mubr.f32.gmra.mrb[0].mxu0 %v13227
    %v13502 = vpop.f32.mrb[0].mxu0
    %v13503 = vadd.f32 0.0, %v13502
    %v13504 = vpop.f32.mrb[0].mxu0
    %13505 = vmatprep.mubr.f32.mxu0 0.0
    %13506 = vmatmul.mubr.f32.gmra.mrb[0].mxu0 %v13230
    %v13507 = vpop.f32.mrb[0].mxu0
    %v13508 = vadd.f32 0.0, %v13507
    %v13509 = vpop.f32.mrb[0].mxu0
    %13510 = vmatprep.mubr.f32.mxu0 0.0
    %13511 = vmatmul.mubr.f32.gmra.mrb[0].mxu0 %v13233
    %v13512 = vpop.f32.mrb[0].mxu0
    %v13513 = vadd.f32 0.0, %v13512
    %v13514 = vpop.f32.mrb[0].mxu0
    %13515 = vmatprep.mubr.f32.mxu0 0.0
    %13516 = vmatmul.mubr.f32.gmra.mrb[0].mxu0 %v13236
    %v13517 = vpop.f32.mrb[0].mxu0
    %v13518 = vadd.f32 0.0, %v13517
    %v13519 = vpop.f32.mrb[0].mxu0
    %13520 = vmatprep.mubr.f32.mxu0 0.0
    %13521 = vmatmul.mubr.f32.gmra.mrb[0].mxu0 %v13239
    %v13522 = vpop.f32.mrb[0].mxu0
    %v13523 = vadd.f32 0.0, %v13522
    %v13524 = vpop.f32.mrb[0].mxu0
    %13525 = vmatprep.mubr.f32.mxu0 0.0
    %13526 = vmatmul.mubr.f32.gmra.mrb[0].mxu0 %v13242
    %v13527 = vpop.f32.mrb[0].mxu0
    %v13528 = vadd.f32 0.0, %v13527
    %v13529 = vpop.f32.mrb[0].mxu0
    %13530 = vmatprep.mubr.f32.mxu0 0.0
    %13531 = vmatmul.mubr.f32.gmra.mrb[0].mxu0 %v13245
    %v13532 = vpop.f32.mrb[0].mxu0
    %v13533 = vadd.f32 0.0, %v13532
    %v13534 = vpop.f32.mrb[0].mxu0
    %13535 = vmatprep.mubr.f32.mxu0 0.0
    %13536 = vmatmul.mubr.f32.gmra.mrb[0].mxu0 %v13248
    %v13537 = vpop.f32.mrb[0].mxu0
    %v13538 = vadd.f32 0.0, %v13537
    %v13539 = vpop.f32.mrb[0].mxu0
    %13540 = vmatprep.mubr.f32.mxu0 0.0
    %13541 = vmatmul.mubr.f32.gmra.mrb[0].mxu0 %v13251
    %v13542 = vpop.f32.mrb[0].mxu0
    %v13543 = vadd.f32 0.0, %v13542
    %v13544 = vpop.f32.mrb[0].mxu0
    %13545 = vmatprep.mubr.f32.mxu0 0.0
    %13546 = vmatmul.mubr.f32.gmra.mrb[0].mxu0 %v13254
    %v13547 = vpop.f32.mrb[0].mxu0
    %v13548 = vadd.f32 0.0, %v13547
    %v13549 = vpop.f32.mrb[0].mxu0
    %13550 = vmatprep.mubr.f32.mxu0 0.0
    %13551 = vmatmul.mubr.f32.gmra.mrb[0].mxu0 %v13257
    %v13552 = vpop.f32.mrb[0].mxu0
    %v13553 = vadd.f32 0.0, %v13552
    %v13554 = vpop.f32.mrb[0].mxu0
    %13555 = vmatprep.mubr.f32.mxu0 0.0
    %13556 = vmatmul.mubr.f32.gmra.mrb[0].mxu0 %v13260
    %v13557 = vpop.f32.mrb[0].mxu0
    %v13558 = vadd.f32 0.0, %v13557
    %v13559 = vpop.f32.mrb[0].mxu0
    %13560 = vmatprep.mubr.f32.mxu0 0.0
    %13561 = vmatmul.mubr.f32.gmra.mrb[0].mxu0 %v13263
    %v13562 = vpop.f32.mrb[0].mxu0
    %v13563 = vadd.f32 0.0, %v13562
    %v13564 = vpop.f32.mrb[0].mxu0
    %13565 = vmatprep.mubr.f32.mxu0 0.0
    %13566 = vmatmul.mubr.f32.gmra.mrb[0].mxu0 %v13266
    %v13567 = vpop.f32.mrb[0].mxu0
    %v13568 = vadd.f32 0.0, %v13567
    %v13569 = vpop.f32.mrb[0].mxu0
    %13570 = vmatprep.mubr.f32.mxu0 0.0
    %13571 = vmatmul.mubr.f32.gmra.mrb[0].mxu0 %v13269
    %v13572 = vpop.f32.mrb[0].mxu0
    %v13573 = vadd.f32 0.0, %v13572
    %v13574 = vpop.f32.mrb[0].mxu0
    %13575 = vmatprep.mubr.f32.mxu0 0.0
    %13576 = vmatmul.mubr.f32.gmra.mrb[0].mxu0 %v13272
    %v13577 = vpop.f32.mrb[0].mxu0
    %v13578 = vadd.f32 0.0, %v13577
    %v13579 = vpop.f32.mrb[0].mxu0
    %13580 = vmatprep.mubr.f32.mxu0 0.0
    %13581 = vmatmul.mubr.f32.gmra.mrb[0].mxu0 %v13275
    %v13582 = vpop.f32.mrb[0].mxu0
    %v13583 = vadd.f32 0.0, %v13582
    %v13584 = vpop.f32.mrb[0].mxu0
    %13585 = vmatprep.mubr.f32.mxu0 0.0
    %13586 = vmatmul.mubr.f32.gmra.mrb[0].mxu0 %v13278
    %v13587 = vpop.f32.mrb[0].mxu0
    %v13588 = vadd.f32 0.0, %v13587
    %v13589 = vpop.f32.mrb[0].mxu0
    %13590 = vmatprep.mubr.f32.mxu0 0.0
    %13591 = vmatmul.mubr.f32.gmra.mrb[0].mxu0 %v13281
    %v13592 = vpop.f32.mrb[0].mxu0
    %v13593 = vadd.f32 0.0, %v13592
    %v13594 = vpop.f32.mrb[0].mxu0
    %13595 = vmatprep.mubr.f32.mxu0 0.0
    %13596 = vmatmul.mubr.f32.gmra.mrb[0].mxu0 %v13284
    %v13597 = vpop.f32.mrb[0].mxu0
    %v13598 = vadd.f32 0.0, %v13597
    %v13599 = vpop.f32.mrb[0].mxu0
    %13600 = vmatprep.mubr.f32.mxu0 0.0
    %13601 = vmatmul.mubr.f32.gmra.mrb[0].mxu0 %v13287
    %v13602 = vpop.f32.mrb[0].mxu0
    %v13603 = vadd.f32 0.0, %v13602
    %v13604 = vpop.f32.mrb[0].mxu0
    %13605 = vmatprep.mubr.f32.mxu0 0.0
    %13606 = vmatmul.mubr.f32.gmra.mrb[0].mxu0 %v13290
    %v13607 = vpop.f32.mrb[0].mxu0
    %v13608 = vadd.f32 0.0, %v13607
    %v13609 = vpop.f32.mrb[0].mxu0
    %13610 = vmatprep.mubr.f32.mxu0 0.0
    %13611 = vmatmul.mubr.f32.gmra.mrb[0].mxu0 %v13293
    %v13612 = vpop.f32.mrb[0].mxu0
    %v13613 = vadd.f32 0.0, %v13612
    %v13614 = vpop.f32.mrb[0].mxu0
    %13615 = vmatprep.mubr.f32.mxu0 0.0
    %13616 = vmatmul.mubr.f32.gmra.mrb[0].mxu0 %v13296
    %v13617 = vpop.f32.mrb[0].mxu0
    %v13618 = vadd.f32 0.0, %v13617
    %v13619 = vpop.f32.mrb[0].mxu0
    %13620 = vmatprep.mubr.f32.mxu0 0.0
    %13621 = vmatmul.mubr.f32.gmra.mrb[0].mxu0 %v13299
    %v13622 = vpop.f32.mrb[0].mxu0
    %v13623 = vadd.f32 0.0, %v13622
    %v13624 = vpop.f32.mrb[0].mxu0
    %13625 = vmatprep.mubr.f32.mxu0 0.0
    %13626 = vmatmul.mubr.f32.gmra.mrb[0].mxu0 %v13302
    %v13627 = vpop.f32.mrb[0].mxu0
    %v13628 = vadd.f32 0.0, %v13627
    %v13629 = vpop.f32.mrb[0].mxu0
    %13630 = vmatprep.mubr.f32.mxu0 0.0
    %13631 = vmatmul.mubr.f32.gmra.mrb[0].mxu0 %v13305
    %v13632 = vpop.f32.mrb[0].mxu0
    %v13633 = vadd.f32 0.0, %v13632
    %v13634 = vpop.f32.mrb[0].mxu0
    %13635 = vmatprep.mubr.f32.mxu0 0.0
    %13636 = vmatmul.mubr.f32.gmra.mrb[0].mxu0 %v13308
    %v13637 = vpop.f32.mrb[0].mxu0
    %v13638 = vadd.f32 0.0, %v13637
    %v13639 = vpop.f32.mrb[0].mxu0
    %13640 = vmatprep.mubr.f32.mxu0 0.0
    %13641 = vmatmul.mubr.f32.gmra.mrb[0].mxu0 %v13311
    %v13642 = vpop.f32.mrb[0].mxu0
    %v13643 = vadd.f32 0.0, %v13642
    %v13644 = vpop.f32.mrb[0].mxu0
    %13645 = vmatprep.mubr.f32.mxu0 0.0
    %13646 = vmatmul.mubr.f32.gmra.mrb[0].mxu0 %v13314
    %v13647 = vpop.f32.mrb[0].mxu0
    %v13648 = vadd.f32 0.0, %v13647
    %v13649 = vpop.f32.mrb[0].mxu0
    %13650 = vmatprep.mubr.f32.mxu0 0.0
    %13651 = vmatmul.mubr.f32.gmra.mrb[0].mxu0 %v13317
    %v13652 = vpop.f32.mrb[0].mxu0
    %v13653 = vadd.f32 0.0, %v13652
    %v13654 = vpop.f32.mrb[0].mxu0
    %13655 = vmatprep.mubr.f32.mxu0 0.0
    %13656 = vmatmul.mubr.f32.gmra.mrb[0].mxu0 %v13320
    %v13657 = vpop.f32.mrb[0].mxu0
    %v13658 = vadd.f32 0.0, %v13657
    %v13659 = vpop.f32.mrb[0].mxu0
    %13660 = vmatprep.mubr.f32.mxu0 0.0
    %13661 = vmatmul.mubr.f32.gmra.mrb[0].mxu0 %v13323
    %v13662 = vpop.f32.mrb[0].mxu0
    %v13663 = vadd.f32 0.0, %v13662
    %v13664 = vpop.f32.mrb[0].mxu0
    %13665 = vmatprep.mubr.f32.mxu0 0.0
    %13666 = vmatmul.mubr.f32.gmra.mrb[0].mxu0 %v13326
    %v13667 = vpop.f32.mrb[0].mxu0
    %v13668 = vadd.f32 0.0, %v13667
    %v13669 = vpop.f32.mrb[0].mxu0
    %13670 = vmatprep.mubr.f32.mxu0 0.0
    %13671 = vmatmul.mubr.f32.gmra.mrb[0].mxu0 %v13329
    %v13672 = vpop.f32.mrb[0].mxu0
    %v13673 = vadd.f32 0.0, %v13672
    %v13674 = vpop.f32.mrb[0].mxu0
    %13675 = vmatprep.mubr.f32.mxu0 0.0
    %13676 = vmatmul.mubr.f32.gmra.mrb[0].mxu0 %v13332
    %v13677 = vpop.f32.mrb[0].mxu0
    %v13678 = vadd.f32 0.0, %v13677
    %v13679 = vpop.f32.mrb[0].mxu0
    %13680 = vmatprep.mubr.f32.mxu0 0.0
    %13681 = vmatmul.mubr.f32.gmra.mrb[0].mxu0 %v13335
    %v13682 = vpop.f32.mrb[0].mxu0
    %v13683 = vadd.f32 0.0, %v13682
    %v13684 = vpop.f32.mrb[0].mxu0
    %13685 = vmatprep.mubr.f32.mxu0 0.0
    %13686 = vmatmul.mubr.f32.gmra.mrb[0].mxu0 %v13338
    %v13687 = vpop.f32.mrb[0].mxu0
    %v13688 = vadd.f32 0.0, %v13687
    %v13689 = vpop.f32.mrb[0].mxu0
    %13690 = vmatprep.mubr.f32.mxu0 0.0
    %13691 = vmatmul.mubr.f32.gmra.mrb[0].mxu0 %v13341
    %v13692 = vpop.f32.mrb[0].mxu0
    %v13693 = vadd.f32 0.0, %v13692
    %v13694 = vpop.f32.mrb[0].mxu0
    %13695 = vmatprep.mubr.f32.mxu0 0.0
    %13696 = vmatmul.mubr.f32.gmra.mrb[0].mxu0 %v13344
    %v13697 = vpop.f32.mrb[0].mxu0
    %v13698 = vadd.f32 0.0, %v13697
    %v13699 = vpop.f32.mrb[0].mxu0
    %13700 = vmatprep.mubr.f32.mxu0 0.0
    %13701 = vmatmul.mubr.f32.gmra.mrb[0].mxu0 %v13347
    %v13702 = vpop.f32.mrb[0].mxu0
    %v13703 = vadd.f32 0.0, %v13702
    %v13704 = vpop.f32.mrb[0].mxu0
    %13705 = vmatprep.mubr.f32.mxu0 0.0
    %13706 = vmatmul.mubr.f32.gmra.mrb[0].mxu0 %v13350
    %v13707 = vpop.f32.mrb[0].mxu0
    %v13708 = vadd.f32 0.0, %v13707
    %v13709 = vpop.f32.mrb[0].mxu0
    %13710 = vmatprep.mubr.f32.mxu0 0.0
    %13711 = vmatmul.mubr.f32.gmra.mrb[0].mxu0 %v13353
    %v13712 = vpop.f32.mrb[0].mxu0
    %v13713 = vadd.f32 0.0, %v13712
    %v13714 = vpop.f32.mrb[0].mxu0
    %13715 = vmatprep.mubr.f32.mxu0 0.0
    %13716 = vmatmul.mubr.f32.gmra.mrb[0].mxu0 %v13356
    %v13717 = vpop.f32.mrb[0].mxu0
    %v13718 = vadd.f32 0.0, %v13717
    %v13719 = vpop.f32.mrb[0].mxu0
    %13720 = vmatprep.mubr.f32.mxu0 0.0
    %13721 = vmatmul.mubr.f32.gmra.mrb[0].mxu0 %v13359
    %v13722 = vpop.f32.mrb[0].mxu0
    %v13723 = vadd.f32 0.0, %v13722
    %v13724 = vpop.f32.mrb[0].mxu0
    %13725 = vmatprep.mubr.f32.mxu0 0.0
    %13726 = vmatmul.mubr.f32.gmra.mrb[0].mxu0 %v13362
    %v13727 = vpop.f32.mrb[0].mxu0
    %v13728 = vadd.f32 0.0, %v13727
    %v13729 = vpop.f32.mrb[0].mxu0
    %13730 = vmatprep.mubr.f32.mxu0 0.0
    %13731 = vmatmul.mubr.f32.gmra.mrb[0].mxu0 %v13365
    %v13732 = vpop.f32.mrb[0].mxu0
    %v13733 = vadd.f32 0.0, %v13732
    %v13734 = vpop.f32.mrb[0].mxu0
    %13735 = vmatprep.mubr.f32.mxu0 0.0
    %13736 = vmatmul.mubr.f32.gmra.mrb[0].mxu0 %v13368
    %v13737 = vpop.f32.mrb[0].mxu0
    %v13738 = vadd.f32 0.0, %v13737
    %v13739 = vpop.f32.mrb[0].mxu0
    %13740 = vmatprep.mubr.f32.mxu0 0.0
    %13741 = vmatmul.mubr.f32.gmra.mrb[0].mxu0 %v13371
    %v13742 = vpop.f32.mrb[0].mxu0
    %v13743 = vadd.f32 0.0, %v13742
    %v13744 = vpop.f32.mrb[0].mxu0
    %13745 = vmatprep.mubr.f32.mxu0 0.0
    %13746 = vmatmul.mubr.f32.gmra.mrb[0].mxu0 %v13374
    %v13747 = vpop.f32.mrb[0].mxu0
    %v13748 = vadd.f32 0.0, %v13747
    %v13749 = vpop.f32.mrb[0].mxu0
    %13750 = vmatprep.mubr.f32.mxu0 0.0
    %13751 = vmatmul.mubr.f32.gmra.mrb[0].mxu0 %v13377
    %v13752 = vpop.f32.mrb[0].mxu0
    %v13753 = vadd.f32 0.0, %v13752
    %v13754 = vpop.f32.mrb[0].mxu0
    %13755 = vmatprep.mubr.f32.mxu0 0.0
    %13756 = vmatmul.mubr.f32.gmra.mrb[0].mxu0 %v13380
    %v13757 = vpop.f32.mrb[0].mxu0
    %v13758 = vadd.f32 0.0, %v13757
    %v13759 = vpop.f32.mrb[0].mxu0
    %13760 = vmatprep.mubr.f32.mxu0 0.0
    %13761 = vmatmul.mubr.f32.gmra.mrb[0].mxu0 %v13383
    %v13762 = vpop.f32.mrb[0].mxu0
    %v13763 = vadd.f32 0.0, %v13762
    %v13764 = vpop.f32.mrb[0].mxu0
    %13765 = vmatprep.mubr.f32.mxu0 0.0
    %13766 = vmatmul.mubr.f32.gmra.mrb[0].mxu0 %v13386
    %v13767 = vpop.f32.mrb[0].mxu0
    %v13768 = vadd.f32 0.0, %v13767
    %v13769 = vpop.f32.mrb[0].mxu0
    %13770 = vmatprep.mubr.f32.mxu0 0.0
    %13771 = vmatmul.mubr.f32.gmra.mrb[0].mxu0 %v13389
    %v13772 = vpop.f32.mrb[0].mxu0
    %v13773 = vadd.f32 0.0, %v13772
    %v13774 = vpop.f32.mrb[0].mxu0
    %13775 = vdwg.mxu0
    %13776 = vxpose.xlu0.b32.start [1/16] %v13458, 128
    %13777 = vxpose.xlu0.b32.cont [2/16] %v13463, 128
    %13778 = vxpose.xlu0.b32.cont [3/16] %v13468, 128
    %13779 = vxpose.xlu0.b32.cont [4/16] %v13473, 128
    %13780 = vxpose.xlu0.b32.cont [5/16] %v13478, 128
    %13781 = vxpose.xlu0.b32.cont [6/16] %v13483, 128
    %13782 = vxpose.xlu0.b32.cont [7/16] %v13488, 128
    %13783 = vxpose.xlu0.b32.cont [8/16] %v13493, 128
    %13784 = vxpose.xlu0.b32.cont [9/16] %v13498, 128
    %13785 = vxpose.xlu0.b32.cont [10/16] %v13503, 128
    %13786 = vxpose.xlu0.b32.cont [11/16] %v13508, 128
    %13787 = vxpose.xlu0.b32.cont [12/16] %v13513, 128
    %13788 = vxpose.xlu0.b32.cont [13/16] %v13518, 128
    %13789 = vxpose.xlu0.b32.cont [14/16] %v13523, 128
    %13790 = vxpose.xlu0.b32.cont [15/16] %v13528, 128
    %13791 = vxpose.xlu0.b32.end [16/16] %v13533, 128
    %v13792 = vpop.trf.xlu0
    %v13793 = vpop.trf.xlu0
    %v13794 = vpop.trf.xlu0
    %v13795 = vpop.trf.xlu0
    %v13796 = vpop.trf.xlu0
    %v13797 = vpop.trf.xlu0
    %v13798 = vpop.trf.xlu0
    %v13799 = vpop.trf.xlu0
    %v13800 = vpop.trf.xlu0
    %v13801 = vpop.trf.xlu0
    %v13802 = vpop.trf.xlu0
    %v13803 = vpop.trf.xlu0
    %v13804 = vpop.trf.xlu0
    %v13805 = vpop.trf.xlu0
    %v13806 = vpop.trf.xlu0
    %v13807 = vpop.trf.xlu0
    %13808 = vxpose.xlu0.b32.start [1/16] %v13538, 128
    %13809 = vxpose.xlu0.b32.cont [2/16] %v13543, 128
    %13810 = vxpose.xlu0.b32.cont [3/16] %v13548, 128
    %13811 = vxpose.xlu0.b32.cont [4/16] %v13553, 128
    %13812 = vxpose.xlu0.b32.cont [5/16] %v13558, 128
    %13813 = vxpose.xlu0.b32.cont [6/16] %v13563, 128
    %13814 = vxpose.xlu0.b32.cont [7/16] %v13568, 128
    %13815 = vxpose.xlu0.b32.cont [8/16] %v13573, 128
    %13816 = vxpose.xlu0.b32.cont [9/16] %v13578, 128
    %13817 = vxpose.xlu0.b32.cont [10/16] %v13583, 128
    %13818 = vxpose.xlu0.b32.cont [11/16] %v13588, 128
    %13819 = vxpose.xlu0.b32.cont [12/16] %v13593, 128
    %13820 = vxpose.xlu0.b32.cont [13/16] %v13598, 128
    %13821 = vxpose.xlu0.b32.cont [14/16] %v13603, 128
    %13822 = vxpose.xlu0.b32.cont [15/16] %v13608, 128
    %13823 = vxpose.xlu0.b32.end [16/16] %v13613, 128
    %v13824 = vpop.trf.xlu0
    %v13825 = vpop.trf.xlu0
    %v13826 = vpop.trf.xlu0
    %v13827 = vpop.trf.xlu0
    %v13828 = vpop.trf.xlu0
    %v13829 = vpop.trf.xlu0
    %v13830 = vpop.trf.xlu0
    %v13831 = vpop.trf.xlu0
    %v13832 = vpop.trf.xlu0
    %v13833 = vpop.trf.xlu0
    %v13834 = vpop.trf.xlu0
    %v13835 = vpop.trf.xlu0
    %v13836 = vpop.trf.xlu0
    %v13837 = vpop.trf.xlu0
    %v13838 = vpop.trf.xlu0
    %v13839 = vpop.trf.xlu0
    %13840 = vxpose.xlu0.b32.start [1/16] %v13618, 128
    %13841 = vxpose.xlu0.b32.cont [2/16] %v13623, 128
    %13842 = vxpose.xlu0.b32.cont [3/16] %v13628, 128
    %13843 = vxpose.xlu0.b32.cont [4/16] %v13633, 128
    %13844 = vxpose.xlu0.b32.cont [5/16] %v13638, 128
    %13845 = vxpose.xlu0.b32.cont [6/16] %v13643, 128
    %13846 = vxpose.xlu0.b32.cont [7/16] %v13648, 128
    %13847 = vxpose.xlu0.b32.cont [8/16] %v13653, 128
    %13848 = vxpose.xlu0.b32.cont [9/16] %v13658, 128
    %13849 = vxpose.xlu0.b32.cont [10/16] %v13663, 128
    %13850 = vxpose.xlu0.b32.cont [11/16] %v13668, 128
    %13851 = vxpose.xlu0.b32.cont [12/16] %v13673, 128
    %13852 = vxpose.xlu0.b32.cont [13/16] %v13678, 128
    %13853 = vxpose.xlu0.b32.cont [14/16] %v13683, 128
    %13854 = vxpose.xlu0.b32.cont [15/16] %v13688, 128
    %13855 = vxpose.xlu0.b32.end [16/16] %v13693, 128
    %v13856 = vpop.trf.xlu0
    %v13857 = vpop.trf.xlu0
    %v13858 = vpop.trf.xlu0
    %v13859 = vpop.trf.xlu0
    %v13860 = vpop.trf.xlu0
    %v13861 = vpop.trf.xlu0
    %v13862 = vpop.trf.xlu0
    %v13863 = vpop.trf.xlu0
    %v13864 = vpop.trf.xlu0
    %v13865 = vpop.trf.xlu0
    %v13866 = vpop.trf.xlu0
    %v13867 = vpop.trf.xlu0
    %v13868 = vpop.trf.xlu0
    %v13869 = vpop.trf.xlu0
    %v13870 = vpop.trf.xlu0
    %v13871 = vpop.trf.xlu0
    %13872 = vxpose.xlu0.b32.start [1/16] %v13698, 128
    %13873 = vxpose.xlu0.b32.cont [2/16] %v13703, 128
    %13874 = vxpose.xlu0.b32.cont [3/16] %v13708, 128
    %13875 = vxpose.xlu0.b32.cont [4/16] %v13713, 128
    %13876 = vxpose.xlu0.b32.cont [5/16] %v13718, 128
    %13877 = vxpose.xlu0.b32.cont [6/16] %v13723, 128
    %13878 = vxpose.xlu0.b32.cont [7/16] %v13728, 128
    %13879 = vxpose.xlu0.b32.cont [8/16] %v13733, 128
    %13880 = vxpose.xlu0.b32.cont [9/16] %v13738, 128
    %13881 = vxpose.xlu0.b32.cont [10/16] %v13743, 128
    %13882 = vxpose.xlu0.b32.cont [11/16] %v13748, 128
    %13883 = vxpose.xlu0.b32.cont [12/16] %v13753, 128
    %13884 = vxpose.xlu0.b32.cont [13/16] %v13758, 128
    %13885 = vxpose.xlu0.b32.cont [14/16] %v13763, 128
    %13886 = vxpose.xlu0.b32.cont [15/16] %v13768, 128
    %13887 = vxpose.xlu0.b32.end [16/16] %v13773, 128
    %v13888 = vpop.trf.xlu0
    %v13889 = vpop.trf.xlu0
    %v13890 = vpop.trf.xlu0
    %v13891 = vpop.trf.xlu0
    %v13892 = vpop.trf.xlu0
    %v13893 = vpop.trf.xlu0
    %v13894 = vpop.trf.xlu0
    %v13895 = vpop.trf.xlu0
    %v13896 = vpop.trf.xlu0
    %v13897 = vpop.trf.xlu0
    %v13898 = vpop.trf.xlu0
    %v13899 = vpop.trf.xlu0
    %v13900 = vpop.trf.xlu0
    %v13901 = vpop.trf.xlu0
    %v13902 = vpop.trf.xlu0
    %v13903 = vpop.trf.xlu0
    %v13904 = vmul.f32 %v12178, 0.98078525
    %v13905 = vmul.f32 %v12179, 0.98078525
    %v13906 = vmul.f32 %v12180, 0.98078525
    %v13907 = vmul.f32 %v12181, 0.98078525
    %v13908 = vmul.f32 %v13792, -0.19509032
    %v13909 = vmul.f32 %v13824, -0.19509032
    %v13910 = vmul.f32 %v13856, -0.19509032
    %v13911 = vmul.f32 %v13888, -0.19509032
    %v13912 = vadd.f32 %v13904, %v13908
    %v13913 = vadd.f32 %v13905, %v13909
    %v13914 = vadd.f32 %v13906, %v13910
    %v13915 = vadd.f32 %v13907, %v13911
    %13916 = vst [vmem:[#allocation2] sm:$0xff] %v13912
    %13917 = vst [vmem:[#allocation2 + $0x8] sm:$0xff] %v13913
    %13918 = vst [vmem:[#allocation2 + $0x10] sm:$0xff] %v13914
    %13919 = vst [vmem:[#allocation2 + $0x18] sm:$0xff] %v13915
    // Predicated region
    $region18: #{tpu_custom_call.1} parent=1 // pred_check
      _
    $region19: #{tpu_custom_call.1} parent=1 // pred_check_branch
      %13921 = sbr.rel (0) target = $region21
    $region20: #{tpu_custom_call.1} parent=1 // pred_region
      %s13923 = ssub.s32 512, 512
      %13924 = vsyncadd [#allocation3], %s13923
      %s13925 = sshll.u32 [#allocation2], 4
      %s13926 = int_to_ptr.vmem [resolvable:$true] %s13925
      %13931 = dma.vmem_to_hbm [thread:$0]  %s13926, 512, %s4, [#allocation3], 256, 256, 16
    $region21: #{tpu_custom_call.1} parent=1 // pred_fallthru
      _
    // Predicated region
    $region22: #{tpu_custom_call.1} parent=1 // pred_check
      _
    $region23: #{tpu_custom_call.1} parent=1 // pred_check_branch
      %13933 = sbr.rel (0) target = $region25
    $region24: #{tpu_custom_call.1} parent=1 // pred_region
      %13934 = dma.done [#allocation3], 512
    $region25: #{tpu_custom_call.1} parent=1 // pred_fallthru
      _
    %13935 = vsyncpa [#allocation3], 1

</llo_original>
